<compile_context>
chip_gen: v7x
topology: tpu7x:2x2x1
jax: 0.10.0
libtpu: 0.0.40
codegen_flags: <defaults>
</compile_context>

<pallas_src>
import functools

import jax
import jax.numpy as jnp
from jax.experimental import pallas as pl
from jax.experimental.pallas import tpu as pltpu

VMEM_LIMIT_BYTES = 32 * 1024 * 1024   # safe scoped-VMEM budget on v5e/v6e/v7x
STEM_C_PAD = 128                      # 64 stem channels zero-padded -> 128 lanes
HEAD_C = 2560                         # EfficientNet-b7 head channels


def _round_up(x, m):
    return ((x + m - 1) // m) * m


def _swish(v):
    # sigmoid(x) == 0.5 * (1 + tanh(x/2)): one EUP op instead of exp+add+div.
    return v * (0.5 * jnp.tanh(0.5 * v) + 0.5)


# ---------------------------------------------------------------------------
# Tiled matmul + bias + activation kernel (stem conv, final FC)
# ---------------------------------------------------------------------------
def _matmul_bias_act_kernel(x_ref, w_ref, b_ref, o_ref, *, act):
    acc = jnp.dot(x_ref[...], w_ref[...], preferred_element_type=jnp.float32)
    acc = acc + b_ref[...].astype(jnp.float32)
    if act == "relu":
        acc = jnp.maximum(acc, 0.0)
    elif act == "swish":
        acc = _swish(acc)
    o_ref[...] = acc.astype(o_ref.dtype)


def matmul_bias_act(x, w, b, act="none", out_dtype=None, tm=512, tn=512):
    """y = act(x @ w + b); x:(M,K), w:(K,N), b:(1,N) -> (M,N).

    Fixed large tiles; M/N are zero-padded up to a tile multiple in the
    wrapper and the result is sliced back, so ragged sizes never collapse
    the tile (keeps ~512-row DMAs and lane-dense 128-multiple stores).
    """
    M, K = x.shape
    K2, N = w.shape
    assert K == K2 and b.shape == (1, N)
    if out_dtype is None:
        out_dtype = x.dtype

    # >= 2 blocks on the parallel M axis when M allows it (v7x dual TC).
    if M >= 2 * tm:
        tm_eff = tm
    else:
        tm_eff = min(_round_up(M, 8), max(8, _round_up(pl.cdiv(M, 2), 8)))
    if N >= 2 * tn:
        tn_eff = tn
    else:
        tn_eff = min(_round_up(N, 128), max(128, _round_up(pl.cdiv(N, 2), 128)))

    Mp, Np = _round_up(M, tm_eff), _round_up(N, tn_eff)
    if Mp != M:
        x = jnp.pad(x, ((0, Mp - M), (0, 0)))
    if Np != N:
        w = jnp.pad(w, ((0, 0), (0, Np - N)))
        b = jnp.pad(b, ((0, 0), (0, Np - N)))

    grid = (Mp // tm_eff, Np // tn_eff)
    kernel = functools.partial(_matmul_bias_act_kernel, act=act)
    out = pl.pallas_call(
        kernel,
        out_shape=jax.ShapeDtypeStruct((Mp, Np), out_dtype),
        grid_spec=pltpu.PrefetchScalarGridSpec(
            num_scalar_prefetch=0,
            grid=grid,
            in_specs=[
                pl.BlockSpec((tm_eff, K), lambda i, j: (i, 0)),
                pl.BlockSpec((K, tn_eff), lambda i, j: (0, j)),
                pl.BlockSpec((1, tn_eff), lambda i, j: (0, j)),
            ],
            out_specs=pl.BlockSpec((tm_eff, tn_eff), lambda i, j: (i, j)),
        ),
        compiler_params=pltpu.CompilerParams(
            dimension_semantics=("parallel", "parallel"),   # M axis feeds both v7x TCs
            vmem_limit_bytes=VMEM_LIMIT_BYTES,
        ),
    )(x, w, b)
    if Mp != M or Np != N:
        out = out[:M, :N]
    return out


# ---------------------------------------------------------------------------
# Fused head 1x1 conv (swish) + global average pool
#   x:(B,HW,C) @ w:(C,N) -> swish -> mean over HW -> (B,N)
# Grid = (N/tn, HW/thw); HW is the inner "arbitrary" axis, a (B,tn) f32
# scratch accumulates per-batch sums so the (B*HW, 2560) activation never
# hits HBM.  tn=1280 -> exactly 2 N tiles (one per v7x TensorCore), so the
# feats tensor is streamed from HBM only twice (w stays resident per pass).
# ---------------------------------------------------------------------------
def _head_pool_kernel(x_ref, w_ref, b_ref, o_ref, acc_ref, *,
                      inv_hw, hw_valid, need_mask):
    k = pl.program_id(1)

    @pl.when(k == 0)
    def _init():
        acc_ref[...] = jnp.zeros_like(acc_ref)

    B, thw, C = x_ref.shape
    tn = w_ref.shape[1]
    x2d = x_ref[...].reshape(B * thw, C)
    s = jnp.dot(x2d, w_ref[...], preferred_element_type=jnp.float32)
    s = s + b_ref[...].astype(jnp.float32)
    s = _swish(s)                                              # swish (tanh form)
    s3 = s.reshape(B, thw, tn)
    if need_mask:                                              # ragged last HW tile
        local = jax.lax.broadcasted_iota(jnp.int32, (1, thw, 1), 1)
        s3 = jnp.where(k * thw + local < hw_valid, s3, 0.0)
    # TODO(synk): jnp.sum rides the VPU; an MXU dot-with-ones variant was
    #             considered but the weight-load cost of s dominates.
    acc_ref[...] += jnp.sum(s3, axis=1)

    @pl.when(k == pl.num_programs(1) - 1)
    def _finish():
        o_ref[...] = (acc_ref[...] * inv_hw).astype(o_ref.dtype)


def head_conv_avg_pool(x, w, b, tn=1280, thw=512, out_dtype=jnp.bfloat16):
    B, HW, C = x.shape
    C2, N = w.shape
    assert C == C2 and b.shape == (1, N) and N % tn == 0
    thw = min(thw, _round_up(HW, 8))          # fixed big tile; pad, don't shrink
    HWp = _round_up(HW, thw)
    need_mask = HWp != HW
    if need_mask:
        x = jnp.pad(x, ((0, 0), (0, HWp - HW), (0, 0)))
    grid = (N // tn, HWp // thw)
    kernel = functools.partial(_head_pool_kernel, inv_hw=1.0 / HW,
                               hw_valid=HW, need_mask=need_mask)
    return pl.pallas_call(
        kernel,
        out_shape=jax.ShapeDtypeStruct((B, N), out_dtype),
        grid_spec=pltpu.PrefetchScalarGridSpec(
            num_scalar_prefetch=0,
            grid=grid,
            in_specs=[
                pl.BlockSpec((B, thw, C), lambda j, k: (0, k, 0)),
                pl.BlockSpec((C, tn), lambda j, k: (0, j)),
                pl.BlockSpec((1, tn), lambda j, k: (0, j)),
            ],
            out_specs=pl.BlockSpec((B, tn), lambda j, k: (0, j)),
            scratch_shapes=[pltpu.VMEM((B, tn), jnp.float32)],
        ),
        compiler_params=pltpu.CompilerParams(
            dimension_semantics=("parallel", "arbitrary"),
            vmem_limit_bytes=VMEM_LIMIT_BYTES,
        ),
    )(x, w, b)


# ---------------------------------------------------------------------------
# Stem conv via im2col (patch extraction is JAX glue; the matmul is Pallas)
# Patches are emitted channels-last directly (no XLA transpose pass) and in
# bf16 so the 9x-expanded patch tensor moves half the HBM traffic.
# ---------------------------------------------------------------------------
def stem_conv(x_nchw, w_mat, b_row):
    B, C, H, W = x_nchw.shape
    patches = jax.lax.conv_general_dilated_patches(
        x_nchw.astype(jnp.bfloat16), filter_shape=(3, 3), window_strides=(2, 2),
        padding=[(1, 1), (1, 1)],
        dimension_numbers=("NCHW", "OIHW", "NHWC"))          # (B, Hp, Wp, C*9)
    _, Hp, Wp, F = patches.shape
    pm = patches.reshape(B * Hp * Wp, F)
    out = matmul_bias_act(pm, w_mat, b_row, act="swish",
                          out_dtype=jnp.bfloat16)            # (B*Hp*Wp, 128), lane-dense
    return out.reshape(B, Hp * Wp, STEM_C_PAD)


# ---------------------------------------------------------------------------
# Parameter init (deterministic, synthetic), weights stored pre-laid-out / bf16
# ---------------------------------------------------------------------------
def init_params(classes, key):
    ks = jax.random.split(key, 4)

    def dense(k, fan_in, shape, dtype=jnp.bfloat16):
        return (jax.random.normal(k, shape, jnp.float32)
                / jnp.sqrt(jnp.float32(fan_in))).astype(dtype)

    # EfficientNet-b7 stem: 3x3/s2 conv, 3 -> 64 channels, zero-padded to 128
    # output lanes; stored as a (27, 128) matmul weight.
    stem_w = jnp.zeros((27, STEM_C_PAD), jnp.bfloat16)
    stem_w = stem_w.at[:, :64].set(dense(ks[0], 27, (27, 64)))
    # Head 1x1 conv to 2560 channels (rows for the padded channels are zero).
    head_w = jnp.zeros((STEM_C_PAD, HEAD_C), jnp.bfloat16)
    head_w = head_w.at[:64, :].set(dense(ks[1], 64, (64, HEAD_C)))
    return {
        "stem_w": stem_w,
        "stem_b": jnp.zeros((1, STEM_C_PAD), jnp.float32),
        "head_w": head_w,
        "head_b": jnp.zeros((1, HEAD_C), jnp.float32),
        # self._fc = nn.Linear(2560, classes); padded to 128 lanes at call time.
        "fc_w": dense(ks[2], HEAD_C, (HEAD_C, classes)),
        "fc_b": dense(ks[3], HEAD_C, (1, classes), dtype=jnp.float32),
    }


# ---------------------------------------------------------------------------
# Forward pass (mirrors Efficietnet_b7.forward, eval mode: dropout = identity)
# ---------------------------------------------------------------------------
@jax.jit
def efficientnet_b7_forward(params, inputs_nchw):
    bs = inputs_nchw.shape[0]

    # ---- basemodel1.extract_features ----
    # TODO(synk): 55 MBConv blocks (depthwise conv + SE + batchnorm) omitted.
    feats = stem_conv(inputs_nchw, params["stem_w"], params["stem_b"])

    # head 1x1 conv to 2560 + swish, FUSED with self._avg_pooling(x); x.view(bs,-1)
    pooled = head_conv_avg_pool(feats, params["head_w"], params["head_b"])

    # ---- self._dropout (eval: identity) ; self._fc ----
    # Wrapper pads M->8 sublanes, N->128 lanes (lane-dense stores), slices back.
    out = matmul_bias_act(pooled, params["fc_w"], params["fc_b"],
                          act="none", out_dtype=jnp.float32)
    return out.reshape(bs, -1)


if __name__ == "__main__":
    classes = 10
    key = jax.random.PRNGKey(0)
    pkey, xkey = jax.random.split(key)

    params = init_params(classes, pkey)
    x = jax.random.normal(xkey, (2, 3, 32, 32), jnp.float32)   # NCHW like PyTorch

    out = efficientnet_b7_forward(params, x)
    out = jax.block_until_ready(out)
    assert out.shape == (2, classes), out.shape
    assert jnp.all(jnp.isfinite(out))
    print("KERNEL_OK")
</pallas_src>

<mosaic_0001>
module attributes {stable_mosaic.version = 11 : i64} {
  func.func @_matmul_bias_act_kernel(%arg0: i32, %arg1: i32, %arg2: memref<256x27xbf16, #tpu.memory_space<vmem>>, %arg3: memref<27x128xbf16, #tpu.memory_space<vmem>>, %arg4: memref<1x128xf32, #tpu.memory_space<vmem>>, %arg5: memref<256x128xbf16, #tpu.memory_space<vmem>>) attributes {dimension_semantics = [#tpu.dimension_semantics<parallel>, #tpu.dimension_semantics<parallel>], iteration_bounds = array<i64: 2, 1>, scalar_prefetch = 0 : i64, scratch_operands = 0 : i64, tpu.core_type = #tpu.core_type<tc>, window_params = [{transform_indices = @transform_0, window_bounds = array<i64: 256, 27>}, {transform_indices = @transform_1, window_bounds = array<i64: 27, 128>}, {transform_indices = @transform_2, window_bounds = array<i64: 1, 128>}, {transform_indices = @transform_3, window_bounds = array<i64: 256, 128>}]} {
    %c0 = arith.constant 0 : index
    %c0_0 = arith.constant 0 : index
    %0 = vector.load %arg2[%c0, %c0_0] : memref<256x27xbf16, #tpu.memory_space<vmem>>, vector<256x27xbf16>
    %c0_1 = arith.constant 0 : index
    %c0_2 = arith.constant 0 : index
    %1 = vector.load %arg3[%c0_1, %c0_2] : memref<27x128xbf16, #tpu.memory_space<vmem>>, vector<27x128xbf16>
    %cst = arith.constant dense<0.000000e+00> : vector<256x128xf32>
    %2 = tpu.matmul %0, %1, %cst {dimension_numbers = #tpu.dot_dimension_numbers<[1], [0], [0], [1], [0, 0, 1, 1], [], []>} : vector<256x27xbf16>, vector<27x128xbf16>, vector<256x128xf32> -> vector<256x128xf32>
    %c0_3 = arith.constant 0 : index
    %c0_4 = arith.constant 0 : index
    %3 = vector.load %arg4[%c0_3, %c0_4] : memref<1x128xf32, #tpu.memory_space<vmem>>, vector<1x128xf32>
    %4 = vector.broadcast %3 : vector<1x128xf32> to vector<256x128xf32>
    %5 = arith.addf %2, %4 : vector<256x128xf32>
    %cst_5 = arith.constant 5.000000e-01 : f32
    %6 = vector.broadcast %cst_5 : f32 to vector<256x128xf32>
    %7 = arith.mulf %6, %5 : vector<256x128xf32>
    %8 = math.tanh %7 : vector<256x128xf32>
    %cst_6 = arith.constant 5.000000e-01 : f32
    %9 = vector.broadcast %cst_6 : f32 to vector<256x128xf32>
    %10 = arith.mulf %9, %8 : vector<256x128xf32>
    %cst_7 = arith.constant 5.000000e-01 : f32
    %11 = vector.broadcast %cst_7 : f32 to vector<256x128xf32>
    %12 = arith.addf %10, %11 : vector<256x128xf32>
    %13 = arith.mulf %5, %12 : vector<256x128xf32>
    %14 = arith.truncf %13 : vector<256x128xf32> to vector<256x128xbf16>
    %c0_8 = arith.constant 0 : index
    %c0_9 = arith.constant 0 : index
    %15 = vector.load %arg5[%c0_8, %c0_9] : memref<256x128xbf16, #tpu.memory_space<vmem>>, vector<256x128xbf16>
    tpu.vector_store %arg5[%c0_8, %c0_9], %14 {strides = array<i32>} : memref<256x128xbf16, #tpu.memory_space<vmem>>, vector<256x128xbf16>,
    return
  }
  func.func @transform_0(%arg0: i32, %arg1: i32) -> (i32, i32) {
    %c0_i32 = arith.constant 0 : i32
    %c0_i32_0 = arith.constant 0 : i32
    return %arg0, %c0_i32 : i32, i32
  }
  func.func @transform_1(%arg0: i32, %arg1: i32) -> (i32, i32) {
    %c0_i32 = arith.constant 0 : i32
    %c0_i32_0 = arith.constant 0 : i32
    return %c0_i32, %arg1 : i32, i32
  }
  func.func @transform_2(%arg0: i32, %arg1: i32) -> (i32, i32) {
    %c0_i32 = arith.constant 0 : i32
    %c0_i32_0 = arith.constant 0 : i32
    return %c0_i32, %arg1 : i32, i32
  }
  func.func @transform_3(%arg0: i32, %arg1: i32) -> (i32, i32) {
    %c0_i32 = arith.constant 0 : i32
    return %arg0, %arg1 : i32, i32
  }
}

module attributes {stable_mosaic.version = 11 : i64} {
  func.func @_head_pool_kernel(%arg0: i32, %arg1: i32, %arg2: memref<2x256x128xbf16, #tpu.memory_space<vmem>>, %arg3: memref<128x1280xbf16, #tpu.memory_space<vmem>>, %arg4: memref<1x1280xf32, #tpu.memory_space<vmem>>, %arg5: memref<2x1280xbf16, #tpu.memory_space<vmem>>, %arg6: memref<2x1280xf32, #tpu.memory_space<vmem>>) attributes {dimension_semantics = [#tpu.dimension_semantics<parallel>, #tpu.dimension_semantics<arbitrary>], iteration_bounds = array<i64: 2, 1>, scalar_prefetch = 0 : i64, scratch_operands = 1 : i64, tpu.core_type = #tpu.core_type<tc>, window_params = [{transform_indices = @transform_0, window_bounds = array<i64: 2, 256, 128>}, {transform_indices = @transform_1, window_bounds = array<i64: 128, 1280>}, {transform_indices = @transform_2, window_bounds = array<i64: 1, 1280>}, {transform_indices = @transform_3, window_bounds = array<i64: 2, 1280>}]} {
    %c0_i32 = arith.constant 0 : i32
    %0 = arith.cmpi eq, %arg1, %c0_i32 : i32
    %1 = arith.extui %0 : i1 to i32
    %c0_i32_0 = arith.constant 0 : i32
    %2 = arith.cmpi ne, %1, %c0_i32_0 : i32
    scf.if %2 {
      %cst_17 = arith.constant 0.000000e+00 : f32
      %26 = vector.broadcast %cst_17 : f32 to vector<2x1280xf32>
      %c0_18 = arith.constant 0 : index
      %c0_19 = arith.constant 0 : index
      %27 = vector.load %arg6[%c0_18, %c0_19] : memref<2x1280xf32, #tpu.memory_space<vmem>>, vector<2x1280xf32>
      tpu.vector_store %arg6[%c0_18, %c0_19], %26 {strides = array<i32>} : memref<2x1280xf32, #tpu.memory_space<vmem>>, vector<2x1280xf32>,
    } else {
    }
    %c0 = arith.constant 0 : index
    %c0_1 = arith.constant 0 : index
    %c0_2 = arith.constant 0 : index
    %3 = vector.load %arg2[%c0, %c0_1, %c0_2] : memref<2x256x128xbf16, #tpu.memory_space<vmem>>, vector<2x256x128xbf16>
    %4 = vector.shape_cast %3 : vector<2x256x128xbf16> to vector<512x128xbf16>
    %c0_3 = arith.constant 0 : index
    %c0_4 = arith.constant 0 : index
    %5 = vector.load %arg3[%c0_3, %c0_4] : memref<128x1280xbf16, #tpu.memory_space<vmem>>, vector<128x1280xbf16>
    %cst = arith.constant dense<0.000000e+00> : vector<512x1280xf32>
    %6 = tpu.matmul %4, %5, %cst {dimension_numbers = #tpu.dot_dimension_numbers<[1], [0], [0], [1], [0, 0, 1, 1], [], []>} : vector<512x128xbf16>, vector<128x1280xbf16>, vector<512x1280xf32> -> vector<512x1280xf32>
    %c0_5 = arith.constant 0 : index
    %c0_6 = arith.constant 0 : index
    %7 = vector.load %arg4[%c0_5, %c0_6] : memref<1x1280xf32, #tpu.memory_space<vmem>>, vector<1x1280xf32>
    %8 = vector.broadcast %7 : vector<1x1280xf32> to vector<512x1280xf32>
    %9 = arith.addf %6, %8 : vector<512x1280xf32>
    %cst_7 = arith.constant 5.000000e-01 : f32
    %10 = vector.broadcast %cst_7 : f32 to vector<512x1280xf32>
    %11 = arith.mulf %10, %9 : vector<512x1280xf32>
    %12 = math.tanh %11 : vector<512x1280xf32>
    %cst_8 = arith.constant 5.000000e-01 : f32
    %13 = vector.broadcast %cst_8 : f32 to vector<512x1280xf32>
    %14 = arith.mulf %13, %12 : vector<512x1280xf32>
    %cst_9 = arith.constant 5.000000e-01 : f32
    %15 = vector.broadcast %cst_9 : f32 to vector<512x1280xf32>
    %16 = arith.addf %14, %15 : vector<512x1280xf32>
    %17 = arith.mulf %9, %16 : vector<512x1280xf32>
    %18 = vector.shape_cast %17 : vector<512x1280xf32> to vector<2x256x1280xf32>
    %c0_10 = arith.constant 0 : index
    %c0_11 = arith.constant 0 : index
    %19 = vector.load %arg6[%c0_10, %c0_11] : memref<2x1280xf32, #tpu.memory_space<vmem>>, vector<2x1280xf32>
    %cst_12 = arith.constant dense<0.000000e+00> : vector<2x1280xf32>
    %20 = vector.multi_reduction <add>, %18, %cst_12 [1] : vector<2x256x1280xf32> to vector<2x1280xf32>
    %21 = arith.addf %19, %20 : vector<2x1280xf32>
    %c0_13 = arith.constant 0 : index
    %c0_14 = arith.constant 0 : index
    %22 = vector.load %arg6[%c0_13, %c0_14] : memref<2x1280xf32, #tpu.memory_space<vmem>>, vector<2x1280xf32>
    tpu.vector_store %arg6[%c0_13, %c0_14], %21 {strides = array<i32>} : memref<2x1280xf32, #tpu.memory_space<vmem>>, vector<2x1280xf32>,
    %c0_i32_15 = arith.constant 0 : i32
    %23 = arith.cmpi eq, %arg1, %c0_i32_15 : i32
    %24 = arith.extui %23 : i1 to i32
    %c0_i32_16 = arith.constant 0 : i32
    %25 = arith.cmpi ne, %24, %c0_i32_16 : i32
    scf.if %25 {
      %c0_17 = arith.constant 0 : index
      %c0_18 = arith.constant 0 : index
      %26 = vector.load %arg6[%c0_17, %c0_18] : memref<2x1280xf32, #tpu.memory_space<vmem>>, vector<2x1280xf32>
      %cst_19 = arith.constant 3.906250e-03 : f32
      %27 = vector.broadcast %cst_19 : f32 to vector<2x1280xf32>
      %28 = arith.mulf %26, %27 : vector<2x1280xf32>
      %29 = arith.truncf %28 : vector<2x1280xf32> to vector<2x1280xbf16>
      %c0_20 = arith.constant 0 : index
      %c0_21 = arith.constant 0 : index
      %30 = vector.load %arg5[%c0_20, %c0_21] : memref<2x1280xbf16, #tpu.memory_space<vmem>>, vector<2x1280xbf16>
      tpu.vector_store %arg5[%c0_20, %c0_21], %29 {strides = array<i32>} : memref<2x1280xbf16, #tpu.memory_space<vmem>>, vector<2x1280xbf16>,
    } else {
    }
    return
  }
  func.func @transform_0(%arg0: i32, %arg1: i32) -> (i32, i32, i32) {
    %c0_i32 = arith.constant 0 : i32
    %c0_i32_0 = arith.constant 0 : i32
    %c0_i32_1 = arith.constant 0 : i32
    return %c0_i32, %arg1, %c0_i32_0 : i32, i32, i32
  }
  func.func @transform_1(%arg0: i32, %arg1: i32) -> (i32, i32) {
    %c0_i32 = arith.constant 0 : i32
    %c0_i32_0 = arith.constant 0 : i32
    return %c0_i32, %arg0 : i32, i32
  }
  func.func @transform_2(%arg0: i32, %arg1: i32) -> (i32, i32) {
    %c0_i32 = arith.constant 0 : i32
    %c0_i32_0 = arith.constant 0 : i32
    return %c0_i32, %arg0 : i32, i32
  }
  func.func @transform_3(%arg0: i32, %arg1: i32) -> (i32, i32) {
    %c0_i32 = arith.constant 0 : i32
    %c0_i32_0 = arith.constant 0 : i32
    return %c0_i32, %arg0 : i32, i32
  }
}

module attributes {stable_mosaic.version = 11 : i64} {
  func.func @_matmul_bias_act_kernel(%arg0: i32, %arg1: i32, %arg2: memref<8x2560xbf16, #tpu.memory_space<vmem>>, %arg3: memref<2560x128xbf16, #tpu.memory_space<vmem>>, %arg4: memref<1x128xf32, #tpu.memory_space<vmem>>, %arg5: memref<8x128xf32, #tpu.memory_space<vmem>>) attributes {dimension_semantics = [#tpu.dimension_semantics<parallel>, #tpu.dimension_semantics<parallel>], iteration_bounds = array<i64: 1, 1>, scalar_prefetch = 0 : i64, scratch_operands = 0 : i64, tpu.core_type = #tpu.core_type<tc>, window_params = [{transform_indices = @transform_0, window_bounds = array<i64: 8, 2560>}, {transform_indices = @transform_1, window_bounds = array<i64: 2560, 128>}, {transform_indices = @transform_2, window_bounds = array<i64: 1, 128>}, {transform_indices = @transform_3, window_bounds = array<i64: 8, 128>}]} {
    %c0 = arith.constant 0 : index
    %c0_0 = arith.constant 0 : index
    %0 = vector.load %arg2[%c0, %c0_0] : memref<8x2560xbf16, #tpu.memory_space<vmem>>, vector<8x2560xbf16>
    %c0_1 = arith.constant 0 : index
    %c0_2 = arith.constant 0 : index
    %1 = vector.load %arg3[%c0_1, %c0_2] : memref<2560x128xbf16, #tpu.memory_space<vmem>>, vector<2560x128xbf16>
    %cst = arith.constant dense<0.000000e+00> : vector<8x128xf32>
    %2 = tpu.matmul %0, %1, %cst {dimension_numbers = #tpu.dot_dimension_numbers<[1], [0], [0], [1], [0, 0, 1, 1], [], []>} : vector<8x2560xbf16>, vector<2560x128xbf16>, vector<8x128xf32> -> vector<8x128xf32>
    %c0_3 = arith.constant 0 : index
    %c0_4 = arith.constant 0 : index
    %3 = vector.load %arg4[%c0_3, %c0_4] : memref<1x128xf32, #tpu.memory_space<vmem>>, vector<1x128xf32>
    %4 = vector.broadcast %3 : vector<1x128xf32> to vector<8x128xf32>
    %5 = arith.addf %2, %4 : vector<8x128xf32>
    %c0_5 = arith.constant 0 : index
    %c0_6 = arith.constant 0 : index
    %6 = vector.load %arg5[%c0_5, %c0_6] : memref<8x128xf32, #tpu.memory_space<vmem>>, vector<8x128xf32>
    tpu.vector_store %arg5[%c0_5, %c0_6], %5 {strides = array<i32>} : memref<8x128xf32, #tpu.memory_space<vmem>>, vector<8x128xf32>,
    return
  }
  func.func @transform_0(%arg0: i32, %arg1: i32) -> (i32, i32) {
    %c0_i32 = arith.constant 0 : i32
    %c0_i32_0 = arith.constant 0 : i32
    return %arg0, %c0_i32 : i32, i32
  }
  func.func @transform_1(%arg0: i32, %arg1: i32) -> (i32, i32) {
    %c0_i32 = arith.constant 0 : i32
    %c0_i32_0 = arith.constant 0 : i32
    return %c0_i32, %arg1 : i32, i32
  }
  func.func @transform_2(%arg0: i32, %arg1: i32) -> (i32, i32) {
    %c0_i32 = arith.constant 0 : i32
    %c0_i32_0 = arith.constant 0 : i32
    return %c0_i32, %arg1 : i32, i32
  }
  func.func @transform_3(%arg0: i32, %arg1: i32) -> (i32, i32) {
    %c0_i32 = arith.constant 0 : i32
    return %arg0, %arg1 : i32, i32
  }
}

</mosaic_0001>

<llo_original>
// kernel: efficientnet_b7_forward.3
$region0: #{efficientnet_b7_forward.3}
  #allocation0 [shape = 'u32[]', space=smem, size = 0x4, offset = 0x4, fixed_abs, tag = 'smem constant byte address 0x4 - core index']
  #allocation1 [shape = 'u32[144,128]{1,0:T(1,128)}', space=vmem, size = 0x12000, scoped, tag = 'internal scratch']
  %s0 = inlined_call_operand.vmem [shape: bf16[512,27], index: 0, kind: input, shape index: {}]
  %s1 = inlined_call_operand.vmem [shape: bf16[27,128], index: 1, kind: input, shape index: {}]
  %s2 = inlined_call_operand.vmem [shape: f32[1,128], index: 2, kind: input, shape index: {}]
  %s3 = inlined_call_operand.vmem [shape: bf16[512,128], index: 3, kind: output, shape index: {}]
  %s4 = sld [smem:[#allocation0]]
  $region45: #{efficientnet_b7_forward.3} parent=0
    _
  %s6 = ssub.s32 1, %s4
  %s7 = scalar_select 0, %s6, %s4
  loop: start=0, step=1, limit=4
  $region2: #{efficientnet_b7_forward.3} parent=0 // loop_pre_header
    _
  $region3: #{efficientnet_b7_forward.3} parent=0 // loop_header
    %s9 = sphi 0, %s13
    %p10 = scmp.ge.s32.totalorder %s9, 4
    %s16 = sphi 0, %s28
    %s17 = sphi 0, %s24
    %s18 = sphi 0, %s16
    %s19 = sphi 0, %s17
    %s20 = sphi 0, %s18
    %s21 = sphi 0, %s19
    %s31 = sphi 0, %s33
    %s34 = sphi 0, %s31
    %s35 = sphi 0, %s34
    %s51 = sphi 0, %s35
    %s57 = sphi 0, %s59
    %s60 = sphi 0, %s57
    %s61 = sphi 0, %s60
    %s77 = sphi 0, %s61
    %s83 = sphi 0, %s85
    %s86 = sphi 0, %s83
    %s87 = sphi 0, %s86
    %s103 = sphi 0, %s87
    %s111 = sphi 0, %s113
    %s114 = sphi 0, %s111
    %s115 = sphi 0, %s114
    %s131 = sphi 0, %s115
  $region4: #{efficientnet_b7_forward.3} parent=0 // loop_header_branch
    %12 = sbr.rel (%p10) target = $region8
  $region5: #{efficientnet_b7_forward.3} parent=0 // loop_body
    %s14 = ssub.s32 %s9, 1
    %s15 = ssub.s32 %s9, 2
    %s22 = sadd.s32 1, %s17
    %p23 = scmp.ge.s32.totalorder %s22, 1
    %s24 = scalar_select %p23, 0, %s22
    %s25 = sadd.s32 1, %s16
    %s26 = scalar_select %p23, %s25, %s16
    %p27 = scmp.ge.s32.totalorder %s26, 2
    %s28 = scalar_select %p27, 0, %s26
    %s29 = ssub.s32 %s16, %s28
    %p30 = scmp.eq.s32.totalorder %s29, 0
    %s32 = sadd.s32 %s31, 1
    %s33 = scalar_select %p30, %s31, %s32
    %p36 = pneg %p30
    %p37 = scmp.eq.s32.totalorder %s9, 1
    %p38 = por %p36, %p37
    %p39 = scmp.ne.s32.totalorder %s31, %s34
    %p40 = scmp.eq.s32.totalorder %s9, 0
    %p41 = por %p39, %p40
    %p42 = scmp.ne.s32.totalorder %s31, %s34
    %p43 = scmp.eq.s32.totalorder %s14, 1
    %p44 = por %p42, %p43
    %p45 = scmp.ne.s32.totalorder %s34, %s35
    %p46 = scmp.eq.s32.totalorder %s14, 0
    %p47 = por %p45, %p46
    %p48 = scmp.ne.s32.totalorder %s34, %s35
    %p49 = scmp.eq.s32.totalorder %s15, 1
    %p50 = por %p48, %p49
    %p52 = scmp.ne.s32.totalorder %s35, %s51
    %p53 = scmp.eq.s32.totalorder %s15, 0
    %p54 = por %p52, %p53
    %s55 = ssub.s32 %s17, %s24
    %p56 = scmp.eq.s32.totalorder %s55, 0
    %s58 = sadd.s32 %s57, 1
    %s59 = scalar_select %p56, %s57, %s58
    %p62 = pneg %p56
    %p63 = scmp.eq.s32.totalorder %s9, 1
    %p64 = por %p62, %p63
    %p65 = scmp.ne.s32.totalorder %s57, %s60
    %p66 = scmp.eq.s32.totalorder %s9, 0
    %p67 = por %p65, %p66
    %p68 = scmp.ne.s32.totalorder %s57, %s60
    %p69 = scmp.eq.s32.totalorder %s14, 1
    %p70 = por %p68, %p69
    %p71 = scmp.ne.s32.totalorder %s60, %s61
    %p72 = scmp.eq.s32.totalorder %s14, 0
    %p73 = por %p71, %p72
    %p74 = scmp.ne.s32.totalorder %s60, %s61
    %p75 = scmp.eq.s32.totalorder %s15, 1
    %p76 = por %p74, %p75
    %p78 = scmp.ne.s32.totalorder %s61, %s77
    %p79 = scmp.eq.s32.totalorder %s15, 0
    %p80 = por %p78, %p79
    %s81 = ssub.s32 %s17, %s24
    %p82 = scmp.eq.s32.totalorder %s81, 0
    %s84 = sadd.s32 %s83, 1
    %s85 = scalar_select %p82, %s83, %s84
    %p88 = pneg %p82
    %p89 = scmp.eq.s32.totalorder %s9, 1
    %p90 = por %p88, %p89
    %p91 = scmp.ne.s32.totalorder %s83, %s86
    %p92 = scmp.eq.s32.totalorder %s9, 0
    %p93 = por %p91, %p92
    %p94 = scmp.ne.s32.totalorder %s83, %s86
    %p95 = scmp.eq.s32.totalorder %s14, 1
    %p96 = por %p94, %p95
    %p97 = scmp.ne.s32.totalorder %s86, %s87
    %p98 = scmp.eq.s32.totalorder %s14, 0
    %p99 = por %p97, %p98
    %p100 = scmp.ne.s32.totalorder %s86, %s87
    %p101 = scmp.eq.s32.totalorder %s15, 1
    %p102 = por %p100, %p101
    %p104 = scmp.ne.s32.totalorder %s87, %s103
    %p105 = scmp.eq.s32.totalorder %s15, 0
    %p106 = por %p104, %p105
    %s107 = ssub.s32 %s16, %s28
    %s108 = ssub.s32 %s17, %s24
    %s109 = sor.u32 %s107, %s108
    %p110 = scmp.eq.s32.totalorder %s109, 0
    %s112 = sadd.s32 %s111, 1
    %s113 = scalar_select %p110, %s111, %s112
    %p116 = pneg %p110
    %p117 = scmp.eq.s32.totalorder %s9, 1
    %p118 = por %p116, %p117
    %p119 = scmp.ne.s32.totalorder %s111, %s114
    %p120 = scmp.eq.s32.totalorder %s9, 0
    %p121 = por %p119, %p120
    %p122 = scmp.ne.s32.totalorder %s111, %s114
    %p123 = scmp.eq.s32.totalorder %s14, 1
    %p124 = por %p122, %p123
    %p125 = scmp.ne.s32.totalorder %s114, %s115
    %p126 = scmp.eq.s32.totalorder %s14, 0
    %p127 = por %p125, %p126
    %p128 = scmp.ne.s32.totalorder %s114, %s115
    %p129 = scmp.eq.s32.totalorder %s15, 1
    %p130 = por %p128, %p129
    %p132 = scmp.ne.s32.totalorder %s115, %s131
    %p133 = scmp.eq.s32.totalorder %s15, 0
    %p134 = por %p132, %p133
    %p135 = scmp.le.s32.totalorder 1, %s9
    %p136 = scmp.lt.s32.totalorder %s9, 3
    %p137 = pnand %p135, %p136
    %p138 = pneg %p137
    // Predicated region
    $region9: #{efficientnet_b7_forward.3} parent=5 // pred_check
      _
    $region10: #{efficientnet_b7_forward.3} parent=5 // pred_check_branch
      %140 = sbr.rel (%p137) target = $region12
    $region11: #{efficientnet_b7_forward.3} parent=5 // pred_region
      %s141 = ssub.s32 %s9, 1
      // Predicated region
      $region13: #{efficientnet_b7_forward.3} parent=11 // pred_check
        %p142 = pneg %p73
      $region14: #{efficientnet_b7_forward.3} parent=11 // pred_check_branch
        %144 = sbr.rel (%p142) target = $region16
      $region15: #{efficientnet_b7_forward.3} parent=11 // pred_region
        %p145 = scmp.lt.s32.totalorder %s19, 0
        %s146 = scalar_select %p145, %s19, 0
        %s147 = smul.addr %s146, 4
        %s148 = scalar_lea.vmem %s1, %s147
      $region16: #{efficientnet_b7_forward.3} parent=11 // pred_fallthru
        _
      // Predicated region
      $region17: #{efficientnet_b7_forward.3} parent=11 // pred_check
        %p149 = pneg %p99
      $region18: #{efficientnet_b7_forward.3} parent=11 // pred_check_branch
        %151 = sbr.rel (%p149) target = $region20
      $region19: #{efficientnet_b7_forward.3} parent=11 // pred_region
        %p152 = scmp.lt.s32.totalorder %s19, 0
        %s153 = scalar_select %p152, %s19, 0
        %s154 = scalar_lea.vmem %s2, %s153
      $region20: #{efficientnet_b7_forward.3} parent=11 // pred_fallthru
        _
    $region12: #{efficientnet_b7_forward.3} parent=5 // pred_fallthru
      _
    %p155 = scmp.lt.s32.totalorder %s9, 2
    // Predicated region
    $region21: #{efficientnet_b7_forward.3} parent=5 // pred_check
      %p156 = pneg %p155
    $region22: #{efficientnet_b7_forward.3} parent=5 // pred_check_branch
      %158 = sbr.rel (%p156) target = $region24
    $region23: #{efficientnet_b7_forward.3} parent=5 // pred_region
      // Predicated region
      $region25: #{efficientnet_b7_forward.3} parent=23 // pred_check
        %p159 = pneg %p41
      $region26: #{efficientnet_b7_forward.3} parent=23 // pred_check_branch
        %161 = sbr.rel (%p159) target = $region28
      $region27: #{efficientnet_b7_forward.3} parent=23 // pred_region
        %s162 = smul.u32 32, %s16
        %p163 = scmp.lt.s32.totalorder %s162, 63
        %s164 = scalar_select %p163, %s162, 63
        %s165 = smul.addr %s164, 4
        %s166 = scalar_lea.vmem %s0, %s165
        %s167 = smul.u32 32, %s16
      $region28: #{efficientnet_b7_forward.3} parent=23 // pred_fallthru
        _
    $region24: #{efficientnet_b7_forward.3} parent=5 // pred_fallthru
      _
    %p168 = scmp.le.s32.totalorder 1, %s9
    %p169 = scmp.lt.s32.totalorder %s9, 3
    %p170 = pnand %p168, %p169
    %p171 = pneg %p170
    // Predicated region
    $region29: #{efficientnet_b7_forward.3} parent=5 // pred_check
      _
    $region30: #{efficientnet_b7_forward.3} parent=5 // pred_check_branch
      %173 = sbr.rel (%p170) target = $region32
    $region31: #{efficientnet_b7_forward.3} parent=5 // pred_region
      %s174 = ssub.s32 %s9, 1
      %s175 = smul.u32 32, %s18
      %p176 = scmp.lt.s32.totalorder %s175, 63
      %s177 = scalar_select %p176, %s175, 63
      %s178 = smul.addr %s177, 4
      %s179 = scalar_lea.vmem %s0, %s178
      %p180 = pneg %p47
      %p181 = pneg %p44
      %p182 = scmp.lt.s32.totalorder %s19, 0
      %s183 = scalar_select %p182, %s19, 0
      %s184 = smul.addr %s183, 4
      %s185 = scalar_lea.vmem %s1, %s184
      %p186 = pneg %p73
      %p187 = pneg %p70
      %p188 = scmp.lt.s32.totalorder %s19, 0
      %s189 = scalar_select %p188, %s19, 0
      %s190 = scalar_lea.vmem %s2, %s189
      %p191 = pneg %p99
      %p192 = pneg %p96
      %p193 = pneg %p127
      %p194 = pneg %p124
      %s195 = smul.u32 32, %s18
      %p196 = scmp.lt.s32.totalorder %s195, 63
      %s197 = scalar_select %p196, %s195, 63
      %p198 = scmp.lt.s32.totalorder %s19, 0
      %s199 = scalar_select %p198, %s19, 0
      %s200 = sadd.s32 %s199, %s197
      %s201 = smul.addr %s200, 4
      %s202 = scalar_lea.vmem %s3, %s201
      %s203 = smul.u32 32, %s18
      %p204 = scmp.lt.s32.totalorder %s203, 63
      %s205 = scalar_select %p204, %s203, 63
      %s206 = smul.addr %s205, 4
      %s207 = scalar_lea.vmem %s0, %s206
      %s208 = smul.u32 32, %s18
      %p209 = scmp.lt.s32.totalorder %s19, 0
      %s210 = scalar_select %p209, %s19, 0
      %s211 = smul.addr %s210, 4
      %s212 = scalar_lea.vmem %s1, %s211
      %p213 = scmp.lt.s32.totalorder %s19, 0
      %s214 = scalar_select %p213, %s19, 0
      %s215 = scalar_lea.vmem %s2, %s214
      %s216 = smul.u32 32, %s18
      %p217 = scmp.lt.s32.totalorder %s216, 63
      %s218 = scalar_select %p217, %s216, 63
      %p219 = scmp.lt.s32.totalorder %s19, 0
      %s220 = scalar_select %p219, %s19, 0
      %s221 = sadd.s32 %s220, %s218
      %s222 = smul.addr %s221, 4
      %s223 = scalar_lea.vmem %s3, %s222
      %s224 = smul.u32 32, %s18
      %v226 = vld [vmem:[%s207] sm:$0xf]
      %v227 = vld [vmem:[%s207 + $0x4] sm:$0xf]
      %v228 = vld [vmem:[%s207 + $0x8] sm:$0xf]
      %v229 = vld [vmem:[%s207 + $0xc] sm:$0xf]
      %v230 = vld [vmem:[%s207 + $0x10] sm:$0xf]
      %v231 = vld [vmem:[%s207 + $0x14] sm:$0xf]
      %v232 = vld [vmem:[%s207 + $0x18] sm:$0xf]
      %v233 = vld [vmem:[%s207 + $0x1c] sm:$0xf]
      %v234 = vld [vmem:[%s207 + $0x20] sm:$0xf]
      %v235 = vld [vmem:[%s207 + $0x24] sm:$0xf]
      %v236 = vld [vmem:[%s207 + $0x28] sm:$0xf]
      %v237 = vld [vmem:[%s207 + $0x2c] sm:$0xf]
      %v238 = vld [vmem:[%s207 + $0x30] sm:$0xf]
      %v239 = vld [vmem:[%s207 + $0x34] sm:$0xf]
      %v240 = vld [vmem:[%s207 + $0x38] sm:$0xf]
      %v241 = vld [vmem:[%s207 + $0x3c] sm:$0xf]
      %v242 = vld [vmem:[%s207 + $0x40] sm:$0xf]
      %v243 = vld [vmem:[%s207 + $0x44] sm:$0xf]
      %v244 = vld [vmem:[%s207 + $0x48] sm:$0xf]
      %v245 = vld [vmem:[%s207 + $0x4c] sm:$0xf]
      %v246 = vld [vmem:[%s207 + $0x50] sm:$0xf]
      %v247 = vld [vmem:[%s207 + $0x54] sm:$0xf]
      %v248 = vld [vmem:[%s207 + $0x58] sm:$0xf]
      %v249 = vld [vmem:[%s207 + $0x5c] sm:$0xf]
      %v250 = vld [vmem:[%s207 + $0x60] sm:$0xf]
      %v251 = vld [vmem:[%s207 + $0x64] sm:$0xf]
      %v252 = vld [vmem:[%s207 + $0x68] sm:$0xf]
      %v253 = vld [vmem:[%s207 + $0x6c] sm:$0xf]
      %v254 = vld [vmem:[%s207 + $0x70] sm:$0xf]
      %v255 = vld [vmem:[%s207 + $0x74] sm:$0xf]
      %v256 = vld [vmem:[%s207 + $0x78] sm:$0xf]
      %v257 = vld [vmem:[%s207 + $0x7c] sm:$0xf]
      %v258 = vld [vmem:[%s212] sm:$0xf]
      %v259 = vld [vmem:[%s212 + $0x4] sm:$0xf]
      %v260 = vld [vmem:[%s212 + $0x8] sm:$0xf]
      %v261 = vld [vmem:[%s212 + $0xc] sm:$0x3]
      %v262 = vld [vmem:[%s215] sm:$0x1]
      %v264 = vlaneseq
      %v265 = vshrl.u32 %v264, 7
      %v266 = vsub.s32 0, %v265
      %v267 = vrot.slane %v262, %v266
      %v301 = vunpack.c.l.b16 %v226
      %v302 = vunpack.c.l.b16 %v227
      %v303 = vunpack.c.l.b16 %v228
      %v304 = vunpack.c.l.b16 %v229
      %v305 = vunpack.c.l.b16 %v230
      %v306 = vunpack.c.l.b16 %v231
      %v307 = vunpack.c.l.b16 %v232
      %v308 = vunpack.c.l.b16 %v233
      %v309 = vunpack.c.l.b16 %v234
      %v310 = vunpack.c.l.b16 %v235
      %v311 = vunpack.c.l.b16 %v236
      %v312 = vunpack.c.l.b16 %v237
      %v313 = vunpack.c.l.b16 %v238
      %v314 = vunpack.c.l.b16 %v239
      %v315 = vunpack.c.l.b16 %v240
      %v316 = vunpack.c.l.b16 %v241
      %v317 = vunpack.c.l.b16 %v242
      %v318 = vunpack.c.l.b16 %v243
      %v319 = vunpack.c.l.b16 %v244
      %v320 = vunpack.c.l.b16 %v245
      %v321 = vunpack.c.l.b16 %v246
      %v322 = vunpack.c.l.b16 %v247
      %v323 = vunpack.c.l.b16 %v248
      %v324 = vunpack.c.l.b16 %v249
      %v325 = vunpack.c.l.b16 %v250
      %v326 = vunpack.c.l.b16 %v251
      %v327 = vunpack.c.l.b16 %v252
      %v328 = vunpack.c.l.b16 %v253
      %v329 = vunpack.c.l.b16 %v254
      %v330 = vunpack.c.l.b16 %v255
      %v331 = vunpack.c.l.b16 %v256
      %v332 = vunpack.c.l.b16 %v257
      %v333 = vpack.c.b16 %v302, %v301
      %v334 = vpack.c.b16 %v304, %v303
      %v335 = vpack.c.b16 %v306, %v305
      %v336 = vpack.c.b16 %v308, %v307
      %v337 = vpack.c.b16 %v310, %v309
      %v338 = vpack.c.b16 %v312, %v311
      %v339 = vpack.c.b16 %v314, %v313
      %v340 = vpack.c.b16 %v316, %v315
      %v341 = vpack.c.b16 %v318, %v317
      %v342 = vpack.c.b16 %v320, %v319
      %v343 = vpack.c.b16 %v322, %v321
      %v344 = vpack.c.b16 %v324, %v323
      %v345 = vpack.c.b16 %v326, %v325
      %v346 = vpack.c.b16 %v328, %v327
      %v347 = vpack.c.b16 %v330, %v329
      %v348 = vpack.c.b16 %v332, %v331
      %v353 = vunpack.c.l.b16 %v258
      %v354 = vunpack.c.l.b16 %v259
      %v355 = vunpack.c.l.b16 %v260
      %v356 = vunpack.c.l.b16 %v261
      %v357 = vpack.c.b16 %v354, %v353
      %v358 = vpack.c.b16 %v356, %v355
      %vm360 = vcmask 220160
      %v362 = vsel %vm360, %v333, 0
      %v365 = vsel %vm360, %v334, 0
      %v368 = vsel %vm360, %v335, 0
      %v371 = vsel %vm360, %v336, 0
      %v374 = vsel %vm360, %v337, 0
      %v377 = vsel %vm360, %v338, 0
      %v380 = vsel %vm360, %v339, 0
      %v383 = vsel %vm360, %v340, 0
      %v386 = vsel %vm360, %v341, 0
      %v389 = vsel %vm360, %v342, 0
      %v392 = vsel %vm360, %v343, 0
      %v395 = vsel %vm360, %v344, 0
      %v398 = vsel %vm360, %v345, 0
      %v401 = vsel %vm360, %v346, 0
      %v404 = vsel %vm360, %v347, 0
      %v407 = vsel %vm360, %v348, 0
      %vm409 = vcmask 1044480
      %vm410 = vcmask 1045504
      %v411 = vsel %vm409, 4294967295, 65535
      %v412 = vsel %vm410, %v411, 0
      %v414 = vand.u32 %v358, %v412
      %416 = vmatprep.subr.bf16.mxu0 0
      %417 = vmatpush1.bf16.msra.mxu0 %v357
      %418 = vmatprep.subr.bf16.mxu0 0
      %419 = vmatpush1.bf16.msra.mxu0 %v414
      %420 = vmatprep.subr.bf16.mxu0 0
      %421 = vmatpush1.bf16.msra.mxu0 0
      %422 = vmatprep.subr.bf16.mxu0 0
      %423 = vmatpush1.bf16.msra.mxu0 0
      %424 = vmatprep.subr.bf16.mxu0 0
      %425 = vmatpush1.bf16.msra.mxu0 0
      %426 = vmatprep.subr.bf16.mxu0 0
      %427 = vmatpush1.bf16.msra.mxu0 0
      %428 = vmatprep.subr.bf16.mxu0 0
      %429 = vmatpush1.bf16.msra.mxu0 0
      %430 = vmatprep.subr.bf16.mxu0 0
      %431 = vmatpush1.bf16.msra.mxu0 0
      %432 = vmatprep.subr.bf16.mxu0 0
      %433 = vmatpush1.bf16.msra.mxu0 0
      %434 = vmatprep.subr.bf16.mxu0 0
      %435 = vmatpush1.bf16.msra.mxu0 0
      %436 = vmatprep.subr.bf16.mxu0 0
      %437 = vmatpush1.bf16.msra.mxu0 0
      %438 = vmatprep.subr.bf16.mxu0 0
      %439 = vmatpush1.bf16.msra.mxu0 0
      %440 = vmatprep.subr.bf16.mxu0 0
      %441 = vmatpush1.bf16.msra.mxu0 0
      %442 = vmatprep.subr.bf16.mxu0 0
      %443 = vmatpush1.bf16.msra.mxu0 0
      %444 = vmatprep.subr.bf16.mxu0 0
      %445 = vmatpush1.bf16.msra.mxu0 0
      %446 = vmatprep.subr.bf16.mxu0 0
      %447 = vmatpush1.bf16.msra.mxu0 0
      %448 = vmatprep.mubr.bf16.mxu0 0
      %449 = vmatmul.mubr.bf16.gmra.mrb[0].mxu0 %v362
      %v450 = vpop.f32.mrb[0].mxu0
      %v451 = vadd.f32 %v267, %v450
      %v452 = vpop.f32.mrb[0].mxu0
      %v453 = vpop.f32.mrb[0].mxu0
      %v454 = vadd.f32 %v267, %v453
      %v455 = vpop.f32.mrb[0].mxu0
      %456 = vmatprep.mubr.bf16.mxu0 0
      %457 = vmatmul.mubr.bf16.gmra.mrb[0].mxu0 %v365
      %v458 = vpop.f32.mrb[0].mxu0
      %v459 = vadd.f32 %v267, %v458
      %v460 = vpop.f32.mrb[0].mxu0
      %v461 = vpop.f32.mrb[0].mxu0
      %v462 = vadd.f32 %v267, %v461
      %v463 = vpop.f32.mrb[0].mxu0
      %464 = vmatprep.mubr.bf16.mxu0 0
      %465 = vmatmul.mubr.bf16.gmra.mrb[0].mxu0 %v368
      %v466 = vpop.f32.mrb[0].mxu0
      %v467 = vadd.f32 %v267, %v466
      %v468 = vpop.f32.mrb[0].mxu0
      %v469 = vpop.f32.mrb[0].mxu0
      %v470 = vadd.f32 %v267, %v469
      %v471 = vpop.f32.mrb[0].mxu0
      %472 = vmatprep.mubr.bf16.mxu0 0
      %473 = vmatmul.mubr.bf16.gmra.mrb[0].mxu0 %v371
      %v474 = vpop.f32.mrb[0].mxu0
      %v475 = vadd.f32 %v267, %v474
      %v476 = vpop.f32.mrb[0].mxu0
      %v477 = vpop.f32.mrb[0].mxu0
      %v478 = vadd.f32 %v267, %v477
      %v479 = vpop.f32.mrb[0].mxu0
      %480 = vmatprep.mubr.bf16.mxu0 0
      %481 = vmatmul.mubr.bf16.gmra.mrb[0].mxu0 %v374
      %v482 = vpop.f32.mrb[0].mxu0
      %v483 = vadd.f32 %v267, %v482
      %v484 = vpop.f32.mrb[0].mxu0
      %v485 = vpop.f32.mrb[0].mxu0
      %v486 = vadd.f32 %v267, %v485
      %v487 = vpop.f32.mrb[0].mxu0
      %488 = vmatprep.mubr.bf16.mxu0 0
      %489 = vmatmul.mubr.bf16.gmra.mrb[0].mxu0 %v377
      %v490 = vpop.f32.mrb[0].mxu0
      %v491 = vadd.f32 %v267, %v490
      %v492 = vpop.f32.mrb[0].mxu0
      %v493 = vpop.f32.mrb[0].mxu0
      %v494 = vadd.f32 %v267, %v493
      %v495 = vpop.f32.mrb[0].mxu0
      %496 = vmatprep.mubr.bf16.mxu0 0
      %497 = vmatmul.mubr.bf16.gmra.mrb[0].mxu0 %v380
      %v498 = vpop.f32.mrb[0].mxu0
      %v499 = vadd.f32 %v267, %v498
      %v500 = vpop.f32.mrb[0].mxu0
      %v501 = vpop.f32.mrb[0].mxu0
      %v502 = vadd.f32 %v267, %v501
      %v503 = vpop.f32.mrb[0].mxu0
      %504 = vmatprep.mubr.bf16.mxu0 0
      %505 = vmatmul.mubr.bf16.gmra.mrb[0].mxu0 %v383
      %v506 = vpop.f32.mrb[0].mxu0
      %v507 = vadd.f32 %v267, %v506
      %v508 = vpop.f32.mrb[0].mxu0
      %v509 = vpop.f32.mrb[0].mxu0
      %v510 = vadd.f32 %v267, %v509
      %v511 = vpop.f32.mrb[0].mxu0
      %512 = vmatprep.mubr.bf16.mxu0 0
      %513 = vmatmul.mubr.bf16.gmra.mrb[0].mxu0 %v386
      %v514 = vpop.f32.mrb[0].mxu0
      %v515 = vadd.f32 %v267, %v514
      %v516 = vpop.f32.mrb[0].mxu0
      %v517 = vpop.f32.mrb[0].mxu0
      %v518 = vadd.f32 %v267, %v517
      %v519 = vpop.f32.mrb[0].mxu0
      %520 = vmatprep.mubr.bf16.mxu0 0
      %521 = vmatmul.mubr.bf16.gmra.mrb[0].mxu0 %v389
      %v522 = vpop.f32.mrb[0].mxu0
      %v523 = vadd.f32 %v267, %v522
      %v524 = vpop.f32.mrb[0].mxu0
      %v525 = vpop.f32.mrb[0].mxu0
      %v526 = vadd.f32 %v267, %v525
      %v527 = vpop.f32.mrb[0].mxu0
      %528 = vmatprep.mubr.bf16.mxu0 0
      %529 = vmatmul.mubr.bf16.gmra.mrb[0].mxu0 %v392
      %v530 = vpop.f32.mrb[0].mxu0
      %v531 = vadd.f32 %v267, %v530
      %v532 = vpop.f32.mrb[0].mxu0
      %v533 = vpop.f32.mrb[0].mxu0
      %v534 = vadd.f32 %v267, %v533
      %v535 = vpop.f32.mrb[0].mxu0
      %536 = vmatprep.mubr.bf16.mxu0 0
      %537 = vmatmul.mubr.bf16.gmra.mrb[0].mxu0 %v395
      %v538 = vpop.f32.mrb[0].mxu0
      %v539 = vadd.f32 %v267, %v538
      %v540 = vpop.f32.mrb[0].mxu0
      %v541 = vpop.f32.mrb[0].mxu0
      %v542 = vadd.f32 %v267, %v541
      %v543 = vpop.f32.mrb[0].mxu0
      %544 = vmatprep.mubr.bf16.mxu0 0
      %545 = vmatmul.mubr.bf16.gmra.mrb[0].mxu0 %v398
      %v546 = vpop.f32.mrb[0].mxu0
      %v547 = vadd.f32 %v267, %v546
      %v548 = vpop.f32.mrb[0].mxu0
      %v549 = vpop.f32.mrb[0].mxu0
      %v550 = vadd.f32 %v267, %v549
      %v551 = vpop.f32.mrb[0].mxu0
      %552 = vmatprep.mubr.bf16.mxu0 0
      %553 = vmatmul.mubr.bf16.gmra.mrb[0].mxu0 %v401
      %v554 = vpop.f32.mrb[0].mxu0
      %v555 = vadd.f32 %v267, %v554
      %v556 = vpop.f32.mrb[0].mxu0
      %v557 = vpop.f32.mrb[0].mxu0
      %v558 = vadd.f32 %v267, %v557
      %v559 = vpop.f32.mrb[0].mxu0
      %560 = vmatprep.mubr.bf16.mxu0 0
      %561 = vmatmul.mubr.bf16.gmra.mrb[0].mxu0 %v404
      %v562 = vpop.f32.mrb[0].mxu0
      %v563 = vadd.f32 %v267, %v562
      %v564 = vpop.f32.mrb[0].mxu0
      %v565 = vpop.f32.mrb[0].mxu0
      %v566 = vadd.f32 %v267, %v565
      %v567 = vpop.f32.mrb[0].mxu0
      %568 = vmatprep.mubr.bf16.mxu0 0
      %569 = vmatmul.mubr.bf16.gmra.mrb[0].mxu0 %v407
      %v570 = vpop.f32.mrb[0].mxu0
      %v571 = vadd.f32 %v267, %v570
      %v572 = vpop.f32.mrb[0].mxu0
      %v573 = vpop.f32.mrb[0].mxu0
      %v574 = vadd.f32 %v267, %v573
      %v575 = vpop.f32.mrb[0].mxu0
      %576 = vdwg.mxu0
      %v577 = vmul.f32 %v451, 0.5
      %v578 = vmul.f32 %v454, 0.5
      %v579 = vmul.f32 %v459, 0.5
      %v580 = vmul.f32 %v462, 0.5
      %v581 = vmul.f32 %v467, 0.5
      %v582 = vmul.f32 %v470, 0.5
      %v583 = vmul.f32 %v475, 0.5
      %v584 = vmul.f32 %v478, 0.5
      %v585 = vmul.f32 %v483, 0.5
      %v586 = vmul.f32 %v486, 0.5
      %v587 = vmul.f32 %v491, 0.5
      %v588 = vmul.f32 %v494, 0.5
      %v589 = vmul.f32 %v499, 0.5
      %v590 = vmul.f32 %v502, 0.5
      %v591 = vmul.f32 %v507, 0.5
      %v592 = vmul.f32 %v510, 0.5
      %v593 = vmul.f32 %v515, 0.5
      %v594 = vmul.f32 %v518, 0.5
      %v595 = vmul.f32 %v523, 0.5
      %v596 = vmul.f32 %v526, 0.5
      %v597 = vmul.f32 %v531, 0.5
      %v598 = vmul.f32 %v534, 0.5
      %v599 = vmul.f32 %v539, 0.5
      %v600 = vmul.f32 %v542, 0.5
      %v601 = vmul.f32 %v547, 0.5
      %v602 = vmul.f32 %v550, 0.5
      %v603 = vmul.f32 %v555, 0.5
      %v604 = vmul.f32 %v558, 0.5
      %v605 = vmul.f32 %v563, 0.5
      %v606 = vmul.f32 %v566, 0.5
      %v607 = vmul.f32 %v571, 0.5
      %v608 = vmul.f32 %v574, 0.5
      %v609 = vtanh.pop %v577
      %v610 = vtanh.pop %v578
      %v611 = vtanh.pop %v579
      %v612 = vtanh.pop %v580
      %v613 = vtanh.pop %v581
      %v614 = vtanh.pop %v582
      %v615 = vtanh.pop %v583
      %v616 = vtanh.pop %v584
      %v617 = vtanh.pop %v585
      %v618 = vtanh.pop %v586
      %v619 = vtanh.pop %v587
      %v620 = vtanh.pop %v588
      %v621 = vtanh.pop %v589
      %v622 = vtanh.pop %v590
      %v623 = vtanh.pop %v591
      %v624 = vtanh.pop %v592
      %v625 = vtanh.pop %v593
      %v626 = vtanh.pop %v594
      %v627 = vtanh.pop %v595
      %v628 = vtanh.pop %v596
      %v629 = vtanh.pop %v597
      %v630 = vtanh.pop %v598
      %v631 = vtanh.pop %v599
      %v632 = vtanh.pop %v600
      %v633 = vtanh.pop %v601
      %v634 = vtanh.pop %v602
      %v635 = vtanh.pop %v603
      %v636 = vtanh.pop %v604
      %v637 = vtanh.pop %v605
      %v638 = vtanh.pop %v606
      %v639 = vtanh.pop %v607
      %v640 = vtanh.pop %v608
      %v641 = vmul.f32 %v609, 0.5
      %v642 = vmul.f32 %v610, 0.5
      %v643 = vmul.f32 %v611, 0.5
      %v644 = vmul.f32 %v612, 0.5
      %v645 = vmul.f32 %v613, 0.5
      %v646 = vmul.f32 %v614, 0.5
      %v647 = vmul.f32 %v615, 0.5
      %v648 = vmul.f32 %v616, 0.5
      %v649 = vmul.f32 %v617, 0.5
      %v650 = vmul.f32 %v618, 0.5
      %v651 = vmul.f32 %v619, 0.5
      %v652 = vmul.f32 %v620, 0.5
      %v653 = vmul.f32 %v621, 0.5
      %v654 = vmul.f32 %v622, 0.5
      %v655 = vmul.f32 %v623, 0.5
      %v656 = vmul.f32 %v624, 0.5
      %v657 = vmul.f32 %v625, 0.5
      %v658 = vmul.f32 %v626, 0.5
      %v659 = vmul.f32 %v627, 0.5
      %v660 = vmul.f32 %v628, 0.5
      %v661 = vmul.f32 %v629, 0.5
      %v662 = vmul.f32 %v630, 0.5
      %v663 = vmul.f32 %v631, 0.5
      %v664 = vmul.f32 %v632, 0.5
      %v665 = vmul.f32 %v633, 0.5
      %v666 = vmul.f32 %v634, 0.5
      %v667 = vmul.f32 %v635, 0.5
      %v668 = vmul.f32 %v636, 0.5
      %v669 = vmul.f32 %v637, 0.5
      %v670 = vmul.f32 %v638, 0.5
      %v671 = vmul.f32 %v639, 0.5
      %v672 = vmul.f32 %v640, 0.5
      %v673 = vadd.f32 %v641, 0.5
      %v674 = vadd.f32 %v642, 0.5
      %v675 = vadd.f32 %v643, 0.5
      %v676 = vadd.f32 %v644, 0.5
      %v677 = vadd.f32 %v645, 0.5
      %v678 = vadd.f32 %v646, 0.5
      %v679 = vadd.f32 %v647, 0.5
      %v680 = vadd.f32 %v648, 0.5
      %v681 = vadd.f32 %v649, 0.5
      %v682 = vadd.f32 %v650, 0.5
      %v683 = vadd.f32 %v651, 0.5
      %v684 = vadd.f32 %v652, 0.5
      %v685 = vadd.f32 %v653, 0.5
      %v686 = vadd.f32 %v654, 0.5
      %v687 = vadd.f32 %v655, 0.5
      %v688 = vadd.f32 %v656, 0.5
      %v689 = vadd.f32 %v657, 0.5
      %v690 = vadd.f32 %v658, 0.5
      %v691 = vadd.f32 %v659, 0.5
      %v692 = vadd.f32 %v660, 0.5
      %v693 = vadd.f32 %v661, 0.5
      %v694 = vadd.f32 %v662, 0.5
      %v695 = vadd.f32 %v663, 0.5
      %v696 = vadd.f32 %v664, 0.5
      %v697 = vadd.f32 %v665, 0.5
      %v698 = vadd.f32 %v666, 0.5
      %v699 = vadd.f32 %v667, 0.5
      %v700 = vadd.f32 %v668, 0.5
      %v701 = vadd.f32 %v669, 0.5
      %v702 = vadd.f32 %v670, 0.5
      %v703 = vadd.f32 %v671, 0.5
      %v704 = vadd.f32 %v672, 0.5
      %v705 = vmul.f32 %v451, %v673
      %v706 = vmul.f32 %v454, %v674
      %v707 = vmul.f32 %v459, %v675
      %v708 = vmul.f32 %v462, %v676
      %v709 = vmul.f32 %v467, %v677
      %v710 = vmul.f32 %v470, %v678
      %v711 = vmul.f32 %v475, %v679
      %v712 = vmul.f32 %v478, %v680
      %v713 = vmul.f32 %v483, %v681
      %v714 = vmul.f32 %v486, %v682
      %v715 = vmul.f32 %v491, %v683
      %v716 = vmul.f32 %v494, %v684
      %v717 = vmul.f32 %v499, %v685
      %v718 = vmul.f32 %v502, %v686
      %v719 = vmul.f32 %v507, %v687
      %v720 = vmul.f32 %v510, %v688
      %v721 = vmul.f32 %v515, %v689
      %v722 = vmul.f32 %v518, %v690
      %v723 = vmul.f32 %v523, %v691
      %v724 = vmul.f32 %v526, %v692
      %v725 = vmul.f32 %v531, %v693
      %v726 = vmul.f32 %v534, %v694
      %v727 = vmul.f32 %v539, %v695
      %v728 = vmul.f32 %v542, %v696
      %v729 = vmul.f32 %v547, %v697
      %v730 = vmul.f32 %v550, %v698
      %v731 = vmul.f32 %v555, %v699
      %v732 = vmul.f32 %v558, %v700
      %v733 = vmul.f32 %v563, %v701
      %v734 = vmul.f32 %v566, %v702
      %v735 = vmul.f32 %v571, %v703
      %v736 = vmul.f32 %v574, %v704
      %v737 = vpack.c.bf16 %v706, %v705
      %v738 = vpack.c.bf16 %v708, %v707
      %v739 = vpack.c.bf16 %v710, %v709
      %v740 = vpack.c.bf16 %v712, %v711
      %v741 = vpack.c.bf16 %v714, %v713
      %v742 = vpack.c.bf16 %v716, %v715
      %v743 = vpack.c.bf16 %v718, %v717
      %v744 = vpack.c.bf16 %v720, %v719
      %v745 = vpack.c.bf16 %v722, %v721
      %v746 = vpack.c.bf16 %v724, %v723
      %v747 = vpack.c.bf16 %v726, %v725
      %v748 = vpack.c.bf16 %v728, %v727
      %v749 = vpack.c.bf16 %v730, %v729
      %v750 = vpack.c.bf16 %v732, %v731
      %v751 = vpack.c.bf16 %v734, %v733
      %v752 = vpack.c.bf16 %v736, %v735
      %v769 = vunpack.c.l.b16 %v737
      %v770 = vunpack.c.h.b16 %v737
      %v771 = vunpack.c.l.b16 %v738
      %v772 = vunpack.c.h.b16 %v738
      %v773 = vunpack.c.l.b16 %v739
      %v774 = vunpack.c.h.b16 %v739
      %v775 = vunpack.c.l.b16 %v740
      %v776 = vunpack.c.h.b16 %v740
      %v777 = vunpack.c.l.b16 %v741
      %v778 = vunpack.c.h.b16 %v741
      %v779 = vunpack.c.l.b16 %v742
      %v780 = vunpack.c.h.b16 %v742
      %v781 = vunpack.c.l.b16 %v743
      %v782 = vunpack.c.h.b16 %v743
      %v783 = vunpack.c.l.b16 %v744
      %v784 = vunpack.c.h.b16 %v744
      %v785 = vunpack.c.l.b16 %v745
      %v786 = vunpack.c.h.b16 %v745
      %v787 = vunpack.c.l.b16 %v746
      %v788 = vunpack.c.h.b16 %v746
      %v789 = vunpack.c.l.b16 %v747
      %v790 = vunpack.c.h.b16 %v747
      %v791 = vunpack.c.l.b16 %v748
      %v792 = vunpack.c.h.b16 %v748
      %v793 = vunpack.c.l.b16 %v749
      %v794 = vunpack.c.h.b16 %v749
      %v795 = vunpack.c.l.b16 %v750
      %v796 = vunpack.c.h.b16 %v750
      %v797 = vunpack.c.l.b16 %v751
      %v798 = vunpack.c.h.b16 %v751
      %v799 = vunpack.c.l.b16 %v752
      %v800 = vunpack.c.h.b16 %v752
      %v801 = vpack.c.b16 %v769, %v769
      %v802 = vpack.c.b16 %v770, %v770
      %v803 = vpack.c.b16 %v771, %v771
      %v804 = vpack.c.b16 %v772, %v772
      %v805 = vpack.c.b16 %v773, %v773
      %v806 = vpack.c.b16 %v774, %v774
      %v807 = vpack.c.b16 %v775, %v775
      %v808 = vpack.c.b16 %v776, %v776
      %v809 = vpack.c.b16 %v777, %v777
      %v810 = vpack.c.b16 %v778, %v778
      %v811 = vpack.c.b16 %v779, %v779
      %v812 = vpack.c.b16 %v780, %v780
      %v813 = vpack.c.b16 %v781, %v781
      %v814 = vpack.c.b16 %v782, %v782
      %v815 = vpack.c.b16 %v783, %v783
      %v816 = vpack.c.b16 %v784, %v784
      %v817 = vpack.c.b16 %v785, %v785
      %v818 = vpack.c.b16 %v786, %v786
      %v819 = vpack.c.b16 %v787, %v787
      %v820 = vpack.c.b16 %v788, %v788
      %v821 = vpack.c.b16 %v789, %v789
      %v822 = vpack.c.b16 %v790, %v790
      %v823 = vpack.c.b16 %v791, %v791
      %v824 = vpack.c.b16 %v792, %v792
      %v825 = vpack.c.b16 %v793, %v793
      %v826 = vpack.c.b16 %v794, %v794
      %v827 = vpack.c.b16 %v795, %v795
      %v828 = vpack.c.b16 %v796, %v796
      %v829 = vpack.c.b16 %v797, %v797
      %v830 = vpack.c.b16 %v798, %v798
      %v831 = vpack.c.b16 %v799, %v799
      %v832 = vpack.c.b16 %v800, %v800
      %865 = vst [vmem:[%s223] sm:$0xf] %v801
      %866 = vst [vmem:[%s223 + $0x4] sm:$0xf] %v802
      %867 = vst [vmem:[%s223 + $0x8] sm:$0xf] %v803
      %868 = vst [vmem:[%s223 + $0xc] sm:$0xf] %v804
      %869 = vst [vmem:[%s223 + $0x10] sm:$0xf] %v805
      %870 = vst [vmem:[%s223 + $0x14] sm:$0xf] %v806
      %871 = vst [vmem:[%s223 + $0x18] sm:$0xf] %v807
      %872 = vst [vmem:[%s223 + $0x1c] sm:$0xf] %v808
      %873 = vst [vmem:[%s223 + $0x20] sm:$0xf] %v809
      %874 = vst [vmem:[%s223 + $0x24] sm:$0xf] %v810
      %875 = vst [vmem:[%s223 + $0x28] sm:$0xf] %v811
      %876 = vst [vmem:[%s223 + $0x2c] sm:$0xf] %v812
      %877 = vst [vmem:[%s223 + $0x30] sm:$0xf] %v813
      %878 = vst [vmem:[%s223 + $0x34] sm:$0xf] %v814
      %879 = vst [vmem:[%s223 + $0x38] sm:$0xf] %v815
      %880 = vst [vmem:[%s223 + $0x3c] sm:$0xf] %v816
      %881 = vst [vmem:[%s223 + $0x40] sm:$0xf] %v817
      %882 = vst [vmem:[%s223 + $0x44] sm:$0xf] %v818
      %883 = vst [vmem:[%s223 + $0x48] sm:$0xf] %v819
      %884 = vst [vmem:[%s223 + $0x4c] sm:$0xf] %v820
      %885 = vst [vmem:[%s223 + $0x50] sm:$0xf] %v821
      %886 = vst [vmem:[%s223 + $0x54] sm:$0xf] %v822
      %887 = vst [vmem:[%s223 + $0x58] sm:$0xf] %v823
      %888 = vst [vmem:[%s223 + $0x5c] sm:$0xf] %v824
      %889 = vst [vmem:[%s223 + $0x60] sm:$0xf] %v825
      %890 = vst [vmem:[%s223 + $0x64] sm:$0xf] %v826
      %891 = vst [vmem:[%s223 + $0x68] sm:$0xf] %v827
      %892 = vst [vmem:[%s223 + $0x6c] sm:$0xf] %v828
      %893 = vst [vmem:[%s223 + $0x70] sm:$0xf] %v829
      %894 = vst [vmem:[%s223 + $0x74] sm:$0xf] %v830
      %895 = vst [vmem:[%s223 + $0x78] sm:$0xf] %v831
      %896 = vst [vmem:[%s223 + $0x7c] sm:$0xf] %v832
      %s897 = smul.u32 32, %s18
      %p898 = scmp.lt.s32.totalorder %s897, 63
      %s899 = scalar_select %p898, %s897, 63
      %p900 = scmp.lt.s32.totalorder %s19, 0
      %s901 = scalar_select %p900, %s19, 0
      %s902 = sadd.s32 %s901, %s899
      %s903 = smul.addr %s902, 4
      %s904 = scalar_lea.vmem %s3, %s903
      // Predicated region
      $region33: #{efficientnet_b7_forward.3} parent=31 // pred_check
        %p905 = pneg %p124
      $region34: #{efficientnet_b7_forward.3} parent=31 // pred_check_branch
        %907 = sbr.rel (%p905) target = $region36
      $region35: #{efficientnet_b7_forward.3} parent=31 // pred_region
        %s908 = smul.u32 32, %s18
      $region36: #{efficientnet_b7_forward.3} parent=31 // pred_fallthru
        _
    $region32: #{efficientnet_b7_forward.3} parent=5 // pred_fallthru
      _
    %p909 = scmp.le.s32.totalorder 2, %s9
    // Predicated region
    $region37: #{efficientnet_b7_forward.3} parent=5 // pred_check
      %p910 = pneg %p909
    $region38: #{efficientnet_b7_forward.3} parent=5 // pred_check_branch
      %912 = sbr.rel (%p910) target = $region40
    $region39: #{efficientnet_b7_forward.3} parent=5 // pred_region
      %s913 = ssub.s32 %s9, 2
      // Predicated region
      $region41: #{efficientnet_b7_forward.3} parent=39 // pred_check
        %p914 = pneg %p130
      $region42: #{efficientnet_b7_forward.3} parent=39 // pred_check_branch
        %916 = sbr.rel (%p914) target = $region44
      $region43: #{efficientnet_b7_forward.3} parent=39 // pred_region
        %s917 = smul.u32 32, %s20
        %p918 = scmp.lt.s32.totalorder %s917, 63
        %s919 = scalar_select %p918, %s917, 63
        %p920 = scmp.lt.s32.totalorder %s21, 0
        %s921 = scalar_select %p920, %s21, 0
        %s922 = sadd.s32 %s921, %s919
        %s923 = smul.addr %s922, 4
        %s924 = scalar_lea.vmem %s3, %s923
      $region44: #{efficientnet_b7_forward.3} parent=39 // pred_fallthru
        _
    $region40: #{efficientnet_b7_forward.3} parent=5 // pred_fallthru
      _
  $region6: #{efficientnet_b7_forward.3} parent=0 // loop_footer
    %s13 = sadd.s32 1, %s9
  $region7: #{efficientnet_b7_forward.3} parent=0 // loop_footer_branch
    %8 = sbr.rel target = $region3
  $region8: #{efficientnet_b7_forward.3} parent=0 // loop_exit
    _

// kernel: efficientnet_b7_forward.5
$region0: #{efficientnet_b7_forward.5}
  #allocation0 [shape = 'u32[]', space=smem, size = 0x4, offset = 0x4, fixed_abs, tag = 'smem constant byte address 0x4 - core index']
  #allocation1 [shape = 'u32[144,128]{1,0:T(1,128)}', space=vmem, size = 0x12000, scoped, tag = 'internal scratch']
  %s0 = inlined_call_operand.vmem [shape: bf16[8,2560], index: 0, kind: input, shape index: {}]
  %s1 = inlined_call_operand.vmem [shape: bf16[2560,128], index: 1, kind: input, shape index: {}]
  %s2 = inlined_call_operand.vmem [shape: f32[1,128], index: 2, kind: input, shape index: {}]
  %s3 = inlined_call_operand.vmem [shape: f32[8,128], index: 3, kind: output, shape index: {}]
  %s4 = sld [smem:[#allocation0]]
  $region22: #{efficientnet_b7_forward.5} parent=0
    _
  %s6 = ssub.s32 1, %s4
  %s7 = scalar_select 0, %s6, %s4
  // Predicated region
  $region2: #{efficientnet_b7_forward.5} parent=0 // pred_check
    _
  $region3: #{efficientnet_b7_forward.5} parent=0 // pred_check_branch
    %9 = sbr.rel (0) target = $region5
  $region4: #{efficientnet_b7_forward.5} parent=0 // pred_region
    _
  $region5: #{efficientnet_b7_forward.5} parent=0 // pred_fallthru
    _
  // Predicated region
  $region6: #{efficientnet_b7_forward.5} parent=0 // pred_check
    _
  $region7: #{efficientnet_b7_forward.5} parent=0 // pred_check_branch
    %11 = sbr.rel (0) target = $region9
  $region8: #{efficientnet_b7_forward.5} parent=0 // pred_region
    _
  $region9: #{efficientnet_b7_forward.5} parent=0 // pred_fallthru
    _
  // Predicated region
  $region10: #{efficientnet_b7_forward.5} parent=0 // pred_check
    _
  $region11: #{efficientnet_b7_forward.5} parent=0 // pred_check_branch
    %13 = sbr.rel (0) target = $region13
  $region12: #{efficientnet_b7_forward.5} parent=0 // pred_region
    _
  $region13: #{efficientnet_b7_forward.5} parent=0 // pred_fallthru
    _
  %v15 = vld [vmem:[%s0] sm:$0xff]
  %v16 = vld [vmem:[%s0 + $0x8] sm:$0xff]
  %v17 = vld [vmem:[%s0 + $0x10] sm:$0xff]
  %v18 = vld [vmem:[%s0 + $0x18] sm:$0xff]
  %v19 = vld [vmem:[%s0 + $0x20] sm:$0xff]
  %v20 = vld [vmem:[%s0 + $0x28] sm:$0xff]
  %v21 = vld [vmem:[%s0 + $0x30] sm:$0xff]
  %v22 = vld [vmem:[%s0 + $0x38] sm:$0xff]
  %v23 = vld [vmem:[%s0 + $0x40] sm:$0xff]
  %v24 = vld [vmem:[%s0 + $0x48] sm:$0xff]
  %v25 = vld [vmem:[%s1] sm:$0xf]
  %v26 = vld [vmem:[%s1 + $0x4] sm:$0xf]
  %v27 = vld [vmem:[%s1 + $0x8] sm:$0xf]
  %v28 = vld [vmem:[%s1 + $0xc] sm:$0xf]
  %v29 = vld [vmem:[%s1 + $0x10] sm:$0xf]
  %v30 = vld [vmem:[%s1 + $0x14] sm:$0xf]
  %v31 = vld [vmem:[%s1 + $0x18] sm:$0xf]
  %v32 = vld [vmem:[%s1 + $0x1c] sm:$0xf]
  %v33 = vld [vmem:[%s1 + $0x20] sm:$0xf]
  %v34 = vld [vmem:[%s1 + $0x24] sm:$0xf]
  %v35 = vld [vmem:[%s1 + $0x28] sm:$0xf]
  %v36 = vld [vmem:[%s1 + $0x2c] sm:$0xf]
  %v37 = vld [vmem:[%s1 + $0x30] sm:$0xf]
  %v38 = vld [vmem:[%s1 + $0x34] sm:$0xf]
  %v39 = vld [vmem:[%s1 + $0x38] sm:$0xf]
  %v40 = vld [vmem:[%s1 + $0x3c] sm:$0xf]
  %v41 = vld [vmem:[%s1 + $0x40] sm:$0xf]
  %v42 = vld [vmem:[%s1 + $0x44] sm:$0xf]
  %v43 = vld [vmem:[%s1 + $0x48] sm:$0xf]
  %v44 = vld [vmem:[%s1 + $0x4c] sm:$0xf]
  %v45 = vld [vmem:[%s1 + $0x50] sm:$0xf]
  %v46 = vld [vmem:[%s1 + $0x54] sm:$0xf]
  %v47 = vld [vmem:[%s1 + $0x58] sm:$0xf]
  %v48 = vld [vmem:[%s1 + $0x5c] sm:$0xf]
  %v49 = vld [vmem:[%s1 + $0x60] sm:$0xf]
  %v50 = vld [vmem:[%s1 + $0x64] sm:$0xf]
  %v51 = vld [vmem:[%s1 + $0x68] sm:$0xf]
  %v52 = vld [vmem:[%s1 + $0x6c] sm:$0xf]
  %v53 = vld [vmem:[%s1 + $0x70] sm:$0xf]
  %v54 = vld [vmem:[%s1 + $0x74] sm:$0xf]
  %v55 = vld [vmem:[%s1 + $0x78] sm:$0xf]
  %v56 = vld [vmem:[%s1 + $0x7c] sm:$0xf]
  %v57 = vld [vmem:[%s1 + $0x80] sm:$0xf]
  %v58 = vld [vmem:[%s1 + $0x84] sm:$0xf]
  %v59 = vld [vmem:[%s1 + $0x88] sm:$0xf]
  %v60 = vld [vmem:[%s1 + $0x8c] sm:$0xf]
  %v61 = vld [vmem:[%s1 + $0x90] sm:$0xf]
  %v62 = vld [vmem:[%s1 + $0x94] sm:$0xf]
  %v63 = vld [vmem:[%s1 + $0x98] sm:$0xf]
  %v64 = vld [vmem:[%s1 + $0x9c] sm:$0xf]
  %v65 = vld [vmem:[%s1 + $0xa0] sm:$0xf]
  %v66 = vld [vmem:[%s1 + $0xa4] sm:$0xf]
  %v67 = vld [vmem:[%s1 + $0xa8] sm:$0xf]
  %v68 = vld [vmem:[%s1 + $0xac] sm:$0xf]
  %v69 = vld [vmem:[%s1 + $0xb0] sm:$0xf]
  %v70 = vld [vmem:[%s1 + $0xb4] sm:$0xf]
  %v71 = vld [vmem:[%s1 + $0xb8] sm:$0xf]
  %v72 = vld [vmem:[%s1 + $0xbc] sm:$0xf]
  %v73 = vld [vmem:[%s1 + $0xc0] sm:$0xf]
  %v74 = vld [vmem:[%s1 + $0xc4] sm:$0xf]
  %v75 = vld [vmem:[%s1 + $0xc8] sm:$0xf]
  %v76 = vld [vmem:[%s1 + $0xcc] sm:$0xf]
  %v77 = vld [vmem:[%s1 + $0xd0] sm:$0xf]
  %v78 = vld [vmem:[%s1 + $0xd4] sm:$0xf]
  %v79 = vld [vmem:[%s1 + $0xd8] sm:$0xf]
  %v80 = vld [vmem:[%s1 + $0xdc] sm:$0xf]
  %v81 = vld [vmem:[%s1 + $0xe0] sm:$0xf]
  %v82 = vld [vmem:[%s1 + $0xe4] sm:$0xf]
  %v83 = vld [vmem:[%s1 + $0xe8] sm:$0xf]
  %v84 = vld [vmem:[%s1 + $0xec] sm:$0xf]
  %v85 = vld [vmem:[%s1 + $0xf0] sm:$0xf]
  %v86 = vld [vmem:[%s1 + $0xf4] sm:$0xf]
  %v87 = vld [vmem:[%s1 + $0xf8] sm:$0xf]
  %v88 = vld [vmem:[%s1 + $0xfc] sm:$0xf]
  %v89 = vld [vmem:[%s1 + $0x100] sm:$0xf]
  %v90 = vld [vmem:[%s1 + $0x104] sm:$0xf]
  %v91 = vld [vmem:[%s1 + $0x108] sm:$0xf]
  %v92 = vld [vmem:[%s1 + $0x10c] sm:$0xf]
  %v93 = vld [vmem:[%s1 + $0x110] sm:$0xf]
  %v94 = vld [vmem:[%s1 + $0x114] sm:$0xf]
  %v95 = vld [vmem:[%s1 + $0x118] sm:$0xf]
  %v96 = vld [vmem:[%s1 + $0x11c] sm:$0xf]
  %v97 = vld [vmem:[%s1 + $0x120] sm:$0xf]
  %v98 = vld [vmem:[%s1 + $0x124] sm:$0xf]
  %v99 = vld [vmem:[%s1 + $0x128] sm:$0xf]
  %v100 = vld [vmem:[%s1 + $0x12c] sm:$0xf]
  %v101 = vld [vmem:[%s1 + $0x130] sm:$0xf]
  %v102 = vld [vmem:[%s1 + $0x134] sm:$0xf]
  %v103 = vld [vmem:[%s1 + $0x138] sm:$0xf]
  %v104 = vld [vmem:[%s1 + $0x13c] sm:$0xf]
  %v105 = vld [vmem:[%s1 + $0x140] sm:$0xf]
  %v106 = vld [vmem:[%s1 + $0x144] sm:$0xf]
  %v107 = vld [vmem:[%s1 + $0x148] sm:$0xf]
  %v108 = vld [vmem:[%s1 + $0x14c] sm:$0xf]
  %v109 = vld [vmem:[%s1 + $0x150] sm:$0xf]
  %v110 = vld [vmem:[%s1 + $0x154] sm:$0xf]
  %v111 = vld [vmem:[%s1 + $0x158] sm:$0xf]
  %v112 = vld [vmem:[%s1 + $0x15c] sm:$0xf]
  %v113 = vld [vmem:[%s1 + $0x160] sm:$0xf]
  %v114 = vld [vmem:[%s1 + $0x164] sm:$0xf]
  %v115 = vld [vmem:[%s1 + $0x168] sm:$0xf]
  %v116 = vld [vmem:[%s1 + $0x16c] sm:$0xf]
  %v117 = vld [vmem:[%s1 + $0x170] sm:$0xf]
  %v118 = vld [vmem:[%s1 + $0x174] sm:$0xf]
  %v119 = vld [vmem:[%s1 + $0x178] sm:$0xf]
  %v120 = vld [vmem:[%s1 + $0x17c] sm:$0xf]
  %v121 = vld [vmem:[%s1 + $0x180] sm:$0xf]
  %v122 = vld [vmem:[%s1 + $0x184] sm:$0xf]
  %v123 = vld [vmem:[%s1 + $0x188] sm:$0xf]
  %v124 = vld [vmem:[%s1 + $0x18c] sm:$0xf]
  %v125 = vld [vmem:[%s1 + $0x190] sm:$0xf]
  %v126 = vld [vmem:[%s1 + $0x194] sm:$0xf]
  %v127 = vld [vmem:[%s1 + $0x198] sm:$0xf]
  %v128 = vld [vmem:[%s1 + $0x19c] sm:$0xf]
  %v129 = vld [vmem:[%s1 + $0x1a0] sm:$0xf]
  %v130 = vld [vmem:[%s1 + $0x1a4] sm:$0xf]
  %v131 = vld [vmem:[%s1 + $0x1a8] sm:$0xf]
  %v132 = vld [vmem:[%s1 + $0x1ac] sm:$0xf]
  %v133 = vld [vmem:[%s1 + $0x1b0] sm:$0xf]
  %v134 = vld [vmem:[%s1 + $0x1b4] sm:$0xf]
  %v135 = vld [vmem:[%s1 + $0x1b8] sm:$0xf]
  %v136 = vld [vmem:[%s1 + $0x1bc] sm:$0xf]
  %v137 = vld [vmem:[%s1 + $0x1c0] sm:$0xf]
  %v138 = vld [vmem:[%s1 + $0x1c4] sm:$0xf]
  %v139 = vld [vmem:[%s1 + $0x1c8] sm:$0xf]
  %v140 = vld [vmem:[%s1 + $0x1cc] sm:$0xf]
  %v141 = vld [vmem:[%s1 + $0x1d0] sm:$0xf]
  %v142 = vld [vmem:[%s1 + $0x1d4] sm:$0xf]
  %v143 = vld [vmem:[%s1 + $0x1d8] sm:$0xf]
  %v144 = vld [vmem:[%s1 + $0x1dc] sm:$0xf]
  %v145 = vld [vmem:[%s1 + $0x1e0] sm:$0xf]
  %v146 = vld [vmem:[%s1 + $0x1e4] sm:$0xf]
  %v147 = vld [vmem:[%s1 + $0x1e8] sm:$0xf]
  %v148 = vld [vmem:[%s1 + $0x1ec] sm:$0xf]
  %v149 = vld [vmem:[%s1 + $0x1f0] sm:$0xf]
  %v150 = vld [vmem:[%s1 + $0x1f4] sm:$0xf]
  %v151 = vld [vmem:[%s1 + $0x1f8] sm:$0xf]
  %v152 = vld [vmem:[%s1 + $0x1fc] sm:$0xf]
  %v153 = vld [vmem:[%s1 + $0x200] sm:$0xf]
  %v154 = vld [vmem:[%s1 + $0x204] sm:$0xf]
  %v155 = vld [vmem:[%s1 + $0x208] sm:$0xf]
  %v156 = vld [vmem:[%s1 + $0x20c] sm:$0xf]
  %v157 = vld [vmem:[%s1 + $0x210] sm:$0xf]
  %v158 = vld [vmem:[%s1 + $0x214] sm:$0xf]
  %v159 = vld [vmem:[%s1 + $0x218] sm:$0xf]
  %v160 = vld [vmem:[%s1 + $0x21c] sm:$0xf]
  %v161 = vld [vmem:[%s1 + $0x220] sm:$0xf]
  %v162 = vld [vmem:[%s1 + $0x224] sm:$0xf]
  %v163 = vld [vmem:[%s1 + $0x228] sm:$0xf]
  %v164 = vld [vmem:[%s1 + $0x22c] sm:$0xf]
  %v165 = vld [vmem:[%s1 + $0x230] sm:$0xf]
  %v166 = vld [vmem:[%s1 + $0x234] sm:$0xf]
  %v167 = vld [vmem:[%s1 + $0x238] sm:$0xf]
  %v168 = vld [vmem:[%s1 + $0x23c] sm:$0xf]
  %v169 = vld [vmem:[%s1 + $0x240] sm:$0xf]
  %v170 = vld [vmem:[%s1 + $0x244] sm:$0xf]
  %v171 = vld [vmem:[%s1 + $0x248] sm:$0xf]
  %v172 = vld [vmem:[%s1 + $0x24c] sm:$0xf]
  %v173 = vld [vmem:[%s1 + $0x250] sm:$0xf]
  %v174 = vld [vmem:[%s1 + $0x254] sm:$0xf]
  %v175 = vld [vmem:[%s1 + $0x258] sm:$0xf]
  %v176 = vld [vmem:[%s1 + $0x25c] sm:$0xf]
  %v177 = vld [vmem:[%s1 + $0x260] sm:$0xf]
  %v178 = vld [vmem:[%s1 + $0x264] sm:$0xf]
  %v179 = vld [vmem:[%s1 + $0x268] sm:$0xf]
  %v180 = vld [vmem:[%s1 + $0x26c] sm:$0xf]
  %v181 = vld [vmem:[%s1 + $0x270] sm:$0xf]
  %v182 = vld [vmem:[%s1 + $0x274] sm:$0xf]
  %v183 = vld [vmem:[%s1 + $0x278] sm:$0xf]
  %v184 = vld [vmem:[%s1 + $0x27c] sm:$0xf]
  %v185 = vld [vmem:[%s1 + $0x280] sm:$0xf]
  %v186 = vld [vmem:[%s1 + $0x284] sm:$0xf]
  %v187 = vld [vmem:[%s1 + $0x288] sm:$0xf]
  %v188 = vld [vmem:[%s1 + $0x28c] sm:$0xf]
  %v189 = vld [vmem:[%s1 + $0x290] sm:$0xf]
  %v190 = vld [vmem:[%s1 + $0x294] sm:$0xf]
  %v191 = vld [vmem:[%s1 + $0x298] sm:$0xf]
  %v192 = vld [vmem:[%s1 + $0x29c] sm:$0xf]
  %v193 = vld [vmem:[%s1 + $0x2a0] sm:$0xf]
  %v194 = vld [vmem:[%s1 + $0x2a4] sm:$0xf]
  %v195 = vld [vmem:[%s1 + $0x2a8] sm:$0xf]
  %v196 = vld [vmem:[%s1 + $0x2ac] sm:$0xf]
  %v197 = vld [vmem:[%s1 + $0x2b0] sm:$0xf]
  %v198 = vld [vmem:[%s1 + $0x2b4] sm:$0xf]
  %v199 = vld [vmem:[%s1 + $0x2b8] sm:$0xf]
  %v200 = vld [vmem:[%s1 + $0x2bc] sm:$0xf]
  %v201 = vld [vmem:[%s1 + $0x2c0] sm:$0xf]
  %v202 = vld [vmem:[%s1 + $0x2c4] sm:$0xf]
  %v203 = vld [vmem:[%s1 + $0x2c8] sm:$0xf]
  %v204 = vld [vmem:[%s1 + $0x2cc] sm:$0xf]
  %v205 = vld [vmem:[%s1 + $0x2d0] sm:$0xf]
  %v206 = vld [vmem:[%s1 + $0x2d4] sm:$0xf]
  %v207 = vld [vmem:[%s1 + $0x2d8] sm:$0xf]
  %v208 = vld [vmem:[%s1 + $0x2dc] sm:$0xf]
  %v209 = vld [vmem:[%s1 + $0x2e0] sm:$0xf]
  %v210 = vld [vmem:[%s1 + $0x2e4] sm:$0xf]
  %v211 = vld [vmem:[%s1 + $0x2e8] sm:$0xf]
  %v212 = vld [vmem:[%s1 + $0x2ec] sm:$0xf]
  %v213 = vld [vmem:[%s1 + $0x2f0] sm:$0xf]
  %v214 = vld [vmem:[%s1 + $0x2f4] sm:$0xf]
  %v215 = vld [vmem:[%s1 + $0x2f8] sm:$0xf]
  %v216 = vld [vmem:[%s1 + $0x2fc] sm:$0xf]
  %v217 = vld [vmem:[%s1 + $0x300] sm:$0xf]
  %v218 = vld [vmem:[%s1 + $0x304] sm:$0xf]
  %v219 = vld [vmem:[%s1 + $0x308] sm:$0xf]
  %v220 = vld [vmem:[%s1 + $0x30c] sm:$0xf]
  %v221 = vld [vmem:[%s1 + $0x310] sm:$0xf]
  %v222 = vld [vmem:[%s1 + $0x314] sm:$0xf]
  %v223 = vld [vmem:[%s1 + $0x318] sm:$0xf]
  %v224 = vld [vmem:[%s1 + $0x31c] sm:$0xf]
  %v225 = vld [vmem:[%s1 + $0x320] sm:$0xf]
  %v226 = vld [vmem:[%s1 + $0x324] sm:$0xf]
  %v227 = vld [vmem:[%s1 + $0x328] sm:$0xf]
  %v228 = vld [vmem:[%s1 + $0x32c] sm:$0xf]
  %v229 = vld [vmem:[%s1 + $0x330] sm:$0xf]
  %v230 = vld [vmem:[%s1 + $0x334] sm:$0xf]
  %v231 = vld [vmem:[%s1 + $0x338] sm:$0xf]
  %v232 = vld [vmem:[%s1 + $0x33c] sm:$0xf]
  %v233 = vld [vmem:[%s1 + $0x340] sm:$0xf]
  %v234 = vld [vmem:[%s1 + $0x344] sm:$0xf]
  %v235 = vld [vmem:[%s1 + $0x348] sm:$0xf]
  %v236 = vld [vmem:[%s1 + $0x34c] sm:$0xf]
  %v237 = vld [vmem:[%s1 + $0x350] sm:$0xf]
  %v238 = vld [vmem:[%s1 + $0x354] sm:$0xf]
  %v239 = vld [vmem:[%s1 + $0x358] sm:$0xf]
  %v240 = vld [vmem:[%s1 + $0x35c] sm:$0xf]
  %v241 = vld [vmem:[%s1 + $0x360] sm:$0xf]
  %v242 = vld [vmem:[%s1 + $0x364] sm:$0xf]
  %v243 = vld [vmem:[%s1 + $0x368] sm:$0xf]
  %v244 = vld [vmem:[%s1 + $0x36c] sm:$0xf]
  %v245 = vld [vmem:[%s1 + $0x370] sm:$0xf]
  %v246 = vld [vmem:[%s1 + $0x374] sm:$0xf]
  %v247 = vld [vmem:[%s1 + $0x378] sm:$0xf]
  %v248 = vld [vmem:[%s1 + $0x37c] sm:$0xf]
  %v249 = vld [vmem:[%s1 + $0x380] sm:$0xf]
  %v250 = vld [vmem:[%s1 + $0x384] sm:$0xf]
  %v251 = vld [vmem:[%s1 + $0x388] sm:$0xf]
  %v252 = vld [vmem:[%s1 + $0x38c] sm:$0xf]
  %v253 = vld [vmem:[%s1 + $0x390] sm:$0xf]
  %v254 = vld [vmem:[%s1 + $0x394] sm:$0xf]
  %v255 = vld [vmem:[%s1 + $0x398] sm:$0xf]
  %v256 = vld [vmem:[%s1 + $0x39c] sm:$0xf]
  %v257 = vld [vmem:[%s1 + $0x3a0] sm:$0xf]
  %v258 = vld [vmem:[%s1 + $0x3a4] sm:$0xf]
  %v259 = vld [vmem:[%s1 + $0x3a8] sm:$0xf]
  %v260 = vld [vmem:[%s1 + $0x3ac] sm:$0xf]
  %v261 = vld [vmem:[%s1 + $0x3b0] sm:$0xf]
  %v262 = vld [vmem:[%s1 + $0x3b4] sm:$0xf]
  %v263 = vld [vmem:[%s1 + $0x3b8] sm:$0xf]
  %v264 = vld [vmem:[%s1 + $0x3bc] sm:$0xf]
  %v265 = vld [vmem:[%s1 + $0x3c0] sm:$0xf]
  %v266 = vld [vmem:[%s1 + $0x3c4] sm:$0xf]
  %v267 = vld [vmem:[%s1 + $0x3c8] sm:$0xf]
  %v268 = vld [vmem:[%s1 + $0x3cc] sm:$0xf]
  %v269 = vld [vmem:[%s1 + $0x3d0] sm:$0xf]
  %v270 = vld [vmem:[%s1 + $0x3d4] sm:$0xf]
  %v271 = vld [vmem:[%s1 + $0x3d8] sm:$0xf]
  %v272 = vld [vmem:[%s1 + $0x3dc] sm:$0xf]
  %v273 = vld [vmem:[%s1 + $0x3e0] sm:$0xf]
  %v274 = vld [vmem:[%s1 + $0x3e4] sm:$0xf]
  %v275 = vld [vmem:[%s1 + $0x3e8] sm:$0xf]
  %v276 = vld [vmem:[%s1 + $0x3ec] sm:$0xf]
  %v277 = vld [vmem:[%s1 + $0x3f0] sm:$0xf]
  %v278 = vld [vmem:[%s1 + $0x3f4] sm:$0xf]
  %v279 = vld [vmem:[%s1 + $0x3f8] sm:$0xf]
  %v280 = vld [vmem:[%s1 + $0x3fc] sm:$0xf]
  %v281 = vld [vmem:[%s1 + $0x400] sm:$0xf]
  %v282 = vld [vmem:[%s1 + $0x404] sm:$0xf]
  %v283 = vld [vmem:[%s1 + $0x408] sm:$0xf]
  %v284 = vld [vmem:[%s1 + $0x40c] sm:$0xf]
  %v285 = vld [vmem:[%s1 + $0x410] sm:$0xf]
  %v286 = vld [vmem:[%s1 + $0x414] sm:$0xf]
  %v287 = vld [vmem:[%s1 + $0x418] sm:$0xf]
  %v288 = vld [vmem:[%s1 + $0x41c] sm:$0xf]
  %v289 = vld [vmem:[%s1 + $0x420] sm:$0xf]
  %v290 = vld [vmem:[%s1 + $0x424] sm:$0xf]
  %v291 = vld [vmem:[%s1 + $0x428] sm:$0xf]
  %v292 = vld [vmem:[%s1 + $0x42c] sm:$0xf]
  %v293 = vld [vmem:[%s1 + $0x430] sm:$0xf]
  %v294 = vld [vmem:[%s1 + $0x434] sm:$0xf]
  %v295 = vld [vmem:[%s1 + $0x438] sm:$0xf]
  %v296 = vld [vmem:[%s1 + $0x43c] sm:$0xf]
  %v297 = vld [vmem:[%s1 + $0x440] sm:$0xf]
  %v298 = vld [vmem:[%s1 + $0x444] sm:$0xf]
  %v299 = vld [vmem:[%s1 + $0x448] sm:$0xf]
  %v300 = vld [vmem:[%s1 + $0x44c] sm:$0xf]
  %v301 = vld [vmem:[%s1 + $0x450] sm:$0xf]
  %v302 = vld [vmem:[%s1 + $0x454] sm:$0xf]
  %v303 = vld [vmem:[%s1 + $0x458] sm:$0xf]
  %v304 = vld [vmem:[%s1 + $0x45c] sm:$0xf]
  %v305 = vld [vmem:[%s1 + $0x460] sm:$0xf]
  %v306 = vld [vmem:[%s1 + $0x464] sm:$0xf]
  %v307 = vld [vmem:[%s1 + $0x468] sm:$0xf]
  %v308 = vld [vmem:[%s1 + $0x46c] sm:$0xf]
  %v309 = vld [vmem:[%s1 + $0x470] sm:$0xf]
  %v310 = vld [vmem:[%s1 + $0x474] sm:$0xf]
  %v311 = vld [vmem:[%s1 + $0x478] sm:$0xf]
  %v312 = vld [vmem:[%s1 + $0x47c] sm:$0xf]
  %v313 = vld [vmem:[%s1 + $0x480] sm:$0xf]
  %v314 = vld [vmem:[%s1 + $0x484] sm:$0xf]
  %v315 = vld [vmem:[%s1 + $0x488] sm:$0xf]
  %v316 = vld [vmem:[%s1 + $0x48c] sm:$0xf]
  %v317 = vld [vmem:[%s1 + $0x490] sm:$0xf]
  %v318 = vld [vmem:[%s1 + $0x494] sm:$0xf]
  %v319 = vld [vmem:[%s1 + $0x498] sm:$0xf]
  %v320 = vld [vmem:[%s1 + $0x49c] sm:$0xf]
  %v321 = vld [vmem:[%s1 + $0x4a0] sm:$0xf]
  %v322 = vld [vmem:[%s1 + $0x4a4] sm:$0xf]
  %v323 = vld [vmem:[%s1 + $0x4a8] sm:$0xf]
  %v324 = vld [vmem:[%s1 + $0x4ac] sm:$0xf]
  %v325 = vld [vmem:[%s1 + $0x4b0] sm:$0xf]
  %v326 = vld [vmem:[%s1 + $0x4b4] sm:$0xf]
  %v327 = vld [vmem:[%s1 + $0x4b8] sm:$0xf]
  %v328 = vld [vmem:[%s1 + $0x4bc] sm:$0xf]
  %v329 = vld [vmem:[%s1 + $0x4c0] sm:$0xf]
  %v330 = vld [vmem:[%s1 + $0x4c4] sm:$0xf]
  %v331 = vld [vmem:[%s1 + $0x4c8] sm:$0xf]
  %v332 = vld [vmem:[%s1 + $0x4cc] sm:$0xf]
  %v333 = vld [vmem:[%s1 + $0x4d0] sm:$0xf]
  %v334 = vld [vmem:[%s1 + $0x4d4] sm:$0xf]
  %v335 = vld [vmem:[%s1 + $0x4d8] sm:$0xf]
  %v336 = vld [vmem:[%s1 + $0x4dc] sm:$0xf]
  %v337 = vld [vmem:[%s1 + $0x4e0] sm:$0xf]
  %v338 = vld [vmem:[%s1 + $0x4e4] sm:$0xf]
  %v339 = vld [vmem:[%s1 + $0x4e8] sm:$0xf]
  %v340 = vld [vmem:[%s1 + $0x4ec] sm:$0xf]
  %v341 = vld [vmem:[%s1 + $0x4f0] sm:$0xf]
  %v342 = vld [vmem:[%s1 + $0x4f4] sm:$0xf]
  %v343 = vld [vmem:[%s1 + $0x4f8] sm:$0xf]
  %v344 = vld [vmem:[%s1 + $0x4fc] sm:$0xf]
  %v345 = vld [vmem:[%s2] sm:$0x1]
  %v347 = vlaneseq
  %v348 = vshrl.u32 %v347, 7
  %v349 = vsub.s32 0, %v348
  %v350 = vrot.slane %v345, %v349
  %v362 = vunpack.c.l.b16 %v15
  %v363 = vunpack.c.h.b16 %v15
  %v364 = vunpack.c.l.b16 %v16
  %v365 = vunpack.c.h.b16 %v16
  %v366 = vunpack.c.l.b16 %v17
  %v367 = vunpack.c.h.b16 %v17
  %v368 = vunpack.c.l.b16 %v18
  %v369 = vunpack.c.h.b16 %v18
  %v370 = vunpack.c.l.b16 %v19
  %v371 = vunpack.c.h.b16 %v19
  %v372 = vunpack.c.l.b16 %v20
  %v373 = vunpack.c.h.b16 %v20
  %v374 = vunpack.c.l.b16 %v21
  %v375 = vunpack.c.h.b16 %v21
  %v376 = vunpack.c.l.b16 %v22
  %v377 = vunpack.c.h.b16 %v22
  %v378 = vunpack.c.l.b16 %v23
  %v379 = vunpack.c.h.b16 %v23
  %v380 = vunpack.c.l.b16 %v24
  %v381 = vunpack.c.h.b16 %v24
  %v382 = vpack.c.b16 %v362, %v362
  %v383 = vpack.c.b16 %v363, %v363
  %v384 = vpack.c.b16 %v364, %v364
  %v385 = vpack.c.b16 %v365, %v365
  %v386 = vpack.c.b16 %v366, %v366
  %v387 = vpack.c.b16 %v367, %v367
  %v388 = vpack.c.b16 %v368, %v368
  %v389 = vpack.c.b16 %v369, %v369
  %v390 = vpack.c.b16 %v370, %v370
  %v391 = vpack.c.b16 %v371, %v371
  %v392 = vpack.c.b16 %v372, %v372
  %v393 = vpack.c.b16 %v373, %v373
  %v394 = vpack.c.b16 %v374, %v374
  %v395 = vpack.c.b16 %v375, %v375
  %v396 = vpack.c.b16 %v376, %v376
  %v397 = vpack.c.b16 %v377, %v377
  %v398 = vpack.c.b16 %v378, %v378
  %v399 = vpack.c.b16 %v379, %v379
  %v400 = vpack.c.b16 %v380, %v380
  %v401 = vpack.c.b16 %v381, %v381
  %v742 = vunpack.c.l.b16 %v25
  %v743 = vunpack.c.l.b16 %v26
  %v744 = vunpack.c.l.b16 %v27
  %v745 = vunpack.c.l.b16 %v28
  %v746 = vunpack.c.l.b16 %v29
  %v747 = vunpack.c.l.b16 %v30
  %v748 = vunpack.c.l.b16 %v31
  %v749 = vunpack.c.l.b16 %v32
  %v750 = vunpack.c.l.b16 %v33
  %v751 = vunpack.c.l.b16 %v34
  %v752 = vunpack.c.l.b16 %v35
  %v753 = vunpack.c.l.b16 %v36
  %v754 = vunpack.c.l.b16 %v37
  %v755 = vunpack.c.l.b16 %v38
  %v756 = vunpack.c.l.b16 %v39
  %v757 = vunpack.c.l.b16 %v40
  %v758 = vunpack.c.l.b16 %v41
  %v759 = vunpack.c.l.b16 %v42
  %v760 = vunpack.c.l.b16 %v43
  %v761 = vunpack.c.l.b16 %v44
  %v762 = vunpack.c.l.b16 %v45
  %v763 = vunpack.c.l.b16 %v46
  %v764 = vunpack.c.l.b16 %v47
  %v765 = vunpack.c.l.b16 %v48
  %v766 = vunpack.c.l.b16 %v49
  %v767 = vunpack.c.l.b16 %v50
  %v768 = vunpack.c.l.b16 %v51
  %v769 = vunpack.c.l.b16 %v52
  %v770 = vunpack.c.l.b16 %v53
  %v771 = vunpack.c.l.b16 %v54
  %v772 = vunpack.c.l.b16 %v55
  %v773 = vunpack.c.l.b16 %v56
  %v774 = vunpack.c.l.b16 %v57
  %v775 = vunpack.c.l.b16 %v58
  %v776 = vunpack.c.l.b16 %v59
  %v777 = vunpack.c.l.b16 %v60
  %v778 = vunpack.c.l.b16 %v61
  %v779 = vunpack.c.l.b16 %v62
  %v780 = vunpack.c.l.b16 %v63
  %v781 = vunpack.c.l.b16 %v64
  %v782 = vunpack.c.l.b16 %v65
  %v783 = vunpack.c.l.b16 %v66
  %v784 = vunpack.c.l.b16 %v67
  %v785 = vunpack.c.l.b16 %v68
  %v786 = vunpack.c.l.b16 %v69
  %v787 = vunpack.c.l.b16 %v70
  %v788 = vunpack.c.l.b16 %v71
  %v789 = vunpack.c.l.b16 %v72
  %v790 = vunpack.c.l.b16 %v73
  %v791 = vunpack.c.l.b16 %v74
  %v792 = vunpack.c.l.b16 %v75
  %v793 = vunpack.c.l.b16 %v76
  %v794 = vunpack.c.l.b16 %v77
  %v795 = vunpack.c.l.b16 %v78
  %v796 = vunpack.c.l.b16 %v79
  %v797 = vunpack.c.l.b16 %v80
  %v798 = vunpack.c.l.b16 %v81
  %v799 = vunpack.c.l.b16 %v82
  %v800 = vunpack.c.l.b16 %v83
  %v801 = vunpack.c.l.b16 %v84
  %v802 = vunpack.c.l.b16 %v85
  %v803 = vunpack.c.l.b16 %v86
  %v804 = vunpack.c.l.b16 %v87
  %v805 = vunpack.c.l.b16 %v88
  %v806 = vunpack.c.l.b16 %v89
  %v807 = vunpack.c.l.b16 %v90
  %v808 = vunpack.c.l.b16 %v91
  %v809 = vunpack.c.l.b16 %v92
  %v810 = vunpack.c.l.b16 %v93
  %v811 = vunpack.c.l.b16 %v94
  %v812 = vunpack.c.l.b16 %v95
  %v813 = vunpack.c.l.b16 %v96
  %v814 = vunpack.c.l.b16 %v97
  %v815 = vunpack.c.l.b16 %v98
  %v816 = vunpack.c.l.b16 %v99
  %v817 = vunpack.c.l.b16 %v100
  %v818 = vunpack.c.l.b16 %v101
  %v819 = vunpack.c.l.b16 %v102
  %v820 = vunpack.c.l.b16 %v103
  %v821 = vunpack.c.l.b16 %v104
  %v822 = vunpack.c.l.b16 %v105
  %v823 = vunpack.c.l.b16 %v106
  %v824 = vunpack.c.l.b16 %v107
  %v825 = vunpack.c.l.b16 %v108
  %v826 = vunpack.c.l.b16 %v109
  %v827 = vunpack.c.l.b16 %v110
  %v828 = vunpack.c.l.b16 %v111
  %v829 = vunpack.c.l.b16 %v112
  %v830 = vunpack.c.l.b16 %v113
  %v831 = vunpack.c.l.b16 %v114
  %v832 = vunpack.c.l.b16 %v115
  %v833 = vunpack.c.l.b16 %v116
  %v834 = vunpack.c.l.b16 %v117
  %v835 = vunpack.c.l.b16 %v118
  %v836 = vunpack.c.l.b16 %v119
  %v837 = vunpack.c.l.b16 %v120
  %v838 = vunpack.c.l.b16 %v121
  %v839 = vunpack.c.l.b16 %v122
  %v840 = vunpack.c.l.b16 %v123
  %v841 = vunpack.c.l.b16 %v124
  %v842 = vunpack.c.l.b16 %v125
  %v843 = vunpack.c.l.b16 %v126
  %v844 = vunpack.c.l.b16 %v127
  %v845 = vunpack.c.l.b16 %v128
  %v846 = vunpack.c.l.b16 %v129
  %v847 = vunpack.c.l.b16 %v130
  %v848 = vunpack.c.l.b16 %v131
  %v849 = vunpack.c.l.b16 %v132
  %v850 = vunpack.c.l.b16 %v133
  %v851 = vunpack.c.l.b16 %v134
  %v852 = vunpack.c.l.b16 %v135
  %v853 = vunpack.c.l.b16 %v136
  %v854 = vunpack.c.l.b16 %v137
  %v855 = vunpack.c.l.b16 %v138
  %v856 = vunpack.c.l.b16 %v139
  %v857 = vunpack.c.l.b16 %v140
  %v858 = vunpack.c.l.b16 %v141
  %v859 = vunpack.c.l.b16 %v142
  %v860 = vunpack.c.l.b16 %v143
  %v861 = vunpack.c.l.b16 %v144
  %v862 = vunpack.c.l.b16 %v145
  %v863 = vunpack.c.l.b16 %v146
  %v864 = vunpack.c.l.b16 %v147
  %v865 = vunpack.c.l.b16 %v148
  %v866 = vunpack.c.l.b16 %v149
  %v867 = vunpack.c.l.b16 %v150
  %v868 = vunpack.c.l.b16 %v151
  %v869 = vunpack.c.l.b16 %v152
  %v870 = vunpack.c.l.b16 %v153
  %v871 = vunpack.c.l.b16 %v154
  %v872 = vunpack.c.l.b16 %v155
  %v873 = vunpack.c.l.b16 %v156
  %v874 = vunpack.c.l.b16 %v157
  %v875 = vunpack.c.l.b16 %v158
  %v876 = vunpack.c.l.b16 %v159
  %v877 = vunpack.c.l.b16 %v160
  %v878 = vunpack.c.l.b16 %v161
  %v879 = vunpack.c.l.b16 %v162
  %v880 = vunpack.c.l.b16 %v163
  %v881 = vunpack.c.l.b16 %v164
  %v882 = vunpack.c.l.b16 %v165
  %v883 = vunpack.c.l.b16 %v166
  %v884 = vunpack.c.l.b16 %v167
  %v885 = vunpack.c.l.b16 %v168
  %v886 = vunpack.c.l.b16 %v169
  %v887 = vunpack.c.l.b16 %v170
  %v888 = vunpack.c.l.b16 %v171
  %v889 = vunpack.c.l.b16 %v172
  %v890 = vunpack.c.l.b16 %v173
  %v891 = vunpack.c.l.b16 %v174
  %v892 = vunpack.c.l.b16 %v175
  %v893 = vunpack.c.l.b16 %v176
  %v894 = vunpack.c.l.b16 %v177
  %v895 = vunpack.c.l.b16 %v178
  %v896 = vunpack.c.l.b16 %v179
  %v897 = vunpack.c.l.b16 %v180
  %v898 = vunpack.c.l.b16 %v181
  %v899 = vunpack.c.l.b16 %v182
  %v900 = vunpack.c.l.b16 %v183
  %v901 = vunpack.c.l.b16 %v184
  %v902 = vunpack.c.l.b16 %v185
  %v903 = vunpack.c.l.b16 %v186
  %v904 = vunpack.c.l.b16 %v187
  %v905 = vunpack.c.l.b16 %v188
  %v906 = vunpack.c.l.b16 %v189
  %v907 = vunpack.c.l.b16 %v190
  %v908 = vunpack.c.l.b16 %v191
  %v909 = vunpack.c.l.b16 %v192
  %v910 = vunpack.c.l.b16 %v193
  %v911 = vunpack.c.l.b16 %v194
  %v912 = vunpack.c.l.b16 %v195
  %v913 = vunpack.c.l.b16 %v196
  %v914 = vunpack.c.l.b16 %v197
  %v915 = vunpack.c.l.b16 %v198
  %v916 = vunpack.c.l.b16 %v199
  %v917 = vunpack.c.l.b16 %v200
  %v918 = vunpack.c.l.b16 %v201
  %v919 = vunpack.c.l.b16 %v202
  %v920 = vunpack.c.l.b16 %v203
  %v921 = vunpack.c.l.b16 %v204
  %v922 = vunpack.c.l.b16 %v205
  %v923 = vunpack.c.l.b16 %v206
  %v924 = vunpack.c.l.b16 %v207
  %v925 = vunpack.c.l.b16 %v208
  %v926 = vunpack.c.l.b16 %v209
  %v927 = vunpack.c.l.b16 %v210
  %v928 = vunpack.c.l.b16 %v211
  %v929 = vunpack.c.l.b16 %v212
  %v930 = vunpack.c.l.b16 %v213
  %v931 = vunpack.c.l.b16 %v214
  %v932 = vunpack.c.l.b16 %v215
  %v933 = vunpack.c.l.b16 %v216
  %v934 = vunpack.c.l.b16 %v217
  %v935 = vunpack.c.l.b16 %v218
  %v936 = vunpack.c.l.b16 %v219
  %v937 = vunpack.c.l.b16 %v220
  %v938 = vunpack.c.l.b16 %v221
  %v939 = vunpack.c.l.b16 %v222
  %v940 = vunpack.c.l.b16 %v223
  %v941 = vunpack.c.l.b16 %v224
  %v942 = vunpack.c.l.b16 %v225
  %v943 = vunpack.c.l.b16 %v226
  %v944 = vunpack.c.l.b16 %v227
  %v945 = vunpack.c.l.b16 %v228
  %v946 = vunpack.c.l.b16 %v229
  %v947 = vunpack.c.l.b16 %v230
  %v948 = vunpack.c.l.b16 %v231
  %v949 = vunpack.c.l.b16 %v232
  %v950 = vunpack.c.l.b16 %v233
  %v951 = vunpack.c.l.b16 %v234
  %v952 = vunpack.c.l.b16 %v235
  %v953 = vunpack.c.l.b16 %v236
  %v954 = vunpack.c.l.b16 %v237
  %v955 = vunpack.c.l.b16 %v238
  %v956 = vunpack.c.l.b16 %v239
  %v957 = vunpack.c.l.b16 %v240
  %v958 = vunpack.c.l.b16 %v241
  %v959 = vunpack.c.l.b16 %v242
  %v960 = vunpack.c.l.b16 %v243
  %v961 = vunpack.c.l.b16 %v244
  %v962 = vunpack.c.l.b16 %v245
  %v963 = vunpack.c.l.b16 %v246
  %v964 = vunpack.c.l.b16 %v247
  %v965 = vunpack.c.l.b16 %v248
  %v966 = vunpack.c.l.b16 %v249
  %v967 = vunpack.c.l.b16 %v250
  %v968 = vunpack.c.l.b16 %v251
  %v969 = vunpack.c.l.b16 %v252
  %v970 = vunpack.c.l.b16 %v253
  %v971 = vunpack.c.l.b16 %v254
  %v972 = vunpack.c.l.b16 %v255
  %v973 = vunpack.c.l.b16 %v256
  %v974 = vunpack.c.l.b16 %v257
  %v975 = vunpack.c.l.b16 %v258
  %v976 = vunpack.c.l.b16 %v259
  %v977 = vunpack.c.l.b16 %v260
  %v978 = vunpack.c.l.b16 %v261
  %v979 = vunpack.c.l.b16 %v262
  %v980 = vunpack.c.l.b16 %v263
  %v981 = vunpack.c.l.b16 %v264
  %v982 = vunpack.c.l.b16 %v265
  %v983 = vunpack.c.l.b16 %v266
  %v984 = vunpack.c.l.b16 %v267
  %v985 = vunpack.c.l.b16 %v268
  %v986 = vunpack.c.l.b16 %v269
  %v987 = vunpack.c.l.b16 %v270
  %v988 = vunpack.c.l.b16 %v271
  %v989 = vunpack.c.l.b16 %v272
  %v990 = vunpack.c.l.b16 %v273
  %v991 = vunpack.c.l.b16 %v274
  %v992 = vunpack.c.l.b16 %v275
  %v993 = vunpack.c.l.b16 %v276
  %v994 = vunpack.c.l.b16 %v277
  %v995 = vunpack.c.l.b16 %v278
  %v996 = vunpack.c.l.b16 %v279
  %v997 = vunpack.c.l.b16 %v280
  %v998 = vunpack.c.l.b16 %v281
  %v999 = vunpack.c.l.b16 %v282
  %v1000 = vunpack.c.l.b16 %v283
  %v1001 = vunpack.c.l.b16 %v284
  %v1002 = vunpack.c.l.b16 %v285
  %v1003 = vunpack.c.l.b16 %v286
  %v1004 = vunpack.c.l.b16 %v287
  %v1005 = vunpack.c.l.b16 %v288
  %v1006 = vunpack.c.l.b16 %v289
  %v1007 = vunpack.c.l.b16 %v290
  %v1008 = vunpack.c.l.b16 %v291
  %v1009 = vunpack.c.l.b16 %v292
  %v1010 = vunpack.c.l.b16 %v293
  %v1011 = vunpack.c.l.b16 %v294
  %v1012 = vunpack.c.l.b16 %v295
  %v1013 = vunpack.c.l.b16 %v296
  %v1014 = vunpack.c.l.b16 %v297
  %v1015 = vunpack.c.l.b16 %v298
  %v1016 = vunpack.c.l.b16 %v299
  %v1017 = vunpack.c.l.b16 %v300
  %v1018 = vunpack.c.l.b16 %v301
  %v1019 = vunpack.c.l.b16 %v302
  %v1020 = vunpack.c.l.b16 %v303
  %v1021 = vunpack.c.l.b16 %v304
  %v1022 = vunpack.c.l.b16 %v305
  %v1023 = vunpack.c.l.b16 %v306
  %v1024 = vunpack.c.l.b16 %v307
  %v1025 = vunpack.c.l.b16 %v308
  %v1026 = vunpack.c.l.b16 %v309
  %v1027 = vunpack.c.l.b16 %v310
  %v1028 = vunpack.c.l.b16 %v311
  %v1029 = vunpack.c.l.b16 %v312
  %v1030 = vunpack.c.l.b16 %v313
  %v1031 = vunpack.c.l.b16 %v314
  %v1032 = vunpack.c.l.b16 %v315
  %v1033 = vunpack.c.l.b16 %v316
  %v1034 = vunpack.c.l.b16 %v317
  %v1035 = vunpack.c.l.b16 %v318
  %v1036 = vunpack.c.l.b16 %v319
  %v1037 = vunpack.c.l.b16 %v320
  %v1038 = vunpack.c.l.b16 %v321
  %v1039 = vunpack.c.l.b16 %v322
  %v1040 = vunpack.c.l.b16 %v323
  %v1041 = vunpack.c.l.b16 %v324
  %v1042 = vunpack.c.l.b16 %v325
  %v1043 = vunpack.c.l.b16 %v326
  %v1044 = vunpack.c.l.b16 %v327
  %v1045 = vunpack.c.l.b16 %v328
  %v1046 = vunpack.c.l.b16 %v329
  %v1047 = vunpack.c.l.b16 %v330
  %v1048 = vunpack.c.l.b16 %v331
  %v1049 = vunpack.c.l.b16 %v332
  %v1050 = vunpack.c.l.b16 %v333
  %v1051 = vunpack.c.l.b16 %v334
  %v1052 = vunpack.c.l.b16 %v335
  %v1053 = vunpack.c.l.b16 %v336
  %v1054 = vunpack.c.l.b16 %v337
  %v1055 = vunpack.c.l.b16 %v338
  %v1056 = vunpack.c.l.b16 %v339
  %v1057 = vunpack.c.l.b16 %v340
  %v1058 = vunpack.c.l.b16 %v341
  %v1059 = vunpack.c.l.b16 %v342
  %v1060 = vunpack.c.l.b16 %v343
  %v1061 = vunpack.c.l.b16 %v344
  %v1062 = vpack.c.b16 %v743, %v742
  %v1063 = vpack.c.b16 %v745, %v744
  %v1064 = vpack.c.b16 %v747, %v746
  %v1065 = vpack.c.b16 %v749, %v748
  %v1066 = vpack.c.b16 %v751, %v750
  %v1067 = vpack.c.b16 %v753, %v752
  %v1068 = vpack.c.b16 %v755, %v754
  %v1069 = vpack.c.b16 %v757, %v756
  %v1070 = vpack.c.b16 %v759, %v758
  %v1071 = vpack.c.b16 %v761, %v760
  %v1072 = vpack.c.b16 %v763, %v762
  %v1073 = vpack.c.b16 %v765, %v764
  %v1074 = vpack.c.b16 %v767, %v766
  %v1075 = vpack.c.b16 %v769, %v768
  %v1076 = vpack.c.b16 %v771, %v770
  %v1077 = vpack.c.b16 %v773, %v772
  %v1078 = vpack.c.b16 %v775, %v774
  %v1079 = vpack.c.b16 %v777, %v776
  %v1080 = vpack.c.b16 %v779, %v778
  %v1081 = vpack.c.b16 %v781, %v780
  %v1082 = vpack.c.b16 %v783, %v782
  %v1083 = vpack.c.b16 %v785, %v784
  %v1084 = vpack.c.b16 %v787, %v786
  %v1085 = vpack.c.b16 %v789, %v788
  %v1086 = vpack.c.b16 %v791, %v790
  %v1087 = vpack.c.b16 %v793, %v792
  %v1088 = vpack.c.b16 %v795, %v794
  %v1089 = vpack.c.b16 %v797, %v796
  %v1090 = vpack.c.b16 %v799, %v798
  %v1091 = vpack.c.b16 %v801, %v800
  %v1092 = vpack.c.b16 %v803, %v802
  %v1093 = vpack.c.b16 %v805, %v804
  %v1094 = vpack.c.b16 %v807, %v806
  %v1095 = vpack.c.b16 %v809, %v808
  %v1096 = vpack.c.b16 %v811, %v810
  %v1097 = vpack.c.b16 %v813, %v812
  %v1098 = vpack.c.b16 %v815, %v814
  %v1099 = vpack.c.b16 %v817, %v816
  %v1100 = vpack.c.b16 %v819, %v818
  %v1101 = vpack.c.b16 %v821, %v820
  %v1102 = vpack.c.b16 %v823, %v822
  %v1103 = vpack.c.b16 %v825, %v824
  %v1104 = vpack.c.b16 %v827, %v826
  %v1105 = vpack.c.b16 %v829, %v828
  %v1106 = vpack.c.b16 %v831, %v830
  %v1107 = vpack.c.b16 %v833, %v832
  %v1108 = vpack.c.b16 %v835, %v834
  %v1109 = vpack.c.b16 %v837, %v836
  %v1110 = vpack.c.b16 %v839, %v838
  %v1111 = vpack.c.b16 %v841, %v840
  %v1112 = vpack.c.b16 %v843, %v842
  %v1113 = vpack.c.b16 %v845, %v844
  %v1114 = vpack.c.b16 %v847, %v846
  %v1115 = vpack.c.b16 %v849, %v848
  %v1116 = vpack.c.b16 %v851, %v850
  %v1117 = vpack.c.b16 %v853, %v852
  %v1118 = vpack.c.b16 %v855, %v854
  %v1119 = vpack.c.b16 %v857, %v856
  %v1120 = vpack.c.b16 %v859, %v858
  %v1121 = vpack.c.b16 %v861, %v860
  %v1122 = vpack.c.b16 %v863, %v862
  %v1123 = vpack.c.b16 %v865, %v864
  %v1124 = vpack.c.b16 %v867, %v866
  %v1125 = vpack.c.b16 %v869, %v868
  %v1126 = vpack.c.b16 %v871, %v870
  %v1127 = vpack.c.b16 %v873, %v872
  %v1128 = vpack.c.b16 %v875, %v874
  %v1129 = vpack.c.b16 %v877, %v876
  %v1130 = vpack.c.b16 %v879, %v878
  %v1131 = vpack.c.b16 %v881, %v880
  %v1132 = vpack.c.b16 %v883, %v882
  %v1133 = vpack.c.b16 %v885, %v884
  %v1134 = vpack.c.b16 %v887, %v886
  %v1135 = vpack.c.b16 %v889, %v888
  %v1136 = vpack.c.b16 %v891, %v890
  %v1137 = vpack.c.b16 %v893, %v892
  %v1138 = vpack.c.b16 %v895, %v894
  %v1139 = vpack.c.b16 %v897, %v896
  %v1140 = vpack.c.b16 %v899, %v898
  %v1141 = vpack.c.b16 %v901, %v900
  %v1142 = vpack.c.b16 %v903, %v902
  %v1143 = vpack.c.b16 %v905, %v904
  %v1144 = vpack.c.b16 %v907, %v906
  %v1145 = vpack.c.b16 %v909, %v908
  %v1146 = vpack.c.b16 %v911, %v910
  %v1147 = vpack.c.b16 %v913, %v912
  %v1148 = vpack.c.b16 %v915, %v914
  %v1149 = vpack.c.b16 %v917, %v916
  %v1150 = vpack.c.b16 %v919, %v918
  %v1151 = vpack.c.b16 %v921, %v920
  %v1152 = vpack.c.b16 %v923, %v922
  %v1153 = vpack.c.b16 %v925, %v924
  %v1154 = vpack.c.b16 %v927, %v926
  %v1155 = vpack.c.b16 %v929, %v928
  %v1156 = vpack.c.b16 %v931, %v930
  %v1157 = vpack.c.b16 %v933, %v932
  %v1158 = vpack.c.b16 %v935, %v934
  %v1159 = vpack.c.b16 %v937, %v936
  %v1160 = vpack.c.b16 %v939, %v938
  %v1161 = vpack.c.b16 %v941, %v940
  %v1162 = vpack.c.b16 %v943, %v942
  %v1163 = vpack.c.b16 %v945, %v944
  %v1164 = vpack.c.b16 %v947, %v946
  %v1165 = vpack.c.b16 %v949, %v948
  %v1166 = vpack.c.b16 %v951, %v950
  %v1167 = vpack.c.b16 %v953, %v952
  %v1168 = vpack.c.b16 %v955, %v954
  %v1169 = vpack.c.b16 %v957, %v956
  %v1170 = vpack.c.b16 %v959, %v958
  %v1171 = vpack.c.b16 %v961, %v960
  %v1172 = vpack.c.b16 %v963, %v962
  %v1173 = vpack.c.b16 %v965, %v964
  %v1174 = vpack.c.b16 %v967, %v966
  %v1175 = vpack.c.b16 %v969, %v968
  %v1176 = vpack.c.b16 %v971, %v970
  %v1177 = vpack.c.b16 %v973, %v972
  %v1178 = vpack.c.b16 %v975, %v974
  %v1179 = vpack.c.b16 %v977, %v976
  %v1180 = vpack.c.b16 %v979, %v978
  %v1181 = vpack.c.b16 %v981, %v980
  %v1182 = vpack.c.b16 %v983, %v982
  %v1183 = vpack.c.b16 %v985, %v984
  %v1184 = vpack.c.b16 %v987, %v986
  %v1185 = vpack.c.b16 %v989, %v988
  %v1186 = vpack.c.b16 %v991, %v990
  %v1187 = vpack.c.b16 %v993, %v992
  %v1188 = vpack.c.b16 %v995, %v994
  %v1189 = vpack.c.b16 %v997, %v996
  %v1190 = vpack.c.b16 %v999, %v998
  %v1191 = vpack.c.b16 %v1001, %v1000
  %v1192 = vpack.c.b16 %v1003, %v1002
  %v1193 = vpack.c.b16 %v1005, %v1004
  %v1194 = vpack.c.b16 %v1007, %v1006
  %v1195 = vpack.c.b16 %v1009, %v1008
  %v1196 = vpack.c.b16 %v1011, %v1010
  %v1197 = vpack.c.b16 %v1013, %v1012
  %v1198 = vpack.c.b16 %v1015, %v1014
  %v1199 = vpack.c.b16 %v1017, %v1016
  %v1200 = vpack.c.b16 %v1019, %v1018
  %v1201 = vpack.c.b16 %v1021, %v1020
  %v1202 = vpack.c.b16 %v1023, %v1022
  %v1203 = vpack.c.b16 %v1025, %v1024
  %v1204 = vpack.c.b16 %v1027, %v1026
  %v1205 = vpack.c.b16 %v1029, %v1028
  %v1206 = vpack.c.b16 %v1031, %v1030
  %v1207 = vpack.c.b16 %v1033, %v1032
  %v1208 = vpack.c.b16 %v1035, %v1034
  %v1209 = vpack.c.b16 %v1037, %v1036
  %v1210 = vpack.c.b16 %v1039, %v1038
  %v1211 = vpack.c.b16 %v1041, %v1040
  %v1212 = vpack.c.b16 %v1043, %v1042
  %v1213 = vpack.c.b16 %v1045, %v1044
  %v1214 = vpack.c.b16 %v1047, %v1046
  %v1215 = vpack.c.b16 %v1049, %v1048
  %v1216 = vpack.c.b16 %v1051, %v1050
  %v1217 = vpack.c.b16 %v1053, %v1052
  %v1218 = vpack.c.b16 %v1055, %v1054
  %v1219 = vpack.c.b16 %v1057, %v1056
  %v1220 = vpack.c.b16 %v1059, %v1058
  %v1221 = vpack.c.b16 %v1061, %v1060
  %1382 = vmatprep.subr.bf16.mxu0 0
  %1383 = vmatpush1.bf16.msra.mxu0 %v1062
  %1384 = vmatprep.subr.bf16.mxu0 0
  %1385 = vmatpush1.bf16.msra.mxu0 %v1063
  %1386 = vmatprep.subr.bf16.mxu0 0
  %1387 = vmatpush1.bf16.msra.mxu0 %v1064
  %1388 = vmatprep.subr.bf16.mxu0 0
  %1389 = vmatpush1.bf16.msra.mxu0 %v1065
  %1390 = vmatprep.subr.bf16.mxu0 0
  %1391 = vmatpush1.bf16.msra.mxu0 %v1066
  %1392 = vmatprep.subr.bf16.mxu0 0
  %1393 = vmatpush1.bf16.msra.mxu0 %v1067
  %1394 = vmatprep.subr.bf16.mxu0 0
  %1395 = vmatpush1.bf16.msra.mxu0 %v1068
  %1396 = vmatprep.subr.bf16.mxu0 0
  %1397 = vmatpush1.bf16.msra.mxu0 %v1069
  %1398 = vmatprep.subr.bf16.mxu0 0
  %1399 = vmatpush1.bf16.msra.mxu0 %v1070
  %1400 = vmatprep.subr.bf16.mxu0 0
  %1401 = vmatpush1.bf16.msra.mxu0 %v1071
  %1402 = vmatprep.subr.bf16.mxu0 0
  %1403 = vmatpush1.bf16.msra.mxu0 %v1072
  %1404 = vmatprep.subr.bf16.mxu0 0
  %1405 = vmatpush1.bf16.msra.mxu0 %v1073
  %1406 = vmatprep.subr.bf16.mxu0 0
  %1407 = vmatpush1.bf16.msra.mxu0 %v1074
  %1408 = vmatprep.subr.bf16.mxu0 0
  %1409 = vmatpush1.bf16.msra.mxu0 %v1075
  %1410 = vmatprep.subr.bf16.mxu0 0
  %1411 = vmatpush1.bf16.msra.mxu0 %v1076
  %1412 = vmatprep.subr.bf16.mxu0 0
  %1413 = vmatpush1.bf16.msra.mxu0 %v1077
  %1414 = vmatprep.mubr.bf16.mxu0 %v383
  %1415 = vmatmul.mubr.bf16.gmra.mrb[0].mxu0 %v382
  %v1416 = vpop.f32.mrb[0].mxu0
  %v1417 = vadd.f32 %v350, %v1416
  %v1418 = vpop.f32.mrb[0].mxu0
  %v1419 = vpop.f32.mrb[0].mxu0
  %v1420 = vpop.f32.mrb[0].mxu0
  %1421 = vdwg.mxu0
  %1422 = vmatprep.subr.bf16.mxu0 0
  %1423 = vmatpush1.bf16.msra.mxu0 %v1078
  %1424 = vmatprep.subr.bf16.mxu0 0
  %1425 = vmatpush1.bf16.msra.mxu0 %v1079
  %1426 = vmatprep.subr.bf16.mxu0 0
  %1427 = vmatpush1.bf16.msra.mxu0 %v1080
  %1428 = vmatprep.subr.bf16.mxu0 0
  %1429 = vmatpush1.bf16.msra.mxu0 %v1081
  %1430 = vmatprep.subr.bf16.mxu0 0
  %1431 = vmatpush1.bf16.msra.mxu0 %v1082
  %1432 = vmatprep.subr.bf16.mxu0 0
  %1433 = vmatpush1.bf16.msra.mxu0 %v1083
  %1434 = vmatprep.subr.bf16.mxu0 0
  %1435 = vmatpush1.bf16.msra.mxu0 %v1084
  %1436 = vmatprep.subr.bf16.mxu0 0
  %1437 = vmatpush1.bf16.msra.mxu0 %v1085
  %1438 = vmatprep.subr.bf16.mxu0 0
  %1439 = vmatpush1.bf16.msra.mxu0 %v1086
  %1440 = vmatprep.subr.bf16.mxu0 0
  %1441 = vmatpush1.bf16.msra.mxu0 %v1087
  %1442 = vmatprep.subr.bf16.mxu0 0
  %1443 = vmatpush1.bf16.msra.mxu0 %v1088
  %1444 = vmatprep.subr.bf16.mxu0 0
  %1445 = vmatpush1.bf16.msra.mxu0 %v1089
  %1446 = vmatprep.subr.bf16.mxu0 0
  %1447 = vmatpush1.bf16.msra.mxu0 %v1090
  %1448 = vmatprep.subr.bf16.mxu0 0
  %1449 = vmatpush1.bf16.msra.mxu0 %v1091
  %1450 = vmatprep.subr.bf16.mxu0 0
  %1451 = vmatpush1.bf16.msra.mxu0 %v1092
  %1452 = vmatprep.subr.bf16.mxu0 0
  %1453 = vmatpush1.bf16.msra.mxu0 %v1093
  %1454 = vmatprep.mubr.bf16.mxu0 %v385
  %1455 = vmatmul.mubr.bf16.gmra.mrb[0].mxu0 %v384
  %v1456 = vpop.f32.mrb[0].mxu0
  %v1457 = vadd.f32 %v1417, %v1456
  %v1458 = vpop.f32.mrb[0].mxu0
  %v1459 = vpop.f32.mrb[0].mxu0
  %v1460 = vpop.f32.mrb[0].mxu0
  %1461 = vdwg.mxu0
  %1462 = vmatprep.subr.bf16.mxu0 0
  %1463 = vmatpush1.bf16.msra.mxu0 %v1094
  %1464 = vmatprep.subr.bf16.mxu0 0
  %1465 = vmatpush1.bf16.msra.mxu0 %v1095
  %1466 = vmatprep.subr.bf16.mxu0 0
  %1467 = vmatpush1.bf16.msra.mxu0 %v1096
  %1468 = vmatprep.subr.bf16.mxu0 0
  %1469 = vmatpush1.bf16.msra.mxu0 %v1097
  %1470 = vmatprep.subr.bf16.mxu0 0
  %1471 = vmatpush1.bf16.msra.mxu0 %v1098
  %1472 = vmatprep.subr.bf16.mxu0 0
  %1473 = vmatpush1.bf16.msra.mxu0 %v1099
  %1474 = vmatprep.subr.bf16.mxu0 0
  %1475 = vmatpush1.bf16.msra.mxu0 %v1100
  %1476 = vmatprep.subr.bf16.mxu0 0
  %1477 = vmatpush1.bf16.msra.mxu0 %v1101
  %1478 = vmatprep.subr.bf16.mxu0 0
  %1479 = vmatpush1.bf16.msra.mxu0 %v1102
  %1480 = vmatprep.subr.bf16.mxu0 0
  %1481 = vmatpush1.bf16.msra.mxu0 %v1103
  %1482 = vmatprep.subr.bf16.mxu0 0
  %1483 = vmatpush1.bf16.msra.mxu0 %v1104
  %1484 = vmatprep.subr.bf16.mxu0 0
  %1485 = vmatpush1.bf16.msra.mxu0 %v1105
  %1486 = vmatprep.subr.bf16.mxu0 0
  %1487 = vmatpush1.bf16.msra.mxu0 %v1106
  %1488 = vmatprep.subr.bf16.mxu0 0
  %1489 = vmatpush1.bf16.msra.mxu0 %v1107
  %1490 = vmatprep.subr.bf16.mxu0 0
  %1491 = vmatpush1.bf16.msra.mxu0 %v1108
  %1492 = vmatprep.subr.bf16.mxu0 0
  %1493 = vmatpush1.bf16.msra.mxu0 %v1109
  %1494 = vmatprep.mubr.bf16.mxu0 %v387
  %1495 = vmatmul.mubr.bf16.gmra.mrb[0].mxu0 %v386
  %v1496 = vpop.f32.mrb[0].mxu0
  %v1497 = vadd.f32 %v1457, %v1496
  %v1498 = vpop.f32.mrb[0].mxu0
  %v1499 = vpop.f32.mrb[0].mxu0
  %v1500 = vpop.f32.mrb[0].mxu0
  %1501 = vdwg.mxu0
  %1502 = vmatprep.subr.bf16.mxu0 0
  %1503 = vmatpush1.bf16.msra.mxu0 %v1110
  %1504 = vmatprep.subr.bf16.mxu0 0
  %1505 = vmatpush1.bf16.msra.mxu0 %v1111
  %1506 = vmatprep.subr.bf16.mxu0 0
  %1507 = vmatpush1.bf16.msra.mxu0 %v1112
  %1508 = vmatprep.subr.bf16.mxu0 0
  %1509 = vmatpush1.bf16.msra.mxu0 %v1113
  %1510 = vmatprep.subr.bf16.mxu0 0
  %1511 = vmatpush1.bf16.msra.mxu0 %v1114
  %1512 = vmatprep.subr.bf16.mxu0 0
  %1513 = vmatpush1.bf16.msra.mxu0 %v1115
  %1514 = vmatprep.subr.bf16.mxu0 0
  %1515 = vmatpush1.bf16.msra.mxu0 %v1116
  %1516 = vmatprep.subr.bf16.mxu0 0
  %1517 = vmatpush1.bf16.msra.mxu0 %v1117
  %1518 = vmatprep.subr.bf16.mxu0 0
  %1519 = vmatpush1.bf16.msra.mxu0 %v1118
  %1520 = vmatprep.subr.bf16.mxu0 0
  %1521 = vmatpush1.bf16.msra.mxu0 %v1119
  %1522 = vmatprep.subr.bf16.mxu0 0
  %1523 = vmatpush1.bf16.msra.mxu0 %v1120
  %1524 = vmatprep.subr.bf16.mxu0 0
  %1525 = vmatpush1.bf16.msra.mxu0 %v1121
  %1526 = vmatprep.subr.bf16.mxu0 0
  %1527 = vmatpush1.bf16.msra.mxu0 %v1122
  %1528 = vmatprep.subr.bf16.mxu0 0
  %1529 = vmatpush1.bf16.msra.mxu0 %v1123
  %1530 = vmatprep.subr.bf16.mxu0 0
  %1531 = vmatpush1.bf16.msra.mxu0 %v1124
  %1532 = vmatprep.subr.bf16.mxu0 0
  %1533 = vmatpush1.bf16.msra.mxu0 %v1125
  %1534 = vmatprep.mubr.bf16.mxu0 %v389
  %1535 = vmatmul.mubr.bf16.gmra.mrb[0].mxu0 %v388
  %v1536 = vpop.f32.mrb[0].mxu0
  %v1537 = vadd.f32 %v1497, %v1536
  %v1538 = vpop.f32.mrb[0].mxu0
  %v1539 = vpop.f32.mrb[0].mxu0
  %v1540 = vpop.f32.mrb[0].mxu0
  %1541 = vdwg.mxu0
  %1542 = vmatprep.subr.bf16.mxu0 0
  %1543 = vmatpush1.bf16.msra.mxu0 %v1126
  %1544 = vmatprep.subr.bf16.mxu0 0
  %1545 = vmatpush1.bf16.msra.mxu0 %v1127
  %1546 = vmatprep.subr.bf16.mxu0 0
  %1547 = vmatpush1.bf16.msra.mxu0 %v1128
  %1548 = vmatprep.subr.bf16.mxu0 0
  %1549 = vmatpush1.bf16.msra.mxu0 %v1129
  %1550 = vmatprep.subr.bf16.mxu0 0
  %1551 = vmatpush1.bf16.msra.mxu0 %v1130
  %1552 = vmatprep.subr.bf16.mxu0 0
  %1553 = vmatpush1.bf16.msra.mxu0 %v1131
  %1554 = vmatprep.subr.bf16.mxu0 0
  %1555 = vmatpush1.bf16.msra.mxu0 %v1132
  %1556 = vmatprep.subr.bf16.mxu0 0
  %1557 = vmatpush1.bf16.msra.mxu0 %v1133
  %1558 = vmatprep.subr.bf16.mxu0 0
  %1559 = vmatpush1.bf16.msra.mxu0 %v1134
  %1560 = vmatprep.subr.bf16.mxu0 0
  %1561 = vmatpush1.bf16.msra.mxu0 %v1135
  %1562 = vmatprep.subr.bf16.mxu0 0
  %1563 = vmatpush1.bf16.msra.mxu0 %v1136
  %1564 = vmatprep.subr.bf16.mxu0 0
  %1565 = vmatpush1.bf16.msra.mxu0 %v1137
  %1566 = vmatprep.subr.bf16.mxu0 0
  %1567 = vmatpush1.bf16.msra.mxu0 %v1138
  %1568 = vmatprep.subr.bf16.mxu0 0
  %1569 = vmatpush1.bf16.msra.mxu0 %v1139
  %1570 = vmatprep.subr.bf16.mxu0 0
  %1571 = vmatpush1.bf16.msra.mxu0 %v1140
  %1572 = vmatprep.subr.bf16.mxu0 0
  %1573 = vmatpush1.bf16.msra.mxu0 %v1141
  %1574 = vmatprep.mubr.bf16.mxu0 %v391
  %1575 = vmatmul.mubr.bf16.gmra.mrb[0].mxu0 %v390
  %v1576 = vpop.f32.mrb[0].mxu0
  %v1577 = vadd.f32 %v1537, %v1576
  %v1578 = vpop.f32.mrb[0].mxu0
  %v1579 = vpop.f32.mrb[0].mxu0
  %v1580 = vpop.f32.mrb[0].mxu0
  %1581 = vdwg.mxu0
  %1582 = vmatprep.subr.bf16.mxu0 0
  %1583 = vmatpush1.bf16.msra.mxu0 %v1142
  %1584 = vmatprep.subr.bf16.mxu0 0
  %1585 = vmatpush1.bf16.msra.mxu0 %v1143
  %1586 = vmatprep.subr.bf16.mxu0 0
  %1587 = vmatpush1.bf16.msra.mxu0 %v1144
  %1588 = vmatprep.subr.bf16.mxu0 0
  %1589 = vmatpush1.bf16.msra.mxu0 %v1145
  %1590 = vmatprep.subr.bf16.mxu0 0
  %1591 = vmatpush1.bf16.msra.mxu0 %v1146
  %1592 = vmatprep.subr.bf16.mxu0 0
  %1593 = vmatpush1.bf16.msra.mxu0 %v1147
  %1594 = vmatprep.subr.bf16.mxu0 0
  %1595 = vmatpush1.bf16.msra.mxu0 %v1148
  %1596 = vmatprep.subr.bf16.mxu0 0
  %1597 = vmatpush1.bf16.msra.mxu0 %v1149
  %1598 = vmatprep.subr.bf16.mxu0 0
  %1599 = vmatpush1.bf16.msra.mxu0 %v1150
  %1600 = vmatprep.subr.bf16.mxu0 0
  %1601 = vmatpush1.bf16.msra.mxu0 %v1151
  %1602 = vmatprep.subr.bf16.mxu0 0
  %1603 = vmatpush1.bf16.msra.mxu0 %v1152
  %1604 = vmatprep.subr.bf16.mxu0 0
  %1605 = vmatpush1.bf16.msra.mxu0 %v1153
  %1606 = vmatprep.subr.bf16.mxu0 0
  %1607 = vmatpush1.bf16.msra.mxu0 %v1154
  %1608 = vmatprep.subr.bf16.mxu0 0
  %1609 = vmatpush1.bf16.msra.mxu0 %v1155
  %1610 = vmatprep.subr.bf16.mxu0 0
  %1611 = vmatpush1.bf16.msra.mxu0 %v1156
  %1612 = vmatprep.subr.bf16.mxu0 0
  %1613 = vmatpush1.bf16.msra.mxu0 %v1157
  %1614 = vmatprep.mubr.bf16.mxu0 %v393
  %1615 = vmatmul.mubr.bf16.gmra.mrb[0].mxu0 %v392
  %v1616 = vpop.f32.mrb[0].mxu0
  %v1617 = vadd.f32 %v1577, %v1616
  %v1618 = vpop.f32.mrb[0].mxu0
  %v1619 = vpop.f32.mrb[0].mxu0
  %v1620 = vpop.f32.mrb[0].mxu0
  %1621 = vdwg.mxu0
  %1622 = vmatprep.subr.bf16.mxu0 0
  %1623 = vmatpush1.bf16.msra.mxu0 %v1158
  %1624 = vmatprep.subr.bf16.mxu0 0
  %1625 = vmatpush1.bf16.msra.mxu0 %v1159
  %1626 = vmatprep.subr.bf16.mxu0 0
  %1627 = vmatpush1.bf16.msra.mxu0 %v1160
  %1628 = vmatprep.subr.bf16.mxu0 0
  %1629 = vmatpush1.bf16.msra.mxu0 %v1161
  %1630 = vmatprep.subr.bf16.mxu0 0
  %1631 = vmatpush1.bf16.msra.mxu0 %v1162
  %1632 = vmatprep.subr.bf16.mxu0 0
  %1633 = vmatpush1.bf16.msra.mxu0 %v1163
  %1634 = vmatprep.subr.bf16.mxu0 0
  %1635 = vmatpush1.bf16.msra.mxu0 %v1164
  %1636 = vmatprep.subr.bf16.mxu0 0
  %1637 = vmatpush1.bf16.msra.mxu0 %v1165
  %1638 = vmatprep.subr.bf16.mxu0 0
  %1639 = vmatpush1.bf16.msra.mxu0 %v1166
  %1640 = vmatprep.subr.bf16.mxu0 0
  %1641 = vmatpush1.bf16.msra.mxu0 %v1167
  %1642 = vmatprep.subr.bf16.mxu0 0
  %1643 = vmatpush1.bf16.msra.mxu0 %v1168
  %1644 = vmatprep.subr.bf16.mxu0 0
  %1645 = vmatpush1.bf16.msra.mxu0 %v1169
  %1646 = vmatprep.subr.bf16.mxu0 0
  %1647 = vmatpush1.bf16.msra.mxu0 %v1170
  %1648 = vmatprep.subr.bf16.mxu0 0
  %1649 = vmatpush1.bf16.msra.mxu0 %v1171
  %1650 = vmatprep.subr.bf16.mxu0 0
  %1651 = vmatpush1.bf16.msra.mxu0 %v1172
  %1652 = vmatprep.subr.bf16.mxu0 0
  %1653 = vmatpush1.bf16.msra.mxu0 %v1173
  %1654 = vmatprep.mubr.bf16.mxu0 %v395
  %1655 = vmatmul.mubr.bf16.gmra.mrb[0].mxu0 %v394
  %v1656 = vpop.f32.mrb[0].mxu0
  %v1657 = vadd.f32 %v1617, %v1656
  %v1658 = vpop.f32.mrb[0].mxu0
  %v1659 = vpop.f32.mrb[0].mxu0
  %v1660 = vpop.f32.mrb[0].mxu0
  %1661 = vdwg.mxu0
  %1662 = vmatprep.subr.bf16.mxu0 0
  %1663 = vmatpush1.bf16.msra.mxu0 %v1174
  %1664 = vmatprep.subr.bf16.mxu0 0
  %1665 = vmatpush1.bf16.msra.mxu0 %v1175
  %1666 = vmatprep.subr.bf16.mxu0 0
  %1667 = vmatpush1.bf16.msra.mxu0 %v1176
  %1668 = vmatprep.subr.bf16.mxu0 0
  %1669 = vmatpush1.bf16.msra.mxu0 %v1177
  %1670 = vmatprep.subr.bf16.mxu0 0
  %1671 = vmatpush1.bf16.msra.mxu0 %v1178
  %1672 = vmatprep.subr.bf16.mxu0 0
  %1673 = vmatpush1.bf16.msra.mxu0 %v1179
  %1674 = vmatprep.subr.bf16.mxu0 0
  %1675 = vmatpush1.bf16.msra.mxu0 %v1180
  %1676 = vmatprep.subr.bf16.mxu0 0
  %1677 = vmatpush1.bf16.msra.mxu0 %v1181
  %1678 = vmatprep.subr.bf16.mxu0 0
  %1679 = vmatpush1.bf16.msra.mxu0 %v1182
  %1680 = vmatprep.subr.bf16.mxu0 0
  %1681 = vmatpush1.bf16.msra.mxu0 %v1183
  %1682 = vmatprep.subr.bf16.mxu0 0
  %1683 = vmatpush1.bf16.msra.mxu0 %v1184
  %1684 = vmatprep.subr.bf16.mxu0 0
  %1685 = vmatpush1.bf16.msra.mxu0 %v1185
  %1686 = vmatprep.subr.bf16.mxu0 0
  %1687 = vmatpush1.bf16.msra.mxu0 %v1186
  %1688 = vmatprep.subr.bf16.mxu0 0
  %1689 = vmatpush1.bf16.msra.mxu0 %v1187
  %1690 = vmatprep.subr.bf16.mxu0 0
  %1691 = vmatpush1.bf16.msra.mxu0 %v1188
  %1692 = vmatprep.subr.bf16.mxu0 0
  %1693 = vmatpush1.bf16.msra.mxu0 %v1189
  %1694 = vmatprep.mubr.bf16.mxu0 %v397
  %1695 = vmatmul.mubr.bf16.gmra.mrb[0].mxu0 %v396
  %v1696 = vpop.f32.mrb[0].mxu0
  %v1697 = vadd.f32 %v1657, %v1696
  %v1698 = vpop.f32.mrb[0].mxu0
  %v1699 = vpop.f32.mrb[0].mxu0
  %v1700 = vpop.f32.mrb[0].mxu0
  %1701 = vdwg.mxu0
  %1702 = vmatprep.subr.bf16.mxu0 0
  %1703 = vmatpush1.bf16.msra.mxu0 %v1190
  %1704 = vmatprep.subr.bf16.mxu0 0
  %1705 = vmatpush1.bf16.msra.mxu0 %v1191
  %1706 = vmatprep.subr.bf16.mxu0 0
  %1707 = vmatpush1.bf16.msra.mxu0 %v1192
  %1708 = vmatprep.subr.bf16.mxu0 0
  %1709 = vmatpush1.bf16.msra.mxu0 %v1193
  %1710 = vmatprep.subr.bf16.mxu0 0
  %1711 = vmatpush1.bf16.msra.mxu0 %v1194
  %1712 = vmatprep.subr.bf16.mxu0 0
  %1713 = vmatpush1.bf16.msra.mxu0 %v1195
  %1714 = vmatprep.subr.bf16.mxu0 0
  %1715 = vmatpush1.bf16.msra.mxu0 %v1196
  %1716 = vmatprep.subr.bf16.mxu0 0
  %1717 = vmatpush1.bf16.msra.mxu0 %v1197
  %1718 = vmatprep.subr.bf16.mxu0 0
  %1719 = vmatpush1.bf16.msra.mxu0 %v1198
  %1720 = vmatprep.subr.bf16.mxu0 0
  %1721 = vmatpush1.bf16.msra.mxu0 %v1199
  %1722 = vmatprep.subr.bf16.mxu0 0
  %1723 = vmatpush1.bf16.msra.mxu0 %v1200
  %1724 = vmatprep.subr.bf16.mxu0 0
  %1725 = vmatpush1.bf16.msra.mxu0 %v1201
  %1726 = vmatprep.subr.bf16.mxu0 0
  %1727 = vmatpush1.bf16.msra.mxu0 %v1202
  %1728 = vmatprep.subr.bf16.mxu0 0
  %1729 = vmatpush1.bf16.msra.mxu0 %v1203
  %1730 = vmatprep.subr.bf16.mxu0 0
  %1731 = vmatpush1.bf16.msra.mxu0 %v1204
  %1732 = vmatprep.subr.bf16.mxu0 0
  %1733 = vmatpush1.bf16.msra.mxu0 %v1205
  %1734 = vmatprep.mubr.bf16.mxu0 %v399
  %1735 = vmatmul.mubr.bf16.gmra.mrb[0].mxu0 %v398
  %v1736 = vpop.f32.mrb[0].mxu0
  %v1737 = vadd.f32 %v1697, %v1736
  %v1738 = vpop.f32.mrb[0].mxu0
  %v1739 = vpop.f32.mrb[0].mxu0
  %v1740 = vpop.f32.mrb[0].mxu0
  %1741 = vdwg.mxu0
  %1742 = vmatprep.subr.bf16.mxu0 0
  %1743 = vmatpush1.bf16.msra.mxu0 %v1206
  %1744 = vmatprep.subr.bf16.mxu0 0
  %1745 = vmatpush1.bf16.msra.mxu0 %v1207
  %1746 = vmatprep.subr.bf16.mxu0 0
  %1747 = vmatpush1.bf16.msra.mxu0 %v1208
  %1748 = vmatprep.subr.bf16.mxu0 0
  %1749 = vmatpush1.bf16.msra.mxu0 %v1209
  %1750 = vmatprep.subr.bf16.mxu0 0
  %1751 = vmatpush1.bf16.msra.mxu0 %v1210
  %1752 = vmatprep.subr.bf16.mxu0 0
  %1753 = vmatpush1.bf16.msra.mxu0 %v1211
  %1754 = vmatprep.subr.bf16.mxu0 0
  %1755 = vmatpush1.bf16.msra.mxu0 %v1212
  %1756 = vmatprep.subr.bf16.mxu0 0
  %1757 = vmatpush1.bf16.msra.mxu0 %v1213
  %1758 = vmatprep.subr.bf16.mxu0 0
  %1759 = vmatpush1.bf16.msra.mxu0 %v1214
  %1760 = vmatprep.subr.bf16.mxu0 0
  %1761 = vmatpush1.bf16.msra.mxu0 %v1215
  %1762 = vmatprep.subr.bf16.mxu0 0
  %1763 = vmatpush1.bf16.msra.mxu0 %v1216
  %1764 = vmatprep.subr.bf16.mxu0 0
  %1765 = vmatpush1.bf16.msra.mxu0 %v1217
  %1766 = vmatprep.subr.bf16.mxu0 0
  %1767 = vmatpush1.bf16.msra.mxu0 %v1218
  %1768 = vmatprep.subr.bf16.mxu0 0
  %1769 = vmatpush1.bf16.msra.mxu0 %v1219
  %1770 = vmatprep.subr.bf16.mxu0 0
  %1771 = vmatpush1.bf16.msra.mxu0 %v1220
  %1772 = vmatprep.subr.bf16.mxu0 0
  %1773 = vmatpush1.bf16.msra.mxu0 %v1221
  %1774 = vmatprep.mubr.bf16.mxu0 %v401
  %1775 = vmatmul.mubr.bf16.gmra.mrb[0].mxu0 %v400
  %v1776 = vpop.f32.mrb[0].mxu0
  %v1777 = vadd.f32 %v1737, %v1776
  %v1778 = vpop.f32.mrb[0].mxu0
  %v1779 = vpop.f32.mrb[0].mxu0
  %v1780 = vpop.f32.mrb[0].mxu0
  %1781 = vdwg.mxu0
  %1782 = vst [vmem:[%s3] sm:$0xff] %v1777
  // Predicated region
  $region14: #{efficientnet_b7_forward.5} parent=0 // pred_check
    _
  $region15: #{efficientnet_b7_forward.5} parent=0 // pred_check_branch
    %1784 = sbr.rel (0) target = $region17
  $region16: #{efficientnet_b7_forward.5} parent=0 // pred_region
    _
  $region17: #{efficientnet_b7_forward.5} parent=0 // pred_fallthru
    _
  // Predicated region
  $region18: #{efficientnet_b7_forward.5} parent=0 // pred_check
    _
  $region19: #{efficientnet_b7_forward.5} parent=0 // pred_check_branch
    %1786 = sbr.rel (0) target = $region21
  $region20: #{efficientnet_b7_forward.5} parent=0 // pred_region
    _
  $region21: #{efficientnet_b7_forward.5} parent=0 // pred_fallthru
    _

// kernel: efficientnet_b7_forward.4
$region0: #{efficientnet_b7_forward.4}
  #allocation0 [shape = 'u32[]', space=smem, size = 0x4, offset = 0x4, fixed_abs, tag = 'smem constant byte address 0x4 - core index']
  #allocation1 [shape = 'u32[144,128]{1,0:T(1,128)}', space=vmem, size = 0x12000, scoped, tag = 'internal scratch']
  #allocation2 [shape = 'f32[2,1280]{1,0:T(2,128)}', space=vmem, size = 0x2800, scoped, tag = 'scratch operand']
  %s0 = inlined_call_operand.vmem [shape: bf16[2,256,128], index: 0, kind: input, shape index: {}]
  %s1 = inlined_call_operand.vmem [shape: bf16[128,2560], index: 1, kind: input, shape index: {}]
  %s2 = inlined_call_operand.vmem [shape: f32[1,2560], index: 2, kind: input, shape index: {}]
  %s3 = inlined_call_operand.vmem [shape: bf16[2,2560], index: 3, kind: output, shape index: {}]
  %s4 = sld [smem:[#allocation0]]
  $region76: #{efficientnet_b7_forward.4} parent=0
    _
  %s6 = ssub.s32 1, %s4
  %s7 = scalar_select 0, %s6, %s4
  $region1: #{efficientnet_b7_forward.4} parent=0
    #allocation3 [shape = 'u8[655360]{0}', space=vmem, size = 0xa0000, scoped, tag = 'input window, operand 1']
    loop: start=0, step=1, limit=4
    $region2: #{efficientnet_b7_forward.4} parent=1 // loop_pre_header
      _
    $region3: #{efficientnet_b7_forward.4} parent=1 // loop_header
      %s9 = sphi 0, %s13
      %p10 = scmp.ge.s32.totalorder %s9, 4
      %s16 = sphi 0, %s28
      %s17 = sphi 0, %s24
      %s18 = sphi 0, %s16
      %s19 = sphi 0, %s17
      %s20 = sphi 0, %s18
      %s21 = sphi 0, %s19
      %s31 = sphi 0, %s33
      %s34 = sphi 0, %s31
      %s35 = sphi 0, %s34
      %s51 = sphi 0, %s35
      %s57 = sphi 0, %s59
      %s60 = sphi 0, %s57
      %s61 = sphi 0, %s60
      %s77 = sphi 0, %s61
      %s83 = sphi 0, %s85
      %s86 = sphi 0, %s83
      %s87 = sphi 0, %s86
      %s103 = sphi 0, %s87
      %s109 = sphi 0, %s111
      %s112 = sphi 0, %s109
      %s113 = sphi 0, %s112
      %s129 = sphi 0, %s113
    $region4: #{efficientnet_b7_forward.4} parent=1 // loop_header_branch
      %12 = sbr.rel (%p10) target = $region8
    $region5: #{efficientnet_b7_forward.4} parent=1 // loop_body
      %s14 = ssub.s32 %s9, 1
      %s15 = ssub.s32 %s9, 2
      %s22 = sadd.s32 1, %s17
      %p23 = scmp.ge.s32.totalorder %s22, 1
      %s24 = scalar_select %p23, 0, %s22
      %s25 = sadd.s32 1, %s16
      %s26 = scalar_select %p23, %s25, %s16
      %p27 = scmp.ge.s32.totalorder %s26, 2
      %s28 = scalar_select %p27, 0, %s26
      %s29 = ssub.s32 %s17, %s24
      %p30 = scmp.eq.s32.totalorder %s29, 0
      %s32 = sadd.s32 %s31, 1
      %s33 = scalar_select %p30, %s31, %s32
      %p36 = pneg %p30
      %p37 = scmp.eq.s32.totalorder %s9, 1
      %p38 = por %p36, %p37
      %p39 = scmp.ne.s32.totalorder %s31, %s34
      %p40 = scmp.eq.s32.totalorder %s9, 0
      %p41 = por %p39, %p40
      %p42 = scmp.ne.s32.totalorder %s31, %s34
      %p43 = scmp.eq.s32.totalorder %s14, 1
      %p44 = por %p42, %p43
      %p45 = scmp.ne.s32.totalorder %s34, %s35
      %p46 = scmp.eq.s32.totalorder %s14, 0
      %p47 = por %p45, %p46
      %p48 = scmp.ne.s32.totalorder %s34, %s35
      %p49 = scmp.eq.s32.totalorder %s15, 1
      %p50 = por %p48, %p49
      %p52 = scmp.ne.s32.totalorder %s35, %s51
      %p53 = scmp.eq.s32.totalorder %s15, 0
      %p54 = por %p52, %p53
      %s55 = ssub.s32 %s16, %s28
      %p56 = scmp.eq.s32.totalorder %s55, 0
      %s58 = sadd.s32 %s57, 1
      %s59 = scalar_select %p56, %s57, %s58
      %p62 = pneg %p56
      %p63 = scmp.eq.s32.totalorder %s9, 1
      %p64 = por %p62, %p63
      %p65 = scmp.ne.s32.totalorder %s57, %s60
      %p66 = scmp.eq.s32.totalorder %s9, 0
      %p67 = por %p65, %p66
      %p68 = scmp.ne.s32.totalorder %s57, %s60
      %p69 = scmp.eq.s32.totalorder %s14, 1
      %p70 = por %p68, %p69
      %p71 = scmp.ne.s32.totalorder %s60, %s61
      %p72 = scmp.eq.s32.totalorder %s14, 0
      %p73 = por %p71, %p72
      %p74 = scmp.ne.s32.totalorder %s60, %s61
      %p75 = scmp.eq.s32.totalorder %s15, 1
      %p76 = por %p74, %p75
      %p78 = scmp.ne.s32.totalorder %s61, %s77
      %p79 = scmp.eq.s32.totalorder %s15, 0
      %p80 = por %p78, %p79
      %s81 = ssub.s32 %s16, %s28
      %p82 = scmp.eq.s32.totalorder %s81, 0
      %s84 = sadd.s32 %s83, 1
      %s85 = scalar_select %p82, %s83, %s84
      %p88 = pneg %p82
      %p89 = scmp.eq.s32.totalorder %s9, 1
      %p90 = por %p88, %p89
      %p91 = scmp.ne.s32.totalorder %s83, %s86
      %p92 = scmp.eq.s32.totalorder %s9, 0
      %p93 = por %p91, %p92
      %p94 = scmp.ne.s32.totalorder %s83, %s86
      %p95 = scmp.eq.s32.totalorder %s14, 1
      %p96 = por %p94, %p95
      %p97 = scmp.ne.s32.totalorder %s86, %s87
      %p98 = scmp.eq.s32.totalorder %s14, 0
      %p99 = por %p97, %p98
      %p100 = scmp.ne.s32.totalorder %s86, %s87
      %p101 = scmp.eq.s32.totalorder %s15, 1
      %p102 = por %p100, %p101
      %p104 = scmp.ne.s32.totalorder %s87, %s103
      %p105 = scmp.eq.s32.totalorder %s15, 0
      %p106 = por %p104, %p105
      %s107 = ssub.s32 %s16, %s28
      %p108 = scmp.eq.s32.totalorder %s107, 0
      %s110 = sadd.s32 %s109, 1
      %s111 = scalar_select %p108, %s109, %s110
      %p114 = pneg %p108
      %p115 = scmp.eq.s32.totalorder %s9, 1
      %p116 = por %p114, %p115
      %p117 = scmp.ne.s32.totalorder %s109, %s112
      %p118 = scmp.eq.s32.totalorder %s9, 0
      %p119 = por %p117, %p118
      %p120 = scmp.ne.s32.totalorder %s109, %s112
      %p121 = scmp.eq.s32.totalorder %s14, 1
      %p122 = por %p120, %p121
      %p123 = scmp.ne.s32.totalorder %s112, %s113
      %p124 = scmp.eq.s32.totalorder %s14, 0
      %p125 = por %p123, %p124
      %p126 = scmp.ne.s32.totalorder %s112, %s113
      %p127 = scmp.eq.s32.totalorder %s15, 1
      %p128 = por %p126, %p127
      %p130 = scmp.ne.s32.totalorder %s113, %s129
      %p131 = scmp.eq.s32.totalorder %s15, 0
      %p132 = por %p130, %p131
      %p133 = scmp.le.s32.totalorder 1, %s9
      %p134 = scmp.lt.s32.totalorder %s9, 3
      %p135 = pnand %p133, %p134
      %p136 = pneg %p135
      // Predicated region
      $region9: #{efficientnet_b7_forward.4} parent=5 // pred_check
        _
      $region10: #{efficientnet_b7_forward.4} parent=5 // pred_check_branch
        %138 = sbr.rel (%p135) target = $region12
      $region11: #{efficientnet_b7_forward.4} parent=5 // pred_region
        %s139 = ssub.s32 %s9, 1
        // Predicated region
        $region13: #{efficientnet_b7_forward.4} parent=11 // pred_check
          %p140 = pneg %p47
        $region14: #{efficientnet_b7_forward.4} parent=11 // pred_check_branch
          %142 = sbr.rel (%p140) target = $region16
        $region15: #{efficientnet_b7_forward.4} parent=11 // pred_region
          %s143 = smul.u32 32, %s19
          %p144 = scmp.lt.s32.totalorder %s143, 31
          %s145 = scalar_select %p144, %s143, 31
          %s146 = smul.addr %s145, 4
          %s147 = scalar_lea.vmem %s0, %s146
          %s148 = smul.u32 32, %s19
        $region16: #{efficientnet_b7_forward.4} parent=11 // pred_fallthru
          _
      $region12: #{efficientnet_b7_forward.4} parent=5 // pred_fallthru
        _
      %p149 = scmp.lt.s32.totalorder %s9, 2
      // Predicated region
      $region17: #{efficientnet_b7_forward.4} parent=5 // pred_check
        %p150 = pneg %p149
      $region18: #{efficientnet_b7_forward.4} parent=5 // pred_check_branch
        %152 = sbr.rel (%p150) target = $region20
      $region19: #{efficientnet_b7_forward.4} parent=5 // pred_region
        // Predicated region
        $region21: #{efficientnet_b7_forward.4} parent=19 // pred_check
          %p153 = pneg %p67
        $region22: #{efficientnet_b7_forward.4} parent=19 // pred_check_branch
          %155 = sbr.rel (%p153) target = $region24
        $region23: #{efficientnet_b7_forward.4} parent=19 // pred_region
          %s156 = sand.u32 %s57, 1
          %s157 = sand.u32 %s57, 1
          %s158 = smul.addr %s157, 640
          %s159 = scalar_lea.vmem [#allocation3], %s158
          %s160 = smul.u32 10, %s16
          %s161 = smul.addr %s160, 4
          %s162 = scalar_lea.vmem %s1, %s161
          // Predicated region
          $region25: #{efficientnet_b7_forward.4} parent=23 // pred_check
            _
          $region26: #{efficientnet_b7_forward.4} parent=23 // pred_check_branch
            %164 = sbr.rel (0) target = $region28
          $region27: #{efficientnet_b7_forward.4} parent=23 // pred_region
            // Predicated region
            $region29: #{efficientnet_b7_forward.4} parent=27 // pred_check
              _
            $region30: #{efficientnet_b7_forward.4} parent=27 // pred_check_branch
              %166 = sbr.rel (0) target = $region32
            $region31: #{efficientnet_b7_forward.4} parent=27 // pred_region
              loop: start=0, step=1, limit=1
              $region33: #{efficientnet_b7_forward.4} parent=31 // loop_pre_header
                _
              $region34: #{efficientnet_b7_forward.4} parent=31 // loop_header
                %s168 = sphi 0, %s172
                %p169 = scmp.ge.s32.totalorder %s168, 1
                %s173 = sphi %s162, %s162
                %s174 = sphi %s159, %s159
              $region35: #{efficientnet_b7_forward.4} parent=31 // loop_header_branch
                %171 = sbr.rel (%p169) target = $region39
              $region36: #{efficientnet_b7_forward.4} parent=31 // loop_body
                %v175 = vld [vmem:[%s173] sm:$0xff]
                %176 = vst [vmem:[%s174] sm:$0xff] %v175
                %v177 = vld [vmem:[%s173 + $0x8] sm:$0xff]
                %178 = vst [vmem:[%s174 + $0x8] sm:$0xff] %v177
                %v179 = vld [vmem:[%s173 + $0x10] sm:$0xff]
                %180 = vst [vmem:[%s174 + $0x10] sm:$0xff] %v179
                %v181 = vld [vmem:[%s173 + $0x18] sm:$0xff]
                %182 = vst [vmem:[%s174 + $0x18] sm:$0xff] %v181
                %v183 = vld [vmem:[%s173 + $0x20] sm:$0xff]
                %184 = vst [vmem:[%s174 + $0x20] sm:$0xff] %v183
                %v185 = vld [vmem:[%s173 + $0x50] sm:$0xff]
                %186 = vst [vmem:[%s174 + $0x28] sm:$0xff] %v185
                %v187 = vld [vmem:[%s173 + $0x58] sm:$0xff]
                %188 = vst [vmem:[%s174 + $0x30] sm:$0xff] %v187
                %v189 = vld [vmem:[%s173 + $0x60] sm:$0xff]
                %190 = vst [vmem:[%s174 + $0x38] sm:$0xff] %v189
                %v191 = vld [vmem:[%s173 + $0x68] sm:$0xff]
                %192 = vst [vmem:[%s174 + $0x40] sm:$0xff] %v191
                %v193 = vld [vmem:[%s173 + $0x70] sm:$0xff]
                %194 = vst [vmem:[%s174 + $0x48] sm:$0xff] %v193
                %v195 = vld [vmem:[%s173 + $0xa0] sm:$0xff]
                %196 = vst [vmem:[%s174 + $0x50] sm:$0xff] %v195
                %v197 = vld [vmem:[%s173 + $0xa8] sm:$0xff]
                %198 = vst [vmem:[%s174 + $0x58] sm:$0xff] %v197
                %v199 = vld [vmem:[%s173 + $0xb0] sm:$0xff]
                %200 = vst [vmem:[%s174 + $0x60] sm:$0xff] %v199
                %v201 = vld [vmem:[%s173 + $0xb8] sm:$0xff]
                %202 = vst [vmem:[%s174 + $0x68] sm:$0xff] %v201
                %v203 = vld [vmem:[%s173 + $0xc0] sm:$0xff]
                %204 = vst [vmem:[%s174 + $0x70] sm:$0xff] %v203
                %v205 = vld [vmem:[%s173 + $0xf0] sm:$0xff]
                %206 = vst [vmem:[%s174 + $0x78] sm:$0xff] %v205
                %v207 = vld [vmem:[%s173 + $0xf8] sm:$0xff]
                %208 = vst [vmem:[%s174 + $0x80] sm:$0xff] %v207
                %v209 = vld [vmem:[%s173 + $0x100] sm:$0xff]
                %210 = vst [vmem:[%s174 + $0x88] sm:$0xff] %v209
                %v211 = vld [vmem:[%s173 + $0x108] sm:$0xff]
                %212 = vst [vmem:[%s174 + $0x90] sm:$0xff] %v211
                %v213 = vld [vmem:[%s173 + $0x110] sm:$0xff]
                %214 = vst [vmem:[%s174 + $0x98] sm:$0xff] %v213
                %v215 = vld [vmem:[%s173 + $0x140] sm:$0xff]
                %216 = vst [vmem:[%s174 + $0xa0] sm:$0xff] %v215
                %v217 = vld [vmem:[%s173 + $0x148] sm:$0xff]
                %218 = vst [vmem:[%s174 + $0xa8] sm:$0xff] %v217
                %v219 = vld [vmem:[%s173 + $0x150] sm:$0xff]
                %220 = vst [vmem:[%s174 + $0xb0] sm:$0xff] %v219
                %v221 = vld [vmem:[%s173 + $0x158] sm:$0xff]
                %222 = vst [vmem:[%s174 + $0xb8] sm:$0xff] %v221
                %v223 = vld [vmem:[%s173 + $0x160] sm:$0xff]
                %224 = vst [vmem:[%s174 + $0xc0] sm:$0xff] %v223
                %v225 = vld [vmem:[%s173 + $0x190] sm:$0xff]
                %226 = vst [vmem:[%s174 + $0xc8] sm:$0xff] %v225
                %v227 = vld [vmem:[%s173 + $0x198] sm:$0xff]
                %228 = vst [vmem:[%s174 + $0xd0] sm:$0xff] %v227
                %v229 = vld [vmem:[%s173 + $0x1a0] sm:$0xff]
                %230 = vst [vmem:[%s174 + $0xd8] sm:$0xff] %v229
                %v231 = vld [vmem:[%s173 + $0x1a8] sm:$0xff]
                %232 = vst [vmem:[%s174 + $0xe0] sm:$0xff] %v231
                %v233 = vld [vmem:[%s173 + $0x1b0] sm:$0xff]
                %234 = vst [vmem:[%s174 + $0xe8] sm:$0xff] %v233
                %v235 = vld [vmem:[%s173 + $0x1e0] sm:$0xff]
                %236 = vst [vmem:[%s174 + $0xf0] sm:$0xff] %v235
                %v237 = vld [vmem:[%s173 + $0x1e8] sm:$0xff]
                %238 = vst [vmem:[%s174 + $0xf8] sm:$0xff] %v237
                %v239 = vld [vmem:[%s173 + $0x1f0] sm:$0xff]
                %240 = vst [vmem:[%s174 + $0x100] sm:$0xff] %v239
                %v241 = vld [vmem:[%s173 + $0x1f8] sm:$0xff]
                %242 = vst [vmem:[%s174 + $0x108] sm:$0xff] %v241
                %v243 = vld [vmem:[%s173 + $0x200] sm:$0xff]
                %244 = vst [vmem:[%s174 + $0x110] sm:$0xff] %v243
                %v245 = vld [vmem:[%s173 + $0x230] sm:$0xff]
                %246 = vst [vmem:[%s174 + $0x118] sm:$0xff] %v245
                %v247 = vld [vmem:[%s173 + $0x238] sm:$0xff]
                %248 = vst [vmem:[%s174 + $0x120] sm:$0xff] %v247
                %v249 = vld [vmem:[%s173 + $0x240] sm:$0xff]
                %250 = vst [vmem:[%s174 + $0x128] sm:$0xff] %v249
                %v251 = vld [vmem:[%s173 + $0x248] sm:$0xff]
                %252 = vst [vmem:[%s174 + $0x130] sm:$0xff] %v251
                %v253 = vld [vmem:[%s173 + $0x250] sm:$0xff]
                %254 = vst [vmem:[%s174 + $0x138] sm:$0xff] %v253
                %v255 = vld [vmem:[%s173 + $0x280] sm:$0xff]
                %256 = vst [vmem:[%s174 + $0x140] sm:$0xff] %v255
                %v257 = vld [vmem:[%s173 + $0x288] sm:$0xff]
                %258 = vst [vmem:[%s174 + $0x148] sm:$0xff] %v257
                %v259 = vld [vmem:[%s173 + $0x290] sm:$0xff]
                %260 = vst [vmem:[%s174 + $0x150] sm:$0xff] %v259
                %v261 = vld [vmem:[%s173 + $0x298] sm:$0xff]
                %262 = vst [vmem:[%s174 + $0x158] sm:$0xff] %v261
                %v263 = vld [vmem:[%s173 + $0x2a0] sm:$0xff]
                %264 = vst [vmem:[%s174 + $0x160] sm:$0xff] %v263
                %v265 = vld [vmem:[%s173 + $0x2d0] sm:$0xff]
                %266 = vst [vmem:[%s174 + $0x168] sm:$0xff] %v265
                %v267 = vld [vmem:[%s173 + $0x2d8] sm:$0xff]
                %268 = vst [vmem:[%s174 + $0x170] sm:$0xff] %v267
                %v269 = vld [vmem:[%s173 + $0x2e0] sm:$0xff]
                %270 = vst [vmem:[%s174 + $0x178] sm:$0xff] %v269
                %v271 = vld [vmem:[%s173 + $0x2e8] sm:$0xff]
                %272 = vst [vmem:[%s174 + $0x180] sm:$0xff] %v271
                %v273 = vld [vmem:[%s173 + $0x2f0] sm:$0xff]
                %274 = vst [vmem:[%s174 + $0x188] sm:$0xff] %v273
                %v275 = vld [vmem:[%s173 + $0x320] sm:$0xff]
                %276 = vst [vmem:[%s174 + $0x190] sm:$0xff] %v275
                %v277 = vld [vmem:[%s173 + $0x328] sm:$0xff]
                %278 = vst [vmem:[%s174 + $0x198] sm:$0xff] %v277
                %v279 = vld [vmem:[%s173 + $0x330] sm:$0xff]
                %280 = vst [vmem:[%s174 + $0x1a0] sm:$0xff] %v279
                %v281 = vld [vmem:[%s173 + $0x338] sm:$0xff]
                %282 = vst [vmem:[%s174 + $0x1a8] sm:$0xff] %v281
                %v283 = vld [vmem:[%s173 + $0x340] sm:$0xff]
                %284 = vst [vmem:[%s174 + $0x1b0] sm:$0xff] %v283
                %v285 = vld [vmem:[%s173 + $0x370] sm:$0xff]
                %286 = vst [vmem:[%s174 + $0x1b8] sm:$0xff] %v285
                %v287 = vld [vmem:[%s173 + $0x378] sm:$0xff]
                %288 = vst [vmem:[%s174 + $0x1c0] sm:$0xff] %v287
                %v289 = vld [vmem:[%s173 + $0x380] sm:$0xff]
                %290 = vst [vmem:[%s174 + $0x1c8] sm:$0xff] %v289
                %v291 = vld [vmem:[%s173 + $0x388] sm:$0xff]
                %292 = vst [vmem:[%s174 + $0x1d0] sm:$0xff] %v291
                %v293 = vld [vmem:[%s173 + $0x390] sm:$0xff]
                %294 = vst [vmem:[%s174 + $0x1d8] sm:$0xff] %v293
                %v295 = vld [vmem:[%s173 + $0x3c0] sm:$0xff]
                %296 = vst [vmem:[%s174 + $0x1e0] sm:$0xff] %v295
                %v297 = vld [vmem:[%s173 + $0x3c8] sm:$0xff]
                %298 = vst [vmem:[%s174 + $0x1e8] sm:$0xff] %v297
                %v299 = vld [vmem:[%s173 + $0x3d0] sm:$0xff]
                %300 = vst [vmem:[%s174 + $0x1f0] sm:$0xff] %v299
                %v301 = vld [vmem:[%s173 + $0x3d8] sm:$0xff]
                %302 = vst [vmem:[%s174 + $0x1f8] sm:$0xff] %v301
                %v303 = vld [vmem:[%s173 + $0x3e0] sm:$0xff]
                %304 = vst [vmem:[%s174 + $0x200] sm:$0xff] %v303
                %v305 = vld [vmem:[%s173 + $0x410] sm:$0xff]
                %306 = vst [vmem:[%s174 + $0x208] sm:$0xff] %v305
                %v307 = vld [vmem:[%s173 + $0x418] sm:$0xff]
                %308 = vst [vmem:[%s174 + $0x210] sm:$0xff] %v307
                %v309 = vld [vmem:[%s173 + $0x420] sm:$0xff]
                %310 = vst [vmem:[%s174 + $0x218] sm:$0xff] %v309
                %v311 = vld [vmem:[%s173 + $0x428] sm:$0xff]
                %312 = vst [vmem:[%s174 + $0x220] sm:$0xff] %v311
                %v313 = vld [vmem:[%s173 + $0x430] sm:$0xff]
                %314 = vst [vmem:[%s174 + $0x228] sm:$0xff] %v313
                %v315 = vld [vmem:[%s173 + $0x460] sm:$0xff]
                %316 = vst [vmem:[%s174 + $0x230] sm:$0xff] %v315
                %v317 = vld [vmem:[%s173 + $0x468] sm:$0xff]
                %318 = vst [vmem:[%s174 + $0x238] sm:$0xff] %v317
                %v319 = vld [vmem:[%s173 + $0x470] sm:$0xff]
                %320 = vst [vmem:[%s174 + $0x240] sm:$0xff] %v319
                %v321 = vld [vmem:[%s173 + $0x478] sm:$0xff]
                %322 = vst [vmem:[%s174 + $0x248] sm:$0xff] %v321
                %v323 = vld [vmem:[%s173 + $0x480] sm:$0xff]
                %324 = vst [vmem:[%s174 + $0x250] sm:$0xff] %v323
                %v325 = vld [vmem:[%s173 + $0x4b0] sm:$0xff]
                %326 = vst [vmem:[%s174 + $0x258] sm:$0xff] %v325
                %v327 = vld [vmem:[%s173 + $0x4b8] sm:$0xff]
                %328 = vst [vmem:[%s174 + $0x260] sm:$0xff] %v327
                %v329 = vld [vmem:[%s173 + $0x4c0] sm:$0xff]
                %330 = vst [vmem:[%s174 + $0x268] sm:$0xff] %v329
                %v331 = vld [vmem:[%s173 + $0x4c8] sm:$0xff]
                %332 = vst [vmem:[%s174 + $0x270] sm:$0xff] %v331
                %v333 = vld [vmem:[%s173 + $0x4d0] sm:$0xff]
                %334 = vst [vmem:[%s174 + $0x278] sm:$0xff] %v333
              $region37: #{efficientnet_b7_forward.4} parent=31 // loop_footer
                %s172 = sadd.s32 1, %s168
              $region38: #{efficientnet_b7_forward.4} parent=31 // loop_footer_branch
                %167 = sbr.rel target = $region34
              $region39: #{efficientnet_b7_forward.4} parent=31 // loop_exit
                _
            $region32: #{efficientnet_b7_forward.4} parent=27 // pred_fallthru
              _
            // Predicated region
            $region40: #{efficientnet_b7_forward.4} parent=27 // pred_check
              _
            $region41: #{efficientnet_b7_forward.4} parent=27 // pred_check_branch
              %336 = sbr.rel target = $region43
            $region42: #{efficientnet_b7_forward.4} parent=27 // pred_region
              _
            $region43: #{efficientnet_b7_forward.4} parent=27 // pred_fallthru
              _
          $region28: #{efficientnet_b7_forward.4} parent=23 // pred_fallthru
            _
          %337 = vnop
        $region24: #{efficientnet_b7_forward.4} parent=19 // pred_fallthru
          _
        // Predicated region
        $region44: #{efficientnet_b7_forward.4} parent=19 // pred_check
          %p338 = pneg %p93
        $region45: #{efficientnet_b7_forward.4} parent=19 // pred_check_branch
          %340 = sbr.rel (%p338) target = $region47
        $region46: #{efficientnet_b7_forward.4} parent=19 // pred_region
          %s341 = smul.u32 10, %s16
          %p342 = scmp.lt.s32.totalorder %s341, 19
          %s343 = scalar_select %p342, %s341, 19
          %s344 = scalar_lea.vmem %s2, %s343
          %s345 = smul.u32 10, %s16
        $region47: #{efficientnet_b7_forward.4} parent=19 // pred_fallthru
          _
      $region20: #{efficientnet_b7_forward.4} parent=5 // pred_fallthru
        _
      %p346 = scmp.le.s32.totalorder 1, %s9
      %p347 = scmp.lt.s32.totalorder %s9, 3
      %p348 = pnand %p346, %p347
      %p349 = pneg %p348
      // Predicated region
      $region48: #{efficientnet_b7_forward.4} parent=5 // pred_check
        _
      $region49: #{efficientnet_b7_forward.4} parent=5 // pred_check_branch
        %351 = sbr.rel (%p348) target = $region51
      $region50: #{efficientnet_b7_forward.4} parent=5 // pred_region
        %s352 = ssub.s32 %s9, 1
        %s353 = sand.u32 %s60, 1
        %s354 = sand.u32 %s60, 1
        %s355 = smul.addr %s354, 640
        %s356 = scalar_lea.vmem [#allocation3], %s355
        // Predicated region
        $region52: #{efficientnet_b7_forward.4} parent=50 // pred_check
          %p357 = pneg %p73
        $region53: #{efficientnet_b7_forward.4} parent=50 // pred_check_branch
          %359 = sbr.rel (%p357) target = $region55
        $region54: #{efficientnet_b7_forward.4} parent=50 // pred_region
          _
        $region55: #{efficientnet_b7_forward.4} parent=50 // pred_fallthru
          _
        %s360 = smul.u32 32, %s19
        %p361 = scmp.lt.s32.totalorder %s360, 31
        %s362 = scalar_select %p361, %s360, 31
        %s363 = smul.addr %s362, 4
        %s364 = scalar_lea.vmem %s0, %s363
        %p365 = pneg %p47
        %p366 = pneg %p44
        %s367 = sand.u32 %s60, 1
        %s368 = sand.u32 %s60, 1
        %s369 = smul.addr %s368, 640
        %s370 = scalar_lea.vmem [#allocation3], %s369
        %p371 = pneg %p73
        %p372 = pneg %p70
        %s373 = smul.u32 10, %s18
        %p374 = scmp.lt.s32.totalorder %s373, 19
        %s375 = scalar_select %p374, %s373, 19
        %s376 = scalar_lea.vmem %s2, %s375
        %p377 = pneg %p99
        %p378 = pneg %p96
        %p379 = pneg %p125
        %p380 = pneg %p122
        %s381 = smul.u32 10, %s18
        %p382 = scmp.lt.s32.totalorder %s381, 19
        %s383 = scalar_select %p382, %s381, 19
        %s384 = scalar_lea.vmem %s3, %s383
        %s385 = smul.u32 32, %s19
        %p386 = scmp.lt.s32.totalorder %s385, 31
        %s387 = scalar_select %p386, %s385, 31
        %s388 = smul.addr %s387, 4
        %s389 = scalar_lea.vmem %s0, %s388
        %s390 = smul.u32 32, %s19
        %s391 = smul.u32 10, %s18
        %s392 = smul.u32 10, %s18
        %p393 = scmp.lt.s32.totalorder %s392, 19
        %s394 = scalar_select %p393, %s392, 19
        %s395 = scalar_lea.vmem %s2, %s394
        %s396 = smul.u32 10, %s18
        %s397 = smul.u32 10, %s18
        %p398 = scmp.lt.s32.totalorder %s397, 19
        %s399 = scalar_select %p398, %s397, 19
        %s400 = scalar_lea.vmem %s3, %s399
        %s401 = smul.u32 10, %s18
        %p403 = scmp.eq.s32.totalorder %s19, 0
        // Predicated region
        $region56: #{efficientnet_b7_forward.4} parent=50 // pred_check
          %p404 = pneg %p403
        $region57: #{efficientnet_b7_forward.4} parent=50 // pred_check_branch
          %406 = sbr.rel (%p404) target = $region59
        $region58: #{efficientnet_b7_forward.4} parent=50 // pred_region
          %407 = vst [vmem:[#allocation2] sm:$0xff] 0.0
          %408 = vst [vmem:[#allocation2 + $0x8] sm:$0xff] 0.0
          %409 = vst [vmem:[#allocation2 + $0x10] sm:$0xf] 0.0
        $region59: #{efficientnet_b7_forward.4} parent=50 // pred_fallthru
          _
        %v410 = vld [vmem:[%s389] sm:$0xf]
        %v411 = vld [vmem:[%s389 + $0x4] sm:$0xf]
        %v412 = vld [vmem:[%s389 + $0x8] sm:$0xf]
        %v413 = vld [vmem:[%s389 + $0xc] sm:$0xf]
        %v414 = vld [vmem:[%s389 + $0x10] sm:$0xf]
        %v415 = vld [vmem:[%s389 + $0x14] sm:$0xf]
        %v416 = vld [vmem:[%s389 + $0x18] sm:$0xf]
        %v417 = vld [vmem:[%s389 + $0x1c] sm:$0xf]
        %v418 = vld [vmem:[%s389 + $0x20] sm:$0xf]
        %v419 = vld [vmem:[%s389 + $0x24] sm:$0xf]
        %v420 = vld [vmem:[%s389 + $0x28] sm:$0xf]
        %v421 = vld [vmem:[%s389 + $0x2c] sm:$0xf]
        %v422 = vld [vmem:[%s389 + $0x30] sm:$0xf]
        %v423 = vld [vmem:[%s389 + $0x34] sm:$0xf]
        %v424 = vld [vmem:[%s389 + $0x38] sm:$0xf]
        %v425 = vld [vmem:[%s389 + $0x3c] sm:$0xf]
        %v426 = vld [vmem:[%s389 + $0x40] sm:$0xf]
        %v427 = vld [vmem:[%s389 + $0x44] sm:$0xf]
        %v428 = vld [vmem:[%s389 + $0x48] sm:$0xf]
        %v429 = vld [vmem:[%s389 + $0x4c] sm:$0xf]
        %v430 = vld [vmem:[%s389 + $0x50] sm:$0xf]
        %v431 = vld [vmem:[%s389 + $0x54] sm:$0xf]
        %v432 = vld [vmem:[%s389 + $0x58] sm:$0xf]
        %v433 = vld [vmem:[%s389 + $0x5c] sm:$0xf]
        %v434 = vld [vmem:[%s389 + $0x60] sm:$0xf]
        %v435 = vld [vmem:[%s389 + $0x64] sm:$0xf]
        %v436 = vld [vmem:[%s389 + $0x68] sm:$0xf]
        %v437 = vld [vmem:[%s389 + $0x6c] sm:$0xf]
        %v438 = vld [vmem:[%s389 + $0x70] sm:$0xf]
        %v439 = vld [vmem:[%s389 + $0x74] sm:$0xf]
        %v440 = vld [vmem:[%s389 + $0x78] sm:$0xf]
        %v441 = vld [vmem:[%s389 + $0x7c] sm:$0xf]
        %v442 = vld [vmem:[%s389 + $0x80] sm:$0xf]
        %v443 = vld [vmem:[%s389 + $0x84] sm:$0xf]
        %v444 = vld [vmem:[%s389 + $0x88] sm:$0xf]
        %v445 = vld [vmem:[%s389 + $0x8c] sm:$0xf]
        %v446 = vld [vmem:[%s389 + $0x90] sm:$0xf]
        %v447 = vld [vmem:[%s389 + $0x94] sm:$0xf]
        %v448 = vld [vmem:[%s389 + $0x98] sm:$0xf]
        %v449 = vld [vmem:[%s389 + $0x9c] sm:$0xf]
        %v450 = vld [vmem:[%s389 + $0xa0] sm:$0xf]
        %v451 = vld [vmem:[%s389 + $0xa4] sm:$0xf]
        %v452 = vld [vmem:[%s389 + $0xa8] sm:$0xf]
        %v453 = vld [vmem:[%s389 + $0xac] sm:$0xf]
        %v454 = vld [vmem:[%s389 + $0xb0] sm:$0xf]
        %v455 = vld [vmem:[%s389 + $0xb4] sm:$0xf]
        %v456 = vld [vmem:[%s389 + $0xb8] sm:$0xf]
        %v457 = vld [vmem:[%s389 + $0xbc] sm:$0xf]
        %v458 = vld [vmem:[%s389 + $0xc0] sm:$0xf]
        %v459 = vld [vmem:[%s389 + $0xc4] sm:$0xf]
        %v460 = vld [vmem:[%s389 + $0xc8] sm:$0xf]
        %v461 = vld [vmem:[%s389 + $0xcc] sm:$0xf]
        %v462 = vld [vmem:[%s389 + $0xd0] sm:$0xf]
        %v463 = vld [vmem:[%s389 + $0xd4] sm:$0xf]
        %v464 = vld [vmem:[%s389 + $0xd8] sm:$0xf]
        %v465 = vld [vmem:[%s389 + $0xdc] sm:$0xf]
        %v466 = vld [vmem:[%s389 + $0xe0] sm:$0xf]
        %v467 = vld [vmem:[%s389 + $0xe4] sm:$0xf]
        %v468 = vld [vmem:[%s389 + $0xe8] sm:$0xf]
        %v469 = vld [vmem:[%s389 + $0xec] sm:$0xf]
        %v470 = vld [vmem:[%s389 + $0xf0] sm:$0xf]
        %v471 = vld [vmem:[%s389 + $0xf4] sm:$0xf]
        %v472 = vld [vmem:[%s389 + $0xf8] sm:$0xf]
        %v473 = vld [vmem:[%s389 + $0xfc] sm:$0xf]
        %v474 = vld [vmem:[%s356] sm:$0xff]
        %v475 = vld [vmem:[%s356 + $0x8] sm:$0xff]
        %v476 = vld [vmem:[%s356 + $0x10] sm:$0xff]
        %v477 = vld [vmem:[%s356 + $0x18] sm:$0xff]
        %v478 = vld [vmem:[%s356 + $0x20] sm:$0xff]
        %v479 = vld [vmem:[%s356 + $0x28] sm:$0xff]
        %v480 = vld [vmem:[%s356 + $0x30] sm:$0xff]
        %v481 = vld [vmem:[%s356 + $0x38] sm:$0xff]
        %v482 = vld [vmem:[%s356 + $0x40] sm:$0xff]
        %v483 = vld [vmem:[%s356 + $0x48] sm:$0xff]
        %v484 = vld [vmem:[%s356 + $0x50] sm:$0xff]
        %v485 = vld [vmem:[%s356 + $0x58] sm:$0xff]
        %v486 = vld [vmem:[%s356 + $0x60] sm:$0xff]
        %v487 = vld [vmem:[%s356 + $0x68] sm:$0xff]
        %v488 = vld [vmem:[%s356 + $0x70] sm:$0xff]
        %v489 = vld [vmem:[%s356 + $0x78] sm:$0xff]
        %v490 = vld [vmem:[%s356 + $0x80] sm:$0xff]
        %v491 = vld [vmem:[%s356 + $0x88] sm:$0xff]
        %v492 = vld [vmem:[%s356 + $0x90] sm:$0xff]
        %v493 = vld [vmem:[%s356 + $0x98] sm:$0xff]
        %v494 = vld [vmem:[%s356 + $0xa0] sm:$0xff]
        %v495 = vld [vmem:[%s356 + $0xa8] sm:$0xff]
        %v496 = vld [vmem:[%s356 + $0xb0] sm:$0xff]
        %v497 = vld [vmem:[%s356 + $0xb8] sm:$0xff]
        %v498 = vld [vmem:[%s356 + $0xc0] sm:$0xff]
        %v499 = vld [vmem:[%s356 + $0xc8] sm:$0xff]
        %v500 = vld [vmem:[%s356 + $0xd0] sm:$0xff]
        %v501 = vld [vmem:[%s356 + $0xd8] sm:$0xff]
        %v502 = vld [vmem:[%s356 + $0xe0] sm:$0xff]
        %v503 = vld [vmem:[%s356 + $0xe8] sm:$0xff]
        %v504 = vld [vmem:[%s356 + $0xf0] sm:$0xff]
        %v505 = vld [vmem:[%s356 + $0xf8] sm:$0xff]
        %v506 = vld [vmem:[%s356 + $0x100] sm:$0xff]
        %v507 = vld [vmem:[%s356 + $0x108] sm:$0xff]
        %v508 = vld [vmem:[%s356 + $0x110] sm:$0xff]
        %v509 = vld [vmem:[%s356 + $0x118] sm:$0xff]
        %v510 = vld [vmem:[%s356 + $0x120] sm:$0xff]
        %v511 = vld [vmem:[%s356 + $0x128] sm:$0xff]
        %v512 = vld [vmem:[%s356 + $0x130] sm:$0xff]
        %v513 = vld [vmem:[%s356 + $0x138] sm:$0xff]
        %v514 = vld [vmem:[%s356 + $0x140] sm:$0xff]
        %v515 = vld [vmem:[%s356 + $0x148] sm:$0xff]
        %v516 = vld [vmem:[%s356 + $0x150] sm:$0xff]
        %v517 = vld [vmem:[%s356 + $0x158] sm:$0xff]
        %v518 = vld [vmem:[%s356 + $0x160] sm:$0xff]
        %v519 = vld [vmem:[%s356 + $0x168] sm:$0xff]
        %v520 = vld [vmem:[%s356 + $0x170] sm:$0xff]
        %v521 = vld [vmem:[%s356 + $0x178] sm:$0xff]
        %v522 = vld [vmem:[%s356 + $0x180] sm:$0xff]
        %v523 = vld [vmem:[%s356 + $0x188] sm:$0xff]
        %v524 = vld [vmem:[%s356 + $0x190] sm:$0xff]
        %v525 = vld [vmem:[%s356 + $0x198] sm:$0xff]
        %v526 = vld [vmem:[%s356 + $0x1a0] sm:$0xff]
        %v527 = vld [vmem:[%s356 + $0x1a8] sm:$0xff]
        %v528 = vld [vmem:[%s356 + $0x1b0] sm:$0xff]
        %v529 = vld [vmem:[%s356 + $0x1b8] sm:$0xff]
        %v530 = vld [vmem:[%s356 + $0x1c0] sm:$0xff]
        %v531 = vld [vmem:[%s356 + $0x1c8] sm:$0xff]
        %v532 = vld [vmem:[%s356 + $0x1d0] sm:$0xff]
        %v533 = vld [vmem:[%s356 + $0x1d8] sm:$0xff]
        %v534 = vld [vmem:[%s356 + $0x1e0] sm:$0xff]
        %v535 = vld [vmem:[%s356 + $0x1e8] sm:$0xff]
        %v536 = vld [vmem:[%s356 + $0x1f0] sm:$0xff]
        %v537 = vld [vmem:[%s356 + $0x1f8] sm:$0xff]
        %v538 = vld [vmem:[%s356 + $0x200] sm:$0xff]
        %v539 = vld [vmem:[%s356 + $0x208] sm:$0xff]
        %v540 = vld [vmem:[%s356 + $0x210] sm:$0xff]
        %v541 = vld [vmem:[%s356 + $0x218] sm:$0xff]
        %v542 = vld [vmem:[%s356 + $0x220] sm:$0xff]
        %v543 = vld [vmem:[%s356 + $0x228] sm:$0xff]
        %v544 = vld [vmem:[%s356 + $0x230] sm:$0xff]
        %v545 = vld [vmem:[%s356 + $0x238] sm:$0xff]
        %v546 = vld [vmem:[%s356 + $0x240] sm:$0xff]
        %v547 = vld [vmem:[%s356 + $0x248] sm:$0xff]
        %v548 = vld [vmem:[%s356 + $0x250] sm:$0xff]
        %v549 = vld [vmem:[%s356 + $0x258] sm:$0xff]
        %v550 = vld [vmem:[%s356 + $0x260] sm:$0xff]
        %v551 = vld [vmem:[%s356 + $0x268] sm:$0xff]
        %v552 = vld [vmem:[%s356 + $0x270] sm:$0xff]
        %v553 = vld [vmem:[%s356 + $0x278] sm:$0xff]
        %v554 = vld [vmem:[%s395] sm:$0xff]
        %v555 = vld [vmem:[%s395 + $0x8] sm:$0x3]
        %v558 = vlaneseq
        %v559 = vshrl.u32 %v558, 7
        %v560 = vsub.s32 0, %v559
        %v561 = vrot.slane %v554, %v560
        %v562 = vlaneseq
        %v563 = vshrl.u32 %v562, 7
        %v564 = vsub.s32 1, %v563
        %v565 = vrot.slane %v554, %v564
        %v566 = vlaneseq
        %v567 = vshrl.u32 %v566, 7
        %v568 = vsub.s32 2, %v567
        %v569 = vrot.slane %v554, %v568
        %v570 = vlaneseq
        %v571 = vshrl.u32 %v570, 7
        %v572 = vsub.s32 3, %v571
        %v573 = vrot.slane %v554, %v572
        %v574 = vlaneseq
        %v575 = vshrl.u32 %v574, 7
        %v576 = vsub.s32 4, %v575
        %v577 = vrot.slane %v554, %v576
        %v578 = vlaneseq
        %v579 = vshrl.u32 %v578, 7
        %v580 = vsub.s32 5, %v579
        %v581 = vrot.slane %v554, %v580
        %v582 = vlaneseq
        %v583 = vshrl.u32 %v582, 7
        %v584 = vsub.s32 6, %v583
        %v585 = vrot.slane %v554, %v584
        %v586 = vlaneseq
        %v587 = vshrl.u32 %v586, 7
        %v588 = vsub.s32 7, %v587
        %v589 = vrot.slane %v554, %v588
        %v590 = vlaneseq
        %v591 = vshrl.u32 %v590, 7
        %v592 = vsub.s32 0, %v591
        %v593 = vrot.slane %v555, %v592
        %v594 = vlaneseq
        %v595 = vshrl.u32 %v594, 7
        %v596 = vsub.s32 1, %v595
        %v597 = vrot.slane %v555, %v596
        %v672 = vunpack.c.l.b16 %v410
        %v673 = vunpack.c.l.b16 %v411
        %v674 = vunpack.c.l.b16 %v412
        %v675 = vunpack.c.l.b16 %v413
        %v676 = vunpack.c.l.b16 %v414
        %v677 = vunpack.c.l.b16 %v415
        %v678 = vunpack.c.l.b16 %v416
        %v679 = vunpack.c.l.b16 %v417
        %v680 = vunpack.c.l.b16 %v418
        %v681 = vunpack.c.l.b16 %v419
        %v682 = vunpack.c.l.b16 %v420
        %v683 = vunpack.c.l.b16 %v421
        %v684 = vunpack.c.l.b16 %v422
        %v685 = vunpack.c.l.b16 %v423
        %v686 = vunpack.c.l.b16 %v424
        %v687 = vunpack.c.l.b16 %v425
        %v688 = vunpack.c.l.b16 %v426
        %v689 = vunpack.c.l.b16 %v427
        %v690 = vunpack.c.l.b16 %v428
        %v691 = vunpack.c.l.b16 %v429
        %v692 = vunpack.c.l.b16 %v430
        %v693 = vunpack.c.l.b16 %v431
        %v694 = vunpack.c.l.b16 %v432
        %v695 = vunpack.c.l.b16 %v433
        %v696 = vunpack.c.l.b16 %v434
        %v697 = vunpack.c.l.b16 %v435
        %v698 = vunpack.c.l.b16 %v436
        %v699 = vunpack.c.l.b16 %v437
        %v700 = vunpack.c.l.b16 %v438
        %v701 = vunpack.c.l.b16 %v439
        %v702 = vunpack.c.l.b16 %v440
        %v703 = vunpack.c.l.b16 %v441
        %v704 = vunpack.c.l.b16 %v442
        %v705 = vunpack.c.l.b16 %v443
        %v706 = vunpack.c.l.b16 %v444
        %v707 = vunpack.c.l.b16 %v445
        %v708 = vunpack.c.l.b16 %v446
        %v709 = vunpack.c.l.b16 %v447
        %v710 = vunpack.c.l.b16 %v448
        %v711 = vunpack.c.l.b16 %v449
        %v712 = vunpack.c.l.b16 %v450
        %v713 = vunpack.c.l.b16 %v451
        %v714 = vunpack.c.l.b16 %v452
        %v715 = vunpack.c.l.b16 %v453
        %v716 = vunpack.c.l.b16 %v454
        %v717 = vunpack.c.l.b16 %v455
        %v718 = vunpack.c.l.b16 %v456
        %v719 = vunpack.c.l.b16 %v457
        %v720 = vunpack.c.l.b16 %v458
        %v721 = vunpack.c.l.b16 %v459
        %v722 = vunpack.c.l.b16 %v460
        %v723 = vunpack.c.l.b16 %v461
        %v724 = vunpack.c.l.b16 %v462
        %v725 = vunpack.c.l.b16 %v463
        %v726 = vunpack.c.l.b16 %v464
        %v727 = vunpack.c.l.b16 %v465
        %v728 = vunpack.c.l.b16 %v466
        %v729 = vunpack.c.l.b16 %v467
        %v730 = vunpack.c.l.b16 %v468
        %v731 = vunpack.c.l.b16 %v469
        %v732 = vunpack.c.l.b16 %v470
        %v733 = vunpack.c.l.b16 %v471
        %v734 = vunpack.c.l.b16 %v472
        %v735 = vunpack.c.l.b16 %v473
        %v736 = vpack.c.b16 %v673, %v672
        %v737 = vpack.c.b16 %v675, %v674
        %v738 = vpack.c.b16 %v677, %v676
        %v739 = vpack.c.b16 %v679, %v678
        %v740 = vpack.c.b16 %v681, %v680
        %v741 = vpack.c.b16 %v683, %v682
        %v742 = vpack.c.b16 %v685, %v684
        %v743 = vpack.c.b16 %v687, %v686
        %v744 = vpack.c.b16 %v689, %v688
        %v745 = vpack.c.b16 %v691, %v690
        %v746 = vpack.c.b16 %v693, %v692
        %v747 = vpack.c.b16 %v695, %v694
        %v748 = vpack.c.b16 %v697, %v696
        %v749 = vpack.c.b16 %v699, %v698
        %v750 = vpack.c.b16 %v701, %v700
        %v751 = vpack.c.b16 %v703, %v702
        %v752 = vpack.c.b16 %v705, %v704
        %v753 = vpack.c.b16 %v707, %v706
        %v754 = vpack.c.b16 %v709, %v708
        %v755 = vpack.c.b16 %v711, %v710
        %v756 = vpack.c.b16 %v713, %v712
        %v757 = vpack.c.b16 %v715, %v714
        %v758 = vpack.c.b16 %v717, %v716
        %v759 = vpack.c.b16 %v719, %v718
        %v760 = vpack.c.b16 %v721, %v720
        %v761 = vpack.c.b16 %v723, %v722
        %v762 = vpack.c.b16 %v725, %v724
        %v763 = vpack.c.b16 %v727, %v726
        %v764 = vpack.c.b16 %v729, %v728
        %v765 = vpack.c.b16 %v731, %v730
        %v766 = vpack.c.b16 %v733, %v732
        %v767 = vpack.c.b16 %v735, %v734
        %v880 = vunpack.c.l.b16 %v474
        %v881 = vunpack.c.h.b16 %v474
        %v882 = vunpack.c.l.b16 %v475
        %v883 = vunpack.c.h.b16 %v475
        %v884 = vunpack.c.l.b16 %v476
        %v885 = vunpack.c.h.b16 %v476
        %v886 = vunpack.c.l.b16 %v477
        %v887 = vunpack.c.h.b16 %v477
        %v888 = vunpack.c.l.b16 %v478
        %v889 = vunpack.c.h.b16 %v478
        %v890 = vunpack.c.l.b16 %v479
        %v891 = vunpack.c.h.b16 %v479
        %v892 = vunpack.c.l.b16 %v480
        %v893 = vunpack.c.h.b16 %v480
        %v894 = vunpack.c.l.b16 %v481
        %v895 = vunpack.c.h.b16 %v481
        %v896 = vunpack.c.l.b16 %v482
        %v897 = vunpack.c.h.b16 %v482
        %v898 = vunpack.c.l.b16 %v483
        %v899 = vunpack.c.h.b16 %v483
        %v900 = vunpack.c.l.b16 %v484
        %v901 = vunpack.c.h.b16 %v484
        %v902 = vunpack.c.l.b16 %v485
        %v903 = vunpack.c.h.b16 %v485
        %v904 = vunpack.c.l.b16 %v486
        %v905 = vunpack.c.h.b16 %v486
        %v906 = vunpack.c.l.b16 %v487
        %v907 = vunpack.c.h.b16 %v487
        %v908 = vunpack.c.l.b16 %v488
        %v909 = vunpack.c.h.b16 %v488
        %v910 = vunpack.c.l.b16 %v489
        %v911 = vunpack.c.h.b16 %v489
        %v912 = vunpack.c.l.b16 %v490
        %v913 = vunpack.c.h.b16 %v490
        %v914 = vunpack.c.l.b16 %v491
        %v915 = vunpack.c.h.b16 %v491
        %v916 = vunpack.c.l.b16 %v492
        %v917 = vunpack.c.h.b16 %v492
        %v918 = vunpack.c.l.b16 %v493
        %v919 = vunpack.c.h.b16 %v493
        %v920 = vunpack.c.l.b16 %v494
        %v921 = vunpack.c.h.b16 %v494
        %v922 = vunpack.c.l.b16 %v495
        %v923 = vunpack.c.h.b16 %v495
        %v924 = vunpack.c.l.b16 %v496
        %v925 = vunpack.c.h.b16 %v496
        %v926 = vunpack.c.l.b16 %v497
        %v927 = vunpack.c.h.b16 %v497
        %v928 = vunpack.c.l.b16 %v498
        %v929 = vunpack.c.h.b16 %v498
        %v930 = vunpack.c.l.b16 %v499
        %v931 = vunpack.c.h.b16 %v499
        %v932 = vunpack.c.l.b16 %v500
        %v933 = vunpack.c.h.b16 %v500
        %v934 = vunpack.c.l.b16 %v501
        %v935 = vunpack.c.h.b16 %v501
        %v936 = vunpack.c.l.b16 %v502
        %v937 = vunpack.c.h.b16 %v502
        %v938 = vunpack.c.l.b16 %v503
        %v939 = vunpack.c.h.b16 %v503
        %v940 = vunpack.c.l.b16 %v504
        %v941 = vunpack.c.h.b16 %v504
        %v942 = vunpack.c.l.b16 %v505
        %v943 = vunpack.c.h.b16 %v505
        %v944 = vunpack.c.l.b16 %v506
        %v945 = vunpack.c.h.b16 %v506
        %v946 = vunpack.c.l.b16 %v507
        %v947 = vunpack.c.h.b16 %v507
        %v948 = vunpack.c.l.b16 %v508
        %v949 = vunpack.c.h.b16 %v508
        %v950 = vunpack.c.l.b16 %v509
        %v951 = vunpack.c.h.b16 %v509
        %v952 = vunpack.c.l.b16 %v510
        %v953 = vunpack.c.h.b16 %v510
        %v954 = vunpack.c.l.b16 %v511
        %v955 = vunpack.c.h.b16 %v511
        %v956 = vunpack.c.l.b16 %v512
        %v957 = vunpack.c.h.b16 %v512
        %v958 = vunpack.c.l.b16 %v513
        %v959 = vunpack.c.h.b16 %v513
        %v960 = vunpack.c.l.b16 %v514
        %v961 = vunpack.c.h.b16 %v514
        %v962 = vunpack.c.l.b16 %v515
        %v963 = vunpack.c.h.b16 %v515
        %v964 = vunpack.c.l.b16 %v516
        %v965 = vunpack.c.h.b16 %v516
        %v966 = vunpack.c.l.b16 %v517
        %v967 = vunpack.c.h.b16 %v517
        %v968 = vunpack.c.l.b16 %v518
        %v969 = vunpack.c.h.b16 %v518
        %v970 = vunpack.c.l.b16 %v519
        %v971 = vunpack.c.h.b16 %v519
        %v972 = vunpack.c.l.b16 %v520
        %v973 = vunpack.c.h.b16 %v520
        %v974 = vunpack.c.l.b16 %v521
        %v975 = vunpack.c.h.b16 %v521
        %v976 = vunpack.c.l.b16 %v522
        %v977 = vunpack.c.h.b16 %v522
        %v978 = vunpack.c.l.b16 %v523
        %v979 = vunpack.c.h.b16 %v523
        %v980 = vunpack.c.l.b16 %v524
        %v981 = vunpack.c.h.b16 %v524
        %v982 = vunpack.c.l.b16 %v525
        %v983 = vunpack.c.h.b16 %v525
        %v984 = vunpack.c.l.b16 %v526
        %v985 = vunpack.c.h.b16 %v526
        %v986 = vunpack.c.l.b16 %v527
        %v987 = vunpack.c.h.b16 %v527
        %v988 = vunpack.c.l.b16 %v528
        %v989 = vunpack.c.h.b16 %v528
        %v990 = vunpack.c.l.b16 %v529
        %v991 = vunpack.c.h.b16 %v529
        %v992 = vunpack.c.l.b16 %v530
        %v993 = vunpack.c.h.b16 %v530
        %v994 = vunpack.c.l.b16 %v531
        %v995 = vunpack.c.h.b16 %v531
        %v996 = vunpack.c.l.b16 %v532
        %v997 = vunpack.c.h.b16 %v532
        %v998 = vunpack.c.l.b16 %v533
        %v999 = vunpack.c.h.b16 %v533
        %v1000 = vunpack.c.l.b16 %v534
        %v1001 = vunpack.c.h.b16 %v534
        %v1002 = vunpack.c.l.b16 %v535
        %v1003 = vunpack.c.h.b16 %v535
        %v1004 = vunpack.c.l.b16 %v536
        %v1005 = vunpack.c.h.b16 %v536
        %v1006 = vunpack.c.l.b16 %v537
        %v1007 = vunpack.c.h.b16 %v537
        %v1008 = vunpack.c.l.b16 %v538
        %v1009 = vunpack.c.h.b16 %v538
        %v1010 = vunpack.c.l.b16 %v539
        %v1011 = vunpack.c.h.b16 %v539
        %v1012 = vunpack.c.l.b16 %v540
        %v1013 = vunpack.c.h.b16 %v540
        %v1014 = vunpack.c.l.b16 %v541
        %v1015 = vunpack.c.h.b16 %v541
        %v1016 = vunpack.c.l.b16 %v542
        %v1017 = vunpack.c.h.b16 %v542
        %v1018 = vunpack.c.l.b16 %v543
        %v1019 = vunpack.c.h.b16 %v543
        %v1020 = vunpack.c.l.b16 %v544
        %v1021 = vunpack.c.h.b16 %v544
        %v1022 = vunpack.c.l.b16 %v545
        %v1023 = vunpack.c.h.b16 %v545
        %v1024 = vunpack.c.l.b16 %v546
        %v1025 = vunpack.c.h.b16 %v546
        %v1026 = vunpack.c.l.b16 %v547
        %v1027 = vunpack.c.h.b16 %v547
        %v1028 = vunpack.c.l.b16 %v548
        %v1029 = vunpack.c.h.b16 %v548
        %v1030 = vunpack.c.l.b16 %v549
        %v1031 = vunpack.c.h.b16 %v549
        %v1032 = vunpack.c.l.b16 %v550
        %v1033 = vunpack.c.h.b16 %v550
        %v1034 = vunpack.c.l.b16 %v551
        %v1035 = vunpack.c.h.b16 %v551
        %v1036 = vunpack.c.l.b16 %v552
        %v1037 = vunpack.c.h.b16 %v552
        %v1038 = vunpack.c.l.b16 %v553
        %v1039 = vunpack.c.h.b16 %v553
        %v1040 = vpack.c.b16 %v890, %v880
        %v1041 = vpack.c.b16 %v891, %v881
        %v1042 = vpack.c.b16 %v892, %v882
        %v1043 = vpack.c.b16 %v893, %v883
        %v1044 = vpack.c.b16 %v894, %v884
        %v1045 = vpack.c.b16 %v895, %v885
        %v1046 = vpack.c.b16 %v896, %v886
        %v1047 = vpack.c.b16 %v897, %v887
        %v1048 = vpack.c.b16 %v898, %v888
        %v1049 = vpack.c.b16 %v899, %v889
        %v1050 = vpack.c.b16 %v910, %v900
        %v1051 = vpack.c.b16 %v911, %v901
        %v1052 = vpack.c.b16 %v912, %v902
        %v1053 = vpack.c.b16 %v913, %v903
        %v1054 = vpack.c.b16 %v914, %v904
        %v1055 = vpack.c.b16 %v915, %v905
        %v1056 = vpack.c.b16 %v916, %v906
        %v1057 = vpack.c.b16 %v917, %v907
        %v1058 = vpack.c.b16 %v918, %v908
        %v1059 = vpack.c.b16 %v919, %v909
        %v1060 = vpack.c.b16 %v930, %v920
        %v1061 = vpack.c.b16 %v931, %v921
        %v1062 = vpack.c.b16 %v932, %v922
        %v1063 = vpack.c.b16 %v933, %v923
        %v1064 = vpack.c.b16 %v934, %v924
        %v1065 = vpack.c.b16 %v935, %v925
        %v1066 = vpack.c.b16 %v936, %v926
        %v1067 = vpack.c.b16 %v937, %v927
        %v1068 = vpack.c.b16 %v938, %v928
        %v1069 = vpack.c.b16 %v939, %v929
        %v1070 = vpack.c.b16 %v950, %v940
        %v1071 = vpack.c.b16 %v951, %v941
        %v1072 = vpack.c.b16 %v952, %v942
        %v1073 = vpack.c.b16 %v953, %v943
        %v1074 = vpack.c.b16 %v954, %v944
        %v1075 = vpack.c.b16 %v955, %v945
        %v1076 = vpack.c.b16 %v956, %v946
        %v1077 = vpack.c.b16 %v957, %v947
        %v1078 = vpack.c.b16 %v958, %v948
        %v1079 = vpack.c.b16 %v959, %v949
        %v1080 = vpack.c.b16 %v970, %v960
        %v1081 = vpack.c.b16 %v971, %v961
        %v1082 = vpack.c.b16 %v972, %v962
        %v1083 = vpack.c.b16 %v973, %v963
        %v1084 = vpack.c.b16 %v974, %v964
        %v1085 = vpack.c.b16 %v975, %v965
        %v1086 = vpack.c.b16 %v976, %v966
        %v1087 = vpack.c.b16 %v977, %v967
        %v1088 = vpack.c.b16 %v978, %v968
        %v1089 = vpack.c.b16 %v979, %v969
        %v1090 = vpack.c.b16 %v990, %v980
        %v1091 = vpack.c.b16 %v991, %v981
        %v1092 = vpack.c.b16 %v992, %v982
        %v1093 = vpack.c.b16 %v993, %v983
        %v1094 = vpack.c.b16 %v994, %v984
        %v1095 = vpack.c.b16 %v995, %v985
        %v1096 = vpack.c.b16 %v996, %v986
        %v1097 = vpack.c.b16 %v997, %v987
        %v1098 = vpack.c.b16 %v998, %v988
        %v1099 = vpack.c.b16 %v999, %v989
        %v1100 = vpack.c.b16 %v1010, %v1000
        %v1101 = vpack.c.b16 %v1011, %v1001
        %v1102 = vpack.c.b16 %v1012, %v1002
        %v1103 = vpack.c.b16 %v1013, %v1003
        %v1104 = vpack.c.b16 %v1014, %v1004
        %v1105 = vpack.c.b16 %v1015, %v1005
        %v1106 = vpack.c.b16 %v1016, %v1006
        %v1107 = vpack.c.b16 %v1017, %v1007
        %v1108 = vpack.c.b16 %v1018, %v1008
        %v1109 = vpack.c.b16 %v1019, %v1009
        %v1110 = vpack.c.b16 %v1030, %v1020
        %v1111 = vpack.c.b16 %v1031, %v1021
        %v1112 = vpack.c.b16 %v1032, %v1022
        %v1113 = vpack.c.b16 %v1033, %v1023
        %v1114 = vpack.c.b16 %v1034, %v1024
        %v1115 = vpack.c.b16 %v1035, %v1025
        %v1116 = vpack.c.b16 %v1036, %v1026
        %v1117 = vpack.c.b16 %v1037, %v1027
        %v1118 = vpack.c.b16 %v1038, %v1028
        %v1119 = vpack.c.b16 %v1039, %v1029
        %1200 = vmatprep.subr.bf16.mxu0 %v1041
        %1201 = vmatpush1.bf16.msra.mxu0 %v1040
        %1202 = vmatprep.subr.bf16.mxu0 %v1051
        %1203 = vmatpush1.bf16.msra.mxu0 %v1050
        %1204 = vmatprep.subr.bf16.mxu0 %v1061
        %1205 = vmatpush1.bf16.msra.mxu0 %v1060
        %1206 = vmatprep.subr.bf16.mxu0 %v1071
        %1207 = vmatpush1.bf16.msra.mxu0 %v1070
        %1208 = vmatprep.subr.bf16.mxu0 %v1081
        %1209 = vmatpush1.bf16.msra.mxu0 %v1080
        %1210 = vmatprep.subr.bf16.mxu0 %v1091
        %1211 = vmatpush1.bf16.msra.mxu0 %v1090
        %1212 = vmatprep.subr.bf16.mxu0 %v1101
        %1213 = vmatpush1.bf16.msra.mxu0 %v1100
        %1214 = vmatprep.subr.bf16.mxu0 %v1111
        %1215 = vmatpush1.bf16.msra.mxu0 %v1110
        %1216 = vmatprep.subr.bf16.mxu0 0
        %1217 = vmatpush1.bf16.msra.mxu0 0
        %1218 = vmatprep.subr.bf16.mxu0 0
        %1219 = vmatpush1.bf16.msra.mxu0 0
        %1220 = vmatprep.subr.bf16.mxu0 0
        %1221 = vmatpush1.bf16.msra.mxu0 0
        %1222 = vmatprep.subr.bf16.mxu0 0
        %1223 = vmatpush1.bf16.msra.mxu0 0
        %1224 = vmatprep.subr.bf16.mxu0 0
        %1225 = vmatpush1.bf16.msra.mxu0 0
        %1226 = vmatprep.subr.bf16.mxu0 0
        %1227 = vmatpush1.bf16.msra.mxu0 0
        %1228 = vmatprep.subr.bf16.mxu0 0
        %1229 = vmatpush1.bf16.msra.mxu0 0
        %1230 = vmatprep.subr.bf16.mxu0 0
        %1231 = vmatpush1.bf16.msra.mxu0 0
        %1232 = vmatprep.mubr.bf16.mxu0 0
        %1233 = vmatmul.mubr.bf16.gmra.mrb[0].mxu0 %v736
        %v1234 = vpop.f32.mrb[0].mxu0
        %v1235 = vadd.f32 %v561, %v1234
        %v1236 = vpop.f32.mrb[0].mxu0
        %v1237 = vadd.f32 %v565, %v1236
        %v1238 = vpop.f32.mrb[0].mxu0
        %v1239 = vadd.f32 %v561, %v1238
        %v1240 = vpop.f32.mrb[0].mxu0
        %v1241 = vadd.f32 %v565, %v1240
        %1242 = vmatprep.mubr.bf16.mxu0 0
        %1243 = vmatmul.mubr.bf16.gmra.mrb[0].mxu0 %v737
        %v1244 = vpop.f32.mrb[0].mxu0
        %v1245 = vadd.f32 %v561, %v1244
        %v1246 = vpop.f32.mrb[0].mxu0
        %v1247 = vadd.f32 %v565, %v1246
        %v1248 = vpop.f32.mrb[0].mxu0
        %v1249 = vadd.f32 %v561, %v1248
        %v1250 = vpop.f32.mrb[0].mxu0
        %v1251 = vadd.f32 %v565, %v1250
        %1252 = vmatprep.mubr.bf16.mxu0 0
        %1253 = vmatmul.mubr.bf16.gmra.mrb[0].mxu0 %v738
        %v1254 = vpop.f32.mrb[0].mxu0
        %v1255 = vadd.f32 %v561, %v1254
        %v1256 = vpop.f32.mrb[0].mxu0
        %v1257 = vadd.f32 %v565, %v1256
        %v1258 = vpop.f32.mrb[0].mxu0
        %v1259 = vadd.f32 %v561, %v1258
        %v1260 = vpop.f32.mrb[0].mxu0
        %v1261 = vadd.f32 %v565, %v1260
        %1262 = vmatprep.mubr.bf16.mxu0 0
        %1263 = vmatmul.mubr.bf16.gmra.mrb[0].mxu0 %v739
        %v1264 = vpop.f32.mrb[0].mxu0
        %v1265 = vadd.f32 %v561, %v1264
        %v1266 = vpop.f32.mrb[0].mxu0
        %v1267 = vadd.f32 %v565, %v1266
        %v1268 = vpop.f32.mrb[0].mxu0
        %v1269 = vadd.f32 %v561, %v1268
        %v1270 = vpop.f32.mrb[0].mxu0
        %v1271 = vadd.f32 %v565, %v1270
        %1272 = vmatprep.mubr.bf16.mxu0 0
        %1273 = vmatmul.mubr.bf16.gmra.mrb[0].mxu0 %v740
        %v1274 = vpop.f32.mrb[0].mxu0
        %v1275 = vadd.f32 %v561, %v1274
        %v1276 = vpop.f32.mrb[0].mxu0
        %v1277 = vadd.f32 %v565, %v1276
        %v1278 = vpop.f32.mrb[0].mxu0
        %v1279 = vadd.f32 %v561, %v1278
        %v1280 = vpop.f32.mrb[0].mxu0
        %v1281 = vadd.f32 %v565, %v1280
        %1282 = vmatprep.mubr.bf16.mxu0 0
        %1283 = vmatmul.mubr.bf16.gmra.mrb[0].mxu0 %v741
        %v1284 = vpop.f32.mrb[0].mxu0
        %v1285 = vadd.f32 %v561, %v1284
        %v1286 = vpop.f32.mrb[0].mxu0
        %v1287 = vadd.f32 %v565, %v1286
        %v1288 = vpop.f32.mrb[0].mxu0
        %v1289 = vadd.f32 %v561, %v1288
        %v1290 = vpop.f32.mrb[0].mxu0
        %v1291 = vadd.f32 %v565, %v1290
        %1292 = vmatprep.mubr.bf16.mxu0 0
        %1293 = vmatmul.mubr.bf16.gmra.mrb[0].mxu0 %v742
        %v1294 = vpop.f32.mrb[0].mxu0
        %v1295 = vadd.f32 %v561, %v1294
        %v1296 = vpop.f32.mrb[0].mxu0
        %v1297 = vadd.f32 %v565, %v1296
        %v1298 = vpop.f32.mrb[0].mxu0
        %v1299 = vadd.f32 %v561, %v1298
        %v1300 = vpop.f32.mrb[0].mxu0
        %v1301 = vadd.f32 %v565, %v1300
        %1302 = vmatprep.mubr.bf16.mxu0 0
        %1303 = vmatmul.mubr.bf16.gmra.mrb[0].mxu0 %v743
        %v1304 = vpop.f32.mrb[0].mxu0
        %v1305 = vadd.f32 %v561, %v1304
        %v1306 = vpop.f32.mrb[0].mxu0
        %v1307 = vadd.f32 %v565, %v1306
        %v1308 = vpop.f32.mrb[0].mxu0
        %v1309 = vadd.f32 %v561, %v1308
        %v1310 = vpop.f32.mrb[0].mxu0
        %v1311 = vadd.f32 %v565, %v1310
        %1312 = vmatprep.mubr.bf16.mxu0 0
        %1313 = vmatmul.mubr.bf16.gmra.mrb[0].mxu0 %v744
        %v1314 = vpop.f32.mrb[0].mxu0
        %v1315 = vadd.f32 %v561, %v1314
        %v1316 = vpop.f32.mrb[0].mxu0
        %v1317 = vadd.f32 %v565, %v1316
        %v1318 = vpop.f32.mrb[0].mxu0
        %v1319 = vadd.f32 %v561, %v1318
        %v1320 = vpop.f32.mrb[0].mxu0
        %v1321 = vadd.f32 %v565, %v1320
        %1322 = vmatprep.mubr.bf16.mxu0 0
        %1323 = vmatmul.mubr.bf16.gmra.mrb[0].mxu0 %v745
        %v1324 = vpop.f32.mrb[0].mxu0
        %v1325 = vadd.f32 %v561, %v1324
        %v1326 = vpop.f32.mrb[0].mxu0
        %v1327 = vadd.f32 %v565, %v1326
        %v1328 = vpop.f32.mrb[0].mxu0
        %v1329 = vadd.f32 %v561, %v1328
        %v1330 = vpop.f32.mrb[0].mxu0
        %v1331 = vadd.f32 %v565, %v1330
        %1332 = vmatprep.mubr.bf16.mxu0 0
        %1333 = vmatmul.mubr.bf16.gmra.mrb[0].mxu0 %v746
        %v1334 = vpop.f32.mrb[0].mxu0
        %v1335 = vadd.f32 %v561, %v1334
        %v1336 = vpop.f32.mrb[0].mxu0
        %v1337 = vadd.f32 %v565, %v1336
        %v1338 = vpop.f32.mrb[0].mxu0
        %v1339 = vadd.f32 %v561, %v1338
        %v1340 = vpop.f32.mrb[0].mxu0
        %v1341 = vadd.f32 %v565, %v1340
        %1342 = vmatprep.mubr.bf16.mxu0 0
        %1343 = vmatmul.mubr.bf16.gmra.mrb[0].mxu0 %v747
        %v1344 = vpop.f32.mrb[0].mxu0
        %v1345 = vadd.f32 %v561, %v1344
        %v1346 = vpop.f32.mrb[0].mxu0
        %v1347 = vadd.f32 %v565, %v1346
        %v1348 = vpop.f32.mrb[0].mxu0
        %v1349 = vadd.f32 %v561, %v1348
        %v1350 = vpop.f32.mrb[0].mxu0
        %v1351 = vadd.f32 %v565, %v1350
        %1352 = vmatprep.mubr.bf16.mxu0 0
        %1353 = vmatmul.mubr.bf16.gmra.mrb[0].mxu0 %v748
        %v1354 = vpop.f32.mrb[0].mxu0
        %v1355 = vadd.f32 %v561, %v1354
        %v1356 = vpop.f32.mrb[0].mxu0
        %v1357 = vadd.f32 %v565, %v1356
        %v1358 = vpop.f32.mrb[0].mxu0
        %v1359 = vadd.f32 %v561, %v1358
        %v1360 = vpop.f32.mrb[0].mxu0
        %v1361 = vadd.f32 %v565, %v1360
        %1362 = vmatprep.mubr.bf16.mxu0 0
        %1363 = vmatmul.mubr.bf16.gmra.mrb[0].mxu0 %v749
        %v1364 = vpop.f32.mrb[0].mxu0
        %v1365 = vadd.f32 %v561, %v1364
        %v1366 = vpop.f32.mrb[0].mxu0
        %v1367 = vadd.f32 %v565, %v1366
        %v1368 = vpop.f32.mrb[0].mxu0
        %v1369 = vadd.f32 %v561, %v1368
        %v1370 = vpop.f32.mrb[0].mxu0
        %v1371 = vadd.f32 %v565, %v1370
        %1372 = vmatprep.mubr.bf16.mxu0 0
        %1373 = vmatmul.mubr.bf16.gmra.mrb[0].mxu0 %v750
        %v1374 = vpop.f32.mrb[0].mxu0
        %v1375 = vadd.f32 %v561, %v1374
        %v1376 = vpop.f32.mrb[0].mxu0
        %v1377 = vadd.f32 %v565, %v1376
        %v1378 = vpop.f32.mrb[0].mxu0
        %v1379 = vadd.f32 %v561, %v1378
        %v1380 = vpop.f32.mrb[0].mxu0
        %v1381 = vadd.f32 %v565, %v1380
        %1382 = vmatprep.mubr.bf16.mxu0 0
        %1383 = vmatmul.mubr.bf16.gmra.mrb[0].mxu0 %v751
        %v1384 = vpop.f32.mrb[0].mxu0
        %v1385 = vadd.f32 %v561, %v1384
        %v1386 = vpop.f32.mrb[0].mxu0
        %v1387 = vadd.f32 %v565, %v1386
        %v1388 = vpop.f32.mrb[0].mxu0
        %v1389 = vadd.f32 %v561, %v1388
        %v1390 = vpop.f32.mrb[0].mxu0
        %v1391 = vadd.f32 %v565, %v1390
        %1392 = vmatprep.mubr.bf16.mxu0 0
        %1393 = vmatmul.mubr.bf16.gmra.mrb[0].mxu0 %v752
        %v1394 = vpop.f32.mrb[0].mxu0
        %v1395 = vadd.f32 %v561, %v1394
        %v1396 = vpop.f32.mrb[0].mxu0
        %v1397 = vadd.f32 %v565, %v1396
        %v1398 = vpop.f32.mrb[0].mxu0
        %v1399 = vadd.f32 %v561, %v1398
        %v1400 = vpop.f32.mrb[0].mxu0
        %v1401 = vadd.f32 %v565, %v1400
        %1402 = vmatprep.mubr.bf16.mxu0 0
        %1403 = vmatmul.mubr.bf16.gmra.mrb[0].mxu0 %v753
        %v1404 = vpop.f32.mrb[0].mxu0
        %v1405 = vadd.f32 %v561, %v1404
        %v1406 = vpop.f32.mrb[0].mxu0
        %v1407 = vadd.f32 %v565, %v1406
        %v1408 = vpop.f32.mrb[0].mxu0
        %v1409 = vadd.f32 %v561, %v1408
        %v1410 = vpop.f32.mrb[0].mxu0
        %v1411 = vadd.f32 %v565, %v1410
        %1412 = vmatprep.mubr.bf16.mxu0 0
        %1413 = vmatmul.mubr.bf16.gmra.mrb[0].mxu0 %v754
        %v1414 = vpop.f32.mrb[0].mxu0
        %v1415 = vadd.f32 %v561, %v1414
        %v1416 = vpop.f32.mrb[0].mxu0
        %v1417 = vadd.f32 %v565, %v1416
        %v1418 = vpop.f32.mrb[0].mxu0
        %v1419 = vadd.f32 %v561, %v1418
        %v1420 = vpop.f32.mrb[0].mxu0
        %v1421 = vadd.f32 %v565, %v1420
        %1422 = vmatprep.mubr.bf16.mxu0 0
        %1423 = vmatmul.mubr.bf16.gmra.mrb[0].mxu0 %v755
        %v1424 = vpop.f32.mrb[0].mxu0
        %v1425 = vadd.f32 %v561, %v1424
        %v1426 = vpop.f32.mrb[0].mxu0
        %v1427 = vadd.f32 %v565, %v1426
        %v1428 = vpop.f32.mrb[0].mxu0
        %v1429 = vadd.f32 %v561, %v1428
        %v1430 = vpop.f32.mrb[0].mxu0
        %v1431 = vadd.f32 %v565, %v1430
        %1432 = vmatprep.mubr.bf16.mxu0 0
        %1433 = vmatmul.mubr.bf16.gmra.mrb[0].mxu0 %v756
        %v1434 = vpop.f32.mrb[0].mxu0
        %v1435 = vadd.f32 %v561, %v1434
        %v1436 = vpop.f32.mrb[0].mxu0
        %v1437 = vadd.f32 %v565, %v1436
        %v1438 = vpop.f32.mrb[0].mxu0
        %v1439 = vadd.f32 %v561, %v1438
        %v1440 = vpop.f32.mrb[0].mxu0
        %v1441 = vadd.f32 %v565, %v1440
        %1442 = vmatprep.mubr.bf16.mxu0 0
        %1443 = vmatmul.mubr.bf16.gmra.mrb[0].mxu0 %v757
        %v1444 = vpop.f32.mrb[0].mxu0
        %v1445 = vadd.f32 %v561, %v1444
        %v1446 = vpop.f32.mrb[0].mxu0
        %v1447 = vadd.f32 %v565, %v1446
        %v1448 = vpop.f32.mrb[0].mxu0
        %v1449 = vadd.f32 %v561, %v1448
        %v1450 = vpop.f32.mrb[0].mxu0
        %v1451 = vadd.f32 %v565, %v1450
        %1452 = vmatprep.mubr.bf16.mxu0 0
        %1453 = vmatmul.mubr.bf16.gmra.mrb[0].mxu0 %v758
        %v1454 = vpop.f32.mrb[0].mxu0
        %v1455 = vadd.f32 %v561, %v1454
        %v1456 = vpop.f32.mrb[0].mxu0
        %v1457 = vadd.f32 %v565, %v1456
        %v1458 = vpop.f32.mrb[0].mxu0
        %v1459 = vadd.f32 %v561, %v1458
        %v1460 = vpop.f32.mrb[0].mxu0
        %v1461 = vadd.f32 %v565, %v1460
        %1462 = vmatprep.mubr.bf16.mxu0 0
        %1463 = vmatmul.mubr.bf16.gmra.mrb[0].mxu0 %v759
        %v1464 = vpop.f32.mrb[0].mxu0
        %v1465 = vadd.f32 %v561, %v1464
        %v1466 = vpop.f32.mrb[0].mxu0
        %v1467 = vadd.f32 %v565, %v1466
        %v1468 = vpop.f32.mrb[0].mxu0
        %v1469 = vadd.f32 %v561, %v1468
        %v1470 = vpop.f32.mrb[0].mxu0
        %v1471 = vadd.f32 %v565, %v1470
        %1472 = vmatprep.mubr.bf16.mxu0 0
        %1473 = vmatmul.mubr.bf16.gmra.mrb[0].mxu0 %v760
        %v1474 = vpop.f32.mrb[0].mxu0
        %v1475 = vadd.f32 %v561, %v1474
        %v1476 = vpop.f32.mrb[0].mxu0
        %v1477 = vadd.f32 %v565, %v1476
        %v1478 = vpop.f32.mrb[0].mxu0
        %v1479 = vadd.f32 %v561, %v1478
        %v1480 = vpop.f32.mrb[0].mxu0
        %v1481 = vadd.f32 %v565, %v1480
        %1482 = vmatprep.mubr.bf16.mxu0 0
        %1483 = vmatmul.mubr.bf16.gmra.mrb[0].mxu0 %v761
        %v1484 = vpop.f32.mrb[0].mxu0
        %v1485 = vadd.f32 %v561, %v1484
        %v1486 = vpop.f32.mrb[0].mxu0
        %v1487 = vadd.f32 %v565, %v1486
        %v1488 = vpop.f32.mrb[0].mxu0
        %v1489 = vadd.f32 %v561, %v1488
        %v1490 = vpop.f32.mrb[0].mxu0
        %v1491 = vadd.f32 %v565, %v1490
        %1492 = vmatprep.mubr.bf16.mxu0 0
        %1493 = vmatmul.mubr.bf16.gmra.mrb[0].mxu0 %v762
        %v1494 = vpop.f32.mrb[0].mxu0
        %v1495 = vadd.f32 %v561, %v1494
        %v1496 = vpop.f32.mrb[0].mxu0
        %v1497 = vadd.f32 %v565, %v1496
        %v1498 = vpop.f32.mrb[0].mxu0
        %v1499 = vadd.f32 %v561, %v1498
        %v1500 = vpop.f32.mrb[0].mxu0
        %v1501 = vadd.f32 %v565, %v1500
        %1502 = vmatprep.mubr.bf16.mxu0 0
        %1503 = vmatmul.mubr.bf16.gmra.mrb[0].mxu0 %v763
        %v1504 = vpop.f32.mrb[0].mxu0
        %v1505 = vadd.f32 %v561, %v1504
        %v1506 = vpop.f32.mrb[0].mxu0
        %v1507 = vadd.f32 %v565, %v1506
        %v1508 = vpop.f32.mrb[0].mxu0
        %v1509 = vadd.f32 %v561, %v1508
        %v1510 = vpop.f32.mrb[0].mxu0
        %v1511 = vadd.f32 %v565, %v1510
        %1512 = vmatprep.mubr.bf16.mxu0 0
        %1513 = vmatmul.mubr.bf16.gmra.mrb[0].mxu0 %v764
        %v1514 = vpop.f32.mrb[0].mxu0
        %v1515 = vadd.f32 %v561, %v1514
        %v1516 = vpop.f32.mrb[0].mxu0
        %v1517 = vadd.f32 %v565, %v1516
        %v1518 = vpop.f32.mrb[0].mxu0
        %v1519 = vadd.f32 %v561, %v1518
        %v1520 = vpop.f32.mrb[0].mxu0
        %v1521 = vadd.f32 %v565, %v1520
        %1522 = vmatprep.mubr.bf16.mxu0 0
        %1523 = vmatmul.mubr.bf16.gmra.mrb[0].mxu0 %v765
        %v1524 = vpop.f32.mrb[0].mxu0
        %v1525 = vadd.f32 %v561, %v1524
        %v1526 = vpop.f32.mrb[0].mxu0
        %v1527 = vadd.f32 %v565, %v1526
        %v1528 = vpop.f32.mrb[0].mxu0
        %v1529 = vadd.f32 %v561, %v1528
        %v1530 = vpop.f32.mrb[0].mxu0
        %v1531 = vadd.f32 %v565, %v1530
        %1532 = vmatprep.mubr.bf16.mxu0 0
        %1533 = vmatmul.mubr.bf16.gmra.mrb[0].mxu0 %v766
        %v1534 = vpop.f32.mrb[0].mxu0
        %v1535 = vadd.f32 %v561, %v1534
        %v1536 = vpop.f32.mrb[0].mxu0
        %v1537 = vadd.f32 %v565, %v1536
        %v1538 = vpop.f32.mrb[0].mxu0
        %v1539 = vadd.f32 %v561, %v1538
        %v1540 = vpop.f32.mrb[0].mxu0
        %v1541 = vadd.f32 %v565, %v1540
        %1542 = vmatprep.mubr.bf16.mxu0 0
        %1543 = vmatmul.mubr.bf16.gmra.mrb[0].mxu0 %v767
        %v1544 = vpop.f32.mrb[0].mxu0
        %v1545 = vadd.f32 %v561, %v1544
        %v1546 = vpop.f32.mrb[0].mxu0
        %v1547 = vadd.f32 %v565, %v1546
        %v1548 = vpop.f32.mrb[0].mxu0
        %v1549 = vadd.f32 %v561, %v1548
        %v1550 = vpop.f32.mrb[0].mxu0
        %v1551 = vadd.f32 %v565, %v1550
        %1552 = vdwg.mxu0
        %1553 = vmatprep.subr.bf16.mxu0 %v1043
        %1554 = vmatpush1.bf16.msra.mxu0 %v1042
        %1555 = vmatprep.subr.bf16.mxu0 %v1053
        %1556 = vmatpush1.bf16.msra.mxu0 %v1052
        %1557 = vmatprep.subr.bf16.mxu0 %v1063
        %1558 = vmatpush1.bf16.msra.mxu0 %v1062
        %1559 = vmatprep.subr.bf16.mxu0 %v1073
        %1560 = vmatpush1.bf16.msra.mxu0 %v1072
        %1561 = vmatprep.subr.bf16.mxu0 %v1083
        %1562 = vmatpush1.bf16.msra.mxu0 %v1082
        %1563 = vmatprep.subr.bf16.mxu0 %v1093
        %1564 = vmatpush1.bf16.msra.mxu0 %v1092
        %1565 = vmatprep.subr.bf16.mxu0 %v1103
        %1566 = vmatpush1.bf16.msra.mxu0 %v1102
        %1567 = vmatprep.subr.bf16.mxu0 %v1113
        %1568 = vmatpush1.bf16.msra.mxu0 %v1112
        %1569 = vmatprep.subr.bf16.mxu0 0
        %1570 = vmatpush1.bf16.msra.mxu0 0
        %1571 = vmatprep.subr.bf16.mxu0 0
        %1572 = vmatpush1.bf16.msra.mxu0 0
        %1573 = vmatprep.subr.bf16.mxu0 0
        %1574 = vmatpush1.bf16.msra.mxu0 0
        %1575 = vmatprep.subr.bf16.mxu0 0
        %1576 = vmatpush1.bf16.msra.mxu0 0
        %1577 = vmatprep.subr.bf16.mxu0 0
        %1578 = vmatpush1.bf16.msra.mxu0 0
        %1579 = vmatprep.subr.bf16.mxu0 0
        %1580 = vmatpush1.bf16.msra.mxu0 0
        %1581 = vmatprep.subr.bf16.mxu0 0
        %1582 = vmatpush1.bf16.msra.mxu0 0
        %1583 = vmatprep.subr.bf16.mxu0 0
        %1584 = vmatpush1.bf16.msra.mxu0 0
        %1585 = vmatprep.mubr.bf16.mxu0 0
        %1586 = vmatmul.mubr.bf16.gmra.mrb[0].mxu0 %v736
        %v1587 = vpop.f32.mrb[0].mxu0
        %v1588 = vadd.f32 %v569, %v1587
        %v1589 = vpop.f32.mrb[0].mxu0
        %v1590 = vadd.f32 %v573, %v1589
        %v1591 = vpop.f32.mrb[0].mxu0
        %v1592 = vadd.f32 %v569, %v1591
        %v1593 = vpop.f32.mrb[0].mxu0
        %v1594 = vadd.f32 %v573, %v1593
        %1595 = vmatprep.mubr.bf16.mxu0 0
        %1596 = vmatmul.mubr.bf16.gmra.mrb[0].mxu0 %v737
        %v1597 = vpop.f32.mrb[0].mxu0
        %v1598 = vadd.f32 %v569, %v1597
        %v1599 = vpop.f32.mrb[0].mxu0
        %v1600 = vadd.f32 %v573, %v1599
        %v1601 = vpop.f32.mrb[0].mxu0
        %v1602 = vadd.f32 %v569, %v1601
        %v1603 = vpop.f32.mrb[0].mxu0
        %v1604 = vadd.f32 %v573, %v1603
        %1605 = vmatprep.mubr.bf16.mxu0 0
        %1606 = vmatmul.mubr.bf16.gmra.mrb[0].mxu0 %v738
        %v1607 = vpop.f32.mrb[0].mxu0
        %v1608 = vadd.f32 %v569, %v1607
        %v1609 = vpop.f32.mrb[0].mxu0
        %v1610 = vadd.f32 %v573, %v1609
        %v1611 = vpop.f32.mrb[0].mxu0
        %v1612 = vadd.f32 %v569, %v1611
        %v1613 = vpop.f32.mrb[0].mxu0
        %v1614 = vadd.f32 %v573, %v1613
        %1615 = vmatprep.mubr.bf16.mxu0 0
        %1616 = vmatmul.mubr.bf16.gmra.mrb[0].mxu0 %v739
        %v1617 = vpop.f32.mrb[0].mxu0
        %v1618 = vadd.f32 %v569, %v1617
        %v1619 = vpop.f32.mrb[0].mxu0
        %v1620 = vadd.f32 %v573, %v1619
        %v1621 = vpop.f32.mrb[0].mxu0
        %v1622 = vadd.f32 %v569, %v1621
        %v1623 = vpop.f32.mrb[0].mxu0
        %v1624 = vadd.f32 %v573, %v1623
        %1625 = vmatprep.mubr.bf16.mxu0 0
        %1626 = vmatmul.mubr.bf16.gmra.mrb[0].mxu0 %v740
        %v1627 = vpop.f32.mrb[0].mxu0
        %v1628 = vadd.f32 %v569, %v1627
        %v1629 = vpop.f32.mrb[0].mxu0
        %v1630 = vadd.f32 %v573, %v1629
        %v1631 = vpop.f32.mrb[0].mxu0
        %v1632 = vadd.f32 %v569, %v1631
        %v1633 = vpop.f32.mrb[0].mxu0
        %v1634 = vadd.f32 %v573, %v1633
        %1635 = vmatprep.mubr.bf16.mxu0 0
        %1636 = vmatmul.mubr.bf16.gmra.mrb[0].mxu0 %v741
        %v1637 = vpop.f32.mrb[0].mxu0
        %v1638 = vadd.f32 %v569, %v1637
        %v1639 = vpop.f32.mrb[0].mxu0
        %v1640 = vadd.f32 %v573, %v1639
        %v1641 = vpop.f32.mrb[0].mxu0
        %v1642 = vadd.f32 %v569, %v1641
        %v1643 = vpop.f32.mrb[0].mxu0
        %v1644 = vadd.f32 %v573, %v1643
        %1645 = vmatprep.mubr.bf16.mxu0 0
        %1646 = vmatmul.mubr.bf16.gmra.mrb[0].mxu0 %v742
        %v1647 = vpop.f32.mrb[0].mxu0
        %v1648 = vadd.f32 %v569, %v1647
        %v1649 = vpop.f32.mrb[0].mxu0
        %v1650 = vadd.f32 %v573, %v1649
        %v1651 = vpop.f32.mrb[0].mxu0
        %v1652 = vadd.f32 %v569, %v1651
        %v1653 = vpop.f32.mrb[0].mxu0
        %v1654 = vadd.f32 %v573, %v1653
        %1655 = vmatprep.mubr.bf16.mxu0 0
        %1656 = vmatmul.mubr.bf16.gmra.mrb[0].mxu0 %v743
        %v1657 = vpop.f32.mrb[0].mxu0
        %v1658 = vadd.f32 %v569, %v1657
        %v1659 = vpop.f32.mrb[0].mxu0
        %v1660 = vadd.f32 %v573, %v1659
        %v1661 = vpop.f32.mrb[0].mxu0
        %v1662 = vadd.f32 %v569, %v1661
        %v1663 = vpop.f32.mrb[0].mxu0
        %v1664 = vadd.f32 %v573, %v1663
        %1665 = vmatprep.mubr.bf16.mxu0 0
        %1666 = vmatmul.mubr.bf16.gmra.mrb[0].mxu0 %v744
        %v1667 = vpop.f32.mrb[0].mxu0
        %v1668 = vadd.f32 %v569, %v1667
        %v1669 = vpop.f32.mrb[0].mxu0
        %v1670 = vadd.f32 %v573, %v1669
        %v1671 = vpop.f32.mrb[0].mxu0
        %v1672 = vadd.f32 %v569, %v1671
        %v1673 = vpop.f32.mrb[0].mxu0
        %v1674 = vadd.f32 %v573, %v1673
        %1675 = vmatprep.mubr.bf16.mxu0 0
        %1676 = vmatmul.mubr.bf16.gmra.mrb[0].mxu0 %v745
        %v1677 = vpop.f32.mrb[0].mxu0
        %v1678 = vadd.f32 %v569, %v1677
        %v1679 = vpop.f32.mrb[0].mxu0
        %v1680 = vadd.f32 %v573, %v1679
        %v1681 = vpop.f32.mrb[0].mxu0
        %v1682 = vadd.f32 %v569, %v1681
        %v1683 = vpop.f32.mrb[0].mxu0
        %v1684 = vadd.f32 %v573, %v1683
        %1685 = vmatprep.mubr.bf16.mxu0 0
        %1686 = vmatmul.mubr.bf16.gmra.mrb[0].mxu0 %v746
        %v1687 = vpop.f32.mrb[0].mxu0
        %v1688 = vadd.f32 %v569, %v1687
        %v1689 = vpop.f32.mrb[0].mxu0
        %v1690 = vadd.f32 %v573, %v1689
        %v1691 = vpop.f32.mrb[0].mxu0
        %v1692 = vadd.f32 %v569, %v1691
        %v1693 = vpop.f32.mrb[0].mxu0
        %v1694 = vadd.f32 %v573, %v1693
        %1695 = vmatprep.mubr.bf16.mxu0 0
        %1696 = vmatmul.mubr.bf16.gmra.mrb[0].mxu0 %v747
        %v1697 = vpop.f32.mrb[0].mxu0
        %v1698 = vadd.f32 %v569, %v1697
        %v1699 = vpop.f32.mrb[0].mxu0
        %v1700 = vadd.f32 %v573, %v1699
        %v1701 = vpop.f32.mrb[0].mxu0
        %v1702 = vadd.f32 %v569, %v1701
        %v1703 = vpop.f32.mrb[0].mxu0
        %v1704 = vadd.f32 %v573, %v1703
        %1705 = vmatprep.mubr.bf16.mxu0 0
        %1706 = vmatmul.mubr.bf16.gmra.mrb[0].mxu0 %v748
        %v1707 = vpop.f32.mrb[0].mxu0
        %v1708 = vadd.f32 %v569, %v1707
        %v1709 = vpop.f32.mrb[0].mxu0
        %v1710 = vadd.f32 %v573, %v1709
        %v1711 = vpop.f32.mrb[0].mxu0
        %v1712 = vadd.f32 %v569, %v1711
        %v1713 = vpop.f32.mrb[0].mxu0
        %v1714 = vadd.f32 %v573, %v1713
        %1715 = vmatprep.mubr.bf16.mxu0 0
        %1716 = vmatmul.mubr.bf16.gmra.mrb[0].mxu0 %v749
        %v1717 = vpop.f32.mrb[0].mxu0
        %v1718 = vadd.f32 %v569, %v1717
        %v1719 = vpop.f32.mrb[0].mxu0
        %v1720 = vadd.f32 %v573, %v1719
        %v1721 = vpop.f32.mrb[0].mxu0
        %v1722 = vadd.f32 %v569, %v1721
        %v1723 = vpop.f32.mrb[0].mxu0
        %v1724 = vadd.f32 %v573, %v1723
        %1725 = vmatprep.mubr.bf16.mxu0 0
        %1726 = vmatmul.mubr.bf16.gmra.mrb[0].mxu0 %v750
        %v1727 = vpop.f32.mrb[0].mxu0
        %v1728 = vadd.f32 %v569, %v1727
        %v1729 = vpop.f32.mrb[0].mxu0
        %v1730 = vadd.f32 %v573, %v1729
        %v1731 = vpop.f32.mrb[0].mxu0
        %v1732 = vadd.f32 %v569, %v1731
        %v1733 = vpop.f32.mrb[0].mxu0
        %v1734 = vadd.f32 %v573, %v1733
        %1735 = vmatprep.mubr.bf16.mxu0 0
        %1736 = vmatmul.mubr.bf16.gmra.mrb[0].mxu0 %v751
        %v1737 = vpop.f32.mrb[0].mxu0
        %v1738 = vadd.f32 %v569, %v1737
        %v1739 = vpop.f32.mrb[0].mxu0
        %v1740 = vadd.f32 %v573, %v1739
        %v1741 = vpop.f32.mrb[0].mxu0
        %v1742 = vadd.f32 %v569, %v1741
        %v1743 = vpop.f32.mrb[0].mxu0
        %v1744 = vadd.f32 %v573, %v1743
        %1745 = vmatprep.mubr.bf16.mxu0 0
        %1746 = vmatmul.mubr.bf16.gmra.mrb[0].mxu0 %v752
        %v1747 = vpop.f32.mrb[0].mxu0
        %v1748 = vadd.f32 %v569, %v1747
        %v1749 = vpop.f32.mrb[0].mxu0
        %v1750 = vadd.f32 %v573, %v1749
        %v1751 = vpop.f32.mrb[0].mxu0
        %v1752 = vadd.f32 %v569, %v1751
        %v1753 = vpop.f32.mrb[0].mxu0
        %v1754 = vadd.f32 %v573, %v1753
        %1755 = vmatprep.mubr.bf16.mxu0 0
        %1756 = vmatmul.mubr.bf16.gmra.mrb[0].mxu0 %v753
        %v1757 = vpop.f32.mrb[0].mxu0
        %v1758 = vadd.f32 %v569, %v1757
        %v1759 = vpop.f32.mrb[0].mxu0
        %v1760 = vadd.f32 %v573, %v1759
        %v1761 = vpop.f32.mrb[0].mxu0
        %v1762 = vadd.f32 %v569, %v1761
        %v1763 = vpop.f32.mrb[0].mxu0
        %v1764 = vadd.f32 %v573, %v1763
        %1765 = vmatprep.mubr.bf16.mxu0 0
        %1766 = vmatmul.mubr.bf16.gmra.mrb[0].mxu0 %v754
        %v1767 = vpop.f32.mrb[0].mxu0
        %v1768 = vadd.f32 %v569, %v1767
        %v1769 = vpop.f32.mrb[0].mxu0
        %v1770 = vadd.f32 %v573, %v1769
        %v1771 = vpop.f32.mrb[0].mxu0
        %v1772 = vadd.f32 %v569, %v1771
        %v1773 = vpop.f32.mrb[0].mxu0
        %v1774 = vadd.f32 %v573, %v1773
        %1775 = vmatprep.mubr.bf16.mxu0 0
        %1776 = vmatmul.mubr.bf16.gmra.mrb[0].mxu0 %v755
        %v1777 = vpop.f32.mrb[0].mxu0
        %v1778 = vadd.f32 %v569, %v1777
        %v1779 = vpop.f32.mrb[0].mxu0
        %v1780 = vadd.f32 %v573, %v1779
        %v1781 = vpop.f32.mrb[0].mxu0
        %v1782 = vadd.f32 %v569, %v1781
        %v1783 = vpop.f32.mrb[0].mxu0
        %v1784 = vadd.f32 %v573, %v1783
        %1785 = vmatprep.mubr.bf16.mxu0 0
        %1786 = vmatmul.mubr.bf16.gmra.mrb[0].mxu0 %v756
        %v1787 = vpop.f32.mrb[0].mxu0
        %v1788 = vadd.f32 %v569, %v1787
        %v1789 = vpop.f32.mrb[0].mxu0
        %v1790 = vadd.f32 %v573, %v1789
        %v1791 = vpop.f32.mrb[0].mxu0
        %v1792 = vadd.f32 %v569, %v1791
        %v1793 = vpop.f32.mrb[0].mxu0
        %v1794 = vadd.f32 %v573, %v1793
        %1795 = vmatprep.mubr.bf16.mxu0 0
        %1796 = vmatmul.mubr.bf16.gmra.mrb[0].mxu0 %v757
        %v1797 = vpop.f32.mrb[0].mxu0
        %v1798 = vadd.f32 %v569, %v1797
        %v1799 = vpop.f32.mrb[0].mxu0
        %v1800 = vadd.f32 %v573, %v1799
        %v1801 = vpop.f32.mrb[0].mxu0
        %v1802 = vadd.f32 %v569, %v1801
        %v1803 = vpop.f32.mrb[0].mxu0
        %v1804 = vadd.f32 %v573, %v1803
        %1805 = vmatprep.mubr.bf16.mxu0 0
        %1806 = vmatmul.mubr.bf16.gmra.mrb[0].mxu0 %v758
        %v1807 = vpop.f32.mrb[0].mxu0
        %v1808 = vadd.f32 %v569, %v1807
        %v1809 = vpop.f32.mrb[0].mxu0
        %v1810 = vadd.f32 %v573, %v1809
        %v1811 = vpop.f32.mrb[0].mxu0
        %v1812 = vadd.f32 %v569, %v1811
        %v1813 = vpop.f32.mrb[0].mxu0
        %v1814 = vadd.f32 %v573, %v1813
        %1815 = vmatprep.mubr.bf16.mxu0 0
        %1816 = vmatmul.mubr.bf16.gmra.mrb[0].mxu0 %v759
        %v1817 = vpop.f32.mrb[0].mxu0
        %v1818 = vadd.f32 %v569, %v1817
        %v1819 = vpop.f32.mrb[0].mxu0
        %v1820 = vadd.f32 %v573, %v1819
        %v1821 = vpop.f32.mrb[0].mxu0
        %v1822 = vadd.f32 %v569, %v1821
        %v1823 = vpop.f32.mrb[0].mxu0
        %v1824 = vadd.f32 %v573, %v1823
        %1825 = vmatprep.mubr.bf16.mxu0 0
        %1826 = vmatmul.mubr.bf16.gmra.mrb[0].mxu0 %v760
        %v1827 = vpop.f32.mrb[0].mxu0
        %v1828 = vadd.f32 %v569, %v1827
        %v1829 = vpop.f32.mrb[0].mxu0
        %v1830 = vadd.f32 %v573, %v1829
        %v1831 = vpop.f32.mrb[0].mxu0
        %v1832 = vadd.f32 %v569, %v1831
        %v1833 = vpop.f32.mrb[0].mxu0
        %v1834 = vadd.f32 %v573, %v1833
        %1835 = vmatprep.mubr.bf16.mxu0 0
        %1836 = vmatmul.mubr.bf16.gmra.mrb[0].mxu0 %v761
        %v1837 = vpop.f32.mrb[0].mxu0
        %v1838 = vadd.f32 %v569, %v1837
        %v1839 = vpop.f32.mrb[0].mxu0
        %v1840 = vadd.f32 %v573, %v1839
        %v1841 = vpop.f32.mrb[0].mxu0
        %v1842 = vadd.f32 %v569, %v1841
        %v1843 = vpop.f32.mrb[0].mxu0
        %v1844 = vadd.f32 %v573, %v1843
        %1845 = vmatprep.mubr.bf16.mxu0 0
        %1846 = vmatmul.mubr.bf16.gmra.mrb[0].mxu0 %v762
        %v1847 = vpop.f32.mrb[0].mxu0
        %v1848 = vadd.f32 %v569, %v1847
        %v1849 = vpop.f32.mrb[0].mxu0
        %v1850 = vadd.f32 %v573, %v1849
        %v1851 = vpop.f32.mrb[0].mxu0
        %v1852 = vadd.f32 %v569, %v1851
        %v1853 = vpop.f32.mrb[0].mxu0
        %v1854 = vadd.f32 %v573, %v1853
        %1855 = vmatprep.mubr.bf16.mxu0 0
        %1856 = vmatmul.mubr.bf16.gmra.mrb[0].mxu0 %v763
        %v1857 = vpop.f32.mrb[0].mxu0
        %v1858 = vadd.f32 %v569, %v1857
        %v1859 = vpop.f32.mrb[0].mxu0
        %v1860 = vadd.f32 %v573, %v1859
        %v1861 = vpop.f32.mrb[0].mxu0
        %v1862 = vadd.f32 %v569, %v1861
        %v1863 = vpop.f32.mrb[0].mxu0
        %v1864 = vadd.f32 %v573, %v1863
        %1865 = vmatprep.mubr.bf16.mxu0 0
        %1866 = vmatmul.mubr.bf16.gmra.mrb[0].mxu0 %v764
        %v1867 = vpop.f32.mrb[0].mxu0
        %v1868 = vadd.f32 %v569, %v1867
        %v1869 = vpop.f32.mrb[0].mxu0
        %v1870 = vadd.f32 %v573, %v1869
        %v1871 = vpop.f32.mrb[0].mxu0
        %v1872 = vadd.f32 %v569, %v1871
        %v1873 = vpop.f32.mrb[0].mxu0
        %v1874 = vadd.f32 %v573, %v1873
        %1875 = vmatprep.mubr.bf16.mxu0 0
        %1876 = vmatmul.mubr.bf16.gmra.mrb[0].mxu0 %v765
        %v1877 = vpop.f32.mrb[0].mxu0
        %v1878 = vadd.f32 %v569, %v1877
        %v1879 = vpop.f32.mrb[0].mxu0
        %v1880 = vadd.f32 %v573, %v1879
        %v1881 = vpop.f32.mrb[0].mxu0
        %v1882 = vadd.f32 %v569, %v1881
        %v1883 = vpop.f32.mrb[0].mxu0
        %v1884 = vadd.f32 %v573, %v1883
        %1885 = vmatprep.mubr.bf16.mxu0 0
        %1886 = vmatmul.mubr.bf16.gmra.mrb[0].mxu0 %v766
        %v1887 = vpop.f32.mrb[0].mxu0
        %v1888 = vadd.f32 %v569, %v1887
        %v1889 = vpop.f32.mrb[0].mxu0
        %v1890 = vadd.f32 %v573, %v1889
        %v1891 = vpop.f32.mrb[0].mxu0
        %v1892 = vadd.f32 %v569, %v1891
        %v1893 = vpop.f32.mrb[0].mxu0
        %v1894 = vadd.f32 %v573, %v1893
        %1895 = vmatprep.mubr.bf16.mxu0 0
        %1896 = vmatmul.mubr.bf16.gmra.mrb[0].mxu0 %v767
        %v1897 = vpop.f32.mrb[0].mxu0
        %v1898 = vadd.f32 %v569, %v1897
        %v1899 = vpop.f32.mrb[0].mxu0
        %v1900 = vadd.f32 %v573, %v1899
        %v1901 = vpop.f32.mrb[0].mxu0
        %v1902 = vadd.f32 %v569, %v1901
        %v1903 = vpop.f32.mrb[0].mxu0
        %v1904 = vadd.f32 %v573, %v1903
        %1905 = vdwg.mxu0
        %1906 = vmatprep.subr.bf16.mxu0 %v1045
        %1907 = vmatpush1.bf16.msra.mxu0 %v1044
        %1908 = vmatprep.subr.bf16.mxu0 %v1055
        %1909 = vmatpush1.bf16.msra.mxu0 %v1054
        %1910 = vmatprep.subr.bf16.mxu0 %v1065
        %1911 = vmatpush1.bf16.msra.mxu0 %v1064
        %1912 = vmatprep.subr.bf16.mxu0 %v1075
        %1913 = vmatpush1.bf16.msra.mxu0 %v1074
        %1914 = vmatprep.subr.bf16.mxu0 %v1085
        %1915 = vmatpush1.bf16.msra.mxu0 %v1084
        %1916 = vmatprep.subr.bf16.mxu0 %v1095
        %1917 = vmatpush1.bf16.msra.mxu0 %v1094
        %1918 = vmatprep.subr.bf16.mxu0 %v1105
        %1919 = vmatpush1.bf16.msra.mxu0 %v1104
        %1920 = vmatprep.subr.bf16.mxu0 %v1115
        %1921 = vmatpush1.bf16.msra.mxu0 %v1114
        %1922 = vmatprep.subr.bf16.mxu0 0
        %1923 = vmatpush1.bf16.msra.mxu0 0
        %1924 = vmatprep.subr.bf16.mxu0 0
        %1925 = vmatpush1.bf16.msra.mxu0 0
        %1926 = vmatprep.subr.bf16.mxu0 0
        %1927 = vmatpush1.bf16.msra.mxu0 0
        %1928 = vmatprep.subr.bf16.mxu0 0
        %1929 = vmatpush1.bf16.msra.mxu0 0
        %1930 = vmatprep.subr.bf16.mxu0 0
        %1931 = vmatpush1.bf16.msra.mxu0 0
        %1932 = vmatprep.subr.bf16.mxu0 0
        %1933 = vmatpush1.bf16.msra.mxu0 0
        %1934 = vmatprep.subr.bf16.mxu0 0
        %1935 = vmatpush1.bf16.msra.mxu0 0
        %1936 = vmatprep.subr.bf16.mxu0 0
        %1937 = vmatpush1.bf16.msra.mxu0 0
        %1938 = vmatprep.mubr.bf16.mxu0 0
        %1939 = vmatmul.mubr.bf16.gmra.mrb[0].mxu0 %v736
        %v1940 = vpop.f32.mrb[0].mxu0
        %v1941 = vadd.f32 %v577, %v1940
        %v1942 = vpop.f32.mrb[0].mxu0
        %v1943 = vadd.f32 %v581, %v1942
        %v1944 = vpop.f32.mrb[0].mxu0
        %v1945 = vadd.f32 %v577, %v1944
        %v1946 = vpop.f32.mrb[0].mxu0
        %v1947 = vadd.f32 %v581, %v1946
        %1948 = vmatprep.mubr.bf16.mxu0 0
        %1949 = vmatmul.mubr.bf16.gmra.mrb[0].mxu0 %v737
        %v1950 = vpop.f32.mrb[0].mxu0
        %v1951 = vadd.f32 %v577, %v1950
        %v1952 = vpop.f32.mrb[0].mxu0
        %v1953 = vadd.f32 %v581, %v1952
        %v1954 = vpop.f32.mrb[0].mxu0
        %v1955 = vadd.f32 %v577, %v1954
        %v1956 = vpop.f32.mrb[0].mxu0
        %v1957 = vadd.f32 %v581, %v1956
        %1958 = vmatprep.mubr.bf16.mxu0 0
        %1959 = vmatmul.mubr.bf16.gmra.mrb[0].mxu0 %v738
        %v1960 = vpop.f32.mrb[0].mxu0
        %v1961 = vadd.f32 %v577, %v1960
        %v1962 = vpop.f32.mrb[0].mxu0
        %v1963 = vadd.f32 %v581, %v1962
        %v1964 = vpop.f32.mrb[0].mxu0
        %v1965 = vadd.f32 %v577, %v1964
        %v1966 = vpop.f32.mrb[0].mxu0
        %v1967 = vadd.f32 %v581, %v1966
        %1968 = vmatprep.mubr.bf16.mxu0 0
        %1969 = vmatmul.mubr.bf16.gmra.mrb[0].mxu0 %v739
        %v1970 = vpop.f32.mrb[0].mxu0
        %v1971 = vadd.f32 %v577, %v1970
        %v1972 = vpop.f32.mrb[0].mxu0
        %v1973 = vadd.f32 %v581, %v1972
        %v1974 = vpop.f32.mrb[0].mxu0
        %v1975 = vadd.f32 %v577, %v1974
        %v1976 = vpop.f32.mrb[0].mxu0
        %v1977 = vadd.f32 %v581, %v1976
        %1978 = vmatprep.mubr.bf16.mxu0 0
        %1979 = vmatmul.mubr.bf16.gmra.mrb[0].mxu0 %v740
        %v1980 = vpop.f32.mrb[0].mxu0
        %v1981 = vadd.f32 %v577, %v1980
        %v1982 = vpop.f32.mrb[0].mxu0
        %v1983 = vadd.f32 %v581, %v1982
        %v1984 = vpop.f32.mrb[0].mxu0
        %v1985 = vadd.f32 %v577, %v1984
        %v1986 = vpop.f32.mrb[0].mxu0
        %v1987 = vadd.f32 %v581, %v1986
        %1988 = vmatprep.mubr.bf16.mxu0 0
        %1989 = vmatmul.mubr.bf16.gmra.mrb[0].mxu0 %v741
        %v1990 = vpop.f32.mrb[0].mxu0
        %v1991 = vadd.f32 %v577, %v1990
        %v1992 = vpop.f32.mrb[0].mxu0
        %v1993 = vadd.f32 %v581, %v1992
        %v1994 = vpop.f32.mrb[0].mxu0
        %v1995 = vadd.f32 %v577, %v1994
        %v1996 = vpop.f32.mrb[0].mxu0
        %v1997 = vadd.f32 %v581, %v1996
        %1998 = vmatprep.mubr.bf16.mxu0 0
        %1999 = vmatmul.mubr.bf16.gmra.mrb[0].mxu0 %v742
        %v2000 = vpop.f32.mrb[0].mxu0
        %v2001 = vadd.f32 %v577, %v2000
        %v2002 = vpop.f32.mrb[0].mxu0
        %v2003 = vadd.f32 %v581, %v2002
        %v2004 = vpop.f32.mrb[0].mxu0
        %v2005 = vadd.f32 %v577, %v2004
        %v2006 = vpop.f32.mrb[0].mxu0
        %v2007 = vadd.f32 %v581, %v2006
        %2008 = vmatprep.mubr.bf16.mxu0 0
        %2009 = vmatmul.mubr.bf16.gmra.mrb[0].mxu0 %v743
        %v2010 = vpop.f32.mrb[0].mxu0
        %v2011 = vadd.f32 %v577, %v2010
        %v2012 = vpop.f32.mrb[0].mxu0
        %v2013 = vadd.f32 %v581, %v2012
        %v2014 = vpop.f32.mrb[0].mxu0
        %v2015 = vadd.f32 %v577, %v2014
        %v2016 = vpop.f32.mrb[0].mxu0
        %v2017 = vadd.f32 %v581, %v2016
        %2018 = vmatprep.mubr.bf16.mxu0 0
        %2019 = vmatmul.mubr.bf16.gmra.mrb[0].mxu0 %v744
        %v2020 = vpop.f32.mrb[0].mxu0
        %v2021 = vadd.f32 %v577, %v2020
        %v2022 = vpop.f32.mrb[0].mxu0
        %v2023 = vadd.f32 %v581, %v2022
        %v2024 = vpop.f32.mrb[0].mxu0
        %v2025 = vadd.f32 %v577, %v2024
        %v2026 = vpop.f32.mrb[0].mxu0
        %v2027 = vadd.f32 %v581, %v2026
        %2028 = vmatprep.mubr.bf16.mxu0 0
        %2029 = vmatmul.mubr.bf16.gmra.mrb[0].mxu0 %v745
        %v2030 = vpop.f32.mrb[0].mxu0
        %v2031 = vadd.f32 %v577, %v2030
        %v2032 = vpop.f32.mrb[0].mxu0
        %v2033 = vadd.f32 %v581, %v2032
        %v2034 = vpop.f32.mrb[0].mxu0
        %v2035 = vadd.f32 %v577, %v2034
        %v2036 = vpop.f32.mrb[0].mxu0
        %v2037 = vadd.f32 %v581, %v2036
        %2038 = vmatprep.mubr.bf16.mxu0 0
        %2039 = vmatmul.mubr.bf16.gmra.mrb[0].mxu0 %v746
        %v2040 = vpop.f32.mrb[0].mxu0
        %v2041 = vadd.f32 %v577, %v2040
        %v2042 = vpop.f32.mrb[0].mxu0
        %v2043 = vadd.f32 %v581, %v2042
        %v2044 = vpop.f32.mrb[0].mxu0
        %v2045 = vadd.f32 %v577, %v2044
        %v2046 = vpop.f32.mrb[0].mxu0
        %v2047 = vadd.f32 %v581, %v2046
        %2048 = vmatprep.mubr.bf16.mxu0 0
        %2049 = vmatmul.mubr.bf16.gmra.mrb[0].mxu0 %v747
        %v2050 = vpop.f32.mrb[0].mxu0
        %v2051 = vadd.f32 %v577, %v2050
        %v2052 = vpop.f32.mrb[0].mxu0
        %v2053 = vadd.f32 %v581, %v2052
        %v2054 = vpop.f32.mrb[0].mxu0
        %v2055 = vadd.f32 %v577, %v2054
        %v2056 = vpop.f32.mrb[0].mxu0
        %v2057 = vadd.f32 %v581, %v2056
        %2058 = vmatprep.mubr.bf16.mxu0 0
        %2059 = vmatmul.mubr.bf16.gmra.mrb[0].mxu0 %v748
        %v2060 = vpop.f32.mrb[0].mxu0
        %v2061 = vadd.f32 %v577, %v2060
        %v2062 = vpop.f32.mrb[0].mxu0
        %v2063 = vadd.f32 %v581, %v2062
        %v2064 = vpop.f32.mrb[0].mxu0
        %v2065 = vadd.f32 %v577, %v2064
        %v2066 = vpop.f32.mrb[0].mxu0
        %v2067 = vadd.f32 %v581, %v2066
        %2068 = vmatprep.mubr.bf16.mxu0 0
        %2069 = vmatmul.mubr.bf16.gmra.mrb[0].mxu0 %v749
        %v2070 = vpop.f32.mrb[0].mxu0
        %v2071 = vadd.f32 %v577, %v2070
        %v2072 = vpop.f32.mrb[0].mxu0
        %v2073 = vadd.f32 %v581, %v2072
        %v2074 = vpop.f32.mrb[0].mxu0
        %v2075 = vadd.f32 %v577, %v2074
        %v2076 = vpop.f32.mrb[0].mxu0
        %v2077 = vadd.f32 %v581, %v2076
        %2078 = vmatprep.mubr.bf16.mxu0 0
        %2079 = vmatmul.mubr.bf16.gmra.mrb[0].mxu0 %v750
        %v2080 = vpop.f32.mrb[0].mxu0
        %v2081 = vadd.f32 %v577, %v2080
        %v2082 = vpop.f32.mrb[0].mxu0
        %v2083 = vadd.f32 %v581, %v2082
        %v2084 = vpop.f32.mrb[0].mxu0
        %v2085 = vadd.f32 %v577, %v2084
        %v2086 = vpop.f32.mrb[0].mxu0
        %v2087 = vadd.f32 %v581, %v2086
        %2088 = vmatprep.mubr.bf16.mxu0 0
        %2089 = vmatmul.mubr.bf16.gmra.mrb[0].mxu0 %v751
        %v2090 = vpop.f32.mrb[0].mxu0
        %v2091 = vadd.f32 %v577, %v2090
        %v2092 = vpop.f32.mrb[0].mxu0
        %v2093 = vadd.f32 %v581, %v2092
        %v2094 = vpop.f32.mrb[0].mxu0
        %v2095 = vadd.f32 %v577, %v2094
        %v2096 = vpop.f32.mrb[0].mxu0
        %v2097 = vadd.f32 %v581, %v2096
        %2098 = vmatprep.mubr.bf16.mxu0 0
        %2099 = vmatmul.mubr.bf16.gmra.mrb[0].mxu0 %v752
        %v2100 = vpop.f32.mrb[0].mxu0
        %v2101 = vadd.f32 %v577, %v2100
        %v2102 = vpop.f32.mrb[0].mxu0
        %v2103 = vadd.f32 %v581, %v2102
        %v2104 = vpop.f32.mrb[0].mxu0
        %v2105 = vadd.f32 %v577, %v2104
        %v2106 = vpop.f32.mrb[0].mxu0
        %v2107 = vadd.f32 %v581, %v2106
        %2108 = vmatprep.mubr.bf16.mxu0 0
        %2109 = vmatmul.mubr.bf16.gmra.mrb[0].mxu0 %v753
        %v2110 = vpop.f32.mrb[0].mxu0
        %v2111 = vadd.f32 %v577, %v2110
        %v2112 = vpop.f32.mrb[0].mxu0
        %v2113 = vadd.f32 %v581, %v2112
        %v2114 = vpop.f32.mrb[0].mxu0
        %v2115 = vadd.f32 %v577, %v2114
        %v2116 = vpop.f32.mrb[0].mxu0
        %v2117 = vadd.f32 %v581, %v2116
        %2118 = vmatprep.mubr.bf16.mxu0 0
        %2119 = vmatmul.mubr.bf16.gmra.mrb[0].mxu0 %v754
        %v2120 = vpop.f32.mrb[0].mxu0
        %v2121 = vadd.f32 %v577, %v2120
        %v2122 = vpop.f32.mrb[0].mxu0
        %v2123 = vadd.f32 %v581, %v2122
        %v2124 = vpop.f32.mrb[0].mxu0
        %v2125 = vadd.f32 %v577, %v2124
        %v2126 = vpop.f32.mrb[0].mxu0
        %v2127 = vadd.f32 %v581, %v2126
        %2128 = vmatprep.mubr.bf16.mxu0 0
        %2129 = vmatmul.mubr.bf16.gmra.mrb[0].mxu0 %v755
        %v2130 = vpop.f32.mrb[0].mxu0
        %v2131 = vadd.f32 %v577, %v2130
        %v2132 = vpop.f32.mrb[0].mxu0
        %v2133 = vadd.f32 %v581, %v2132
        %v2134 = vpop.f32.mrb[0].mxu0
        %v2135 = vadd.f32 %v577, %v2134
        %v2136 = vpop.f32.mrb[0].mxu0
        %v2137 = vadd.f32 %v581, %v2136
        %2138 = vmatprep.mubr.bf16.mxu0 0
        %2139 = vmatmul.mubr.bf16.gmra.mrb[0].mxu0 %v756
        %v2140 = vpop.f32.mrb[0].mxu0
        %v2141 = vadd.f32 %v577, %v2140
        %v2142 = vpop.f32.mrb[0].mxu0
        %v2143 = vadd.f32 %v581, %v2142
        %v2144 = vpop.f32.mrb[0].mxu0
        %v2145 = vadd.f32 %v577, %v2144
        %v2146 = vpop.f32.mrb[0].mxu0
        %v2147 = vadd.f32 %v581, %v2146
        %2148 = vmatprep.mubr.bf16.mxu0 0
        %2149 = vmatmul.mubr.bf16.gmra.mrb[0].mxu0 %v757
        %v2150 = vpop.f32.mrb[0].mxu0
        %v2151 = vadd.f32 %v577, %v2150
        %v2152 = vpop.f32.mrb[0].mxu0
        %v2153 = vadd.f32 %v581, %v2152
        %v2154 = vpop.f32.mrb[0].mxu0
        %v2155 = vadd.f32 %v577, %v2154
        %v2156 = vpop.f32.mrb[0].mxu0
        %v2157 = vadd.f32 %v581, %v2156
        %2158 = vmatprep.mubr.bf16.mxu0 0
        %2159 = vmatmul.mubr.bf16.gmra.mrb[0].mxu0 %v758
        %v2160 = vpop.f32.mrb[0].mxu0
        %v2161 = vadd.f32 %v577, %v2160
        %v2162 = vpop.f32.mrb[0].mxu0
        %v2163 = vadd.f32 %v581, %v2162
        %v2164 = vpop.f32.mrb[0].mxu0
        %v2165 = vadd.f32 %v577, %v2164
        %v2166 = vpop.f32.mrb[0].mxu0
        %v2167 = vadd.f32 %v581, %v2166
        %2168 = vmatprep.mubr.bf16.mxu0 0
        %2169 = vmatmul.mubr.bf16.gmra.mrb[0].mxu0 %v759
        %v2170 = vpop.f32.mrb[0].mxu0
        %v2171 = vadd.f32 %v577, %v2170
        %v2172 = vpop.f32.mrb[0].mxu0
        %v2173 = vadd.f32 %v581, %v2172
        %v2174 = vpop.f32.mrb[0].mxu0
        %v2175 = vadd.f32 %v577, %v2174
        %v2176 = vpop.f32.mrb[0].mxu0
        %v2177 = vadd.f32 %v581, %v2176
        %2178 = vmatprep.mubr.bf16.mxu0 0
        %2179 = vmatmul.mubr.bf16.gmra.mrb[0].mxu0 %v760
        %v2180 = vpop.f32.mrb[0].mxu0
        %v2181 = vadd.f32 %v577, %v2180
        %v2182 = vpop.f32.mrb[0].mxu0
        %v2183 = vadd.f32 %v581, %v2182
        %v2184 = vpop.f32.mrb[0].mxu0
        %v2185 = vadd.f32 %v577, %v2184
        %v2186 = vpop.f32.mrb[0].mxu0
        %v2187 = vadd.f32 %v581, %v2186
        %2188 = vmatprep.mubr.bf16.mxu0 0
        %2189 = vmatmul.mubr.bf16.gmra.mrb[0].mxu0 %v761
        %v2190 = vpop.f32.mrb[0].mxu0
        %v2191 = vadd.f32 %v577, %v2190
        %v2192 = vpop.f32.mrb[0].mxu0
        %v2193 = vadd.f32 %v581, %v2192
        %v2194 = vpop.f32.mrb[0].mxu0
        %v2195 = vadd.f32 %v577, %v2194
        %v2196 = vpop.f32.mrb[0].mxu0
        %v2197 = vadd.f32 %v581, %v2196
        %2198 = vmatprep.mubr.bf16.mxu0 0
        %2199 = vmatmul.mubr.bf16.gmra.mrb[0].mxu0 %v762
        %v2200 = vpop.f32.mrb[0].mxu0
        %v2201 = vadd.f32 %v577, %v2200
        %v2202 = vpop.f32.mrb[0].mxu0
        %v2203 = vadd.f32 %v581, %v2202
        %v2204 = vpop.f32.mrb[0].mxu0
        %v2205 = vadd.f32 %v577, %v2204
        %v2206 = vpop.f32.mrb[0].mxu0
        %v2207 = vadd.f32 %v581, %v2206
        %2208 = vmatprep.mubr.bf16.mxu0 0
        %2209 = vmatmul.mubr.bf16.gmra.mrb[0].mxu0 %v763
        %v2210 = vpop.f32.mrb[0].mxu0
        %v2211 = vadd.f32 %v577, %v2210
        %v2212 = vpop.f32.mrb[0].mxu0
        %v2213 = vadd.f32 %v581, %v2212
        %v2214 = vpop.f32.mrb[0].mxu0
        %v2215 = vadd.f32 %v577, %v2214
        %v2216 = vpop.f32.mrb[0].mxu0
        %v2217 = vadd.f32 %v581, %v2216
        %2218 = vmatprep.mubr.bf16.mxu0 0
        %2219 = vmatmul.mubr.bf16.gmra.mrb[0].mxu0 %v764
        %v2220 = vpop.f32.mrb[0].mxu0
        %v2221 = vadd.f32 %v577, %v2220
        %v2222 = vpop.f32.mrb[0].mxu0
        %v2223 = vadd.f32 %v581, %v2222
        %v2224 = vpop.f32.mrb[0].mxu0
        %v2225 = vadd.f32 %v577, %v2224
        %v2226 = vpop.f32.mrb[0].mxu0
        %v2227 = vadd.f32 %v581, %v2226
        %2228 = vmatprep.mubr.bf16.mxu0 0
        %2229 = vmatmul.mubr.bf16.gmra.mrb[0].mxu0 %v765
        %v2230 = vpop.f32.mrb[0].mxu0
        %v2231 = vadd.f32 %v577, %v2230
        %v2232 = vpop.f32.mrb[0].mxu0
        %v2233 = vadd.f32 %v581, %v2232
        %v2234 = vpop.f32.mrb[0].mxu0
        %v2235 = vadd.f32 %v577, %v2234
        %v2236 = vpop.f32.mrb[0].mxu0
        %v2237 = vadd.f32 %v581, %v2236
        %2238 = vmatprep.mubr.bf16.mxu0 0
        %2239 = vmatmul.mubr.bf16.gmra.mrb[0].mxu0 %v766
        %v2240 = vpop.f32.mrb[0].mxu0
        %v2241 = vadd.f32 %v577, %v2240
        %v2242 = vpop.f32.mrb[0].mxu0
        %v2243 = vadd.f32 %v581, %v2242
        %v2244 = vpop.f32.mrb[0].mxu0
        %v2245 = vadd.f32 %v577, %v2244
        %v2246 = vpop.f32.mrb[0].mxu0
        %v2247 = vadd.f32 %v581, %v2246
        %2248 = vmatprep.mubr.bf16.mxu0 0
        %2249 = vmatmul.mubr.bf16.gmra.mrb[0].mxu0 %v767
        %v2250 = vpop.f32.mrb[0].mxu0
        %v2251 = vadd.f32 %v577, %v2250
        %v2252 = vpop.f32.mrb[0].mxu0
        %v2253 = vadd.f32 %v581, %v2252
        %v2254 = vpop.f32.mrb[0].mxu0
        %v2255 = vadd.f32 %v577, %v2254
        %v2256 = vpop.f32.mrb[0].mxu0
        %v2257 = vadd.f32 %v581, %v2256
        %2258 = vdwg.mxu0
        %2259 = vmatprep.subr.bf16.mxu0 %v1047
        %2260 = vmatpush1.bf16.msra.mxu0 %v1046
        %2261 = vmatprep.subr.bf16.mxu0 %v1057
        %2262 = vmatpush1.bf16.msra.mxu0 %v1056
        %2263 = vmatprep.subr.bf16.mxu0 %v1067
        %2264 = vmatpush1.bf16.msra.mxu0 %v1066
        %2265 = vmatprep.subr.bf16.mxu0 %v1077
        %2266 = vmatpush1.bf16.msra.mxu0 %v1076
        %2267 = vmatprep.subr.bf16.mxu0 %v1087
        %2268 = vmatpush1.bf16.msra.mxu0 %v1086
        %2269 = vmatprep.subr.bf16.mxu0 %v1097
        %2270 = vmatpush1.bf16.msra.mxu0 %v1096
        %2271 = vmatprep.subr.bf16.mxu0 %v1107
        %2272 = vmatpush1.bf16.msra.mxu0 %v1106
        %2273 = vmatprep.subr.bf16.mxu0 %v1117
        %2274 = vmatpush1.bf16.msra.mxu0 %v1116
        %2275 = vmatprep.subr.bf16.mxu0 0
        %2276 = vmatpush1.bf16.msra.mxu0 0
        %2277 = vmatprep.subr.bf16.mxu0 0
        %2278 = vmatpush1.bf16.msra.mxu0 0
        %2279 = vmatprep.subr.bf16.mxu0 0
        %2280 = vmatpush1.bf16.msra.mxu0 0
        %2281 = vmatprep.subr.bf16.mxu0 0
        %2282 = vmatpush1.bf16.msra.mxu0 0
        %2283 = vmatprep.subr.bf16.mxu0 0
        %2284 = vmatpush1.bf16.msra.mxu0 0
        %2285 = vmatprep.subr.bf16.mxu0 0
        %2286 = vmatpush1.bf16.msra.mxu0 0
        %2287 = vmatprep.subr.bf16.mxu0 0
        %2288 = vmatpush1.bf16.msra.mxu0 0
        %2289 = vmatprep.subr.bf16.mxu0 0
        %2290 = vmatpush1.bf16.msra.mxu0 0
        %2291 = vmatprep.mubr.bf16.mxu0 0
        %2292 = vmatmul.mubr.bf16.gmra.mrb[0].mxu0 %v736
        %v2293 = vpop.f32.mrb[0].mxu0
        %v2294 = vadd.f32 %v585, %v2293
        %v2295 = vpop.f32.mrb[0].mxu0
        %v2296 = vadd.f32 %v589, %v2295
        %v2297 = vpop.f32.mrb[0].mxu0
        %v2298 = vadd.f32 %v585, %v2297
        %v2299 = vpop.f32.mrb[0].mxu0
        %v2300 = vadd.f32 %v589, %v2299
        %2301 = vmatprep.mubr.bf16.mxu0 0
        %2302 = vmatmul.mubr.bf16.gmra.mrb[0].mxu0 %v737
        %v2303 = vpop.f32.mrb[0].mxu0
        %v2304 = vadd.f32 %v585, %v2303
        %v2305 = vpop.f32.mrb[0].mxu0
        %v2306 = vadd.f32 %v589, %v2305
        %v2307 = vpop.f32.mrb[0].mxu0
        %v2308 = vadd.f32 %v585, %v2307
        %v2309 = vpop.f32.mrb[0].mxu0
        %v2310 = vadd.f32 %v589, %v2309
        %2311 = vmatprep.mubr.bf16.mxu0 0
        %2312 = vmatmul.mubr.bf16.gmra.mrb[0].mxu0 %v738
        %v2313 = vpop.f32.mrb[0].mxu0
        %v2314 = vadd.f32 %v585, %v2313
        %v2315 = vpop.f32.mrb[0].mxu0
        %v2316 = vadd.f32 %v589, %v2315
        %v2317 = vpop.f32.mrb[0].mxu0
        %v2318 = vadd.f32 %v585, %v2317
        %v2319 = vpop.f32.mrb[0].mxu0
        %v2320 = vadd.f32 %v589, %v2319
        %2321 = vmatprep.mubr.bf16.mxu0 0
        %2322 = vmatmul.mubr.bf16.gmra.mrb[0].mxu0 %v739
        %v2323 = vpop.f32.mrb[0].mxu0
        %v2324 = vadd.f32 %v585, %v2323
        %v2325 = vpop.f32.mrb[0].mxu0
        %v2326 = vadd.f32 %v589, %v2325
        %v2327 = vpop.f32.mrb[0].mxu0
        %v2328 = vadd.f32 %v585, %v2327
        %v2329 = vpop.f32.mrb[0].mxu0
        %v2330 = vadd.f32 %v589, %v2329
        %2331 = vmatprep.mubr.bf16.mxu0 0
        %2332 = vmatmul.mubr.bf16.gmra.mrb[0].mxu0 %v740
        %v2333 = vpop.f32.mrb[0].mxu0
        %v2334 = vadd.f32 %v585, %v2333
        %v2335 = vpop.f32.mrb[0].mxu0
        %v2336 = vadd.f32 %v589, %v2335
        %v2337 = vpop.f32.mrb[0].mxu0
        %v2338 = vadd.f32 %v585, %v2337
        %v2339 = vpop.f32.mrb[0].mxu0
        %v2340 = vadd.f32 %v589, %v2339
        %2341 = vmatprep.mubr.bf16.mxu0 0
        %2342 = vmatmul.mubr.bf16.gmra.mrb[0].mxu0 %v741
        %v2343 = vpop.f32.mrb[0].mxu0
        %v2344 = vadd.f32 %v585, %v2343
        %v2345 = vpop.f32.mrb[0].mxu0
        %v2346 = vadd.f32 %v589, %v2345
        %v2347 = vpop.f32.mrb[0].mxu0
        %v2348 = vadd.f32 %v585, %v2347
        %v2349 = vpop.f32.mrb[0].mxu0
        %v2350 = vadd.f32 %v589, %v2349
        %2351 = vmatprep.mubr.bf16.mxu0 0
        %2352 = vmatmul.mubr.bf16.gmra.mrb[0].mxu0 %v742
        %v2353 = vpop.f32.mrb[0].mxu0
        %v2354 = vadd.f32 %v585, %v2353
        %v2355 = vpop.f32.mrb[0].mxu0
        %v2356 = vadd.f32 %v589, %v2355
        %v2357 = vpop.f32.mrb[0].mxu0
        %v2358 = vadd.f32 %v585, %v2357
        %v2359 = vpop.f32.mrb[0].mxu0
        %v2360 = vadd.f32 %v589, %v2359
        %2361 = vmatprep.mubr.bf16.mxu0 0
        %2362 = vmatmul.mubr.bf16.gmra.mrb[0].mxu0 %v743
        %v2363 = vpop.f32.mrb[0].mxu0
        %v2364 = vadd.f32 %v585, %v2363
        %v2365 = vpop.f32.mrb[0].mxu0
        %v2366 = vadd.f32 %v589, %v2365
        %v2367 = vpop.f32.mrb[0].mxu0
        %v2368 = vadd.f32 %v585, %v2367
        %v2369 = vpop.f32.mrb[0].mxu0
        %v2370 = vadd.f32 %v589, %v2369
        %2371 = vmatprep.mubr.bf16.mxu0 0
        %2372 = vmatmul.mubr.bf16.gmra.mrb[0].mxu0 %v744
        %v2373 = vpop.f32.mrb[0].mxu0
        %v2374 = vadd.f32 %v585, %v2373
        %v2375 = vpop.f32.mrb[0].mxu0
        %v2376 = vadd.f32 %v589, %v2375
        %v2377 = vpop.f32.mrb[0].mxu0
        %v2378 = vadd.f32 %v585, %v2377
        %v2379 = vpop.f32.mrb[0].mxu0
        %v2380 = vadd.f32 %v589, %v2379
        %2381 = vmatprep.mubr.bf16.mxu0 0
        %2382 = vmatmul.mubr.bf16.gmra.mrb[0].mxu0 %v745
        %v2383 = vpop.f32.mrb[0].mxu0
        %v2384 = vadd.f32 %v585, %v2383
        %v2385 = vpop.f32.mrb[0].mxu0
        %v2386 = vadd.f32 %v589, %v2385
        %v2387 = vpop.f32.mrb[0].mxu0
        %v2388 = vadd.f32 %v585, %v2387
        %v2389 = vpop.f32.mrb[0].mxu0
        %v2390 = vadd.f32 %v589, %v2389
        %2391 = vmatprep.mubr.bf16.mxu0 0
        %2392 = vmatmul.mubr.bf16.gmra.mrb[0].mxu0 %v746
        %v2393 = vpop.f32.mrb[0].mxu0
        %v2394 = vadd.f32 %v585, %v2393
        %v2395 = vpop.f32.mrb[0].mxu0
        %v2396 = vadd.f32 %v589, %v2395
        %v2397 = vpop.f32.mrb[0].mxu0
        %v2398 = vadd.f32 %v585, %v2397
        %v2399 = vpop.f32.mrb[0].mxu0
        %v2400 = vadd.f32 %v589, %v2399
        %2401 = vmatprep.mubr.bf16.mxu0 0
        %2402 = vmatmul.mubr.bf16.gmra.mrb[0].mxu0 %v747
        %v2403 = vpop.f32.mrb[0].mxu0
        %v2404 = vadd.f32 %v585, %v2403
        %v2405 = vpop.f32.mrb[0].mxu0
        %v2406 = vadd.f32 %v589, %v2405
        %v2407 = vpop.f32.mrb[0].mxu0
        %v2408 = vadd.f32 %v585, %v2407
        %v2409 = vpop.f32.mrb[0].mxu0
        %v2410 = vadd.f32 %v589, %v2409
        %2411 = vmatprep.mubr.bf16.mxu0 0
        %2412 = vmatmul.mubr.bf16.gmra.mrb[0].mxu0 %v748
        %v2413 = vpop.f32.mrb[0].mxu0
        %v2414 = vadd.f32 %v585, %v2413
        %v2415 = vpop.f32.mrb[0].mxu0
        %v2416 = vadd.f32 %v589, %v2415
        %v2417 = vpop.f32.mrb[0].mxu0
        %v2418 = vadd.f32 %v585, %v2417
        %v2419 = vpop.f32.mrb[0].mxu0
        %v2420 = vadd.f32 %v589, %v2419
        %2421 = vmatprep.mubr.bf16.mxu0 0
        %2422 = vmatmul.mubr.bf16.gmra.mrb[0].mxu0 %v749
        %v2423 = vpop.f32.mrb[0].mxu0
        %v2424 = vadd.f32 %v585, %v2423
        %v2425 = vpop.f32.mrb[0].mxu0
        %v2426 = vadd.f32 %v589, %v2425
        %v2427 = vpop.f32.mrb[0].mxu0
        %v2428 = vadd.f32 %v585, %v2427
        %v2429 = vpop.f32.mrb[0].mxu0
        %v2430 = vadd.f32 %v589, %v2429
        %2431 = vmatprep.mubr.bf16.mxu0 0
        %2432 = vmatmul.mubr.bf16.gmra.mrb[0].mxu0 %v750
        %v2433 = vpop.f32.mrb[0].mxu0
        %v2434 = vadd.f32 %v585, %v2433
        %v2435 = vpop.f32.mrb[0].mxu0
        %v2436 = vadd.f32 %v589, %v2435
        %v2437 = vpop.f32.mrb[0].mxu0
        %v2438 = vadd.f32 %v585, %v2437
        %v2439 = vpop.f32.mrb[0].mxu0
        %v2440 = vadd.f32 %v589, %v2439
        %2441 = vmatprep.mubr.bf16.mxu0 0
        %2442 = vmatmul.mubr.bf16.gmra.mrb[0].mxu0 %v751
        %v2443 = vpop.f32.mrb[0].mxu0
        %v2444 = vadd.f32 %v585, %v2443
        %v2445 = vpop.f32.mrb[0].mxu0
        %v2446 = vadd.f32 %v589, %v2445
        %v2447 = vpop.f32.mrb[0].mxu0
        %v2448 = vadd.f32 %v585, %v2447
        %v2449 = vpop.f32.mrb[0].mxu0
        %v2450 = vadd.f32 %v589, %v2449
        %2451 = vmatprep.mubr.bf16.mxu0 0
        %2452 = vmatmul.mubr.bf16.gmra.mrb[0].mxu0 %v752
        %v2453 = vpop.f32.mrb[0].mxu0
        %v2454 = vadd.f32 %v585, %v2453
        %v2455 = vpop.f32.mrb[0].mxu0
        %v2456 = vadd.f32 %v589, %v2455
        %v2457 = vpop.f32.mrb[0].mxu0
        %v2458 = vadd.f32 %v585, %v2457
        %v2459 = vpop.f32.mrb[0].mxu0
        %v2460 = vadd.f32 %v589, %v2459
        %2461 = vmatprep.mubr.bf16.mxu0 0
        %2462 = vmatmul.mubr.bf16.gmra.mrb[0].mxu0 %v753
        %v2463 = vpop.f32.mrb[0].mxu0
        %v2464 = vadd.f32 %v585, %v2463
        %v2465 = vpop.f32.mrb[0].mxu0
        %v2466 = vadd.f32 %v589, %v2465
        %v2467 = vpop.f32.mrb[0].mxu0
        %v2468 = vadd.f32 %v585, %v2467
        %v2469 = vpop.f32.mrb[0].mxu0
        %v2470 = vadd.f32 %v589, %v2469
        %2471 = vmatprep.mubr.bf16.mxu0 0
        %2472 = vmatmul.mubr.bf16.gmra.mrb[0].mxu0 %v754
        %v2473 = vpop.f32.mrb[0].mxu0
        %v2474 = vadd.f32 %v585, %v2473
        %v2475 = vpop.f32.mrb[0].mxu0
        %v2476 = vadd.f32 %v589, %v2475
        %v2477 = vpop.f32.mrb[0].mxu0
        %v2478 = vadd.f32 %v585, %v2477
        %v2479 = vpop.f32.mrb[0].mxu0
        %v2480 = vadd.f32 %v589, %v2479
        %2481 = vmatprep.mubr.bf16.mxu0 0
        %2482 = vmatmul.mubr.bf16.gmra.mrb[0].mxu0 %v755
        %v2483 = vpop.f32.mrb[0].mxu0
        %v2484 = vadd.f32 %v585, %v2483
        %v2485 = vpop.f32.mrb[0].mxu0
        %v2486 = vadd.f32 %v589, %v2485
        %v2487 = vpop.f32.mrb[0].mxu0
        %v2488 = vadd.f32 %v585, %v2487
        %v2489 = vpop.f32.mrb[0].mxu0
        %v2490 = vadd.f32 %v589, %v2489
        %2491 = vmatprep.mubr.bf16.mxu0 0
        %2492 = vmatmul.mubr.bf16.gmra.mrb[0].mxu0 %v756
        %v2493 = vpop.f32.mrb[0].mxu0
        %v2494 = vadd.f32 %v585, %v2493
        %v2495 = vpop.f32.mrb[0].mxu0
        %v2496 = vadd.f32 %v589, %v2495
        %v2497 = vpop.f32.mrb[0].mxu0
        %v2498 = vadd.f32 %v585, %v2497
        %v2499 = vpop.f32.mrb[0].mxu0
        %v2500 = vadd.f32 %v589, %v2499
        %2501 = vmatprep.mubr.bf16.mxu0 0
        %2502 = vmatmul.mubr.bf16.gmra.mrb[0].mxu0 %v757
        %v2503 = vpop.f32.mrb[0].mxu0
        %v2504 = vadd.f32 %v585, %v2503
        %v2505 = vpop.f32.mrb[0].mxu0
        %v2506 = vadd.f32 %v589, %v2505
        %v2507 = vpop.f32.mrb[0].mxu0
        %v2508 = vadd.f32 %v585, %v2507
        %v2509 = vpop.f32.mrb[0].mxu0
        %v2510 = vadd.f32 %v589, %v2509
        %2511 = vmatprep.mubr.bf16.mxu0 0
        %2512 = vmatmul.mubr.bf16.gmra.mrb[0].mxu0 %v758
        %v2513 = vpop.f32.mrb[0].mxu0
        %v2514 = vadd.f32 %v585, %v2513
        %v2515 = vpop.f32.mrb[0].mxu0
        %v2516 = vadd.f32 %v589, %v2515
        %v2517 = vpop.f32.mrb[0].mxu0
        %v2518 = vadd.f32 %v585, %v2517
        %v2519 = vpop.f32.mrb[0].mxu0
        %v2520 = vadd.f32 %v589, %v2519
        %2521 = vmatprep.mubr.bf16.mxu0 0
        %2522 = vmatmul.mubr.bf16.gmra.mrb[0].mxu0 %v759
        %v2523 = vpop.f32.mrb[0].mxu0
        %v2524 = vadd.f32 %v585, %v2523
        %v2525 = vpop.f32.mrb[0].mxu0
        %v2526 = vadd.f32 %v589, %v2525
        %v2527 = vpop.f32.mrb[0].mxu0
        %v2528 = vadd.f32 %v585, %v2527
        %v2529 = vpop.f32.mrb[0].mxu0
        %v2530 = vadd.f32 %v589, %v2529
        %2531 = vmatprep.mubr.bf16.mxu0 0
        %2532 = vmatmul.mubr.bf16.gmra.mrb[0].mxu0 %v760
        %v2533 = vpop.f32.mrb[0].mxu0
        %v2534 = vadd.f32 %v585, %v2533
        %v2535 = vpop.f32.mrb[0].mxu0
        %v2536 = vadd.f32 %v589, %v2535
        %v2537 = vpop.f32.mrb[0].mxu0
        %v2538 = vadd.f32 %v585, %v2537
        %v2539 = vpop.f32.mrb[0].mxu0
        %v2540 = vadd.f32 %v589, %v2539
        %2541 = vmatprep.mubr.bf16.mxu0 0
        %2542 = vmatmul.mubr.bf16.gmra.mrb[0].mxu0 %v761
        %v2543 = vpop.f32.mrb[0].mxu0
        %v2544 = vadd.f32 %v585, %v2543
        %v2545 = vpop.f32.mrb[0].mxu0
        %v2546 = vadd.f32 %v589, %v2545
        %v2547 = vpop.f32.mrb[0].mxu0
        %v2548 = vadd.f32 %v585, %v2547
        %v2549 = vpop.f32.mrb[0].mxu0
        %v2550 = vadd.f32 %v589, %v2549
        %2551 = vmatprep.mubr.bf16.mxu0 0
        %2552 = vmatmul.mubr.bf16.gmra.mrb[0].mxu0 %v762
        %v2553 = vpop.f32.mrb[0].mxu0
        %v2554 = vadd.f32 %v585, %v2553
        %v2555 = vpop.f32.mrb[0].mxu0
        %v2556 = vadd.f32 %v589, %v2555
        %v2557 = vpop.f32.mrb[0].mxu0
        %v2558 = vadd.f32 %v585, %v2557
        %v2559 = vpop.f32.mrb[0].mxu0
        %v2560 = vadd.f32 %v589, %v2559
        %2561 = vmatprep.mubr.bf16.mxu0 0
        %2562 = vmatmul.mubr.bf16.gmra.mrb[0].mxu0 %v763
        %v2563 = vpop.f32.mrb[0].mxu0
        %v2564 = vadd.f32 %v585, %v2563
        %v2565 = vpop.f32.mrb[0].mxu0
        %v2566 = vadd.f32 %v589, %v2565
        %v2567 = vpop.f32.mrb[0].mxu0
        %v2568 = vadd.f32 %v585, %v2567
        %v2569 = vpop.f32.mrb[0].mxu0
        %v2570 = vadd.f32 %v589, %v2569
        %2571 = vmatprep.mubr.bf16.mxu0 0
        %2572 = vmatmul.mubr.bf16.gmra.mrb[0].mxu0 %v764
        %v2573 = vpop.f32.mrb[0].mxu0
        %v2574 = vadd.f32 %v585, %v2573
        %v2575 = vpop.f32.mrb[0].mxu0
        %v2576 = vadd.f32 %v589, %v2575
        %v2577 = vpop.f32.mrb[0].mxu0
        %v2578 = vadd.f32 %v585, %v2577
        %v2579 = vpop.f32.mrb[0].mxu0
        %v2580 = vadd.f32 %v589, %v2579
        %2581 = vmatprep.mubr.bf16.mxu0 0
        %2582 = vmatmul.mubr.bf16.gmra.mrb[0].mxu0 %v765
        %v2583 = vpop.f32.mrb[0].mxu0
        %v2584 = vadd.f32 %v585, %v2583
        %v2585 = vpop.f32.mrb[0].mxu0
        %v2586 = vadd.f32 %v589, %v2585
        %v2587 = vpop.f32.mrb[0].mxu0
        %v2588 = vadd.f32 %v585, %v2587
        %v2589 = vpop.f32.mrb[0].mxu0
        %v2590 = vadd.f32 %v589, %v2589
        %2591 = vmatprep.mubr.bf16.mxu0 0
        %2592 = vmatmul.mubr.bf16.gmra.mrb[0].mxu0 %v766
        %v2593 = vpop.f32.mrb[0].mxu0
        %v2594 = vadd.f32 %v585, %v2593
        %v2595 = vpop.f32.mrb[0].mxu0
        %v2596 = vadd.f32 %v589, %v2595
        %v2597 = vpop.f32.mrb[0].mxu0
        %v2598 = vadd.f32 %v585, %v2597
        %v2599 = vpop.f32.mrb[0].mxu0
        %v2600 = vadd.f32 %v589, %v2599
        %2601 = vmatprep.mubr.bf16.mxu0 0
        %2602 = vmatmul.mubr.bf16.gmra.mrb[0].mxu0 %v767
        %v2603 = vpop.f32.mrb[0].mxu0
        %v2604 = vadd.f32 %v585, %v2603
        %v2605 = vpop.f32.mrb[0].mxu0
        %v2606 = vadd.f32 %v589, %v2605
        %v2607 = vpop.f32.mrb[0].mxu0
        %v2608 = vadd.f32 %v585, %v2607
        %v2609 = vpop.f32.mrb[0].mxu0
        %v2610 = vadd.f32 %v589, %v2609
        %2611 = vdwg.mxu0
        %2612 = vmatprep.subr.bf16.mxu0 %v1049
        %2613 = vmatpush1.bf16.msra.mxu0 %v1048
        %2614 = vmatprep.subr.bf16.mxu0 %v1059
        %2615 = vmatpush1.bf16.msra.mxu0 %v1058
        %2616 = vmatprep.subr.bf16.mxu0 %v1069
        %2617 = vmatpush1.bf16.msra.mxu0 %v1068
        %2618 = vmatprep.subr.bf16.mxu0 %v1079
        %2619 = vmatpush1.bf16.msra.mxu0 %v1078
        %2620 = vmatprep.subr.bf16.mxu0 %v1089
        %2621 = vmatpush1.bf16.msra.mxu0 %v1088
        %2622 = vmatprep.subr.bf16.mxu0 %v1099
        %2623 = vmatpush1.bf16.msra.mxu0 %v1098
        %2624 = vmatprep.subr.bf16.mxu0 %v1109
        %2625 = vmatpush1.bf16.msra.mxu0 %v1108
        %2626 = vmatprep.subr.bf16.mxu0 %v1119
        %2627 = vmatpush1.bf16.msra.mxu0 %v1118
        %2628 = vmatprep.subr.bf16.mxu0 0
        %2629 = vmatpush1.bf16.msra.mxu0 0
        %2630 = vmatprep.subr.bf16.mxu0 0
        %2631 = vmatpush1.bf16.msra.mxu0 0
        %2632 = vmatprep.subr.bf16.mxu0 0
        %2633 = vmatpush1.bf16.msra.mxu0 0
        %2634 = vmatprep.subr.bf16.mxu0 0
        %2635 = vmatpush1.bf16.msra.mxu0 0
        %2636 = vmatprep.subr.bf16.mxu0 0
        %2637 = vmatpush1.bf16.msra.mxu0 0
        %2638 = vmatprep.subr.bf16.mxu0 0
        %2639 = vmatpush1.bf16.msra.mxu0 0
        %2640 = vmatprep.subr.bf16.mxu0 0
        %2641 = vmatpush1.bf16.msra.mxu0 0
        %2642 = vmatprep.subr.bf16.mxu0 0
        %2643 = vmatpush1.bf16.msra.mxu0 0
        %2644 = vmatprep.mubr.bf16.mxu0 0
        %2645 = vmatmul.mubr.bf16.gmra.mrb[0].mxu0 %v736
        %v2646 = vpop.f32.mrb[0].mxu0
        %v2647 = vadd.f32 %v593, %v2646
        %v2648 = vpop.f32.mrb[0].mxu0
        %v2649 = vadd.f32 %v597, %v2648
        %v2650 = vpop.f32.mrb[0].mxu0
        %v2651 = vadd.f32 %v593, %v2650
        %v2652 = vpop.f32.mrb[0].mxu0
        %v2653 = vadd.f32 %v597, %v2652
        %2654 = vmatprep.mubr.bf16.mxu0 0
        %2655 = vmatmul.mubr.bf16.gmra.mrb[0].mxu0 %v737
        %v2656 = vpop.f32.mrb[0].mxu0
        %v2657 = vadd.f32 %v593, %v2656
        %v2658 = vpop.f32.mrb[0].mxu0
        %v2659 = vadd.f32 %v597, %v2658
        %v2660 = vpop.f32.mrb[0].mxu0
        %v2661 = vadd.f32 %v593, %v2660
        %v2662 = vpop.f32.mrb[0].mxu0
        %v2663 = vadd.f32 %v597, %v2662
        %2664 = vmatprep.mubr.bf16.mxu0 0
        %2665 = vmatmul.mubr.bf16.gmra.mrb[0].mxu0 %v738
        %v2666 = vpop.f32.mrb[0].mxu0
        %v2667 = vadd.f32 %v593, %v2666
        %v2668 = vpop.f32.mrb[0].mxu0
        %v2669 = vadd.f32 %v597, %v2668
        %v2670 = vpop.f32.mrb[0].mxu0
        %v2671 = vadd.f32 %v593, %v2670
        %v2672 = vpop.f32.mrb[0].mxu0
        %v2673 = vadd.f32 %v597, %v2672
        %2674 = vmatprep.mubr.bf16.mxu0 0
        %2675 = vmatmul.mubr.bf16.gmra.mrb[0].mxu0 %v739
        %v2676 = vpop.f32.mrb[0].mxu0
        %v2677 = vadd.f32 %v593, %v2676
        %v2678 = vpop.f32.mrb[0].mxu0
        %v2679 = vadd.f32 %v597, %v2678
        %v2680 = vpop.f32.mrb[0].mxu0
        %v2681 = vadd.f32 %v593, %v2680
        %v2682 = vpop.f32.mrb[0].mxu0
        %v2683 = vadd.f32 %v597, %v2682
        %2684 = vmatprep.mubr.bf16.mxu0 0
        %2685 = vmatmul.mubr.bf16.gmra.mrb[0].mxu0 %v740
        %v2686 = vpop.f32.mrb[0].mxu0
        %v2687 = vadd.f32 %v593, %v2686
        %v2688 = vpop.f32.mrb[0].mxu0
        %v2689 = vadd.f32 %v597, %v2688
        %v2690 = vpop.f32.mrb[0].mxu0
        %v2691 = vadd.f32 %v593, %v2690
        %v2692 = vpop.f32.mrb[0].mxu0
        %v2693 = vadd.f32 %v597, %v2692
        %2694 = vmatprep.mubr.bf16.mxu0 0
        %2695 = vmatmul.mubr.bf16.gmra.mrb[0].mxu0 %v741
        %v2696 = vpop.f32.mrb[0].mxu0
        %v2697 = vadd.f32 %v593, %v2696
        %v2698 = vpop.f32.mrb[0].mxu0
        %v2699 = vadd.f32 %v597, %v2698
        %v2700 = vpop.f32.mrb[0].mxu0
        %v2701 = vadd.f32 %v593, %v2700
        %v2702 = vpop.f32.mrb[0].mxu0
        %v2703 = vadd.f32 %v597, %v2702
        %2704 = vmatprep.mubr.bf16.mxu0 0
        %2705 = vmatmul.mubr.bf16.gmra.mrb[0].mxu0 %v742
        %v2706 = vpop.f32.mrb[0].mxu0
        %v2707 = vadd.f32 %v593, %v2706
        %v2708 = vpop.f32.mrb[0].mxu0
        %v2709 = vadd.f32 %v597, %v2708
        %v2710 = vpop.f32.mrb[0].mxu0
        %v2711 = vadd.f32 %v593, %v2710
        %v2712 = vpop.f32.mrb[0].mxu0
        %v2713 = vadd.f32 %v597, %v2712
        %2714 = vmatprep.mubr.bf16.mxu0 0
        %2715 = vmatmul.mubr.bf16.gmra.mrb[0].mxu0 %v743
        %v2716 = vpop.f32.mrb[0].mxu0
        %v2717 = vadd.f32 %v593, %v2716
        %v2718 = vpop.f32.mrb[0].mxu0
        %v2719 = vadd.f32 %v597, %v2718
        %v2720 = vpop.f32.mrb[0].mxu0
        %v2721 = vadd.f32 %v593, %v2720
        %v2722 = vpop.f32.mrb[0].mxu0
        %v2723 = vadd.f32 %v597, %v2722
        %2724 = vmatprep.mubr.bf16.mxu0 0
        %2725 = vmatmul.mubr.bf16.gmra.mrb[0].mxu0 %v744
        %v2726 = vpop.f32.mrb[0].mxu0
        %v2727 = vadd.f32 %v593, %v2726
        %v2728 = vpop.f32.mrb[0].mxu0
        %v2729 = vadd.f32 %v597, %v2728
        %v2730 = vpop.f32.mrb[0].mxu0
        %v2731 = vadd.f32 %v593, %v2730
        %v2732 = vpop.f32.mrb[0].mxu0
        %v2733 = vadd.f32 %v597, %v2732
        %2734 = vmatprep.mubr.bf16.mxu0 0
        %2735 = vmatmul.mubr.bf16.gmra.mrb[0].mxu0 %v745
        %v2736 = vpop.f32.mrb[0].mxu0
        %v2737 = vadd.f32 %v593, %v2736
        %v2738 = vpop.f32.mrb[0].mxu0
        %v2739 = vadd.f32 %v597, %v2738
        %v2740 = vpop.f32.mrb[0].mxu0
        %v2741 = vadd.f32 %v593, %v2740
        %v2742 = vpop.f32.mrb[0].mxu0
        %v2743 = vadd.f32 %v597, %v2742
        %2744 = vmatprep.mubr.bf16.mxu0 0
        %2745 = vmatmul.mubr.bf16.gmra.mrb[0].mxu0 %v746
        %v2746 = vpop.f32.mrb[0].mxu0
        %v2747 = vadd.f32 %v593, %v2746
        %v2748 = vpop.f32.mrb[0].mxu0
        %v2749 = vadd.f32 %v597, %v2748
        %v2750 = vpop.f32.mrb[0].mxu0
        %v2751 = vadd.f32 %v593, %v2750
        %v2752 = vpop.f32.mrb[0].mxu0
        %v2753 = vadd.f32 %v597, %v2752
        %2754 = vmatprep.mubr.bf16.mxu0 0
        %2755 = vmatmul.mubr.bf16.gmra.mrb[0].mxu0 %v747
        %v2756 = vpop.f32.mrb[0].mxu0
        %v2757 = vadd.f32 %v593, %v2756
        %v2758 = vpop.f32.mrb[0].mxu0
        %v2759 = vadd.f32 %v597, %v2758
        %v2760 = vpop.f32.mrb[0].mxu0
        %v2761 = vadd.f32 %v593, %v2760
        %v2762 = vpop.f32.mrb[0].mxu0
        %v2763 = vadd.f32 %v597, %v2762
        %2764 = vmatprep.mubr.bf16.mxu0 0
        %2765 = vmatmul.mubr.bf16.gmra.mrb[0].mxu0 %v748
        %v2766 = vpop.f32.mrb[0].mxu0
        %v2767 = vadd.f32 %v593, %v2766
        %v2768 = vpop.f32.mrb[0].mxu0
        %v2769 = vadd.f32 %v597, %v2768
        %v2770 = vpop.f32.mrb[0].mxu0
        %v2771 = vadd.f32 %v593, %v2770
        %v2772 = vpop.f32.mrb[0].mxu0
        %v2773 = vadd.f32 %v597, %v2772
        %2774 = vmatprep.mubr.bf16.mxu0 0
        %2775 = vmatmul.mubr.bf16.gmra.mrb[0].mxu0 %v749
        %v2776 = vpop.f32.mrb[0].mxu0
        %v2777 = vadd.f32 %v593, %v2776
        %v2778 = vpop.f32.mrb[0].mxu0
        %v2779 = vadd.f32 %v597, %v2778
        %v2780 = vpop.f32.mrb[0].mxu0
        %v2781 = vadd.f32 %v593, %v2780
        %v2782 = vpop.f32.mrb[0].mxu0
        %v2783 = vadd.f32 %v597, %v2782
        %2784 = vmatprep.mubr.bf16.mxu0 0
        %2785 = vmatmul.mubr.bf16.gmra.mrb[0].mxu0 %v750
        %v2786 = vpop.f32.mrb[0].mxu0
        %v2787 = vadd.f32 %v593, %v2786
        %v2788 = vpop.f32.mrb[0].mxu0
        %v2789 = vadd.f32 %v597, %v2788
        %v2790 = vpop.f32.mrb[0].mxu0
        %v2791 = vadd.f32 %v593, %v2790
        %v2792 = vpop.f32.mrb[0].mxu0
        %v2793 = vadd.f32 %v597, %v2792
        %2794 = vmatprep.mubr.bf16.mxu0 0
        %2795 = vmatmul.mubr.bf16.gmra.mrb[0].mxu0 %v751
        %v2796 = vpop.f32.mrb[0].mxu0
        %v2797 = vadd.f32 %v593, %v2796
        %v2798 = vpop.f32.mrb[0].mxu0
        %v2799 = vadd.f32 %v597, %v2798
        %v2800 = vpop.f32.mrb[0].mxu0
        %v2801 = vadd.f32 %v593, %v2800
        %v2802 = vpop.f32.mrb[0].mxu0
        %v2803 = vadd.f32 %v597, %v2802
        %2804 = vmatprep.mubr.bf16.mxu0 0
        %2805 = vmatmul.mubr.bf16.gmra.mrb[0].mxu0 %v752
        %v2806 = vpop.f32.mrb[0].mxu0
        %v2807 = vadd.f32 %v593, %v2806
        %v2808 = vpop.f32.mrb[0].mxu0
        %v2809 = vadd.f32 %v597, %v2808
        %v2810 = vpop.f32.mrb[0].mxu0
        %v2811 = vadd.f32 %v593, %v2810
        %v2812 = vpop.f32.mrb[0].mxu0
        %v2813 = vadd.f32 %v597, %v2812
        %2814 = vmatprep.mubr.bf16.mxu0 0
        %2815 = vmatmul.mubr.bf16.gmra.mrb[0].mxu0 %v753
        %v2816 = vpop.f32.mrb[0].mxu0
        %v2817 = vadd.f32 %v593, %v2816
        %v2818 = vpop.f32.mrb[0].mxu0
        %v2819 = vadd.f32 %v597, %v2818
        %v2820 = vpop.f32.mrb[0].mxu0
        %v2821 = vadd.f32 %v593, %v2820
        %v2822 = vpop.f32.mrb[0].mxu0
        %v2823 = vadd.f32 %v597, %v2822
        %2824 = vmatprep.mubr.bf16.mxu0 0
        %2825 = vmatmul.mubr.bf16.gmra.mrb[0].mxu0 %v754
        %v2826 = vpop.f32.mrb[0].mxu0
        %v2827 = vadd.f32 %v593, %v2826
        %v2828 = vpop.f32.mrb[0].mxu0
        %v2829 = vadd.f32 %v597, %v2828
        %v2830 = vpop.f32.mrb[0].mxu0
        %v2831 = vadd.f32 %v593, %v2830
        %v2832 = vpop.f32.mrb[0].mxu0
        %v2833 = vadd.f32 %v597, %v2832
        %2834 = vmatprep.mubr.bf16.mxu0 0
        %2835 = vmatmul.mubr.bf16.gmra.mrb[0].mxu0 %v755
        %v2836 = vpop.f32.mrb[0].mxu0
        %v2837 = vadd.f32 %v593, %v2836
        %v2838 = vpop.f32.mrb[0].mxu0
        %v2839 = vadd.f32 %v597, %v2838
        %v2840 = vpop.f32.mrb[0].mxu0
        %v2841 = vadd.f32 %v593, %v2840
        %v2842 = vpop.f32.mrb[0].mxu0
        %v2843 = vadd.f32 %v597, %v2842
        %2844 = vmatprep.mubr.bf16.mxu0 0
        %2845 = vmatmul.mubr.bf16.gmra.mrb[0].mxu0 %v756
        %v2846 = vpop.f32.mrb[0].mxu0
        %v2847 = vadd.f32 %v593, %v2846
        %v2848 = vpop.f32.mrb[0].mxu0
        %v2849 = vadd.f32 %v597, %v2848
        %v2850 = vpop.f32.mrb[0].mxu0
        %v2851 = vadd.f32 %v593, %v2850
        %v2852 = vpop.f32.mrb[0].mxu0
        %v2853 = vadd.f32 %v597, %v2852
        %2854 = vmatprep.mubr.bf16.mxu0 0
        %2855 = vmatmul.mubr.bf16.gmra.mrb[0].mxu0 %v757
        %v2856 = vpop.f32.mrb[0].mxu0
        %v2857 = vadd.f32 %v593, %v2856
        %v2858 = vpop.f32.mrb[0].mxu0
        %v2859 = vadd.f32 %v597, %v2858
        %v2860 = vpop.f32.mrb[0].mxu0
        %v2861 = vadd.f32 %v593, %v2860
        %v2862 = vpop.f32.mrb[0].mxu0
        %v2863 = vadd.f32 %v597, %v2862
        %2864 = vmatprep.mubr.bf16.mxu0 0
        %2865 = vmatmul.mubr.bf16.gmra.mrb[0].mxu0 %v758
        %v2866 = vpop.f32.mrb[0].mxu0
        %v2867 = vadd.f32 %v593, %v2866
        %v2868 = vpop.f32.mrb[0].mxu0
        %v2869 = vadd.f32 %v597, %v2868
        %v2870 = vpop.f32.mrb[0].mxu0
        %v2871 = vadd.f32 %v593, %v2870
        %v2872 = vpop.f32.mrb[0].mxu0
        %v2873 = vadd.f32 %v597, %v2872
        %2874 = vmatprep.mubr.bf16.mxu0 0
        %2875 = vmatmul.mubr.bf16.gmra.mrb[0].mxu0 %v759
        %v2876 = vpop.f32.mrb[0].mxu0
        %v2877 = vadd.f32 %v593, %v2876
        %v2878 = vpop.f32.mrb[0].mxu0
        %v2879 = vadd.f32 %v597, %v2878
        %v2880 = vpop.f32.mrb[0].mxu0
        %v2881 = vadd.f32 %v593, %v2880
        %v2882 = vpop.f32.mrb[0].mxu0
        %v2883 = vadd.f32 %v597, %v2882
        %2884 = vmatprep.mubr.bf16.mxu0 0
        %2885 = vmatmul.mubr.bf16.gmra.mrb[0].mxu0 %v760
        %v2886 = vpop.f32.mrb[0].mxu0
        %v2887 = vadd.f32 %v593, %v2886
        %v2888 = vpop.f32.mrb[0].mxu0
        %v2889 = vadd.f32 %v597, %v2888
        %v2890 = vpop.f32.mrb[0].mxu0
        %v2891 = vadd.f32 %v593, %v2890
        %v2892 = vpop.f32.mrb[0].mxu0
        %v2893 = vadd.f32 %v597, %v2892
        %2894 = vmatprep.mubr.bf16.mxu0 0
        %2895 = vmatmul.mubr.bf16.gmra.mrb[0].mxu0 %v761
        %v2896 = vpop.f32.mrb[0].mxu0
        %v2897 = vadd.f32 %v593, %v2896
        %v2898 = vpop.f32.mrb[0].mxu0
        %v2899 = vadd.f32 %v597, %v2898
        %v2900 = vpop.f32.mrb[0].mxu0
        %v2901 = vadd.f32 %v593, %v2900
        %v2902 = vpop.f32.mrb[0].mxu0
        %v2903 = vadd.f32 %v597, %v2902
        %2904 = vmatprep.mubr.bf16.mxu0 0
        %2905 = vmatmul.mubr.bf16.gmra.mrb[0].mxu0 %v762
        %v2906 = vpop.f32.mrb[0].mxu0
        %v2907 = vadd.f32 %v593, %v2906
        %v2908 = vpop.f32.mrb[0].mxu0
        %v2909 = vadd.f32 %v597, %v2908
        %v2910 = vpop.f32.mrb[0].mxu0
        %v2911 = vadd.f32 %v593, %v2910
        %v2912 = vpop.f32.mrb[0].mxu0
        %v2913 = vadd.f32 %v597, %v2912
        %2914 = vmatprep.mubr.bf16.mxu0 0
        %2915 = vmatmul.mubr.bf16.gmra.mrb[0].mxu0 %v763
        %v2916 = vpop.f32.mrb[0].mxu0
        %v2917 = vadd.f32 %v593, %v2916
        %v2918 = vpop.f32.mrb[0].mxu0
        %v2919 = vadd.f32 %v597, %v2918
        %v2920 = vpop.f32.mrb[0].mxu0
        %v2921 = vadd.f32 %v593, %v2920
        %v2922 = vpop.f32.mrb[0].mxu0
        %v2923 = vadd.f32 %v597, %v2922
        %2924 = vmatprep.mubr.bf16.mxu0 0
        %2925 = vmatmul.mubr.bf16.gmra.mrb[0].mxu0 %v764
        %v2926 = vpop.f32.mrb[0].mxu0
        %v2927 = vadd.f32 %v593, %v2926
        %v2928 = vpop.f32.mrb[0].mxu0
        %v2929 = vadd.f32 %v597, %v2928
        %v2930 = vpop.f32.mrb[0].mxu0
        %v2931 = vadd.f32 %v593, %v2930
        %v2932 = vpop.f32.mrb[0].mxu0
        %v2933 = vadd.f32 %v597, %v2932
        %2934 = vmatprep.mubr.bf16.mxu0 0
        %2935 = vmatmul.mubr.bf16.gmra.mrb[0].mxu0 %v765
        %v2936 = vpop.f32.mrb[0].mxu0
        %v2937 = vadd.f32 %v593, %v2936
        %v2938 = vpop.f32.mrb[0].mxu0
        %v2939 = vadd.f32 %v597, %v2938
        %v2940 = vpop.f32.mrb[0].mxu0
        %v2941 = vadd.f32 %v593, %v2940
        %v2942 = vpop.f32.mrb[0].mxu0
        %v2943 = vadd.f32 %v597, %v2942
        %2944 = vmatprep.mubr.bf16.mxu0 0
        %2945 = vmatmul.mubr.bf16.gmra.mrb[0].mxu0 %v766
        %v2946 = vpop.f32.mrb[0].mxu0
        %v2947 = vadd.f32 %v593, %v2946
        %v2948 = vpop.f32.mrb[0].mxu0
        %v2949 = vadd.f32 %v597, %v2948
        %v2950 = vpop.f32.mrb[0].mxu0
        %v2951 = vadd.f32 %v593, %v2950
        %v2952 = vpop.f32.mrb[0].mxu0
        %v2953 = vadd.f32 %v597, %v2952
        %2954 = vmatprep.mubr.bf16.mxu0 0
        %2955 = vmatmul.mubr.bf16.gmra.mrb[0].mxu0 %v767
        %v2956 = vpop.f32.mrb[0].mxu0
        %v2957 = vadd.f32 %v593, %v2956
        %v2958 = vpop.f32.mrb[0].mxu0
        %v2959 = vadd.f32 %v597, %v2958
        %v2960 = vpop.f32.mrb[0].mxu0
        %v2961 = vadd.f32 %v593, %v2960
        %v2962 = vpop.f32.mrb[0].mxu0
        %v2963 = vadd.f32 %v597, %v2962
        %2964 = vdwg.mxu0
        %v2965 = vmul.f32 %v1235, 0.5
        %v2966 = vmul.f32 %v1237, 0.5
        %v2967 = vmul.f32 %v1588, 0.5
        %v2968 = vmul.f32 %v1590, 0.5
        %v2969 = vmul.f32 %v1941, 0.5
        %v2970 = vmul.f32 %v1943, 0.5
        %v2971 = vmul.f32 %v2294, 0.5
        %v2972 = vmul.f32 %v2296, 0.5
        %v2973 = vmul.f32 %v2647, 0.5
        %v2974 = vmul.f32 %v2649, 0.5
        %v2975 = vmul.f32 %v1239, 0.5
        %v2976 = vmul.f32 %v1241, 0.5
        %v2977 = vmul.f32 %v1592, 0.5
        %v2978 = vmul.f32 %v1594, 0.5
        %v2979 = vmul.f32 %v1945, 0.5
        %v2980 = vmul.f32 %v1947, 0.5
        %v2981 = vmul.f32 %v2298, 0.5
        %v2982 = vmul.f32 %v2300, 0.5
        %v2983 = vmul.f32 %v2651, 0.5
        %v2984 = vmul.f32 %v2653, 0.5
        %v2985 = vmul.f32 %v1245, 0.5
        %v2986 = vmul.f32 %v1247, 0.5
        %v2987 = vmul.f32 %v1598, 0.5
        %v2988 = vmul.f32 %v1600, 0.5
        %v2989 = vmul.f32 %v1951, 0.5
        %v2990 = vmul.f32 %v1953, 0.5
        %v2991 = vmul.f32 %v2304, 0.5
        %v2992 = vmul.f32 %v2306, 0.5
        %v2993 = vmul.f32 %v2657, 0.5
        %v2994 = vmul.f32 %v2659, 0.5
        %v2995 = vmul.f32 %v1249, 0.5
        %v2996 = vmul.f32 %v1251, 0.5
        %v2997 = vmul.f32 %v1602, 0.5
        %v2998 = vmul.f32 %v1604, 0.5
        %v2999 = vmul.f32 %v1955, 0.5
        %v3000 = vmul.f32 %v1957, 0.5
        %v3001 = vmul.f32 %v2308, 0.5
        %v3002 = vmul.f32 %v2310, 0.5
        %v3003 = vmul.f32 %v2661, 0.5
        %v3004 = vmul.f32 %v2663, 0.5
        %v3005 = vmul.f32 %v1255, 0.5
        %v3006 = vmul.f32 %v1257, 0.5
        %v3007 = vmul.f32 %v1608, 0.5
        %v3008 = vmul.f32 %v1610, 0.5
        %v3009 = vmul.f32 %v1961, 0.5
        %v3010 = vmul.f32 %v1963, 0.5
        %v3011 = vmul.f32 %v2314, 0.5
        %v3012 = vmul.f32 %v2316, 0.5
        %v3013 = vmul.f32 %v2667, 0.5
        %v3014 = vmul.f32 %v2669, 0.5
        %v3015 = vmul.f32 %v1259, 0.5
        %v3016 = vmul.f32 %v1261, 0.5
        %v3017 = vmul.f32 %v1612, 0.5
        %v3018 = vmul.f32 %v1614, 0.5
        %v3019 = vmul.f32 %v1965, 0.5
        %v3020 = vmul.f32 %v1967, 0.5
        %v3021 = vmul.f32 %v2318, 0.5
        %v3022 = vmul.f32 %v2320, 0.5
        %v3023 = vmul.f32 %v2671, 0.5
        %v3024 = vmul.f32 %v2673, 0.5
        %v3025 = vmul.f32 %v1265, 0.5
        %v3026 = vmul.f32 %v1267, 0.5
        %v3027 = vmul.f32 %v1618, 0.5
        %v3028 = vmul.f32 %v1620, 0.5
        %v3029 = vmul.f32 %v1971, 0.5
        %v3030 = vmul.f32 %v1973, 0.5
        %v3031 = vmul.f32 %v2324, 0.5
        %v3032 = vmul.f32 %v2326, 0.5
        %v3033 = vmul.f32 %v2677, 0.5
        %v3034 = vmul.f32 %v2679, 0.5
        %v3035 = vmul.f32 %v1269, 0.5
        %v3036 = vmul.f32 %v1271, 0.5
        %v3037 = vmul.f32 %v1622, 0.5
        %v3038 = vmul.f32 %v1624, 0.5
        %v3039 = vmul.f32 %v1975, 0.5
        %v3040 = vmul.f32 %v1977, 0.5
        %v3041 = vmul.f32 %v2328, 0.5
        %v3042 = vmul.f32 %v2330, 0.5
        %v3043 = vmul.f32 %v2681, 0.5
        %v3044 = vmul.f32 %v2683, 0.5
        %v3045 = vmul.f32 %v1275, 0.5
        %v3046 = vmul.f32 %v1277, 0.5
        %v3047 = vmul.f32 %v1628, 0.5
        %v3048 = vmul.f32 %v1630, 0.5
        %v3049 = vmul.f32 %v1981, 0.5
        %v3050 = vmul.f32 %v1983, 0.5
        %v3051 = vmul.f32 %v2334, 0.5
        %v3052 = vmul.f32 %v2336, 0.5
        %v3053 = vmul.f32 %v2687, 0.5
        %v3054 = vmul.f32 %v2689, 0.5
        %v3055 = vmul.f32 %v1279, 0.5
        %v3056 = vmul.f32 %v1281, 0.5
        %v3057 = vmul.f32 %v1632, 0.5
        %v3058 = vmul.f32 %v1634, 0.5
        %v3059 = vmul.f32 %v1985, 0.5
        %v3060 = vmul.f32 %v1987, 0.5
        %v3061 = vmul.f32 %v2338, 0.5
        %v3062 = vmul.f32 %v2340, 0.5
        %v3063 = vmul.f32 %v2691, 0.5
        %v3064 = vmul.f32 %v2693, 0.5
        %v3065 = vmul.f32 %v1285, 0.5
        %v3066 = vmul.f32 %v1287, 0.5
        %v3067 = vmul.f32 %v1638, 0.5
        %v3068 = vmul.f32 %v1640, 0.5
        %v3069 = vmul.f32 %v1991, 0.5
        %v3070 = vmul.f32 %v1993, 0.5
        %v3071 = vmul.f32 %v2344, 0.5
        %v3072 = vmul.f32 %v2346, 0.5
        %v3073 = vmul.f32 %v2697, 0.5
        %v3074 = vmul.f32 %v2699, 0.5
        %v3075 = vmul.f32 %v1289, 0.5
        %v3076 = vmul.f32 %v1291, 0.5
        %v3077 = vmul.f32 %v1642, 0.5
        %v3078 = vmul.f32 %v1644, 0.5
        %v3079 = vmul.f32 %v1995, 0.5
        %v3080 = vmul.f32 %v1997, 0.5
        %v3081 = vmul.f32 %v2348, 0.5
        %v3082 = vmul.f32 %v2350, 0.5
        %v3083 = vmul.f32 %v2701, 0.5
        %v3084 = vmul.f32 %v2703, 0.5
        %v3085 = vmul.f32 %v1295, 0.5
        %v3086 = vmul.f32 %v1297, 0.5
        %v3087 = vmul.f32 %v1648, 0.5
        %v3088 = vmul.f32 %v1650, 0.5
        %v3089 = vmul.f32 %v2001, 0.5
        %v3090 = vmul.f32 %v2003, 0.5
        %v3091 = vmul.f32 %v2354, 0.5
        %v3092 = vmul.f32 %v2356, 0.5
        %v3093 = vmul.f32 %v2707, 0.5
        %v3094 = vmul.f32 %v2709, 0.5
        %v3095 = vmul.f32 %v1299, 0.5
        %v3096 = vmul.f32 %v1301, 0.5
        %v3097 = vmul.f32 %v1652, 0.5
        %v3098 = vmul.f32 %v1654, 0.5
        %v3099 = vmul.f32 %v2005, 0.5
        %v3100 = vmul.f32 %v2007, 0.5
        %v3101 = vmul.f32 %v2358, 0.5
        %v3102 = vmul.f32 %v2360, 0.5
        %v3103 = vmul.f32 %v2711, 0.5
        %v3104 = vmul.f32 %v2713, 0.5
        %v3105 = vmul.f32 %v1305, 0.5
        %v3106 = vmul.f32 %v1307, 0.5
        %v3107 = vmul.f32 %v1658, 0.5
        %v3108 = vmul.f32 %v1660, 0.5
        %v3109 = vmul.f32 %v2011, 0.5
        %v3110 = vmul.f32 %v2013, 0.5
        %v3111 = vmul.f32 %v2364, 0.5
        %v3112 = vmul.f32 %v2366, 0.5
        %v3113 = vmul.f32 %v2717, 0.5
        %v3114 = vmul.f32 %v2719, 0.5
        %v3115 = vmul.f32 %v1309, 0.5
        %v3116 = vmul.f32 %v1311, 0.5
        %v3117 = vmul.f32 %v1662, 0.5
        %v3118 = vmul.f32 %v1664, 0.5
        %v3119 = vmul.f32 %v2015, 0.5
        %v3120 = vmul.f32 %v2017, 0.5
        %v3121 = vmul.f32 %v2368, 0.5
        %v3122 = vmul.f32 %v2370, 0.5
        %v3123 = vmul.f32 %v2721, 0.5
        %v3124 = vmul.f32 %v2723, 0.5
        %v3125 = vmul.f32 %v1315, 0.5
        %v3126 = vmul.f32 %v1317, 0.5
        %v3127 = vmul.f32 %v1668, 0.5
        %v3128 = vmul.f32 %v1670, 0.5
        %v3129 = vmul.f32 %v2021, 0.5
        %v3130 = vmul.f32 %v2023, 0.5
        %v3131 = vmul.f32 %v2374, 0.5
        %v3132 = vmul.f32 %v2376, 0.5
        %v3133 = vmul.f32 %v2727, 0.5
        %v3134 = vmul.f32 %v2729, 0.5
        %v3135 = vmul.f32 %v1319, 0.5
        %v3136 = vmul.f32 %v1321, 0.5
        %v3137 = vmul.f32 %v1672, 0.5
        %v3138 = vmul.f32 %v1674, 0.5
        %v3139 = vmul.f32 %v2025, 0.5
        %v3140 = vmul.f32 %v2027, 0.5
        %v3141 = vmul.f32 %v2378, 0.5
        %v3142 = vmul.f32 %v2380, 0.5
        %v3143 = vmul.f32 %v2731, 0.5
        %v3144 = vmul.f32 %v2733, 0.5
        %v3145 = vmul.f32 %v1325, 0.5
        %v3146 = vmul.f32 %v1327, 0.5
        %v3147 = vmul.f32 %v1678, 0.5
        %v3148 = vmul.f32 %v1680, 0.5
        %v3149 = vmul.f32 %v2031, 0.5
        %v3150 = vmul.f32 %v2033, 0.5
        %v3151 = vmul.f32 %v2384, 0.5
        %v3152 = vmul.f32 %v2386, 0.5
        %v3153 = vmul.f32 %v2737, 0.5
        %v3154 = vmul.f32 %v2739, 0.5
        %v3155 = vmul.f32 %v1329, 0.5
        %v3156 = vmul.f32 %v1331, 0.5
        %v3157 = vmul.f32 %v1682, 0.5
        %v3158 = vmul.f32 %v1684, 0.5
        %v3159 = vmul.f32 %v2035, 0.5
        %v3160 = vmul.f32 %v2037, 0.5
        %v3161 = vmul.f32 %v2388, 0.5
        %v3162 = vmul.f32 %v2390, 0.5
        %v3163 = vmul.f32 %v2741, 0.5
        %v3164 = vmul.f32 %v2743, 0.5
        %v3165 = vmul.f32 %v1335, 0.5
        %v3166 = vmul.f32 %v1337, 0.5
        %v3167 = vmul.f32 %v1688, 0.5
        %v3168 = vmul.f32 %v1690, 0.5
        %v3169 = vmul.f32 %v2041, 0.5
        %v3170 = vmul.f32 %v2043, 0.5
        %v3171 = vmul.f32 %v2394, 0.5
        %v3172 = vmul.f32 %v2396, 0.5
        %v3173 = vmul.f32 %v2747, 0.5
        %v3174 = vmul.f32 %v2749, 0.5
        %v3175 = vmul.f32 %v1339, 0.5
        %v3176 = vmul.f32 %v1341, 0.5
        %v3177 = vmul.f32 %v1692, 0.5
        %v3178 = vmul.f32 %v1694, 0.5
        %v3179 = vmul.f32 %v2045, 0.5
        %v3180 = vmul.f32 %v2047, 0.5
        %v3181 = vmul.f32 %v2398, 0.5
        %v3182 = vmul.f32 %v2400, 0.5
        %v3183 = vmul.f32 %v2751, 0.5
        %v3184 = vmul.f32 %v2753, 0.5
        %v3185 = vmul.f32 %v1345, 0.5
        %v3186 = vmul.f32 %v1347, 0.5
        %v3187 = vmul.f32 %v1698, 0.5
        %v3188 = vmul.f32 %v1700, 0.5
        %v3189 = vmul.f32 %v2051, 0.5
        %v3190 = vmul.f32 %v2053, 0.5
        %v3191 = vmul.f32 %v2404, 0.5
        %v3192 = vmul.f32 %v2406, 0.5
        %v3193 = vmul.f32 %v2757, 0.5
        %v3194 = vmul.f32 %v2759, 0.5
        %v3195 = vmul.f32 %v1349, 0.5
        %v3196 = vmul.f32 %v1351, 0.5
        %v3197 = vmul.f32 %v1702, 0.5
        %v3198 = vmul.f32 %v1704, 0.5
        %v3199 = vmul.f32 %v2055, 0.5
        %v3200 = vmul.f32 %v2057, 0.5
        %v3201 = vmul.f32 %v2408, 0.5
        %v3202 = vmul.f32 %v2410, 0.5
        %v3203 = vmul.f32 %v2761, 0.5
        %v3204 = vmul.f32 %v2763, 0.5
        %v3205 = vmul.f32 %v1355, 0.5
        %v3206 = vmul.f32 %v1357, 0.5
        %v3207 = vmul.f32 %v1708, 0.5
        %v3208 = vmul.f32 %v1710, 0.5
        %v3209 = vmul.f32 %v2061, 0.5
        %v3210 = vmul.f32 %v2063, 0.5
        %v3211 = vmul.f32 %v2414, 0.5
        %v3212 = vmul.f32 %v2416, 0.5
        %v3213 = vmul.f32 %v2767, 0.5
        %v3214 = vmul.f32 %v2769, 0.5
        %v3215 = vmul.f32 %v1359, 0.5
        %v3216 = vmul.f32 %v1361, 0.5
        %v3217 = vmul.f32 %v1712, 0.5
        %v3218 = vmul.f32 %v1714, 0.5
        %v3219 = vmul.f32 %v2065, 0.5
        %v3220 = vmul.f32 %v2067, 0.5
        %v3221 = vmul.f32 %v2418, 0.5
        %v3222 = vmul.f32 %v2420, 0.5
        %v3223 = vmul.f32 %v2771, 0.5
        %v3224 = vmul.f32 %v2773, 0.5
        %v3225 = vmul.f32 %v1365, 0.5
        %v3226 = vmul.f32 %v1367, 0.5
        %v3227 = vmul.f32 %v1718, 0.5
        %v3228 = vmul.f32 %v1720, 0.5
        %v3229 = vmul.f32 %v2071, 0.5
        %v3230 = vmul.f32 %v2073, 0.5
        %v3231 = vmul.f32 %v2424, 0.5
        %v3232 = vmul.f32 %v2426, 0.5
        %v3233 = vmul.f32 %v2777, 0.5
        %v3234 = vmul.f32 %v2779, 0.5
        %v3235 = vmul.f32 %v1369, 0.5
        %v3236 = vmul.f32 %v1371, 0.5
        %v3237 = vmul.f32 %v1722, 0.5
        %v3238 = vmul.f32 %v1724, 0.5
        %v3239 = vmul.f32 %v2075, 0.5
        %v3240 = vmul.f32 %v2077, 0.5
        %v3241 = vmul.f32 %v2428, 0.5
        %v3242 = vmul.f32 %v2430, 0.5
        %v3243 = vmul.f32 %v2781, 0.5
        %v3244 = vmul.f32 %v2783, 0.5
        %v3245 = vmul.f32 %v1375, 0.5
        %v3246 = vmul.f32 %v1377, 0.5
        %v3247 = vmul.f32 %v1728, 0.5
        %v3248 = vmul.f32 %v1730, 0.5
        %v3249 = vmul.f32 %v2081, 0.5
        %v3250 = vmul.f32 %v2083, 0.5
        %v3251 = vmul.f32 %v2434, 0.5
        %v3252 = vmul.f32 %v2436, 0.5
        %v3253 = vmul.f32 %v2787, 0.5
        %v3254 = vmul.f32 %v2789, 0.5
        %v3255 = vmul.f32 %v1379, 0.5
        %v3256 = vmul.f32 %v1381, 0.5
        %v3257 = vmul.f32 %v1732, 0.5
        %v3258 = vmul.f32 %v1734, 0.5
        %v3259 = vmul.f32 %v2085, 0.5
        %v3260 = vmul.f32 %v2087, 0.5
        %v3261 = vmul.f32 %v2438, 0.5
        %v3262 = vmul.f32 %v2440, 0.5
        %v3263 = vmul.f32 %v2791, 0.5
        %v3264 = vmul.f32 %v2793, 0.5
        %v3265 = vmul.f32 %v1385, 0.5
        %v3266 = vmul.f32 %v1387, 0.5
        %v3267 = vmul.f32 %v1738, 0.5
        %v3268 = vmul.f32 %v1740, 0.5
        %v3269 = vmul.f32 %v2091, 0.5
        %v3270 = vmul.f32 %v2093, 0.5
        %v3271 = vmul.f32 %v2444, 0.5
        %v3272 = vmul.f32 %v2446, 0.5
        %v3273 = vmul.f32 %v2797, 0.5
        %v3274 = vmul.f32 %v2799, 0.5
        %v3275 = vmul.f32 %v1389, 0.5
        %v3276 = vmul.f32 %v1391, 0.5
        %v3277 = vmul.f32 %v1742, 0.5
        %v3278 = vmul.f32 %v1744, 0.5
        %v3279 = vmul.f32 %v2095, 0.5
        %v3280 = vmul.f32 %v2097, 0.5
        %v3281 = vmul.f32 %v2448, 0.5
        %v3282 = vmul.f32 %v2450, 0.5
        %v3283 = vmul.f32 %v2801, 0.5
        %v3284 = vmul.f32 %v2803, 0.5
        %v3285 = vmul.f32 %v1395, 0.5
        %v3286 = vmul.f32 %v1397, 0.5
        %v3287 = vmul.f32 %v1748, 0.5
        %v3288 = vmul.f32 %v1750, 0.5
        %v3289 = vmul.f32 %v2101, 0.5
        %v3290 = vmul.f32 %v2103, 0.5
        %v3291 = vmul.f32 %v2454, 0.5
        %v3292 = vmul.f32 %v2456, 0.5
        %v3293 = vmul.f32 %v2807, 0.5
        %v3294 = vmul.f32 %v2809, 0.5
        %v3295 = vmul.f32 %v1399, 0.5
        %v3296 = vmul.f32 %v1401, 0.5
        %v3297 = vmul.f32 %v1752, 0.5
        %v3298 = vmul.f32 %v1754, 0.5
        %v3299 = vmul.f32 %v2105, 0.5
        %v3300 = vmul.f32 %v2107, 0.5
        %v3301 = vmul.f32 %v2458, 0.5
        %v3302 = vmul.f32 %v2460, 0.5
        %v3303 = vmul.f32 %v2811, 0.5
        %v3304 = vmul.f32 %v2813, 0.5
        %v3305 = vmul.f32 %v1405, 0.5
        %v3306 = vmul.f32 %v1407, 0.5
        %v3307 = vmul.f32 %v1758, 0.5
        %v3308 = vmul.f32 %v1760, 0.5
        %v3309 = vmul.f32 %v2111, 0.5
        %v3310 = vmul.f32 %v2113, 0.5
        %v3311 = vmul.f32 %v2464, 0.5
        %v3312 = vmul.f32 %v2466, 0.5
        %v3313 = vmul.f32 %v2817, 0.5
        %v3314 = vmul.f32 %v2819, 0.5
        %v3315 = vmul.f32 %v1409, 0.5
        %v3316 = vmul.f32 %v1411, 0.5
        %v3317 = vmul.f32 %v1762, 0.5
        %v3318 = vmul.f32 %v1764, 0.5
        %v3319 = vmul.f32 %v2115, 0.5
        %v3320 = vmul.f32 %v2117, 0.5
        %v3321 = vmul.f32 %v2468, 0.5
        %v3322 = vmul.f32 %v2470, 0.5
        %v3323 = vmul.f32 %v2821, 0.5
        %v3324 = vmul.f32 %v2823, 0.5
        %v3325 = vmul.f32 %v1415, 0.5
        %v3326 = vmul.f32 %v1417, 0.5
        %v3327 = vmul.f32 %v1768, 0.5
        %v3328 = vmul.f32 %v1770, 0.5
        %v3329 = vmul.f32 %v2121, 0.5
        %v3330 = vmul.f32 %v2123, 0.5
        %v3331 = vmul.f32 %v2474, 0.5
        %v3332 = vmul.f32 %v2476, 0.5
        %v3333 = vmul.f32 %v2827, 0.5
        %v3334 = vmul.f32 %v2829, 0.5
        %v3335 = vmul.f32 %v1419, 0.5
        %v3336 = vmul.f32 %v1421, 0.5
        %v3337 = vmul.f32 %v1772, 0.5
        %v3338 = vmul.f32 %v1774, 0.5
        %v3339 = vmul.f32 %v2125, 0.5
        %v3340 = vmul.f32 %v2127, 0.5
        %v3341 = vmul.f32 %v2478, 0.5
        %v3342 = vmul.f32 %v2480, 0.5
        %v3343 = vmul.f32 %v2831, 0.5
        %v3344 = vmul.f32 %v2833, 0.5
        %v3345 = vmul.f32 %v1425, 0.5
        %v3346 = vmul.f32 %v1427, 0.5
        %v3347 = vmul.f32 %v1778, 0.5
        %v3348 = vmul.f32 %v1780, 0.5
        %v3349 = vmul.f32 %v2131, 0.5
        %v3350 = vmul.f32 %v2133, 0.5
        %v3351 = vmul.f32 %v2484, 0.5
        %v3352 = vmul.f32 %v2486, 0.5
        %v3353 = vmul.f32 %v2837, 0.5
        %v3354 = vmul.f32 %v2839, 0.5
        %v3355 = vmul.f32 %v1429, 0.5
        %v3356 = vmul.f32 %v1431, 0.5
        %v3357 = vmul.f32 %v1782, 0.5
        %v3358 = vmul.f32 %v1784, 0.5
        %v3359 = vmul.f32 %v2135, 0.5
        %v3360 = vmul.f32 %v2137, 0.5
        %v3361 = vmul.f32 %v2488, 0.5
        %v3362 = vmul.f32 %v2490, 0.5
        %v3363 = vmul.f32 %v2841, 0.5
        %v3364 = vmul.f32 %v2843, 0.5
        %v3365 = vmul.f32 %v1435, 0.5
        %v3366 = vmul.f32 %v1437, 0.5
        %v3367 = vmul.f32 %v1788, 0.5
        %v3368 = vmul.f32 %v1790, 0.5
        %v3369 = vmul.f32 %v2141, 0.5
        %v3370 = vmul.f32 %v2143, 0.5
        %v3371 = vmul.f32 %v2494, 0.5
        %v3372 = vmul.f32 %v2496, 0.5
        %v3373 = vmul.f32 %v2847, 0.5
        %v3374 = vmul.f32 %v2849, 0.5
        %v3375 = vmul.f32 %v1439, 0.5
        %v3376 = vmul.f32 %v1441, 0.5
        %v3377 = vmul.f32 %v1792, 0.5
        %v3378 = vmul.f32 %v1794, 0.5
        %v3379 = vmul.f32 %v2145, 0.5
        %v3380 = vmul.f32 %v2147, 0.5
        %v3381 = vmul.f32 %v2498, 0.5
        %v3382 = vmul.f32 %v2500, 0.5
        %v3383 = vmul.f32 %v2851, 0.5
        %v3384 = vmul.f32 %v2853, 0.5
        %v3385 = vmul.f32 %v1445, 0.5
        %v3386 = vmul.f32 %v1447, 0.5
        %v3387 = vmul.f32 %v1798, 0.5
        %v3388 = vmul.f32 %v1800, 0.5
        %v3389 = vmul.f32 %v2151, 0.5
        %v3390 = vmul.f32 %v2153, 0.5
        %v3391 = vmul.f32 %v2504, 0.5
        %v3392 = vmul.f32 %v2506, 0.5
        %v3393 = vmul.f32 %v2857, 0.5
        %v3394 = vmul.f32 %v2859, 0.5
        %v3395 = vmul.f32 %v1449, 0.5
        %v3396 = vmul.f32 %v1451, 0.5
        %v3397 = vmul.f32 %v1802, 0.5
        %v3398 = vmul.f32 %v1804, 0.5
        %v3399 = vmul.f32 %v2155, 0.5
        %v3400 = vmul.f32 %v2157, 0.5
        %v3401 = vmul.f32 %v2508, 0.5
        %v3402 = vmul.f32 %v2510, 0.5
        %v3403 = vmul.f32 %v2861, 0.5
        %v3404 = vmul.f32 %v2863, 0.5
        %v3405 = vmul.f32 %v1455, 0.5
        %v3406 = vmul.f32 %v1457, 0.5
        %v3407 = vmul.f32 %v1808, 0.5
        %v3408 = vmul.f32 %v1810, 0.5
        %v3409 = vmul.f32 %v2161, 0.5
        %v3410 = vmul.f32 %v2163, 0.5
        %v3411 = vmul.f32 %v2514, 0.5
        %v3412 = vmul.f32 %v2516, 0.5
        %v3413 = vmul.f32 %v2867, 0.5
        %v3414 = vmul.f32 %v2869, 0.5
        %v3415 = vmul.f32 %v1459, 0.5
        %v3416 = vmul.f32 %v1461, 0.5
        %v3417 = vmul.f32 %v1812, 0.5
        %v3418 = vmul.f32 %v1814, 0.5
        %v3419 = vmul.f32 %v2165, 0.5
        %v3420 = vmul.f32 %v2167, 0.5
        %v3421 = vmul.f32 %v2518, 0.5
        %v3422 = vmul.f32 %v2520, 0.5
        %v3423 = vmul.f32 %v2871, 0.5
        %v3424 = vmul.f32 %v2873, 0.5
        %v3425 = vmul.f32 %v1465, 0.5
        %v3426 = vmul.f32 %v1467, 0.5
        %v3427 = vmul.f32 %v1818, 0.5
        %v3428 = vmul.f32 %v1820, 0.5
        %v3429 = vmul.f32 %v2171, 0.5
        %v3430 = vmul.f32 %v2173, 0.5
        %v3431 = vmul.f32 %v2524, 0.5
        %v3432 = vmul.f32 %v2526, 0.5
        %v3433 = vmul.f32 %v2877, 0.5
        %v3434 = vmul.f32 %v2879, 0.5
        %v3435 = vmul.f32 %v1469, 0.5
        %v3436 = vmul.f32 %v1471, 0.5
        %v3437 = vmul.f32 %v1822, 0.5
        %v3438 = vmul.f32 %v1824, 0.5
        %v3439 = vmul.f32 %v2175, 0.5
        %v3440 = vmul.f32 %v2177, 0.5
        %v3441 = vmul.f32 %v2528, 0.5
        %v3442 = vmul.f32 %v2530, 0.5
        %v3443 = vmul.f32 %v2881, 0.5
        %v3444 = vmul.f32 %v2883, 0.5
        %v3445 = vmul.f32 %v1475, 0.5
        %v3446 = vmul.f32 %v1477, 0.5
        %v3447 = vmul.f32 %v1828, 0.5
        %v3448 = vmul.f32 %v1830, 0.5
        %v3449 = vmul.f32 %v2181, 0.5
        %v3450 = vmul.f32 %v2183, 0.5
        %v3451 = vmul.f32 %v2534, 0.5
        %v3452 = vmul.f32 %v2536, 0.5
        %v3453 = vmul.f32 %v2887, 0.5
        %v3454 = vmul.f32 %v2889, 0.5
        %v3455 = vmul.f32 %v1479, 0.5
        %v3456 = vmul.f32 %v1481, 0.5
        %v3457 = vmul.f32 %v1832, 0.5
        %v3458 = vmul.f32 %v1834, 0.5
        %v3459 = vmul.f32 %v2185, 0.5
        %v3460 = vmul.f32 %v2187, 0.5
        %v3461 = vmul.f32 %v2538, 0.5
        %v3462 = vmul.f32 %v2540, 0.5
        %v3463 = vmul.f32 %v2891, 0.5
        %v3464 = vmul.f32 %v2893, 0.5
        %v3465 = vmul.f32 %v1485, 0.5
        %v3466 = vmul.f32 %v1487, 0.5
        %v3467 = vmul.f32 %v1838, 0.5
        %v3468 = vmul.f32 %v1840, 0.5
        %v3469 = vmul.f32 %v2191, 0.5
        %v3470 = vmul.f32 %v2193, 0.5
        %v3471 = vmul.f32 %v2544, 0.5
        %v3472 = vmul.f32 %v2546, 0.5
        %v3473 = vmul.f32 %v2897, 0.5
        %v3474 = vmul.f32 %v2899, 0.5
        %v3475 = vmul.f32 %v1489, 0.5
        %v3476 = vmul.f32 %v1491, 0.5
        %v3477 = vmul.f32 %v1842, 0.5
        %v3478 = vmul.f32 %v1844, 0.5
        %v3479 = vmul.f32 %v2195, 0.5
        %v3480 = vmul.f32 %v2197, 0.5
        %v3481 = vmul.f32 %v2548, 0.5
        %v3482 = vmul.f32 %v2550, 0.5
        %v3483 = vmul.f32 %v2901, 0.5
        %v3484 = vmul.f32 %v2903, 0.5
        %v3485 = vmul.f32 %v1495, 0.5
        %v3486 = vmul.f32 %v1497, 0.5
        %v3487 = vmul.f32 %v1848, 0.5
        %v3488 = vmul.f32 %v1850, 0.5
        %v3489 = vmul.f32 %v2201, 0.5
        %v3490 = vmul.f32 %v2203, 0.5
        %v3491 = vmul.f32 %v2554, 0.5
        %v3492 = vmul.f32 %v2556, 0.5
        %v3493 = vmul.f32 %v2907, 0.5
        %v3494 = vmul.f32 %v2909, 0.5
        %v3495 = vmul.f32 %v1499, 0.5
        %v3496 = vmul.f32 %v1501, 0.5
        %v3497 = vmul.f32 %v1852, 0.5
        %v3498 = vmul.f32 %v1854, 0.5
        %v3499 = vmul.f32 %v2205, 0.5
        %v3500 = vmul.f32 %v2207, 0.5
        %v3501 = vmul.f32 %v2558, 0.5
        %v3502 = vmul.f32 %v2560, 0.5
        %v3503 = vmul.f32 %v2911, 0.5
        %v3504 = vmul.f32 %v2913, 0.5
        %v3505 = vmul.f32 %v1505, 0.5
        %v3506 = vmul.f32 %v1507, 0.5
        %v3507 = vmul.f32 %v1858, 0.5
        %v3508 = vmul.f32 %v1860, 0.5
        %v3509 = vmul.f32 %v2211, 0.5
        %v3510 = vmul.f32 %v2213, 0.5
        %v3511 = vmul.f32 %v2564, 0.5
        %v3512 = vmul.f32 %v2566, 0.5
        %v3513 = vmul.f32 %v2917, 0.5
        %v3514 = vmul.f32 %v2919, 0.5
        %v3515 = vmul.f32 %v1509, 0.5
        %v3516 = vmul.f32 %v1511, 0.5
        %v3517 = vmul.f32 %v1862, 0.5
        %v3518 = vmul.f32 %v1864, 0.5
        %v3519 = vmul.f32 %v2215, 0.5
        %v3520 = vmul.f32 %v2217, 0.5
        %v3521 = vmul.f32 %v2568, 0.5
        %v3522 = vmul.f32 %v2570, 0.5
        %v3523 = vmul.f32 %v2921, 0.5
        %v3524 = vmul.f32 %v2923, 0.5
        %v3525 = vmul.f32 %v1515, 0.5
        %v3526 = vmul.f32 %v1517, 0.5
        %v3527 = vmul.f32 %v1868, 0.5
        %v3528 = vmul.f32 %v1870, 0.5
        %v3529 = vmul.f32 %v2221, 0.5
        %v3530 = vmul.f32 %v2223, 0.5
        %v3531 = vmul.f32 %v2574, 0.5
        %v3532 = vmul.f32 %v2576, 0.5
        %v3533 = vmul.f32 %v2927, 0.5
        %v3534 = vmul.f32 %v2929, 0.5
        %v3535 = vmul.f32 %v1519, 0.5
        %v3536 = vmul.f32 %v1521, 0.5
        %v3537 = vmul.f32 %v1872, 0.5
        %v3538 = vmul.f32 %v1874, 0.5
        %v3539 = vmul.f32 %v2225, 0.5
        %v3540 = vmul.f32 %v2227, 0.5
        %v3541 = vmul.f32 %v2578, 0.5
        %v3542 = vmul.f32 %v2580, 0.5
        %v3543 = vmul.f32 %v2931, 0.5
        %v3544 = vmul.f32 %v2933, 0.5
        %v3545 = vmul.f32 %v1525, 0.5
        %v3546 = vmul.f32 %v1527, 0.5
        %v3547 = vmul.f32 %v1878, 0.5
        %v3548 = vmul.f32 %v1880, 0.5
        %v3549 = vmul.f32 %v2231, 0.5
        %v3550 = vmul.f32 %v2233, 0.5
        %v3551 = vmul.f32 %v2584, 0.5
        %v3552 = vmul.f32 %v2586, 0.5
        %v3553 = vmul.f32 %v2937, 0.5
        %v3554 = vmul.f32 %v2939, 0.5
        %v3555 = vmul.f32 %v1529, 0.5
        %v3556 = vmul.f32 %v1531, 0.5
        %v3557 = vmul.f32 %v1882, 0.5
        %v3558 = vmul.f32 %v1884, 0.5
        %v3559 = vmul.f32 %v2235, 0.5
        %v3560 = vmul.f32 %v2237, 0.5
        %v3561 = vmul.f32 %v2588, 0.5
        %v3562 = vmul.f32 %v2590, 0.5
        %v3563 = vmul.f32 %v2941, 0.5
        %v3564 = vmul.f32 %v2943, 0.5
        %v3565 = vmul.f32 %v1535, 0.5
        %v3566 = vmul.f32 %v1537, 0.5
        %v3567 = vmul.f32 %v1888, 0.5
        %v3568 = vmul.f32 %v1890, 0.5
        %v3569 = vmul.f32 %v2241, 0.5
        %v3570 = vmul.f32 %v2243, 0.5
        %v3571 = vmul.f32 %v2594, 0.5
        %v3572 = vmul.f32 %v2596, 0.5
        %v3573 = vmul.f32 %v2947, 0.5
        %v3574 = vmul.f32 %v2949, 0.5
        %v3575 = vmul.f32 %v1539, 0.5
        %v3576 = vmul.f32 %v1541, 0.5
        %v3577 = vmul.f32 %v1892, 0.5
        %v3578 = vmul.f32 %v1894, 0.5
        %v3579 = vmul.f32 %v2245, 0.5
        %v3580 = vmul.f32 %v2247, 0.5
        %v3581 = vmul.f32 %v2598, 0.5
        %v3582 = vmul.f32 %v2600, 0.5
        %v3583 = vmul.f32 %v2951, 0.5
        %v3584 = vmul.f32 %v2953, 0.5
        %v3585 = vmul.f32 %v1545, 0.5
        %v3586 = vmul.f32 %v1547, 0.5
        %v3587 = vmul.f32 %v1898, 0.5
        %v3588 = vmul.f32 %v1900, 0.5
        %v3589 = vmul.f32 %v2251, 0.5
        %v3590 = vmul.f32 %v2253, 0.5
        %v3591 = vmul.f32 %v2604, 0.5
        %v3592 = vmul.f32 %v2606, 0.5
        %v3593 = vmul.f32 %v2957, 0.5
        %v3594 = vmul.f32 %v2959, 0.5
        %v3595 = vmul.f32 %v1549, 0.5
        %v3596 = vmul.f32 %v1551, 0.5
        %v3597 = vmul.f32 %v1902, 0.5
        %v3598 = vmul.f32 %v1904, 0.5
        %v3599 = vmul.f32 %v2255, 0.5
        %v3600 = vmul.f32 %v2257, 0.5
        %v3601 = vmul.f32 %v2608, 0.5
        %v3602 = vmul.f32 %v2610, 0.5
        %v3603 = vmul.f32 %v2961, 0.5
        %v3604 = vmul.f32 %v2963, 0.5
        %v3605 = vtanh.pop %v2965
        %v3606 = vtanh.pop %v2966
        %v3607 = vtanh.pop %v2967
        %v3608 = vtanh.pop %v2968
        %v3609 = vtanh.pop %v2969
        %v3610 = vtanh.pop %v2970
        %v3611 = vtanh.pop %v2971
        %v3612 = vtanh.pop %v2972
        %v3613 = vtanh.pop %v2973
        %v3614 = vtanh.pop %v2974
        %v3615 = vtanh.pop %v2975
        %v3616 = vtanh.pop %v2976
        %v3617 = vtanh.pop %v2977
        %v3618 = vtanh.pop %v2978
        %v3619 = vtanh.pop %v2979
        %v3620 = vtanh.pop %v2980
        %v3621 = vtanh.pop %v2981
        %v3622 = vtanh.pop %v2982
        %v3623 = vtanh.pop %v2983
        %v3624 = vtanh.pop %v2984
        %v3625 = vtanh.pop %v2985
        %v3626 = vtanh.pop %v2986
        %v3627 = vtanh.pop %v2987
        %v3628 = vtanh.pop %v2988
        %v3629 = vtanh.pop %v2989
        %v3630 = vtanh.pop %v2990
        %v3631 = vtanh.pop %v2991
        %v3632 = vtanh.pop %v2992
        %v3633 = vtanh.pop %v2993
        %v3634 = vtanh.pop %v2994
        %v3635 = vtanh.pop %v2995
        %v3636 = vtanh.pop %v2996
        %v3637 = vtanh.pop %v2997
        %v3638 = vtanh.pop %v2998
        %v3639 = vtanh.pop %v2999
        %v3640 = vtanh.pop %v3000
        %v3641 = vtanh.pop %v3001
        %v3642 = vtanh.pop %v3002
        %v3643 = vtanh.pop %v3003
        %v3644 = vtanh.pop %v3004
        %v3645 = vtanh.pop %v3005
        %v3646 = vtanh.pop %v3006
        %v3647 = vtanh.pop %v3007
        %v3648 = vtanh.pop %v3008
        %v3649 = vtanh.pop %v3009
        %v3650 = vtanh.pop %v3010
        %v3651 = vtanh.pop %v3011
        %v3652 = vtanh.pop %v3012
        %v3653 = vtanh.pop %v3013
        %v3654 = vtanh.pop %v3014
        %v3655 = vtanh.pop %v3015
        %v3656 = vtanh.pop %v3016
        %v3657 = vtanh.pop %v3017
        %v3658 = vtanh.pop %v3018
        %v3659 = vtanh.pop %v3019
        %v3660 = vtanh.pop %v3020
        %v3661 = vtanh.pop %v3021
        %v3662 = vtanh.pop %v3022
        %v3663 = vtanh.pop %v3023
        %v3664 = vtanh.pop %v3024
        %v3665 = vtanh.pop %v3025
        %v3666 = vtanh.pop %v3026
        %v3667 = vtanh.pop %v3027
        %v3668 = vtanh.pop %v3028
        %v3669 = vtanh.pop %v3029
        %v3670 = vtanh.pop %v3030
        %v3671 = vtanh.pop %v3031
        %v3672 = vtanh.pop %v3032
        %v3673 = vtanh.pop %v3033
        %v3674 = vtanh.pop %v3034
        %v3675 = vtanh.pop %v3035
        %v3676 = vtanh.pop %v3036
        %v3677 = vtanh.pop %v3037
        %v3678 = vtanh.pop %v3038
        %v3679 = vtanh.pop %v3039
        %v3680 = vtanh.pop %v3040
        %v3681 = vtanh.pop %v3041
        %v3682 = vtanh.pop %v3042
        %v3683 = vtanh.pop %v3043
        %v3684 = vtanh.pop %v3044
        %v3685 = vtanh.pop %v3045
        %v3686 = vtanh.pop %v3046
        %v3687 = vtanh.pop %v3047
        %v3688 = vtanh.pop %v3048
        %v3689 = vtanh.pop %v3049
        %v3690 = vtanh.pop %v3050
        %v3691 = vtanh.pop %v3051
        %v3692 = vtanh.pop %v3052
        %v3693 = vtanh.pop %v3053
        %v3694 = vtanh.pop %v3054
        %v3695 = vtanh.pop %v3055
        %v3696 = vtanh.pop %v3056
        %v3697 = vtanh.pop %v3057
        %v3698 = vtanh.pop %v3058
        %v3699 = vtanh.pop %v3059
        %v3700 = vtanh.pop %v3060
        %v3701 = vtanh.pop %v3061
        %v3702 = vtanh.pop %v3062
        %v3703 = vtanh.pop %v3063
        %v3704 = vtanh.pop %v3064
        %v3705 = vtanh.pop %v3065
        %v3706 = vtanh.pop %v3066
        %v3707 = vtanh.pop %v3067
        %v3708 = vtanh.pop %v3068
        %v3709 = vtanh.pop %v3069
        %v3710 = vtanh.pop %v3070
        %v3711 = vtanh.pop %v3071
        %v3712 = vtanh.pop %v3072
        %v3713 = vtanh.pop %v3073
        %v3714 = vtanh.pop %v3074
        %v3715 = vtanh.pop %v3075
        %v3716 = vtanh.pop %v3076
        %v3717 = vtanh.pop %v3077
        %v3718 = vtanh.pop %v3078
        %v3719 = vtanh.pop %v3079
        %v3720 = vtanh.pop %v3080
        %v3721 = vtanh.pop %v3081
        %v3722 = vtanh.pop %v3082
        %v3723 = vtanh.pop %v3083
        %v3724 = vtanh.pop %v3084
        %v3725 = vtanh.pop %v3085
        %v3726 = vtanh.pop %v3086
        %v3727 = vtanh.pop %v3087
        %v3728 = vtanh.pop %v3088
        %v3729 = vtanh.pop %v3089
        %v3730 = vtanh.pop %v3090
        %v3731 = vtanh.pop %v3091
        %v3732 = vtanh.pop %v3092
        %v3733 = vtanh.pop %v3093
        %v3734 = vtanh.pop %v3094
        %v3735 = vtanh.pop %v3095
        %v3736 = vtanh.pop %v3096
        %v3737 = vtanh.pop %v3097
        %v3738 = vtanh.pop %v3098
        %v3739 = vtanh.pop %v3099
        %v3740 = vtanh.pop %v3100
        %v3741 = vtanh.pop %v3101
        %v3742 = vtanh.pop %v3102
        %v3743 = vtanh.pop %v3103
        %v3744 = vtanh.pop %v3104
        %v3745 = vtanh.pop %v3105
        %v3746 = vtanh.pop %v3106
        %v3747 = vtanh.pop %v3107
        %v3748 = vtanh.pop %v3108
        %v3749 = vtanh.pop %v3109
        %v3750 = vtanh.pop %v3110
        %v3751 = vtanh.pop %v3111
        %v3752 = vtanh.pop %v3112
        %v3753 = vtanh.pop %v3113
        %v3754 = vtanh.pop %v3114
        %v3755 = vtanh.pop %v3115
        %v3756 = vtanh.pop %v3116
        %v3757 = vtanh.pop %v3117
        %v3758 = vtanh.pop %v3118
        %v3759 = vtanh.pop %v3119
        %v3760 = vtanh.pop %v3120
        %v3761 = vtanh.pop %v3121
        %v3762 = vtanh.pop %v3122
        %v3763 = vtanh.pop %v3123
        %v3764 = vtanh.pop %v3124
        %v3765 = vtanh.pop %v3125
        %v3766 = vtanh.pop %v3126
        %v3767 = vtanh.pop %v3127
        %v3768 = vtanh.pop %v3128
        %v3769 = vtanh.pop %v3129
        %v3770 = vtanh.pop %v3130
        %v3771 = vtanh.pop %v3131
        %v3772 = vtanh.pop %v3132
        %v3773 = vtanh.pop %v3133
        %v3774 = vtanh.pop %v3134
        %v3775 = vtanh.pop %v3135
        %v3776 = vtanh.pop %v3136
        %v3777 = vtanh.pop %v3137
        %v3778 = vtanh.pop %v3138
        %v3779 = vtanh.pop %v3139
        %v3780 = vtanh.pop %v3140
        %v3781 = vtanh.pop %v3141
        %v3782 = vtanh.pop %v3142
        %v3783 = vtanh.pop %v3143
        %v3784 = vtanh.pop %v3144
        %v3785 = vtanh.pop %v3145
        %v3786 = vtanh.pop %v3146
        %v3787 = vtanh.pop %v3147
        %v3788 = vtanh.pop %v3148
        %v3789 = vtanh.pop %v3149
        %v3790 = vtanh.pop %v3150
        %v3791 = vtanh.pop %v3151
        %v3792 = vtanh.pop %v3152
        %v3793 = vtanh.pop %v3153
        %v3794 = vtanh.pop %v3154
        %v3795 = vtanh.pop %v3155
        %v3796 = vtanh.pop %v3156
        %v3797 = vtanh.pop %v3157
        %v3798 = vtanh.pop %v3158
        %v3799 = vtanh.pop %v3159
        %v3800 = vtanh.pop %v3160
        %v3801 = vtanh.pop %v3161
        %v3802 = vtanh.pop %v3162
        %v3803 = vtanh.pop %v3163
        %v3804 = vtanh.pop %v3164
        %v3805 = vtanh.pop %v3165
        %v3806 = vtanh.pop %v3166
        %v3807 = vtanh.pop %v3167
        %v3808 = vtanh.pop %v3168
        %v3809 = vtanh.pop %v3169
        %v3810 = vtanh.pop %v3170
        %v3811 = vtanh.pop %v3171
        %v3812 = vtanh.pop %v3172
        %v3813 = vtanh.pop %v3173
        %v3814 = vtanh.pop %v3174
        %v3815 = vtanh.pop %v3175
        %v3816 = vtanh.pop %v3176
        %v3817 = vtanh.pop %v3177
        %v3818 = vtanh.pop %v3178
        %v3819 = vtanh.pop %v3179
        %v3820 = vtanh.pop %v3180
        %v3821 = vtanh.pop %v3181
        %v3822 = vtanh.pop %v3182
        %v3823 = vtanh.pop %v3183
        %v3824 = vtanh.pop %v3184
        %v3825 = vtanh.pop %v3185
        %v3826 = vtanh.pop %v3186
        %v3827 = vtanh.pop %v3187
        %v3828 = vtanh.pop %v3188
        %v3829 = vtanh.pop %v3189
        %v3830 = vtanh.pop %v3190
        %v3831 = vtanh.pop %v3191
        %v3832 = vtanh.pop %v3192
        %v3833 = vtanh.pop %v3193
        %v3834 = vtanh.pop %v3194
        %v3835 = vtanh.pop %v3195
        %v3836 = vtanh.pop %v3196
        %v3837 = vtanh.pop %v3197
        %v3838 = vtanh.pop %v3198
        %v3839 = vtanh.pop %v3199
        %v3840 = vtanh.pop %v3200
        %v3841 = vtanh.pop %v3201
        %v3842 = vtanh.pop %v3202
        %v3843 = vtanh.pop %v3203
        %v3844 = vtanh.pop %v3204
        %v3845 = vtanh.pop %v3205
        %v3846 = vtanh.pop %v3206
        %v3847 = vtanh.pop %v3207
        %v3848 = vtanh.pop %v3208
        %v3849 = vtanh.pop %v3209
        %v3850 = vtanh.pop %v3210
        %v3851 = vtanh.pop %v3211
        %v3852 = vtanh.pop %v3212
        %v3853 = vtanh.pop %v3213
        %v3854 = vtanh.pop %v3214
        %v3855 = vtanh.pop %v3215
        %v3856 = vtanh.pop %v3216
        %v3857 = vtanh.pop %v3217
        %v3858 = vtanh.pop %v3218
        %v3859 = vtanh.pop %v3219
        %v3860 = vtanh.pop %v3220
        %v3861 = vtanh.pop %v3221
        %v3862 = vtanh.pop %v3222
        %v3863 = vtanh.pop %v3223
        %v3864 = vtanh.pop %v3224
        %v3865 = vtanh.pop %v3225
        %v3866 = vtanh.pop %v3226
        %v3867 = vtanh.pop %v3227
        %v3868 = vtanh.pop %v3228
        %v3869 = vtanh.pop %v3229
        %v3870 = vtanh.pop %v3230
        %v3871 = vtanh.pop %v3231
        %v3872 = vtanh.pop %v3232
        %v3873 = vtanh.pop %v3233
        %v3874 = vtanh.pop %v3234
        %v3875 = vtanh.pop %v3235
        %v3876 = vtanh.pop %v3236
        %v3877 = vtanh.pop %v3237
        %v3878 = vtanh.pop %v3238
        %v3879 = vtanh.pop %v3239
        %v3880 = vtanh.pop %v3240
        %v3881 = vtanh.pop %v3241
        %v3882 = vtanh.pop %v3242
        %v3883 = vtanh.pop %v3243
        %v3884 = vtanh.pop %v3244
        %v3885 = vtanh.pop %v3245
        %v3886 = vtanh.pop %v3246
        %v3887 = vtanh.pop %v3247
        %v3888 = vtanh.pop %v3248
        %v3889 = vtanh.pop %v3249
        %v3890 = vtanh.pop %v3250
        %v3891 = vtanh.pop %v3251
        %v3892 = vtanh.pop %v3252
        %v3893 = vtanh.pop %v3253
        %v3894 = vtanh.pop %v3254
        %v3895 = vtanh.pop %v3255
        %v3896 = vtanh.pop %v3256
        %v3897 = vtanh.pop %v3257
        %v3898 = vtanh.pop %v3258
        %v3899 = vtanh.pop %v3259
        %v3900 = vtanh.pop %v3260
        %v3901 = vtanh.pop %v3261
        %v3902 = vtanh.pop %v3262
        %v3903 = vtanh.pop %v3263
        %v3904 = vtanh.pop %v3264
        %v3905 = vtanh.pop %v3265
        %v3906 = vtanh.pop %v3266
        %v3907 = vtanh.pop %v3267
        %v3908 = vtanh.pop %v3268
        %v3909 = vtanh.pop %v3269
        %v3910 = vtanh.pop %v3270
        %v3911 = vtanh.pop %v3271
        %v3912 = vtanh.pop %v3272
        %v3913 = vtanh.pop %v3273
        %v3914 = vtanh.pop %v3274
        %v3915 = vtanh.pop %v3275
        %v3916 = vtanh.pop %v3276
        %v3917 = vtanh.pop %v3277
        %v3918 = vtanh.pop %v3278
        %v3919 = vtanh.pop %v3279
        %v3920 = vtanh.pop %v3280
        %v3921 = vtanh.pop %v3281
        %v3922 = vtanh.pop %v3282
        %v3923 = vtanh.pop %v3283
        %v3924 = vtanh.pop %v3284
        %v3925 = vtanh.pop %v3285
        %v3926 = vtanh.pop %v3286
        %v3927 = vtanh.pop %v3287
        %v3928 = vtanh.pop %v3288
        %v3929 = vtanh.pop %v3289
        %v3930 = vtanh.pop %v3290
        %v3931 = vtanh.pop %v3291
        %v3932 = vtanh.pop %v3292
        %v3933 = vtanh.pop %v3293
        %v3934 = vtanh.pop %v3294
        %v3935 = vtanh.pop %v3295
        %v3936 = vtanh.pop %v3296
        %v3937 = vtanh.pop %v3297
        %v3938 = vtanh.pop %v3298
        %v3939 = vtanh.pop %v3299
        %v3940 = vtanh.pop %v3300
        %v3941 = vtanh.pop %v3301
        %v3942 = vtanh.pop %v3302
        %v3943 = vtanh.pop %v3303
        %v3944 = vtanh.pop %v3304
        %v3945 = vtanh.pop %v3305
        %v3946 = vtanh.pop %v3306
        %v3947 = vtanh.pop %v3307
        %v3948 = vtanh.pop %v3308
        %v3949 = vtanh.pop %v3309
        %v3950 = vtanh.pop %v3310
        %v3951 = vtanh.pop %v3311
        %v3952 = vtanh.pop %v3312
        %v3953 = vtanh.pop %v3313
        %v3954 = vtanh.pop %v3314
        %v3955 = vtanh.pop %v3315
        %v3956 = vtanh.pop %v3316
        %v3957 = vtanh.pop %v3317
        %v3958 = vtanh.pop %v3318
        %v3959 = vtanh.pop %v3319
        %v3960 = vtanh.pop %v3320
        %v3961 = vtanh.pop %v3321
        %v3962 = vtanh.pop %v3322
        %v3963 = vtanh.pop %v3323
        %v3964 = vtanh.pop %v3324
        %v3965 = vtanh.pop %v3325
        %v3966 = vtanh.pop %v3326
        %v3967 = vtanh.pop %v3327
        %v3968 = vtanh.pop %v3328
        %v3969 = vtanh.pop %v3329
        %v3970 = vtanh.pop %v3330
        %v3971 = vtanh.pop %v3331
        %v3972 = vtanh.pop %v3332
        %v3973 = vtanh.pop %v3333
        %v3974 = vtanh.pop %v3334
        %v3975 = vtanh.pop %v3335
        %v3976 = vtanh.pop %v3336
        %v3977 = vtanh.pop %v3337
        %v3978 = vtanh.pop %v3338
        %v3979 = vtanh.pop %v3339
        %v3980 = vtanh.pop %v3340
        %v3981 = vtanh.pop %v3341
        %v3982 = vtanh.pop %v3342
        %v3983 = vtanh.pop %v3343
        %v3984 = vtanh.pop %v3344
        %v3985 = vtanh.pop %v3345
        %v3986 = vtanh.pop %v3346
        %v3987 = vtanh.pop %v3347
        %v3988 = vtanh.pop %v3348
        %v3989 = vtanh.pop %v3349
        %v3990 = vtanh.pop %v3350
        %v3991 = vtanh.pop %v3351
        %v3992 = vtanh.pop %v3352
        %v3993 = vtanh.pop %v3353
        %v3994 = vtanh.pop %v3354
        %v3995 = vtanh.pop %v3355
        %v3996 = vtanh.pop %v3356
        %v3997 = vtanh.pop %v3357
        %v3998 = vtanh.pop %v3358
        %v3999 = vtanh.pop %v3359
        %v4000 = vtanh.pop %v3360
        %v4001 = vtanh.pop %v3361
        %v4002 = vtanh.pop %v3362
        %v4003 = vtanh.pop %v3363
        %v4004 = vtanh.pop %v3364
        %v4005 = vtanh.pop %v3365
        %v4006 = vtanh.pop %v3366
        %v4007 = vtanh.pop %v3367
        %v4008 = vtanh.pop %v3368
        %v4009 = vtanh.pop %v3369
        %v4010 = vtanh.pop %v3370
        %v4011 = vtanh.pop %v3371
        %v4012 = vtanh.pop %v3372
        %v4013 = vtanh.pop %v3373
        %v4014 = vtanh.pop %v3374
        %v4015 = vtanh.pop %v3375
        %v4016 = vtanh.pop %v3376
        %v4017 = vtanh.pop %v3377
        %v4018 = vtanh.pop %v3378
        %v4019 = vtanh.pop %v3379
        %v4020 = vtanh.pop %v3380
        %v4021 = vtanh.pop %v3381
        %v4022 = vtanh.pop %v3382
        %v4023 = vtanh.pop %v3383
        %v4024 = vtanh.pop %v3384
        %v4025 = vtanh.pop %v3385
        %v4026 = vtanh.pop %v3386
        %v4027 = vtanh.pop %v3387
        %v4028 = vtanh.pop %v3388
        %v4029 = vtanh.pop %v3389
        %v4030 = vtanh.pop %v3390
        %v4031 = vtanh.pop %v3391
        %v4032 = vtanh.pop %v3392
        %v4033 = vtanh.pop %v3393
        %v4034 = vtanh.pop %v3394
        %v4035 = vtanh.pop %v3395
        %v4036 = vtanh.pop %v3396
        %v4037 = vtanh.pop %v3397
        %v4038 = vtanh.pop %v3398
        %v4039 = vtanh.pop %v3399
        %v4040 = vtanh.pop %v3400
        %v4041 = vtanh.pop %v3401
        %v4042 = vtanh.pop %v3402
        %v4043 = vtanh.pop %v3403
        %v4044 = vtanh.pop %v3404
        %v4045 = vtanh.pop %v3405
        %v4046 = vtanh.pop %v3406
        %v4047 = vtanh.pop %v3407
        %v4048 = vtanh.pop %v3408
        %v4049 = vtanh.pop %v3409
        %v4050 = vtanh.pop %v3410
        %v4051 = vtanh.pop %v3411
        %v4052 = vtanh.pop %v3412
        %v4053 = vtanh.pop %v3413
        %v4054 = vtanh.pop %v3414
        %v4055 = vtanh.pop %v3415
        %v4056 = vtanh.pop %v3416
        %v4057 = vtanh.pop %v3417
        %v4058 = vtanh.pop %v3418
        %v4059 = vtanh.pop %v3419
        %v4060 = vtanh.pop %v3420
        %v4061 = vtanh.pop %v3421
        %v4062 = vtanh.pop %v3422
        %v4063 = vtanh.pop %v3423
        %v4064 = vtanh.pop %v3424
        %v4065 = vtanh.pop %v3425
        %v4066 = vtanh.pop %v3426
        %v4067 = vtanh.pop %v3427
        %v4068 = vtanh.pop %v3428
        %v4069 = vtanh.pop %v3429
        %v4070 = vtanh.pop %v3430
        %v4071 = vtanh.pop %v3431
        %v4072 = vtanh.pop %v3432
        %v4073 = vtanh.pop %v3433
        %v4074 = vtanh.pop %v3434
        %v4075 = vtanh.pop %v3435
        %v4076 = vtanh.pop %v3436
        %v4077 = vtanh.pop %v3437
        %v4078 = vtanh.pop %v3438
        %v4079 = vtanh.pop %v3439
        %v4080 = vtanh.pop %v3440
        %v4081 = vtanh.pop %v3441
        %v4082 = vtanh.pop %v3442
        %v4083 = vtanh.pop %v3443
        %v4084 = vtanh.pop %v3444
        %v4085 = vtanh.pop %v3445
        %v4086 = vtanh.pop %v3446
        %v4087 = vtanh.pop %v3447
        %v4088 = vtanh.pop %v3448
        %v4089 = vtanh.pop %v3449
        %v4090 = vtanh.pop %v3450
        %v4091 = vtanh.pop %v3451
        %v4092 = vtanh.pop %v3452
        %v4093 = vtanh.pop %v3453
        %v4094 = vtanh.pop %v3454
        %v4095 = vtanh.pop %v3455
        %v4096 = vtanh.pop %v3456
        %v4097 = vtanh.pop %v3457
        %v4098 = vtanh.pop %v3458
        %v4099 = vtanh.pop %v3459
        %v4100 = vtanh.pop %v3460
        %v4101 = vtanh.pop %v3461
        %v4102 = vtanh.pop %v3462
        %v4103 = vtanh.pop %v3463
        %v4104 = vtanh.pop %v3464
        %v4105 = vtanh.pop %v3465
        %v4106 = vtanh.pop %v3466
        %v4107 = vtanh.pop %v3467
        %v4108 = vtanh.pop %v3468
        %v4109 = vtanh.pop %v3469
        %v4110 = vtanh.pop %v3470
        %v4111 = vtanh.pop %v3471
        %v4112 = vtanh.pop %v3472
        %v4113 = vtanh.pop %v3473
        %v4114 = vtanh.pop %v3474
        %v4115 = vtanh.pop %v3475
        %v4116 = vtanh.pop %v3476
        %v4117 = vtanh.pop %v3477
        %v4118 = vtanh.pop %v3478
        %v4119 = vtanh.pop %v3479
        %v4120 = vtanh.pop %v3480
        %v4121 = vtanh.pop %v3481
        %v4122 = vtanh.pop %v3482
        %v4123 = vtanh.pop %v3483
        %v4124 = vtanh.pop %v3484
        %v4125 = vtanh.pop %v3485
        %v4126 = vtanh.pop %v3486
        %v4127 = vtanh.pop %v3487
        %v4128 = vtanh.pop %v3488
        %v4129 = vtanh.pop %v3489
        %v4130 = vtanh.pop %v3490
        %v4131 = vtanh.pop %v3491
        %v4132 = vtanh.pop %v3492
        %v4133 = vtanh.pop %v3493
        %v4134 = vtanh.pop %v3494
        %v4135 = vtanh.pop %v3495
        %v4136 = vtanh.pop %v3496
        %v4137 = vtanh.pop %v3497
        %v4138 = vtanh.pop %v3498
        %v4139 = vtanh.pop %v3499
        %v4140 = vtanh.pop %v3500
        %v4141 = vtanh.pop %v3501
        %v4142 = vtanh.pop %v3502
        %v4143 = vtanh.pop %v3503
        %v4144 = vtanh.pop %v3504
        %v4145 = vtanh.pop %v3505
        %v4146 = vtanh.pop %v3506
        %v4147 = vtanh.pop %v3507
        %v4148 = vtanh.pop %v3508
        %v4149 = vtanh.pop %v3509
        %v4150 = vtanh.pop %v3510
        %v4151 = vtanh.pop %v3511
        %v4152 = vtanh.pop %v3512
        %v4153 = vtanh.pop %v3513
        %v4154 = vtanh.pop %v3514
        %v4155 = vtanh.pop %v3515
        %v4156 = vtanh.pop %v3516
        %v4157 = vtanh.pop %v3517
        %v4158 = vtanh.pop %v3518
        %v4159 = vtanh.pop %v3519
        %v4160 = vtanh.pop %v3520
        %v4161 = vtanh.pop %v3521
        %v4162 = vtanh.pop %v3522
        %v4163 = vtanh.pop %v3523
        %v4164 = vtanh.pop %v3524
        %v4165 = vtanh.pop %v3525
        %v4166 = vtanh.pop %v3526
        %v4167 = vtanh.pop %v3527
        %v4168 = vtanh.pop %v3528
        %v4169 = vtanh.pop %v3529
        %v4170 = vtanh.pop %v3530
        %v4171 = vtanh.pop %v3531
        %v4172 = vtanh.pop %v3532
        %v4173 = vtanh.pop %v3533
        %v4174 = vtanh.pop %v3534
        %v4175 = vtanh.pop %v3535
        %v4176 = vtanh.pop %v3536
        %v4177 = vtanh.pop %v3537
        %v4178 = vtanh.pop %v3538
        %v4179 = vtanh.pop %v3539
        %v4180 = vtanh.pop %v3540
        %v4181 = vtanh.pop %v3541
        %v4182 = vtanh.pop %v3542
        %v4183 = vtanh.pop %v3543
        %v4184 = vtanh.pop %v3544
        %v4185 = vtanh.pop %v3545
        %v4186 = vtanh.pop %v3546
        %v4187 = vtanh.pop %v3547
        %v4188 = vtanh.pop %v3548
        %v4189 = vtanh.pop %v3549
        %v4190 = vtanh.pop %v3550
        %v4191 = vtanh.pop %v3551
        %v4192 = vtanh.pop %v3552
        %v4193 = vtanh.pop %v3553
        %v4194 = vtanh.pop %v3554
        %v4195 = vtanh.pop %v3555
        %v4196 = vtanh.pop %v3556
        %v4197 = vtanh.pop %v3557
        %v4198 = vtanh.pop %v3558
        %v4199 = vtanh.pop %v3559
        %v4200 = vtanh.pop %v3560
        %v4201 = vtanh.pop %v3561
        %v4202 = vtanh.pop %v3562
        %v4203 = vtanh.pop %v3563
        %v4204 = vtanh.pop %v3564
        %v4205 = vtanh.pop %v3565
        %v4206 = vtanh.pop %v3566
        %v4207 = vtanh.pop %v3567
        %v4208 = vtanh.pop %v3568
        %v4209 = vtanh.pop %v3569
        %v4210 = vtanh.pop %v3570
        %v4211 = vtanh.pop %v3571
        %v4212 = vtanh.pop %v3572
        %v4213 = vtanh.pop %v3573
        %v4214 = vtanh.pop %v3574
        %v4215 = vtanh.pop %v3575
        %v4216 = vtanh.pop %v3576
        %v4217 = vtanh.pop %v3577
        %v4218 = vtanh.pop %v3578
        %v4219 = vtanh.pop %v3579
        %v4220 = vtanh.pop %v3580
        %v4221 = vtanh.pop %v3581
        %v4222 = vtanh.pop %v3582
        %v4223 = vtanh.pop %v3583
        %v4224 = vtanh.pop %v3584
        %v4225 = vtanh.pop %v3585
        %v4226 = vtanh.pop %v3586
        %v4227 = vtanh.pop %v3587
        %v4228 = vtanh.pop %v3588
        %v4229 = vtanh.pop %v3589
        %v4230 = vtanh.pop %v3590
        %v4231 = vtanh.pop %v3591
        %v4232 = vtanh.pop %v3592
        %v4233 = vtanh.pop %v3593
        %v4234 = vtanh.pop %v3594
        %v4235 = vtanh.pop %v3595
        %v4236 = vtanh.pop %v3596
        %v4237 = vtanh.pop %v3597
        %v4238 = vtanh.pop %v3598
        %v4239 = vtanh.pop %v3599
        %v4240 = vtanh.pop %v3600
        %v4241 = vtanh.pop %v3601
        %v4242 = vtanh.pop %v3602
        %v4243 = vtanh.pop %v3603
        %v4244 = vtanh.pop %v3604
        %v4245 = vmul.f32 %v3605, 0.5
        %v4246 = vmul.f32 %v3606, 0.5
        %v4247 = vmul.f32 %v3607, 0.5
        %v4248 = vmul.f32 %v3608, 0.5
        %v4249 = vmul.f32 %v3609, 0.5
        %v4250 = vmul.f32 %v3610, 0.5
        %v4251 = vmul.f32 %v3611, 0.5
        %v4252 = vmul.f32 %v3612, 0.5
        %v4253 = vmul.f32 %v3613, 0.5
        %v4254 = vmul.f32 %v3614, 0.5
        %v4255 = vmul.f32 %v3615, 0.5
        %v4256 = vmul.f32 %v3616, 0.5
        %v4257 = vmul.f32 %v3617, 0.5
        %v4258 = vmul.f32 %v3618, 0.5
        %v4259 = vmul.f32 %v3619, 0.5
        %v4260 = vmul.f32 %v3620, 0.5
        %v4261 = vmul.f32 %v3621, 0.5
        %v4262 = vmul.f32 %v3622, 0.5
        %v4263 = vmul.f32 %v3623, 0.5
        %v4264 = vmul.f32 %v3624, 0.5
        %v4265 = vmul.f32 %v3625, 0.5
        %v4266 = vmul.f32 %v3626, 0.5
        %v4267 = vmul.f32 %v3627, 0.5
        %v4268 = vmul.f32 %v3628, 0.5
        %v4269 = vmul.f32 %v3629, 0.5
        %v4270 = vmul.f32 %v3630, 0.5
        %v4271 = vmul.f32 %v3631, 0.5
        %v4272 = vmul.f32 %v3632, 0.5
        %v4273 = vmul.f32 %v3633, 0.5
        %v4274 = vmul.f32 %v3634, 0.5
        %v4275 = vmul.f32 %v3635, 0.5
        %v4276 = vmul.f32 %v3636, 0.5
        %v4277 = vmul.f32 %v3637, 0.5
        %v4278 = vmul.f32 %v3638, 0.5
        %v4279 = vmul.f32 %v3639, 0.5
        %v4280 = vmul.f32 %v3640, 0.5
        %v4281 = vmul.f32 %v3641, 0.5
        %v4282 = vmul.f32 %v3642, 0.5
        %v4283 = vmul.f32 %v3643, 0.5
        %v4284 = vmul.f32 %v3644, 0.5
        %v4285 = vmul.f32 %v3645, 0.5
        %v4286 = vmul.f32 %v3646, 0.5
        %v4287 = vmul.f32 %v3647, 0.5
        %v4288 = vmul.f32 %v3648, 0.5
        %v4289 = vmul.f32 %v3649, 0.5
        %v4290 = vmul.f32 %v3650, 0.5
        %v4291 = vmul.f32 %v3651, 0.5
        %v4292 = vmul.f32 %v3652, 0.5
        %v4293 = vmul.f32 %v3653, 0.5
        %v4294 = vmul.f32 %v3654, 0.5
        %v4295 = vmul.f32 %v3655, 0.5
        %v4296 = vmul.f32 %v3656, 0.5
        %v4297 = vmul.f32 %v3657, 0.5
        %v4298 = vmul.f32 %v3658, 0.5
        %v4299 = vmul.f32 %v3659, 0.5
        %v4300 = vmul.f32 %v3660, 0.5
        %v4301 = vmul.f32 %v3661, 0.5
        %v4302 = vmul.f32 %v3662, 0.5
        %v4303 = vmul.f32 %v3663, 0.5
        %v4304 = vmul.f32 %v3664, 0.5
        %v4305 = vmul.f32 %v3665, 0.5
        %v4306 = vmul.f32 %v3666, 0.5
        %v4307 = vmul.f32 %v3667, 0.5
        %v4308 = vmul.f32 %v3668, 0.5
        %v4309 = vmul.f32 %v3669, 0.5
        %v4310 = vmul.f32 %v3670, 0.5
        %v4311 = vmul.f32 %v3671, 0.5
        %v4312 = vmul.f32 %v3672, 0.5
        %v4313 = vmul.f32 %v3673, 0.5
        %v4314 = vmul.f32 %v3674, 0.5
        %v4315 = vmul.f32 %v3675, 0.5
        %v4316 = vmul.f32 %v3676, 0.5
        %v4317 = vmul.f32 %v3677, 0.5
        %v4318 = vmul.f32 %v3678, 0.5
        %v4319 = vmul.f32 %v3679, 0.5
        %v4320 = vmul.f32 %v3680, 0.5
        %v4321 = vmul.f32 %v3681, 0.5
        %v4322 = vmul.f32 %v3682, 0.5
        %v4323 = vmul.f32 %v3683, 0.5
        %v4324 = vmul.f32 %v3684, 0.5
        %v4325 = vmul.f32 %v3685, 0.5
        %v4326 = vmul.f32 %v3686, 0.5
        %v4327 = vmul.f32 %v3687, 0.5
        %v4328 = vmul.f32 %v3688, 0.5
        %v4329 = vmul.f32 %v3689, 0.5
        %v4330 = vmul.f32 %v3690, 0.5
        %v4331 = vmul.f32 %v3691, 0.5
        %v4332 = vmul.f32 %v3692, 0.5
        %v4333 = vmul.f32 %v3693, 0.5
        %v4334 = vmul.f32 %v3694, 0.5
        %v4335 = vmul.f32 %v3695, 0.5
        %v4336 = vmul.f32 %v3696, 0.5
        %v4337 = vmul.f32 %v3697, 0.5
        %v4338 = vmul.f32 %v3698, 0.5
        %v4339 = vmul.f32 %v3699, 0.5
        %v4340 = vmul.f32 %v3700, 0.5
        %v4341 = vmul.f32 %v3701, 0.5
        %v4342 = vmul.f32 %v3702, 0.5
        %v4343 = vmul.f32 %v3703, 0.5
        %v4344 = vmul.f32 %v3704, 0.5
        %v4345 = vmul.f32 %v3705, 0.5
        %v4346 = vmul.f32 %v3706, 0.5
        %v4347 = vmul.f32 %v3707, 0.5
        %v4348 = vmul.f32 %v3708, 0.5
        %v4349 = vmul.f32 %v3709, 0.5
        %v4350 = vmul.f32 %v3710, 0.5
        %v4351 = vmul.f32 %v3711, 0.5
        %v4352 = vmul.f32 %v3712, 0.5
        %v4353 = vmul.f32 %v3713, 0.5
        %v4354 = vmul.f32 %v3714, 0.5
        %v4355 = vmul.f32 %v3715, 0.5
        %v4356 = vmul.f32 %v3716, 0.5
        %v4357 = vmul.f32 %v3717, 0.5
        %v4358 = vmul.f32 %v3718, 0.5
        %v4359 = vmul.f32 %v3719, 0.5
        %v4360 = vmul.f32 %v3720, 0.5
        %v4361 = vmul.f32 %v3721, 0.5
        %v4362 = vmul.f32 %v3722, 0.5
        %v4363 = vmul.f32 %v3723, 0.5
        %v4364 = vmul.f32 %v3724, 0.5
        %v4365 = vmul.f32 %v3725, 0.5
        %v4366 = vmul.f32 %v3726, 0.5
        %v4367 = vmul.f32 %v3727, 0.5
        %v4368 = vmul.f32 %v3728, 0.5
        %v4369 = vmul.f32 %v3729, 0.5
        %v4370 = vmul.f32 %v3730, 0.5
        %v4371 = vmul.f32 %v3731, 0.5
        %v4372 = vmul.f32 %v3732, 0.5
        %v4373 = vmul.f32 %v3733, 0.5
        %v4374 = vmul.f32 %v3734, 0.5
        %v4375 = vmul.f32 %v3735, 0.5
        %v4376 = vmul.f32 %v3736, 0.5
        %v4377 = vmul.f32 %v3737, 0.5
        %v4378 = vmul.f32 %v3738, 0.5
        %v4379 = vmul.f32 %v3739, 0.5
        %v4380 = vmul.f32 %v3740, 0.5
        %v4381 = vmul.f32 %v3741, 0.5
        %v4382 = vmul.f32 %v3742, 0.5
        %v4383 = vmul.f32 %v3743, 0.5
        %v4384 = vmul.f32 %v3744, 0.5
        %v4385 = vmul.f32 %v3745, 0.5
        %v4386 = vmul.f32 %v3746, 0.5
        %v4387 = vmul.f32 %v3747, 0.5
        %v4388 = vmul.f32 %v3748, 0.5
        %v4389 = vmul.f32 %v3749, 0.5
        %v4390 = vmul.f32 %v3750, 0.5
        %v4391 = vmul.f32 %v3751, 0.5
        %v4392 = vmul.f32 %v3752, 0.5
        %v4393 = vmul.f32 %v3753, 0.5
        %v4394 = vmul.f32 %v3754, 0.5
        %v4395 = vmul.f32 %v3755, 0.5
        %v4396 = vmul.f32 %v3756, 0.5
        %v4397 = vmul.f32 %v3757, 0.5
        %v4398 = vmul.f32 %v3758, 0.5
        %v4399 = vmul.f32 %v3759, 0.5
        %v4400 = vmul.f32 %v3760, 0.5
        %v4401 = vmul.f32 %v3761, 0.5
        %v4402 = vmul.f32 %v3762, 0.5
        %v4403 = vmul.f32 %v3763, 0.5
        %v4404 = vmul.f32 %v3764, 0.5
        %v4405 = vmul.f32 %v3765, 0.5
        %v4406 = vmul.f32 %v3766, 0.5
        %v4407 = vmul.f32 %v3767, 0.5
        %v4408 = vmul.f32 %v3768, 0.5
        %v4409 = vmul.f32 %v3769, 0.5
        %v4410 = vmul.f32 %v3770, 0.5
        %v4411 = vmul.f32 %v3771, 0.5
        %v4412 = vmul.f32 %v3772, 0.5
        %v4413 = vmul.f32 %v3773, 0.5
        %v4414 = vmul.f32 %v3774, 0.5
        %v4415 = vmul.f32 %v3775, 0.5
        %v4416 = vmul.f32 %v3776, 0.5
        %v4417 = vmul.f32 %v3777, 0.5
        %v4418 = vmul.f32 %v3778, 0.5
        %v4419 = vmul.f32 %v3779, 0.5
        %v4420 = vmul.f32 %v3780, 0.5
        %v4421 = vmul.f32 %v3781, 0.5
        %v4422 = vmul.f32 %v3782, 0.5
        %v4423 = vmul.f32 %v3783, 0.5
        %v4424 = vmul.f32 %v3784, 0.5
        %v4425 = vmul.f32 %v3785, 0.5
        %v4426 = vmul.f32 %v3786, 0.5
        %v4427 = vmul.f32 %v3787, 0.5
        %v4428 = vmul.f32 %v3788, 0.5
        %v4429 = vmul.f32 %v3789, 0.5
        %v4430 = vmul.f32 %v3790, 0.5
        %v4431 = vmul.f32 %v3791, 0.5
        %v4432 = vmul.f32 %v3792, 0.5
        %v4433 = vmul.f32 %v3793, 0.5
        %v4434 = vmul.f32 %v3794, 0.5
        %v4435 = vmul.f32 %v3795, 0.5
        %v4436 = vmul.f32 %v3796, 0.5
        %v4437 = vmul.f32 %v3797, 0.5
        %v4438 = vmul.f32 %v3798, 0.5
        %v4439 = vmul.f32 %v3799, 0.5
        %v4440 = vmul.f32 %v3800, 0.5
        %v4441 = vmul.f32 %v3801, 0.5
        %v4442 = vmul.f32 %v3802, 0.5
        %v4443 = vmul.f32 %v3803, 0.5
        %v4444 = vmul.f32 %v3804, 0.5
        %v4445 = vmul.f32 %v3805, 0.5
        %v4446 = vmul.f32 %v3806, 0.5
        %v4447 = vmul.f32 %v3807, 0.5
        %v4448 = vmul.f32 %v3808, 0.5
        %v4449 = vmul.f32 %v3809, 0.5
        %v4450 = vmul.f32 %v3810, 0.5
        %v4451 = vmul.f32 %v3811, 0.5
        %v4452 = vmul.f32 %v3812, 0.5
        %v4453 = vmul.f32 %v3813, 0.5
        %v4454 = vmul.f32 %v3814, 0.5
        %v4455 = vmul.f32 %v3815, 0.5
        %v4456 = vmul.f32 %v3816, 0.5
        %v4457 = vmul.f32 %v3817, 0.5
        %v4458 = vmul.f32 %v3818, 0.5
        %v4459 = vmul.f32 %v3819, 0.5
        %v4460 = vmul.f32 %v3820, 0.5
        %v4461 = vmul.f32 %v3821, 0.5
        %v4462 = vmul.f32 %v3822, 0.5
        %v4463 = vmul.f32 %v3823, 0.5
        %v4464 = vmul.f32 %v3824, 0.5
        %v4465 = vmul.f32 %v3825, 0.5
        %v4466 = vmul.f32 %v3826, 0.5
        %v4467 = vmul.f32 %v3827, 0.5
        %v4468 = vmul.f32 %v3828, 0.5
        %v4469 = vmul.f32 %v3829, 0.5
        %v4470 = vmul.f32 %v3830, 0.5
        %v4471 = vmul.f32 %v3831, 0.5
        %v4472 = vmul.f32 %v3832, 0.5
        %v4473 = vmul.f32 %v3833, 0.5
        %v4474 = vmul.f32 %v3834, 0.5
        %v4475 = vmul.f32 %v3835, 0.5
        %v4476 = vmul.f32 %v3836, 0.5
        %v4477 = vmul.f32 %v3837, 0.5
        %v4478 = vmul.f32 %v3838, 0.5
        %v4479 = vmul.f32 %v3839, 0.5
        %v4480 = vmul.f32 %v3840, 0.5
        %v4481 = vmul.f32 %v3841, 0.5
        %v4482 = vmul.f32 %v3842, 0.5
        %v4483 = vmul.f32 %v3843, 0.5
        %v4484 = vmul.f32 %v3844, 0.5
        %v4485 = vmul.f32 %v3845, 0.5
        %v4486 = vmul.f32 %v3846, 0.5
        %v4487 = vmul.f32 %v3847, 0.5
        %v4488 = vmul.f32 %v3848, 0.5
        %v4489 = vmul.f32 %v3849, 0.5
        %v4490 = vmul.f32 %v3850, 0.5
        %v4491 = vmul.f32 %v3851, 0.5
        %v4492 = vmul.f32 %v3852, 0.5
        %v4493 = vmul.f32 %v3853, 0.5
        %v4494 = vmul.f32 %v3854, 0.5
        %v4495 = vmul.f32 %v3855, 0.5
        %v4496 = vmul.f32 %v3856, 0.5
        %v4497 = vmul.f32 %v3857, 0.5
        %v4498 = vmul.f32 %v3858, 0.5
        %v4499 = vmul.f32 %v3859, 0.5
        %v4500 = vmul.f32 %v3860, 0.5
        %v4501 = vmul.f32 %v3861, 0.5
        %v4502 = vmul.f32 %v3862, 0.5
        %v4503 = vmul.f32 %v3863, 0.5
        %v4504 = vmul.f32 %v3864, 0.5
        %v4505 = vmul.f32 %v3865, 0.5
        %v4506 = vmul.f32 %v3866, 0.5
        %v4507 = vmul.f32 %v3867, 0.5
        %v4508 = vmul.f32 %v3868, 0.5
        %v4509 = vmul.f32 %v3869, 0.5
        %v4510 = vmul.f32 %v3870, 0.5
        %v4511 = vmul.f32 %v3871, 0.5
        %v4512 = vmul.f32 %v3872, 0.5
        %v4513 = vmul.f32 %v3873, 0.5
        %v4514 = vmul.f32 %v3874, 0.5
        %v4515 = vmul.f32 %v3875, 0.5
        %v4516 = vmul.f32 %v3876, 0.5
        %v4517 = vmul.f32 %v3877, 0.5
        %v4518 = vmul.f32 %v3878, 0.5
        %v4519 = vmul.f32 %v3879, 0.5
        %v4520 = vmul.f32 %v3880, 0.5
        %v4521 = vmul.f32 %v3881, 0.5
        %v4522 = vmul.f32 %v3882, 0.5
        %v4523 = vmul.f32 %v3883, 0.5
        %v4524 = vmul.f32 %v3884, 0.5
        %v4525 = vmul.f32 %v3885, 0.5
        %v4526 = vmul.f32 %v3886, 0.5
        %v4527 = vmul.f32 %v3887, 0.5
        %v4528 = vmul.f32 %v3888, 0.5
        %v4529 = vmul.f32 %v3889, 0.5
        %v4530 = vmul.f32 %v3890, 0.5
        %v4531 = vmul.f32 %v3891, 0.5
        %v4532 = vmul.f32 %v3892, 0.5
        %v4533 = vmul.f32 %v3893, 0.5
        %v4534 = vmul.f32 %v3894, 0.5
        %v4535 = vmul.f32 %v3895, 0.5
        %v4536 = vmul.f32 %v3896, 0.5
        %v4537 = vmul.f32 %v3897, 0.5
        %v4538 = vmul.f32 %v3898, 0.5
        %v4539 = vmul.f32 %v3899, 0.5
        %v4540 = vmul.f32 %v3900, 0.5
        %v4541 = vmul.f32 %v3901, 0.5
        %v4542 = vmul.f32 %v3902, 0.5
        %v4543 = vmul.f32 %v3903, 0.5
        %v4544 = vmul.f32 %v3904, 0.5
        %v4545 = vmul.f32 %v3905, 0.5
        %v4546 = vmul.f32 %v3906, 0.5
        %v4547 = vmul.f32 %v3907, 0.5
        %v4548 = vmul.f32 %v3908, 0.5
        %v4549 = vmul.f32 %v3909, 0.5
        %v4550 = vmul.f32 %v3910, 0.5
        %v4551 = vmul.f32 %v3911, 0.5
        %v4552 = vmul.f32 %v3912, 0.5
        %v4553 = vmul.f32 %v3913, 0.5
        %v4554 = vmul.f32 %v3914, 0.5
        %v4555 = vmul.f32 %v3915, 0.5
        %v4556 = vmul.f32 %v3916, 0.5
        %v4557 = vmul.f32 %v3917, 0.5
        %v4558 = vmul.f32 %v3918, 0.5
        %v4559 = vmul.f32 %v3919, 0.5
        %v4560 = vmul.f32 %v3920, 0.5
        %v4561 = vmul.f32 %v3921, 0.5
        %v4562 = vmul.f32 %v3922, 0.5
        %v4563 = vmul.f32 %v3923, 0.5
        %v4564 = vmul.f32 %v3924, 0.5
        %v4565 = vmul.f32 %v3925, 0.5
        %v4566 = vmul.f32 %v3926, 0.5
        %v4567 = vmul.f32 %v3927, 0.5
        %v4568 = vmul.f32 %v3928, 0.5
        %v4569 = vmul.f32 %v3929, 0.5
        %v4570 = vmul.f32 %v3930, 0.5
        %v4571 = vmul.f32 %v3931, 0.5
        %v4572 = vmul.f32 %v3932, 0.5
        %v4573 = vmul.f32 %v3933, 0.5
        %v4574 = vmul.f32 %v3934, 0.5
        %v4575 = vmul.f32 %v3935, 0.5
        %v4576 = vmul.f32 %v3936, 0.5
        %v4577 = vmul.f32 %v3937, 0.5
        %v4578 = vmul.f32 %v3938, 0.5
        %v4579 = vmul.f32 %v3939, 0.5
        %v4580 = vmul.f32 %v3940, 0.5
        %v4581 = vmul.f32 %v3941, 0.5
        %v4582 = vmul.f32 %v3942, 0.5
        %v4583 = vmul.f32 %v3943, 0.5
        %v4584 = vmul.f32 %v3944, 0.5
        %v4585 = vmul.f32 %v3945, 0.5
        %v4586 = vmul.f32 %v3946, 0.5
        %v4587 = vmul.f32 %v3947, 0.5
        %v4588 = vmul.f32 %v3948, 0.5
        %v4589 = vmul.f32 %v3949, 0.5
        %v4590 = vmul.f32 %v3950, 0.5
        %v4591 = vmul.f32 %v3951, 0.5
        %v4592 = vmul.f32 %v3952, 0.5
        %v4593 = vmul.f32 %v3953, 0.5
        %v4594 = vmul.f32 %v3954, 0.5
        %v4595 = vmul.f32 %v3955, 0.5
        %v4596 = vmul.f32 %v3956, 0.5
        %v4597 = vmul.f32 %v3957, 0.5
        %v4598 = vmul.f32 %v3958, 0.5
        %v4599 = vmul.f32 %v3959, 0.5
        %v4600 = vmul.f32 %v3960, 0.5
        %v4601 = vmul.f32 %v3961, 0.5
        %v4602 = vmul.f32 %v3962, 0.5
        %v4603 = vmul.f32 %v3963, 0.5
        %v4604 = vmul.f32 %v3964, 0.5
        %v4605 = vmul.f32 %v3965, 0.5
        %v4606 = vmul.f32 %v3966, 0.5
        %v4607 = vmul.f32 %v3967, 0.5
        %v4608 = vmul.f32 %v3968, 0.5
        %v4609 = vmul.f32 %v3969, 0.5
        %v4610 = vmul.f32 %v3970, 0.5
        %v4611 = vmul.f32 %v3971, 0.5
        %v4612 = vmul.f32 %v3972, 0.5
        %v4613 = vmul.f32 %v3973, 0.5
        %v4614 = vmul.f32 %v3974, 0.5
        %v4615 = vmul.f32 %v3975, 0.5
        %v4616 = vmul.f32 %v3976, 0.5
        %v4617 = vmul.f32 %v3977, 0.5
        %v4618 = vmul.f32 %v3978, 0.5
        %v4619 = vmul.f32 %v3979, 0.5
        %v4620 = vmul.f32 %v3980, 0.5
        %v4621 = vmul.f32 %v3981, 0.5
        %v4622 = vmul.f32 %v3982, 0.5
        %v4623 = vmul.f32 %v3983, 0.5
        %v4624 = vmul.f32 %v3984, 0.5
        %v4625 = vmul.f32 %v3985, 0.5
        %v4626 = vmul.f32 %v3986, 0.5
        %v4627 = vmul.f32 %v3987, 0.5
        %v4628 = vmul.f32 %v3988, 0.5
        %v4629 = vmul.f32 %v3989, 0.5
        %v4630 = vmul.f32 %v3990, 0.5
        %v4631 = vmul.f32 %v3991, 0.5
        %v4632 = vmul.f32 %v3992, 0.5
        %v4633 = vmul.f32 %v3993, 0.5
        %v4634 = vmul.f32 %v3994, 0.5
        %v4635 = vmul.f32 %v3995, 0.5
        %v4636 = vmul.f32 %v3996, 0.5
        %v4637 = vmul.f32 %v3997, 0.5
        %v4638 = vmul.f32 %v3998, 0.5
        %v4639 = vmul.f32 %v3999, 0.5
        %v4640 = vmul.f32 %v4000, 0.5
        %v4641 = vmul.f32 %v4001, 0.5
        %v4642 = vmul.f32 %v4002, 0.5
        %v4643 = vmul.f32 %v4003, 0.5
        %v4644 = vmul.f32 %v4004, 0.5
        %v4645 = vmul.f32 %v4005, 0.5
        %v4646 = vmul.f32 %v4006, 0.5
        %v4647 = vmul.f32 %v4007, 0.5
        %v4648 = vmul.f32 %v4008, 0.5
        %v4649 = vmul.f32 %v4009, 0.5
        %v4650 = vmul.f32 %v4010, 0.5
        %v4651 = vmul.f32 %v4011, 0.5
        %v4652 = vmul.f32 %v4012, 0.5
        %v4653 = vmul.f32 %v4013, 0.5
        %v4654 = vmul.f32 %v4014, 0.5
        %v4655 = vmul.f32 %v4015, 0.5
        %v4656 = vmul.f32 %v4016, 0.5
        %v4657 = vmul.f32 %v4017, 0.5
        %v4658 = vmul.f32 %v4018, 0.5
        %v4659 = vmul.f32 %v4019, 0.5
        %v4660 = vmul.f32 %v4020, 0.5
        %v4661 = vmul.f32 %v4021, 0.5
        %v4662 = vmul.f32 %v4022, 0.5
        %v4663 = vmul.f32 %v4023, 0.5
        %v4664 = vmul.f32 %v4024, 0.5
        %v4665 = vmul.f32 %v4025, 0.5
        %v4666 = vmul.f32 %v4026, 0.5
        %v4667 = vmul.f32 %v4027, 0.5
        %v4668 = vmul.f32 %v4028, 0.5
        %v4669 = vmul.f32 %v4029, 0.5
        %v4670 = vmul.f32 %v4030, 0.5
        %v4671 = vmul.f32 %v4031, 0.5
        %v4672 = vmul.f32 %v4032, 0.5
        %v4673 = vmul.f32 %v4033, 0.5
        %v4674 = vmul.f32 %v4034, 0.5
        %v4675 = vmul.f32 %v4035, 0.5
        %v4676 = vmul.f32 %v4036, 0.5
        %v4677 = vmul.f32 %v4037, 0.5
        %v4678 = vmul.f32 %v4038, 0.5
        %v4679 = vmul.f32 %v4039, 0.5
        %v4680 = vmul.f32 %v4040, 0.5
        %v4681 = vmul.f32 %v4041, 0.5
        %v4682 = vmul.f32 %v4042, 0.5
        %v4683 = vmul.f32 %v4043, 0.5
        %v4684 = vmul.f32 %v4044, 0.5
        %v4685 = vmul.f32 %v4045, 0.5
        %v4686 = vmul.f32 %v4046, 0.5
        %v4687 = vmul.f32 %v4047, 0.5
        %v4688 = vmul.f32 %v4048, 0.5
        %v4689 = vmul.f32 %v4049, 0.5
        %v4690 = vmul.f32 %v4050, 0.5
        %v4691 = vmul.f32 %v4051, 0.5
        %v4692 = vmul.f32 %v4052, 0.5
        %v4693 = vmul.f32 %v4053, 0.5
        %v4694 = vmul.f32 %v4054, 0.5
        %v4695 = vmul.f32 %v4055, 0.5
        %v4696 = vmul.f32 %v4056, 0.5
        %v4697 = vmul.f32 %v4057, 0.5
        %v4698 = vmul.f32 %v4058, 0.5
        %v4699 = vmul.f32 %v4059, 0.5
        %v4700 = vmul.f32 %v4060, 0.5
        %v4701 = vmul.f32 %v4061, 0.5
        %v4702 = vmul.f32 %v4062, 0.5
        %v4703 = vmul.f32 %v4063, 0.5
        %v4704 = vmul.f32 %v4064, 0.5
        %v4705 = vmul.f32 %v4065, 0.5
        %v4706 = vmul.f32 %v4066, 0.5
        %v4707 = vmul.f32 %v4067, 0.5
        %v4708 = vmul.f32 %v4068, 0.5
        %v4709 = vmul.f32 %v4069, 0.5
        %v4710 = vmul.f32 %v4070, 0.5
        %v4711 = vmul.f32 %v4071, 0.5
        %v4712 = vmul.f32 %v4072, 0.5
        %v4713 = vmul.f32 %v4073, 0.5
        %v4714 = vmul.f32 %v4074, 0.5
        %v4715 = vmul.f32 %v4075, 0.5
        %v4716 = vmul.f32 %v4076, 0.5
        %v4717 = vmul.f32 %v4077, 0.5
        %v4718 = vmul.f32 %v4078, 0.5
        %v4719 = vmul.f32 %v4079, 0.5
        %v4720 = vmul.f32 %v4080, 0.5
        %v4721 = vmul.f32 %v4081, 0.5
        %v4722 = vmul.f32 %v4082, 0.5
        %v4723 = vmul.f32 %v4083, 0.5
        %v4724 = vmul.f32 %v4084, 0.5
        %v4725 = vmul.f32 %v4085, 0.5
        %v4726 = vmul.f32 %v4086, 0.5
        %v4727 = vmul.f32 %v4087, 0.5
        %v4728 = vmul.f32 %v4088, 0.5
        %v4729 = vmul.f32 %v4089, 0.5
        %v4730 = vmul.f32 %v4090, 0.5
        %v4731 = vmul.f32 %v4091, 0.5
        %v4732 = vmul.f32 %v4092, 0.5
        %v4733 = vmul.f32 %v4093, 0.5
        %v4734 = vmul.f32 %v4094, 0.5
        %v4735 = vmul.f32 %v4095, 0.5
        %v4736 = vmul.f32 %v4096, 0.5
        %v4737 = vmul.f32 %v4097, 0.5
        %v4738 = vmul.f32 %v4098, 0.5
        %v4739 = vmul.f32 %v4099, 0.5
        %v4740 = vmul.f32 %v4100, 0.5
        %v4741 = vmul.f32 %v4101, 0.5
        %v4742 = vmul.f32 %v4102, 0.5
        %v4743 = vmul.f32 %v4103, 0.5
        %v4744 = vmul.f32 %v4104, 0.5
        %v4745 = vmul.f32 %v4105, 0.5
        %v4746 = vmul.f32 %v4106, 0.5
        %v4747 = vmul.f32 %v4107, 0.5
        %v4748 = vmul.f32 %v4108, 0.5
        %v4749 = vmul.f32 %v4109, 0.5
        %v4750 = vmul.f32 %v4110, 0.5
        %v4751 = vmul.f32 %v4111, 0.5
        %v4752 = vmul.f32 %v4112, 0.5
        %v4753 = vmul.f32 %v4113, 0.5
        %v4754 = vmul.f32 %v4114, 0.5
        %v4755 = vmul.f32 %v4115, 0.5
        %v4756 = vmul.f32 %v4116, 0.5
        %v4757 = vmul.f32 %v4117, 0.5
        %v4758 = vmul.f32 %v4118, 0.5
        %v4759 = vmul.f32 %v4119, 0.5
        %v4760 = vmul.f32 %v4120, 0.5
        %v4761 = vmul.f32 %v4121, 0.5
        %v4762 = vmul.f32 %v4122, 0.5
        %v4763 = vmul.f32 %v4123, 0.5
        %v4764 = vmul.f32 %v4124, 0.5
        %v4765 = vmul.f32 %v4125, 0.5
        %v4766 = vmul.f32 %v4126, 0.5
        %v4767 = vmul.f32 %v4127, 0.5
        %v4768 = vmul.f32 %v4128, 0.5
        %v4769 = vmul.f32 %v4129, 0.5
        %v4770 = vmul.f32 %v4130, 0.5
        %v4771 = vmul.f32 %v4131, 0.5
        %v4772 = vmul.f32 %v4132, 0.5
        %v4773 = vmul.f32 %v4133, 0.5
        %v4774 = vmul.f32 %v4134, 0.5
        %v4775 = vmul.f32 %v4135, 0.5
        %v4776 = vmul.f32 %v4136, 0.5
        %v4777 = vmul.f32 %v4137, 0.5
        %v4778 = vmul.f32 %v4138, 0.5
        %v4779 = vmul.f32 %v4139, 0.5
        %v4780 = vmul.f32 %v4140, 0.5
        %v4781 = vmul.f32 %v4141, 0.5
        %v4782 = vmul.f32 %v4142, 0.5
        %v4783 = vmul.f32 %v4143, 0.5
        %v4784 = vmul.f32 %v4144, 0.5
        %v4785 = vmul.f32 %v4145, 0.5
        %v4786 = vmul.f32 %v4146, 0.5
        %v4787 = vmul.f32 %v4147, 0.5
        %v4788 = vmul.f32 %v4148, 0.5
        %v4789 = vmul.f32 %v4149, 0.5
        %v4790 = vmul.f32 %v4150, 0.5
        %v4791 = vmul.f32 %v4151, 0.5
        %v4792 = vmul.f32 %v4152, 0.5
        %v4793 = vmul.f32 %v4153, 0.5
        %v4794 = vmul.f32 %v4154, 0.5
        %v4795 = vmul.f32 %v4155, 0.5
        %v4796 = vmul.f32 %v4156, 0.5
        %v4797 = vmul.f32 %v4157, 0.5
        %v4798 = vmul.f32 %v4158, 0.5
        %v4799 = vmul.f32 %v4159, 0.5
        %v4800 = vmul.f32 %v4160, 0.5
        %v4801 = vmul.f32 %v4161, 0.5
        %v4802 = vmul.f32 %v4162, 0.5
        %v4803 = vmul.f32 %v4163, 0.5
        %v4804 = vmul.f32 %v4164, 0.5
        %v4805 = vmul.f32 %v4165, 0.5
        %v4806 = vmul.f32 %v4166, 0.5
        %v4807 = vmul.f32 %v4167, 0.5
        %v4808 = vmul.f32 %v4168, 0.5
        %v4809 = vmul.f32 %v4169, 0.5
        %v4810 = vmul.f32 %v4170, 0.5
        %v4811 = vmul.f32 %v4171, 0.5
        %v4812 = vmul.f32 %v4172, 0.5
        %v4813 = vmul.f32 %v4173, 0.5
        %v4814 = vmul.f32 %v4174, 0.5
        %v4815 = vmul.f32 %v4175, 0.5
        %v4816 = vmul.f32 %v4176, 0.5
        %v4817 = vmul.f32 %v4177, 0.5
        %v4818 = vmul.f32 %v4178, 0.5
        %v4819 = vmul.f32 %v4179, 0.5
        %v4820 = vmul.f32 %v4180, 0.5
        %v4821 = vmul.f32 %v4181, 0.5
        %v4822 = vmul.f32 %v4182, 0.5
        %v4823 = vmul.f32 %v4183, 0.5
        %v4824 = vmul.f32 %v4184, 0.5
        %v4825 = vmul.f32 %v4185, 0.5
        %v4826 = vmul.f32 %v4186, 0.5
        %v4827 = vmul.f32 %v4187, 0.5
        %v4828 = vmul.f32 %v4188, 0.5
        %v4829 = vmul.f32 %v4189, 0.5
        %v4830 = vmul.f32 %v4190, 0.5
        %v4831 = vmul.f32 %v4191, 0.5
        %v4832 = vmul.f32 %v4192, 0.5
        %v4833 = vmul.f32 %v4193, 0.5
        %v4834 = vmul.f32 %v4194, 0.5
        %v4835 = vmul.f32 %v4195, 0.5
        %v4836 = vmul.f32 %v4196, 0.5
        %v4837 = vmul.f32 %v4197, 0.5
        %v4838 = vmul.f32 %v4198, 0.5
        %v4839 = vmul.f32 %v4199, 0.5
        %v4840 = vmul.f32 %v4200, 0.5
        %v4841 = vmul.f32 %v4201, 0.5
        %v4842 = vmul.f32 %v4202, 0.5
        %v4843 = vmul.f32 %v4203, 0.5
        %v4844 = vmul.f32 %v4204, 0.5
        %v4845 = vmul.f32 %v4205, 0.5
        %v4846 = vmul.f32 %v4206, 0.5
        %v4847 = vmul.f32 %v4207, 0.5
        %v4848 = vmul.f32 %v4208, 0.5
        %v4849 = vmul.f32 %v4209, 0.5
        %v4850 = vmul.f32 %v4210, 0.5
        %v4851 = vmul.f32 %v4211, 0.5
        %v4852 = vmul.f32 %v4212, 0.5
        %v4853 = vmul.f32 %v4213, 0.5
        %v4854 = vmul.f32 %v4214, 0.5
        %v4855 = vmul.f32 %v4215, 0.5
        %v4856 = vmul.f32 %v4216, 0.5
        %v4857 = vmul.f32 %v4217, 0.5
        %v4858 = vmul.f32 %v4218, 0.5
        %v4859 = vmul.f32 %v4219, 0.5
        %v4860 = vmul.f32 %v4220, 0.5
        %v4861 = vmul.f32 %v4221, 0.5
        %v4862 = vmul.f32 %v4222, 0.5
        %v4863 = vmul.f32 %v4223, 0.5
        %v4864 = vmul.f32 %v4224, 0.5
        %v4865 = vmul.f32 %v4225, 0.5
        %v4866 = vmul.f32 %v4226, 0.5
        %v4867 = vmul.f32 %v4227, 0.5
        %v4868 = vmul.f32 %v4228, 0.5
        %v4869 = vmul.f32 %v4229, 0.5
        %v4870 = vmul.f32 %v4230, 0.5
        %v4871 = vmul.f32 %v4231, 0.5
        %v4872 = vmul.f32 %v4232, 0.5
        %v4873 = vmul.f32 %v4233, 0.5
        %v4874 = vmul.f32 %v4234, 0.5
        %v4875 = vmul.f32 %v4235, 0.5
        %v4876 = vmul.f32 %v4236, 0.5
        %v4877 = vmul.f32 %v4237, 0.5
        %v4878 = vmul.f32 %v4238, 0.5
        %v4879 = vmul.f32 %v4239, 0.5
        %v4880 = vmul.f32 %v4240, 0.5
        %v4881 = vmul.f32 %v4241, 0.5
        %v4882 = vmul.f32 %v4242, 0.5
        %v4883 = vmul.f32 %v4243, 0.5
        %v4884 = vmul.f32 %v4244, 0.5
        %v4885 = vadd.f32 %v4245, 0.5
        %v4886 = vadd.f32 %v4246, 0.5
        %v4887 = vadd.f32 %v4247, 0.5
        %v4888 = vadd.f32 %v4248, 0.5
        %v4889 = vadd.f32 %v4249, 0.5
        %v4890 = vadd.f32 %v4250, 0.5
        %v4891 = vadd.f32 %v4251, 0.5
        %v4892 = vadd.f32 %v4252, 0.5
        %v4893 = vadd.f32 %v4253, 0.5
        %v4894 = vadd.f32 %v4254, 0.5
        %v4895 = vadd.f32 %v4255, 0.5
        %v4896 = vadd.f32 %v4256, 0.5
        %v4897 = vadd.f32 %v4257, 0.5
        %v4898 = vadd.f32 %v4258, 0.5
        %v4899 = vadd.f32 %v4259, 0.5
        %v4900 = vadd.f32 %v4260, 0.5
        %v4901 = vadd.f32 %v4261, 0.5
        %v4902 = vadd.f32 %v4262, 0.5
        %v4903 = vadd.f32 %v4263, 0.5
        %v4904 = vadd.f32 %v4264, 0.5
        %v4905 = vadd.f32 %v4265, 0.5
        %v4906 = vadd.f32 %v4266, 0.5
        %v4907 = vadd.f32 %v4267, 0.5
        %v4908 = vadd.f32 %v4268, 0.5
        %v4909 = vadd.f32 %v4269, 0.5
        %v4910 = vadd.f32 %v4270, 0.5
        %v4911 = vadd.f32 %v4271, 0.5
        %v4912 = vadd.f32 %v4272, 0.5
        %v4913 = vadd.f32 %v4273, 0.5
        %v4914 = vadd.f32 %v4274, 0.5
        %v4915 = vadd.f32 %v4275, 0.5
        %v4916 = vadd.f32 %v4276, 0.5
        %v4917 = vadd.f32 %v4277, 0.5
        %v4918 = vadd.f32 %v4278, 0.5
        %v4919 = vadd.f32 %v4279, 0.5
        %v4920 = vadd.f32 %v4280, 0.5
        %v4921 = vadd.f32 %v4281, 0.5
        %v4922 = vadd.f32 %v4282, 0.5
        %v4923 = vadd.f32 %v4283, 0.5
        %v4924 = vadd.f32 %v4284, 0.5
        %v4925 = vadd.f32 %v4285, 0.5
        %v4926 = vadd.f32 %v4286, 0.5
        %v4927 = vadd.f32 %v4287, 0.5
        %v4928 = vadd.f32 %v4288, 0.5
        %v4929 = vadd.f32 %v4289, 0.5
        %v4930 = vadd.f32 %v4290, 0.5
        %v4931 = vadd.f32 %v4291, 0.5
        %v4932 = vadd.f32 %v4292, 0.5
        %v4933 = vadd.f32 %v4293, 0.5
        %v4934 = vadd.f32 %v4294, 0.5
        %v4935 = vadd.f32 %v4295, 0.5
        %v4936 = vadd.f32 %v4296, 0.5
        %v4937 = vadd.f32 %v4297, 0.5
        %v4938 = vadd.f32 %v4298, 0.5
        %v4939 = vadd.f32 %v4299, 0.5
        %v4940 = vadd.f32 %v4300, 0.5
        %v4941 = vadd.f32 %v4301, 0.5
        %v4942 = vadd.f32 %v4302, 0.5
        %v4943 = vadd.f32 %v4303, 0.5
        %v4944 = vadd.f32 %v4304, 0.5
        %v4945 = vadd.f32 %v4305, 0.5
        %v4946 = vadd.f32 %v4306, 0.5
        %v4947 = vadd.f32 %v4307, 0.5
        %v4948 = vadd.f32 %v4308, 0.5
        %v4949 = vadd.f32 %v4309, 0.5
        %v4950 = vadd.f32 %v4310, 0.5
        %v4951 = vadd.f32 %v4311, 0.5
        %v4952 = vadd.f32 %v4312, 0.5
        %v4953 = vadd.f32 %v4313, 0.5
        %v4954 = vadd.f32 %v4314, 0.5
        %v4955 = vadd.f32 %v4315, 0.5
        %v4956 = vadd.f32 %v4316, 0.5
        %v4957 = vadd.f32 %v4317, 0.5
        %v4958 = vadd.f32 %v4318, 0.5
        %v4959 = vadd.f32 %v4319, 0.5
        %v4960 = vadd.f32 %v4320, 0.5
        %v4961 = vadd.f32 %v4321, 0.5
        %v4962 = vadd.f32 %v4322, 0.5
        %v4963 = vadd.f32 %v4323, 0.5
        %v4964 = vadd.f32 %v4324, 0.5
        %v4965 = vadd.f32 %v4325, 0.5
        %v4966 = vadd.f32 %v4326, 0.5
        %v4967 = vadd.f32 %v4327, 0.5
        %v4968 = vadd.f32 %v4328, 0.5
        %v4969 = vadd.f32 %v4329, 0.5
        %v4970 = vadd.f32 %v4330, 0.5
        %v4971 = vadd.f32 %v4331, 0.5
        %v4972 = vadd.f32 %v4332, 0.5
        %v4973 = vadd.f32 %v4333, 0.5
        %v4974 = vadd.f32 %v4334, 0.5
        %v4975 = vadd.f32 %v4335, 0.5
        %v4976 = vadd.f32 %v4336, 0.5
        %v4977 = vadd.f32 %v4337, 0.5
        %v4978 = vadd.f32 %v4338, 0.5
        %v4979 = vadd.f32 %v4339, 0.5
        %v4980 = vadd.f32 %v4340, 0.5
        %v4981 = vadd.f32 %v4341, 0.5
        %v4982 = vadd.f32 %v4342, 0.5
        %v4983 = vadd.f32 %v4343, 0.5
        %v4984 = vadd.f32 %v4344, 0.5
        %v4985 = vadd.f32 %v4345, 0.5
        %v4986 = vadd.f32 %v4346, 0.5
        %v4987 = vadd.f32 %v4347, 0.5
        %v4988 = vadd.f32 %v4348, 0.5
        %v4989 = vadd.f32 %v4349, 0.5
        %v4990 = vadd.f32 %v4350, 0.5
        %v4991 = vadd.f32 %v4351, 0.5
        %v4992 = vadd.f32 %v4352, 0.5
        %v4993 = vadd.f32 %v4353, 0.5
        %v4994 = vadd.f32 %v4354, 0.5
        %v4995 = vadd.f32 %v4355, 0.5
        %v4996 = vadd.f32 %v4356, 0.5
        %v4997 = vadd.f32 %v4357, 0.5
        %v4998 = vadd.f32 %v4358, 0.5
        %v4999 = vadd.f32 %v4359, 0.5
        %v5000 = vadd.f32 %v4360, 0.5
        %v5001 = vadd.f32 %v4361, 0.5
        %v5002 = vadd.f32 %v4362, 0.5
        %v5003 = vadd.f32 %v4363, 0.5
        %v5004 = vadd.f32 %v4364, 0.5
        %v5005 = vadd.f32 %v4365, 0.5
        %v5006 = vadd.f32 %v4366, 0.5
        %v5007 = vadd.f32 %v4367, 0.5
        %v5008 = vadd.f32 %v4368, 0.5
        %v5009 = vadd.f32 %v4369, 0.5
        %v5010 = vadd.f32 %v4370, 0.5
        %v5011 = vadd.f32 %v4371, 0.5
        %v5012 = vadd.f32 %v4372, 0.5
        %v5013 = vadd.f32 %v4373, 0.5
        %v5014 = vadd.f32 %v4374, 0.5
        %v5015 = vadd.f32 %v4375, 0.5
        %v5016 = vadd.f32 %v4376, 0.5
        %v5017 = vadd.f32 %v4377, 0.5
        %v5018 = vadd.f32 %v4378, 0.5
        %v5019 = vadd.f32 %v4379, 0.5
        %v5020 = vadd.f32 %v4380, 0.5
        %v5021 = vadd.f32 %v4381, 0.5
        %v5022 = vadd.f32 %v4382, 0.5
        %v5023 = vadd.f32 %v4383, 0.5
        %v5024 = vadd.f32 %v4384, 0.5
        %v5025 = vadd.f32 %v4385, 0.5
        %v5026 = vadd.f32 %v4386, 0.5
        %v5027 = vadd.f32 %v4387, 0.5
        %v5028 = vadd.f32 %v4388, 0.5
        %v5029 = vadd.f32 %v4389, 0.5
        %v5030 = vadd.f32 %v4390, 0.5
        %v5031 = vadd.f32 %v4391, 0.5
        %v5032 = vadd.f32 %v4392, 0.5
        %v5033 = vadd.f32 %v4393, 0.5
        %v5034 = vadd.f32 %v4394, 0.5
        %v5035 = vadd.f32 %v4395, 0.5
        %v5036 = vadd.f32 %v4396, 0.5
        %v5037 = vadd.f32 %v4397, 0.5
        %v5038 = vadd.f32 %v4398, 0.5
        %v5039 = vadd.f32 %v4399, 0.5
        %v5040 = vadd.f32 %v4400, 0.5
        %v5041 = vadd.f32 %v4401, 0.5
        %v5042 = vadd.f32 %v4402, 0.5
        %v5043 = vadd.f32 %v4403, 0.5
        %v5044 = vadd.f32 %v4404, 0.5
        %v5045 = vadd.f32 %v4405, 0.5
        %v5046 = vadd.f32 %v4406, 0.5
        %v5047 = vadd.f32 %v4407, 0.5
        %v5048 = vadd.f32 %v4408, 0.5
        %v5049 = vadd.f32 %v4409, 0.5
        %v5050 = vadd.f32 %v4410, 0.5
        %v5051 = vadd.f32 %v4411, 0.5
        %v5052 = vadd.f32 %v4412, 0.5
        %v5053 = vadd.f32 %v4413, 0.5
        %v5054 = vadd.f32 %v4414, 0.5
        %v5055 = vadd.f32 %v4415, 0.5
        %v5056 = vadd.f32 %v4416, 0.5
        %v5057 = vadd.f32 %v4417, 0.5
        %v5058 = vadd.f32 %v4418, 0.5
        %v5059 = vadd.f32 %v4419, 0.5
        %v5060 = vadd.f32 %v4420, 0.5
        %v5061 = vadd.f32 %v4421, 0.5
        %v5062 = vadd.f32 %v4422, 0.5
        %v5063 = vadd.f32 %v4423, 0.5
        %v5064 = vadd.f32 %v4424, 0.5
        %v5065 = vadd.f32 %v4425, 0.5
        %v5066 = vadd.f32 %v4426, 0.5
        %v5067 = vadd.f32 %v4427, 0.5
        %v5068 = vadd.f32 %v4428, 0.5
        %v5069 = vadd.f32 %v4429, 0.5
        %v5070 = vadd.f32 %v4430, 0.5
        %v5071 = vadd.f32 %v4431, 0.5
        %v5072 = vadd.f32 %v4432, 0.5
        %v5073 = vadd.f32 %v4433, 0.5
        %v5074 = vadd.f32 %v4434, 0.5
        %v5075 = vadd.f32 %v4435, 0.5
        %v5076 = vadd.f32 %v4436, 0.5
        %v5077 = vadd.f32 %v4437, 0.5
        %v5078 = vadd.f32 %v4438, 0.5
        %v5079 = vadd.f32 %v4439, 0.5
        %v5080 = vadd.f32 %v4440, 0.5
        %v5081 = vadd.f32 %v4441, 0.5
        %v5082 = vadd.f32 %v4442, 0.5
        %v5083 = vadd.f32 %v4443, 0.5
        %v5084 = vadd.f32 %v4444, 0.5
        %v5085 = vadd.f32 %v4445, 0.5
        %v5086 = vadd.f32 %v4446, 0.5
        %v5087 = vadd.f32 %v4447, 0.5
        %v5088 = vadd.f32 %v4448, 0.5
        %v5089 = vadd.f32 %v4449, 0.5
        %v5090 = vadd.f32 %v4450, 0.5
        %v5091 = vadd.f32 %v4451, 0.5
        %v5092 = vadd.f32 %v4452, 0.5
        %v5093 = vadd.f32 %v4453, 0.5
        %v5094 = vadd.f32 %v4454, 0.5
        %v5095 = vadd.f32 %v4455, 0.5
        %v5096 = vadd.f32 %v4456, 0.5
        %v5097 = vadd.f32 %v4457, 0.5
        %v5098 = vadd.f32 %v4458, 0.5
        %v5099 = vadd.f32 %v4459, 0.5
        %v5100 = vadd.f32 %v4460, 0.5
        %v5101 = vadd.f32 %v4461, 0.5
        %v5102 = vadd.f32 %v4462, 0.5
        %v5103 = vadd.f32 %v4463, 0.5
        %v5104 = vadd.f32 %v4464, 0.5
        %v5105 = vadd.f32 %v4465, 0.5
        %v5106 = vadd.f32 %v4466, 0.5
        %v5107 = vadd.f32 %v4467, 0.5
        %v5108 = vadd.f32 %v4468, 0.5
        %v5109 = vadd.f32 %v4469, 0.5
        %v5110 = vadd.f32 %v4470, 0.5
        %v5111 = vadd.f32 %v4471, 0.5
        %v5112 = vadd.f32 %v4472, 0.5
        %v5113 = vadd.f32 %v4473, 0.5
        %v5114 = vadd.f32 %v4474, 0.5
        %v5115 = vadd.f32 %v4475, 0.5
        %v5116 = vadd.f32 %v4476, 0.5
        %v5117 = vadd.f32 %v4477, 0.5
        %v5118 = vadd.f32 %v4478, 0.5
        %v5119 = vadd.f32 %v4479, 0.5
        %v5120 = vadd.f32 %v4480, 0.5
        %v5121 = vadd.f32 %v4481, 0.5
        %v5122 = vadd.f32 %v4482, 0.5
        %v5123 = vadd.f32 %v4483, 0.5
        %v5124 = vadd.f32 %v4484, 0.5
        %v5125 = vadd.f32 %v4485, 0.5
        %v5126 = vadd.f32 %v4486, 0.5
        %v5127 = vadd.f32 %v4487, 0.5
        %v5128 = vadd.f32 %v4488, 0.5
        %v5129 = vadd.f32 %v4489, 0.5
        %v5130 = vadd.f32 %v4490, 0.5
        %v5131 = vadd.f32 %v4491, 0.5
        %v5132 = vadd.f32 %v4492, 0.5
        %v5133 = vadd.f32 %v4493, 0.5
        %v5134 = vadd.f32 %v4494, 0.5
        %v5135 = vadd.f32 %v4495, 0.5
        %v5136 = vadd.f32 %v4496, 0.5
        %v5137 = vadd.f32 %v4497, 0.5
        %v5138 = vadd.f32 %v4498, 0.5
        %v5139 = vadd.f32 %v4499, 0.5
        %v5140 = vadd.f32 %v4500, 0.5
        %v5141 = vadd.f32 %v4501, 0.5
        %v5142 = vadd.f32 %v4502, 0.5
        %v5143 = vadd.f32 %v4503, 0.5
        %v5144 = vadd.f32 %v4504, 0.5
        %v5145 = vadd.f32 %v4505, 0.5
        %v5146 = vadd.f32 %v4506, 0.5
        %v5147 = vadd.f32 %v4507, 0.5
        %v5148 = vadd.f32 %v4508, 0.5
        %v5149 = vadd.f32 %v4509, 0.5
        %v5150 = vadd.f32 %v4510, 0.5
        %v5151 = vadd.f32 %v4511, 0.5
        %v5152 = vadd.f32 %v4512, 0.5
        %v5153 = vadd.f32 %v4513, 0.5
        %v5154 = vadd.f32 %v4514, 0.5
        %v5155 = vadd.f32 %v4515, 0.5
        %v5156 = vadd.f32 %v4516, 0.5
        %v5157 = vadd.f32 %v4517, 0.5
        %v5158 = vadd.f32 %v4518, 0.5
        %v5159 = vadd.f32 %v4519, 0.5
        %v5160 = vadd.f32 %v4520, 0.5
        %v5161 = vadd.f32 %v4521, 0.5
        %v5162 = vadd.f32 %v4522, 0.5
        %v5163 = vadd.f32 %v4523, 0.5
        %v5164 = vadd.f32 %v4524, 0.5
        %v5165 = vadd.f32 %v4525, 0.5
        %v5166 = vadd.f32 %v4526, 0.5
        %v5167 = vadd.f32 %v4527, 0.5
        %v5168 = vadd.f32 %v4528, 0.5
        %v5169 = vadd.f32 %v4529, 0.5
        %v5170 = vadd.f32 %v4530, 0.5
        %v5171 = vadd.f32 %v4531, 0.5
        %v5172 = vadd.f32 %v4532, 0.5
        %v5173 = vadd.f32 %v4533, 0.5
        %v5174 = vadd.f32 %v4534, 0.5
        %v5175 = vadd.f32 %v4535, 0.5
        %v5176 = vadd.f32 %v4536, 0.5
        %v5177 = vadd.f32 %v4537, 0.5
        %v5178 = vadd.f32 %v4538, 0.5
        %v5179 = vadd.f32 %v4539, 0.5
        %v5180 = vadd.f32 %v4540, 0.5
        %v5181 = vadd.f32 %v4541, 0.5
        %v5182 = vadd.f32 %v4542, 0.5
        %v5183 = vadd.f32 %v4543, 0.5
        %v5184 = vadd.f32 %v4544, 0.5
        %v5185 = vadd.f32 %v4545, 0.5
        %v5186 = vadd.f32 %v4546, 0.5
        %v5187 = vadd.f32 %v4547, 0.5
        %v5188 = vadd.f32 %v4548, 0.5
        %v5189 = vadd.f32 %v4549, 0.5
        %v5190 = vadd.f32 %v4550, 0.5
        %v5191 = vadd.f32 %v4551, 0.5
        %v5192 = vadd.f32 %v4552, 0.5
        %v5193 = vadd.f32 %v4553, 0.5
        %v5194 = vadd.f32 %v4554, 0.5
        %v5195 = vadd.f32 %v4555, 0.5
        %v5196 = vadd.f32 %v4556, 0.5
        %v5197 = vadd.f32 %v4557, 0.5
        %v5198 = vadd.f32 %v4558, 0.5
        %v5199 = vadd.f32 %v4559, 0.5
        %v5200 = vadd.f32 %v4560, 0.5
        %v5201 = vadd.f32 %v4561, 0.5
        %v5202 = vadd.f32 %v4562, 0.5
        %v5203 = vadd.f32 %v4563, 0.5
        %v5204 = vadd.f32 %v4564, 0.5
        %v5205 = vadd.f32 %v4565, 0.5
        %v5206 = vadd.f32 %v4566, 0.5
        %v5207 = vadd.f32 %v4567, 0.5
        %v5208 = vadd.f32 %v4568, 0.5
        %v5209 = vadd.f32 %v4569, 0.5
        %v5210 = vadd.f32 %v4570, 0.5
        %v5211 = vadd.f32 %v4571, 0.5
        %v5212 = vadd.f32 %v4572, 0.5
        %v5213 = vadd.f32 %v4573, 0.5
        %v5214 = vadd.f32 %v4574, 0.5
        %v5215 = vadd.f32 %v4575, 0.5
        %v5216 = vadd.f32 %v4576, 0.5
        %v5217 = vadd.f32 %v4577, 0.5
        %v5218 = vadd.f32 %v4578, 0.5
        %v5219 = vadd.f32 %v4579, 0.5
        %v5220 = vadd.f32 %v4580, 0.5
        %v5221 = vadd.f32 %v4581, 0.5
        %v5222 = vadd.f32 %v4582, 0.5
        %v5223 = vadd.f32 %v4583, 0.5
        %v5224 = vadd.f32 %v4584, 0.5
        %v5225 = vadd.f32 %v4585, 0.5
        %v5226 = vadd.f32 %v4586, 0.5
        %v5227 = vadd.f32 %v4587, 0.5
        %v5228 = vadd.f32 %v4588, 0.5
        %v5229 = vadd.f32 %v4589, 0.5
        %v5230 = vadd.f32 %v4590, 0.5
        %v5231 = vadd.f32 %v4591, 0.5
        %v5232 = vadd.f32 %v4592, 0.5
        %v5233 = vadd.f32 %v4593, 0.5
        %v5234 = vadd.f32 %v4594, 0.5
        %v5235 = vadd.f32 %v4595, 0.5
        %v5236 = vadd.f32 %v4596, 0.5
        %v5237 = vadd.f32 %v4597, 0.5
        %v5238 = vadd.f32 %v4598, 0.5
        %v5239 = vadd.f32 %v4599, 0.5
        %v5240 = vadd.f32 %v4600, 0.5
        %v5241 = vadd.f32 %v4601, 0.5
        %v5242 = vadd.f32 %v4602, 0.5
        %v5243 = vadd.f32 %v4603, 0.5
        %v5244 = vadd.f32 %v4604, 0.5
        %v5245 = vadd.f32 %v4605, 0.5
        %v5246 = vadd.f32 %v4606, 0.5
        %v5247 = vadd.f32 %v4607, 0.5
        %v5248 = vadd.f32 %v4608, 0.5
        %v5249 = vadd.f32 %v4609, 0.5
        %v5250 = vadd.f32 %v4610, 0.5
        %v5251 = vadd.f32 %v4611, 0.5
        %v5252 = vadd.f32 %v4612, 0.5
        %v5253 = vadd.f32 %v4613, 0.5
        %v5254 = vadd.f32 %v4614, 0.5
        %v5255 = vadd.f32 %v4615, 0.5
        %v5256 = vadd.f32 %v4616, 0.5
        %v5257 = vadd.f32 %v4617, 0.5
        %v5258 = vadd.f32 %v4618, 0.5
        %v5259 = vadd.f32 %v4619, 0.5
        %v5260 = vadd.f32 %v4620, 0.5
        %v5261 = vadd.f32 %v4621, 0.5
        %v5262 = vadd.f32 %v4622, 0.5
        %v5263 = vadd.f32 %v4623, 0.5
        %v5264 = vadd.f32 %v4624, 0.5
        %v5265 = vadd.f32 %v4625, 0.5
        %v5266 = vadd.f32 %v4626, 0.5
        %v5267 = vadd.f32 %v4627, 0.5
        %v5268 = vadd.f32 %v4628, 0.5
        %v5269 = vadd.f32 %v4629, 0.5
        %v5270 = vadd.f32 %v4630, 0.5
        %v5271 = vadd.f32 %v4631, 0.5
        %v5272 = vadd.f32 %v4632, 0.5
        %v5273 = vadd.f32 %v4633, 0.5
        %v5274 = vadd.f32 %v4634, 0.5
        %v5275 = vadd.f32 %v4635, 0.5
        %v5276 = vadd.f32 %v4636, 0.5
        %v5277 = vadd.f32 %v4637, 0.5
        %v5278 = vadd.f32 %v4638, 0.5
        %v5279 = vadd.f32 %v4639, 0.5
        %v5280 = vadd.f32 %v4640, 0.5
        %v5281 = vadd.f32 %v4641, 0.5
        %v5282 = vadd.f32 %v4642, 0.5
        %v5283 = vadd.f32 %v4643, 0.5
        %v5284 = vadd.f32 %v4644, 0.5
        %v5285 = vadd.f32 %v4645, 0.5
        %v5286 = vadd.f32 %v4646, 0.5
        %v5287 = vadd.f32 %v4647, 0.5
        %v5288 = vadd.f32 %v4648, 0.5
        %v5289 = vadd.f32 %v4649, 0.5
        %v5290 = vadd.f32 %v4650, 0.5
        %v5291 = vadd.f32 %v4651, 0.5
        %v5292 = vadd.f32 %v4652, 0.5
        %v5293 = vadd.f32 %v4653, 0.5
        %v5294 = vadd.f32 %v4654, 0.5
        %v5295 = vadd.f32 %v4655, 0.5
        %v5296 = vadd.f32 %v4656, 0.5
        %v5297 = vadd.f32 %v4657, 0.5
        %v5298 = vadd.f32 %v4658, 0.5
        %v5299 = vadd.f32 %v4659, 0.5
        %v5300 = vadd.f32 %v4660, 0.5
        %v5301 = vadd.f32 %v4661, 0.5
        %v5302 = vadd.f32 %v4662, 0.5
        %v5303 = vadd.f32 %v4663, 0.5
        %v5304 = vadd.f32 %v4664, 0.5
        %v5305 = vadd.f32 %v4665, 0.5
        %v5306 = vadd.f32 %v4666, 0.5
        %v5307 = vadd.f32 %v4667, 0.5
        %v5308 = vadd.f32 %v4668, 0.5
        %v5309 = vadd.f32 %v4669, 0.5
        %v5310 = vadd.f32 %v4670, 0.5
        %v5311 = vadd.f32 %v4671, 0.5
        %v5312 = vadd.f32 %v4672, 0.5
        %v5313 = vadd.f32 %v4673, 0.5
        %v5314 = vadd.f32 %v4674, 0.5
        %v5315 = vadd.f32 %v4675, 0.5
        %v5316 = vadd.f32 %v4676, 0.5
        %v5317 = vadd.f32 %v4677, 0.5
        %v5318 = vadd.f32 %v4678, 0.5
        %v5319 = vadd.f32 %v4679, 0.5
        %v5320 = vadd.f32 %v4680, 0.5
        %v5321 = vadd.f32 %v4681, 0.5
        %v5322 = vadd.f32 %v4682, 0.5
        %v5323 = vadd.f32 %v4683, 0.5
        %v5324 = vadd.f32 %v4684, 0.5
        %v5325 = vadd.f32 %v4685, 0.5
        %v5326 = vadd.f32 %v4686, 0.5
        %v5327 = vadd.f32 %v4687, 0.5
        %v5328 = vadd.f32 %v4688, 0.5
        %v5329 = vadd.f32 %v4689, 0.5
        %v5330 = vadd.f32 %v4690, 0.5
        %v5331 = vadd.f32 %v4691, 0.5
        %v5332 = vadd.f32 %v4692, 0.5
        %v5333 = vadd.f32 %v4693, 0.5
        %v5334 = vadd.f32 %v4694, 0.5
        %v5335 = vadd.f32 %v4695, 0.5
        %v5336 = vadd.f32 %v4696, 0.5
        %v5337 = vadd.f32 %v4697, 0.5
        %v5338 = vadd.f32 %v4698, 0.5
        %v5339 = vadd.f32 %v4699, 0.5
        %v5340 = vadd.f32 %v4700, 0.5
        %v5341 = vadd.f32 %v4701, 0.5
        %v5342 = vadd.f32 %v4702, 0.5
        %v5343 = vadd.f32 %v4703, 0.5
        %v5344 = vadd.f32 %v4704, 0.5
        %v5345 = vadd.f32 %v4705, 0.5
        %v5346 = vadd.f32 %v4706, 0.5
        %v5347 = vadd.f32 %v4707, 0.5
        %v5348 = vadd.f32 %v4708, 0.5
        %v5349 = vadd.f32 %v4709, 0.5
        %v5350 = vadd.f32 %v4710, 0.5
        %v5351 = vadd.f32 %v4711, 0.5
        %v5352 = vadd.f32 %v4712, 0.5
        %v5353 = vadd.f32 %v4713, 0.5
        %v5354 = vadd.f32 %v4714, 0.5
        %v5355 = vadd.f32 %v4715, 0.5
        %v5356 = vadd.f32 %v4716, 0.5
        %v5357 = vadd.f32 %v4717, 0.5
        %v5358 = vadd.f32 %v4718, 0.5
        %v5359 = vadd.f32 %v4719, 0.5
        %v5360 = vadd.f32 %v4720, 0.5
        %v5361 = vadd.f32 %v4721, 0.5
        %v5362 = vadd.f32 %v4722, 0.5
        %v5363 = vadd.f32 %v4723, 0.5
        %v5364 = vadd.f32 %v4724, 0.5
        %v5365 = vadd.f32 %v4725, 0.5
        %v5366 = vadd.f32 %v4726, 0.5
        %v5367 = vadd.f32 %v4727, 0.5
        %v5368 = vadd.f32 %v4728, 0.5
        %v5369 = vadd.f32 %v4729, 0.5
        %v5370 = vadd.f32 %v4730, 0.5
        %v5371 = vadd.f32 %v4731, 0.5
        %v5372 = vadd.f32 %v4732, 0.5
        %v5373 = vadd.f32 %v4733, 0.5
        %v5374 = vadd.f32 %v4734, 0.5
        %v5375 = vadd.f32 %v4735, 0.5
        %v5376 = vadd.f32 %v4736, 0.5
        %v5377 = vadd.f32 %v4737, 0.5
        %v5378 = vadd.f32 %v4738, 0.5
        %v5379 = vadd.f32 %v4739, 0.5
        %v5380 = vadd.f32 %v4740, 0.5
        %v5381 = vadd.f32 %v4741, 0.5
        %v5382 = vadd.f32 %v4742, 0.5
        %v5383 = vadd.f32 %v4743, 0.5
        %v5384 = vadd.f32 %v4744, 0.5
        %v5385 = vadd.f32 %v4745, 0.5
        %v5386 = vadd.f32 %v4746, 0.5
        %v5387 = vadd.f32 %v4747, 0.5
        %v5388 = vadd.f32 %v4748, 0.5
        %v5389 = vadd.f32 %v4749, 0.5
        %v5390 = vadd.f32 %v4750, 0.5
        %v5391 = vadd.f32 %v4751, 0.5
        %v5392 = vadd.f32 %v4752, 0.5
        %v5393 = vadd.f32 %v4753, 0.5
        %v5394 = vadd.f32 %v4754, 0.5
        %v5395 = vadd.f32 %v4755, 0.5
        %v5396 = vadd.f32 %v4756, 0.5
        %v5397 = vadd.f32 %v4757, 0.5
        %v5398 = vadd.f32 %v4758, 0.5
        %v5399 = vadd.f32 %v4759, 0.5
        %v5400 = vadd.f32 %v4760, 0.5
        %v5401 = vadd.f32 %v4761, 0.5
        %v5402 = vadd.f32 %v4762, 0.5
        %v5403 = vadd.f32 %v4763, 0.5
        %v5404 = vadd.f32 %v4764, 0.5
        %v5405 = vadd.f32 %v4765, 0.5
        %v5406 = vadd.f32 %v4766, 0.5
        %v5407 = vadd.f32 %v4767, 0.5
        %v5408 = vadd.f32 %v4768, 0.5
        %v5409 = vadd.f32 %v4769, 0.5
        %v5410 = vadd.f32 %v4770, 0.5
        %v5411 = vadd.f32 %v4771, 0.5
        %v5412 = vadd.f32 %v4772, 0.5
        %v5413 = vadd.f32 %v4773, 0.5
        %v5414 = vadd.f32 %v4774, 0.5
        %v5415 = vadd.f32 %v4775, 0.5
        %v5416 = vadd.f32 %v4776, 0.5
        %v5417 = vadd.f32 %v4777, 0.5
        %v5418 = vadd.f32 %v4778, 0.5
        %v5419 = vadd.f32 %v4779, 0.5
        %v5420 = vadd.f32 %v4780, 0.5
        %v5421 = vadd.f32 %v4781, 0.5
        %v5422 = vadd.f32 %v4782, 0.5
        %v5423 = vadd.f32 %v4783, 0.5
        %v5424 = vadd.f32 %v4784, 0.5
        %v5425 = vadd.f32 %v4785, 0.5
        %v5426 = vadd.f32 %v4786, 0.5
        %v5427 = vadd.f32 %v4787, 0.5
        %v5428 = vadd.f32 %v4788, 0.5
        %v5429 = vadd.f32 %v4789, 0.5
        %v5430 = vadd.f32 %v4790, 0.5
        %v5431 = vadd.f32 %v4791, 0.5
        %v5432 = vadd.f32 %v4792, 0.5
        %v5433 = vadd.f32 %v4793, 0.5
        %v5434 = vadd.f32 %v4794, 0.5
        %v5435 = vadd.f32 %v4795, 0.5
        %v5436 = vadd.f32 %v4796, 0.5
        %v5437 = vadd.f32 %v4797, 0.5
        %v5438 = vadd.f32 %v4798, 0.5
        %v5439 = vadd.f32 %v4799, 0.5
        %v5440 = vadd.f32 %v4800, 0.5
        %v5441 = vadd.f32 %v4801, 0.5
        %v5442 = vadd.f32 %v4802, 0.5
        %v5443 = vadd.f32 %v4803, 0.5
        %v5444 = vadd.f32 %v4804, 0.5
        %v5445 = vadd.f32 %v4805, 0.5
        %v5446 = vadd.f32 %v4806, 0.5
        %v5447 = vadd.f32 %v4807, 0.5
        %v5448 = vadd.f32 %v4808, 0.5
        %v5449 = vadd.f32 %v4809, 0.5
        %v5450 = vadd.f32 %v4810, 0.5
        %v5451 = vadd.f32 %v4811, 0.5
        %v5452 = vadd.f32 %v4812, 0.5
        %v5453 = vadd.f32 %v4813, 0.5
        %v5454 = vadd.f32 %v4814, 0.5
        %v5455 = vadd.f32 %v4815, 0.5
        %v5456 = vadd.f32 %v4816, 0.5
        %v5457 = vadd.f32 %v4817, 0.5
        %v5458 = vadd.f32 %v4818, 0.5
        %v5459 = vadd.f32 %v4819, 0.5
        %v5460 = vadd.f32 %v4820, 0.5
        %v5461 = vadd.f32 %v4821, 0.5
        %v5462 = vadd.f32 %v4822, 0.5
        %v5463 = vadd.f32 %v4823, 0.5
        %v5464 = vadd.f32 %v4824, 0.5
        %v5465 = vadd.f32 %v4825, 0.5
        %v5466 = vadd.f32 %v4826, 0.5
        %v5467 = vadd.f32 %v4827, 0.5
        %v5468 = vadd.f32 %v4828, 0.5
        %v5469 = vadd.f32 %v4829, 0.5
        %v5470 = vadd.f32 %v4830, 0.5
        %v5471 = vadd.f32 %v4831, 0.5
        %v5472 = vadd.f32 %v4832, 0.5
        %v5473 = vadd.f32 %v4833, 0.5
        %v5474 = vadd.f32 %v4834, 0.5
        %v5475 = vadd.f32 %v4835, 0.5
        %v5476 = vadd.f32 %v4836, 0.5
        %v5477 = vadd.f32 %v4837, 0.5
        %v5478 = vadd.f32 %v4838, 0.5
        %v5479 = vadd.f32 %v4839, 0.5
        %v5480 = vadd.f32 %v4840, 0.5
        %v5481 = vadd.f32 %v4841, 0.5
        %v5482 = vadd.f32 %v4842, 0.5
        %v5483 = vadd.f32 %v4843, 0.5
        %v5484 = vadd.f32 %v4844, 0.5
        %v5485 = vadd.f32 %v4845, 0.5
        %v5486 = vadd.f32 %v4846, 0.5
        %v5487 = vadd.f32 %v4847, 0.5
        %v5488 = vadd.f32 %v4848, 0.5
        %v5489 = vadd.f32 %v4849, 0.5
        %v5490 = vadd.f32 %v4850, 0.5
        %v5491 = vadd.f32 %v4851, 0.5
        %v5492 = vadd.f32 %v4852, 0.5
        %v5493 = vadd.f32 %v4853, 0.5
        %v5494 = vadd.f32 %v4854, 0.5
        %v5495 = vadd.f32 %v4855, 0.5
        %v5496 = vadd.f32 %v4856, 0.5
        %v5497 = vadd.f32 %v4857, 0.5
        %v5498 = vadd.f32 %v4858, 0.5
        %v5499 = vadd.f32 %v4859, 0.5
        %v5500 = vadd.f32 %v4860, 0.5
        %v5501 = vadd.f32 %v4861, 0.5
        %v5502 = vadd.f32 %v4862, 0.5
        %v5503 = vadd.f32 %v4863, 0.5
        %v5504 = vadd.f32 %v4864, 0.5
        %v5505 = vadd.f32 %v4865, 0.5
        %v5506 = vadd.f32 %v4866, 0.5
        %v5507 = vadd.f32 %v4867, 0.5
        %v5508 = vadd.f32 %v4868, 0.5
        %v5509 = vadd.f32 %v4869, 0.5
        %v5510 = vadd.f32 %v4870, 0.5
        %v5511 = vadd.f32 %v4871, 0.5
        %v5512 = vadd.f32 %v4872, 0.5
        %v5513 = vadd.f32 %v4873, 0.5
        %v5514 = vadd.f32 %v4874, 0.5
        %v5515 = vadd.f32 %v4875, 0.5
        %v5516 = vadd.f32 %v4876, 0.5
        %v5517 = vadd.f32 %v4877, 0.5
        %v5518 = vadd.f32 %v4878, 0.5
        %v5519 = vadd.f32 %v4879, 0.5
        %v5520 = vadd.f32 %v4880, 0.5
        %v5521 = vadd.f32 %v4881, 0.5
        %v5522 = vadd.f32 %v4882, 0.5
        %v5523 = vadd.f32 %v4883, 0.5
        %v5524 = vadd.f32 %v4884, 0.5
        %v5525 = vmul.f32 %v1235, %v4885
        %v5526 = vmul.f32 %v1237, %v4886
        %v5527 = vmul.f32 %v1588, %v4887
        %v5528 = vmul.f32 %v1590, %v4888
        %v5529 = vmul.f32 %v1941, %v4889
        %v5530 = vmul.f32 %v1943, %v4890
        %v5531 = vmul.f32 %v2294, %v4891
        %v5532 = vmul.f32 %v2296, %v4892
        %v5533 = vmul.f32 %v2647, %v4893
        %v5534 = vmul.f32 %v2649, %v4894
        %v5535 = vmul.f32 %v1239, %v4895
        %v5536 = vmul.f32 %v1241, %v4896
        %v5537 = vmul.f32 %v1592, %v4897
        %v5538 = vmul.f32 %v1594, %v4898
        %v5539 = vmul.f32 %v1945, %v4899
        %v5540 = vmul.f32 %v1947, %v4900
        %v5541 = vmul.f32 %v2298, %v4901
        %v5542 = vmul.f32 %v2300, %v4902
        %v5543 = vmul.f32 %v2651, %v4903
        %v5544 = vmul.f32 %v2653, %v4904
        %v5545 = vmul.f32 %v1245, %v4905
        %v5546 = vmul.f32 %v1247, %v4906
        %v5547 = vmul.f32 %v1598, %v4907
        %v5548 = vmul.f32 %v1600, %v4908
        %v5549 = vmul.f32 %v1951, %v4909
        %v5550 = vmul.f32 %v1953, %v4910
        %v5551 = vmul.f32 %v2304, %v4911
        %v5552 = vmul.f32 %v2306, %v4912
        %v5553 = vmul.f32 %v2657, %v4913
        %v5554 = vmul.f32 %v2659, %v4914
        %v5555 = vmul.f32 %v1249, %v4915
        %v5556 = vmul.f32 %v1251, %v4916
        %v5557 = vmul.f32 %v1602, %v4917
        %v5558 = vmul.f32 %v1604, %v4918
        %v5559 = vmul.f32 %v1955, %v4919
        %v5560 = vmul.f32 %v1957, %v4920
        %v5561 = vmul.f32 %v2308, %v4921
        %v5562 = vmul.f32 %v2310, %v4922
        %v5563 = vmul.f32 %v2661, %v4923
        %v5564 = vmul.f32 %v2663, %v4924
        %v5565 = vmul.f32 %v1255, %v4925
        %v5566 = vmul.f32 %v1257, %v4926
        %v5567 = vmul.f32 %v1608, %v4927
        %v5568 = vmul.f32 %v1610, %v4928
        %v5569 = vmul.f32 %v1961, %v4929
        %v5570 = vmul.f32 %v1963, %v4930
        %v5571 = vmul.f32 %v2314, %v4931
        %v5572 = vmul.f32 %v2316, %v4932
        %v5573 = vmul.f32 %v2667, %v4933
        %v5574 = vmul.f32 %v2669, %v4934
        %v5575 = vmul.f32 %v1259, %v4935
        %v5576 = vmul.f32 %v1261, %v4936
        %v5577 = vmul.f32 %v1612, %v4937
        %v5578 = vmul.f32 %v1614, %v4938
        %v5579 = vmul.f32 %v1965, %v4939
        %v5580 = vmul.f32 %v1967, %v4940
        %v5581 = vmul.f32 %v2318, %v4941
        %v5582 = vmul.f32 %v2320, %v4942
        %v5583 = vmul.f32 %v2671, %v4943
        %v5584 = vmul.f32 %v2673, %v4944
        %v5585 = vmul.f32 %v1265, %v4945
        %v5586 = vmul.f32 %v1267, %v4946
        %v5587 = vmul.f32 %v1618, %v4947
        %v5588 = vmul.f32 %v1620, %v4948
        %v5589 = vmul.f32 %v1971, %v4949
        %v5590 = vmul.f32 %v1973, %v4950
        %v5591 = vmul.f32 %v2324, %v4951
        %v5592 = vmul.f32 %v2326, %v4952
        %v5593 = vmul.f32 %v2677, %v4953
        %v5594 = vmul.f32 %v2679, %v4954
        %v5595 = vmul.f32 %v1269, %v4955
        %v5596 = vmul.f32 %v1271, %v4956
        %v5597 = vmul.f32 %v1622, %v4957
        %v5598 = vmul.f32 %v1624, %v4958
        %v5599 = vmul.f32 %v1975, %v4959
        %v5600 = vmul.f32 %v1977, %v4960
        %v5601 = vmul.f32 %v2328, %v4961
        %v5602 = vmul.f32 %v2330, %v4962
        %v5603 = vmul.f32 %v2681, %v4963
        %v5604 = vmul.f32 %v2683, %v4964
        %v5605 = vmul.f32 %v1275, %v4965
        %v5606 = vmul.f32 %v1277, %v4966
        %v5607 = vmul.f32 %v1628, %v4967
        %v5608 = vmul.f32 %v1630, %v4968
        %v5609 = vmul.f32 %v1981, %v4969
        %v5610 = vmul.f32 %v1983, %v4970
        %v5611 = vmul.f32 %v2334, %v4971
        %v5612 = vmul.f32 %v2336, %v4972
        %v5613 = vmul.f32 %v2687, %v4973
        %v5614 = vmul.f32 %v2689, %v4974
        %v5615 = vmul.f32 %v1279, %v4975
        %v5616 = vmul.f32 %v1281, %v4976
        %v5617 = vmul.f32 %v1632, %v4977
        %v5618 = vmul.f32 %v1634, %v4978
        %v5619 = vmul.f32 %v1985, %v4979
        %v5620 = vmul.f32 %v1987, %v4980
        %v5621 = vmul.f32 %v2338, %v4981
        %v5622 = vmul.f32 %v2340, %v4982
        %v5623 = vmul.f32 %v2691, %v4983
        %v5624 = vmul.f32 %v2693, %v4984
        %v5625 = vmul.f32 %v1285, %v4985
        %v5626 = vmul.f32 %v1287, %v4986
        %v5627 = vmul.f32 %v1638, %v4987
        %v5628 = vmul.f32 %v1640, %v4988
        %v5629 = vmul.f32 %v1991, %v4989
        %v5630 = vmul.f32 %v1993, %v4990
        %v5631 = vmul.f32 %v2344, %v4991
        %v5632 = vmul.f32 %v2346, %v4992
        %v5633 = vmul.f32 %v2697, %v4993
        %v5634 = vmul.f32 %v2699, %v4994
        %v5635 = vmul.f32 %v1289, %v4995
        %v5636 = vmul.f32 %v1291, %v4996
        %v5637 = vmul.f32 %v1642, %v4997
        %v5638 = vmul.f32 %v1644, %v4998
        %v5639 = vmul.f32 %v1995, %v4999
        %v5640 = vmul.f32 %v1997, %v5000
        %v5641 = vmul.f32 %v2348, %v5001
        %v5642 = vmul.f32 %v2350, %v5002
        %v5643 = vmul.f32 %v2701, %v5003
        %v5644 = vmul.f32 %v2703, %v5004
        %v5645 = vmul.f32 %v1295, %v5005
        %v5646 = vmul.f32 %v1297, %v5006
        %v5647 = vmul.f32 %v1648, %v5007
        %v5648 = vmul.f32 %v1650, %v5008
        %v5649 = vmul.f32 %v2001, %v5009
        %v5650 = vmul.f32 %v2003, %v5010
        %v5651 = vmul.f32 %v2354, %v5011
        %v5652 = vmul.f32 %v2356, %v5012
        %v5653 = vmul.f32 %v2707, %v5013
        %v5654 = vmul.f32 %v2709, %v5014
        %v5655 = vmul.f32 %v1299, %v5015
        %v5656 = vmul.f32 %v1301, %v5016
        %v5657 = vmul.f32 %v1652, %v5017
        %v5658 = vmul.f32 %v1654, %v5018
        %v5659 = vmul.f32 %v2005, %v5019
        %v5660 = vmul.f32 %v2007, %v5020
        %v5661 = vmul.f32 %v2358, %v5021
        %v5662 = vmul.f32 %v2360, %v5022
        %v5663 = vmul.f32 %v2711, %v5023
        %v5664 = vmul.f32 %v2713, %v5024
        %v5665 = vmul.f32 %v1305, %v5025
        %v5666 = vmul.f32 %v1307, %v5026
        %v5667 = vmul.f32 %v1658, %v5027
        %v5668 = vmul.f32 %v1660, %v5028
        %v5669 = vmul.f32 %v2011, %v5029
        %v5670 = vmul.f32 %v2013, %v5030
        %v5671 = vmul.f32 %v2364, %v5031
        %v5672 = vmul.f32 %v2366, %v5032
        %v5673 = vmul.f32 %v2717, %v5033
        %v5674 = vmul.f32 %v2719, %v5034
        %v5675 = vmul.f32 %v1309, %v5035
        %v5676 = vmul.f32 %v1311, %v5036
        %v5677 = vmul.f32 %v1662, %v5037
        %v5678 = vmul.f32 %v1664, %v5038
        %v5679 = vmul.f32 %v2015, %v5039
        %v5680 = vmul.f32 %v2017, %v5040
        %v5681 = vmul.f32 %v2368, %v5041
        %v5682 = vmul.f32 %v2370, %v5042
        %v5683 = vmul.f32 %v2721, %v5043
        %v5684 = vmul.f32 %v2723, %v5044
        %v5685 = vmul.f32 %v1315, %v5045
        %v5686 = vmul.f32 %v1317, %v5046
        %v5687 = vmul.f32 %v1668, %v5047
        %v5688 = vmul.f32 %v1670, %v5048
        %v5689 = vmul.f32 %v2021, %v5049
        %v5690 = vmul.f32 %v2023, %v5050
        %v5691 = vmul.f32 %v2374, %v5051
        %v5692 = vmul.f32 %v2376, %v5052
        %v5693 = vmul.f32 %v2727, %v5053
        %v5694 = vmul.f32 %v2729, %v5054
        %v5695 = vmul.f32 %v1319, %v5055
        %v5696 = vmul.f32 %v1321, %v5056
        %v5697 = vmul.f32 %v1672, %v5057
        %v5698 = vmul.f32 %v1674, %v5058
        %v5699 = vmul.f32 %v2025, %v5059
        %v5700 = vmul.f32 %v2027, %v5060
        %v5701 = vmul.f32 %v2378, %v5061
        %v5702 = vmul.f32 %v2380, %v5062
        %v5703 = vmul.f32 %v2731, %v5063
        %v5704 = vmul.f32 %v2733, %v5064
        %v5705 = vmul.f32 %v1325, %v5065
        %v5706 = vmul.f32 %v1327, %v5066
        %v5707 = vmul.f32 %v1678, %v5067
        %v5708 = vmul.f32 %v1680, %v5068
        %v5709 = vmul.f32 %v2031, %v5069
        %v5710 = vmul.f32 %v2033, %v5070
        %v5711 = vmul.f32 %v2384, %v5071
        %v5712 = vmul.f32 %v2386, %v5072
        %v5713 = vmul.f32 %v2737, %v5073
        %v5714 = vmul.f32 %v2739, %v5074
        %v5715 = vmul.f32 %v1329, %v5075
        %v5716 = vmul.f32 %v1331, %v5076
        %v5717 = vmul.f32 %v1682, %v5077
        %v5718 = vmul.f32 %v1684, %v5078
        %v5719 = vmul.f32 %v2035, %v5079
        %v5720 = vmul.f32 %v2037, %v5080
        %v5721 = vmul.f32 %v2388, %v5081
        %v5722 = vmul.f32 %v2390, %v5082
        %v5723 = vmul.f32 %v2741, %v5083
        %v5724 = vmul.f32 %v2743, %v5084
        %v5725 = vmul.f32 %v1335, %v5085
        %v5726 = vmul.f32 %v1337, %v5086
        %v5727 = vmul.f32 %v1688, %v5087
        %v5728 = vmul.f32 %v1690, %v5088
        %v5729 = vmul.f32 %v2041, %v5089
        %v5730 = vmul.f32 %v2043, %v5090
        %v5731 = vmul.f32 %v2394, %v5091
        %v5732 = vmul.f32 %v2396, %v5092
        %v5733 = vmul.f32 %v2747, %v5093
        %v5734 = vmul.f32 %v2749, %v5094
        %v5735 = vmul.f32 %v1339, %v5095
        %v5736 = vmul.f32 %v1341, %v5096
        %v5737 = vmul.f32 %v1692, %v5097
        %v5738 = vmul.f32 %v1694, %v5098
        %v5739 = vmul.f32 %v2045, %v5099
        %v5740 = vmul.f32 %v2047, %v5100
        %v5741 = vmul.f32 %v2398, %v5101
        %v5742 = vmul.f32 %v2400, %v5102
        %v5743 = vmul.f32 %v2751, %v5103
        %v5744 = vmul.f32 %v2753, %v5104
        %v5745 = vmul.f32 %v1345, %v5105
        %v5746 = vmul.f32 %v1347, %v5106
        %v5747 = vmul.f32 %v1698, %v5107
        %v5748 = vmul.f32 %v1700, %v5108
        %v5749 = vmul.f32 %v2051, %v5109
        %v5750 = vmul.f32 %v2053, %v5110
        %v5751 = vmul.f32 %v2404, %v5111
        %v5752 = vmul.f32 %v2406, %v5112
        %v5753 = vmul.f32 %v2757, %v5113
        %v5754 = vmul.f32 %v2759, %v5114
        %v5755 = vmul.f32 %v1349, %v5115
        %v5756 = vmul.f32 %v1351, %v5116
        %v5757 = vmul.f32 %v1702, %v5117
        %v5758 = vmul.f32 %v1704, %v5118
        %v5759 = vmul.f32 %v2055, %v5119
        %v5760 = vmul.f32 %v2057, %v5120
        %v5761 = vmul.f32 %v2408, %v5121
        %v5762 = vmul.f32 %v2410, %v5122
        %v5763 = vmul.f32 %v2761, %v5123
        %v5764 = vmul.f32 %v2763, %v5124
        %v5765 = vmul.f32 %v1355, %v5125
        %v5766 = vmul.f32 %v1357, %v5126
        %v5767 = vmul.f32 %v1708, %v5127
        %v5768 = vmul.f32 %v1710, %v5128
        %v5769 = vmul.f32 %v2061, %v5129
        %v5770 = vmul.f32 %v2063, %v5130
        %v5771 = vmul.f32 %v2414, %v5131
        %v5772 = vmul.f32 %v2416, %v5132
        %v5773 = vmul.f32 %v2767, %v5133
        %v5774 = vmul.f32 %v2769, %v5134
        %v5775 = vmul.f32 %v1359, %v5135
        %v5776 = vmul.f32 %v1361, %v5136
        %v5777 = vmul.f32 %v1712, %v5137
        %v5778 = vmul.f32 %v1714, %v5138
        %v5779 = vmul.f32 %v2065, %v5139
        %v5780 = vmul.f32 %v2067, %v5140
        %v5781 = vmul.f32 %v2418, %v5141
        %v5782 = vmul.f32 %v2420, %v5142
        %v5783 = vmul.f32 %v2771, %v5143
        %v5784 = vmul.f32 %v2773, %v5144
        %v5785 = vmul.f32 %v1365, %v5145
        %v5786 = vmul.f32 %v1367, %v5146
        %v5787 = vmul.f32 %v1718, %v5147
        %v5788 = vmul.f32 %v1720, %v5148
        %v5789 = vmul.f32 %v2071, %v5149
        %v5790 = vmul.f32 %v2073, %v5150
        %v5791 = vmul.f32 %v2424, %v5151
        %v5792 = vmul.f32 %v2426, %v5152
        %v5793 = vmul.f32 %v2777, %v5153
        %v5794 = vmul.f32 %v2779, %v5154
        %v5795 = vmul.f32 %v1369, %v5155
        %v5796 = vmul.f32 %v1371, %v5156
        %v5797 = vmul.f32 %v1722, %v5157
        %v5798 = vmul.f32 %v1724, %v5158
        %v5799 = vmul.f32 %v2075, %v5159
        %v5800 = vmul.f32 %v2077, %v5160
        %v5801 = vmul.f32 %v2428, %v5161
        %v5802 = vmul.f32 %v2430, %v5162
        %v5803 = vmul.f32 %v2781, %v5163
        %v5804 = vmul.f32 %v2783, %v5164
        %v5805 = vmul.f32 %v1375, %v5165
        %v5806 = vmul.f32 %v1377, %v5166
        %v5807 = vmul.f32 %v1728, %v5167
        %v5808 = vmul.f32 %v1730, %v5168
        %v5809 = vmul.f32 %v2081, %v5169
        %v5810 = vmul.f32 %v2083, %v5170
        %v5811 = vmul.f32 %v2434, %v5171
        %v5812 = vmul.f32 %v2436, %v5172
        %v5813 = vmul.f32 %v2787, %v5173
        %v5814 = vmul.f32 %v2789, %v5174
        %v5815 = vmul.f32 %v1379, %v5175
        %v5816 = vmul.f32 %v1381, %v5176
        %v5817 = vmul.f32 %v1732, %v5177
        %v5818 = vmul.f32 %v1734, %v5178
        %v5819 = vmul.f32 %v2085, %v5179
        %v5820 = vmul.f32 %v2087, %v5180
        %v5821 = vmul.f32 %v2438, %v5181
        %v5822 = vmul.f32 %v2440, %v5182
        %v5823 = vmul.f32 %v2791, %v5183
        %v5824 = vmul.f32 %v2793, %v5184
        %v5825 = vmul.f32 %v1385, %v5185
        %v5826 = vmul.f32 %v1387, %v5186
        %v5827 = vmul.f32 %v1738, %v5187
        %v5828 = vmul.f32 %v1740, %v5188
        %v5829 = vmul.f32 %v2091, %v5189
        %v5830 = vmul.f32 %v2093, %v5190
        %v5831 = vmul.f32 %v2444, %v5191
        %v5832 = vmul.f32 %v2446, %v5192
        %v5833 = vmul.f32 %v2797, %v5193
        %v5834 = vmul.f32 %v2799, %v5194
        %v5835 = vmul.f32 %v1389, %v5195
        %v5836 = vmul.f32 %v1391, %v5196
        %v5837 = vmul.f32 %v1742, %v5197
        %v5838 = vmul.f32 %v1744, %v5198
        %v5839 = vmul.f32 %v2095, %v5199
        %v5840 = vmul.f32 %v2097, %v5200
        %v5841 = vmul.f32 %v2448, %v5201
        %v5842 = vmul.f32 %v2450, %v5202
        %v5843 = vmul.f32 %v2801, %v5203
        %v5844 = vmul.f32 %v2803, %v5204
        %v5845 = vmul.f32 %v1395, %v5205
        %v5846 = vmul.f32 %v1397, %v5206
        %v5847 = vmul.f32 %v1748, %v5207
        %v5848 = vmul.f32 %v1750, %v5208
        %v5849 = vmul.f32 %v2101, %v5209
        %v5850 = vmul.f32 %v2103, %v5210
        %v5851 = vmul.f32 %v2454, %v5211
        %v5852 = vmul.f32 %v2456, %v5212
        %v5853 = vmul.f32 %v2807, %v5213
        %v5854 = vmul.f32 %v2809, %v5214
        %v5855 = vmul.f32 %v1399, %v5215
        %v5856 = vmul.f32 %v1401, %v5216
        %v5857 = vmul.f32 %v1752, %v5217
        %v5858 = vmul.f32 %v1754, %v5218
        %v5859 = vmul.f32 %v2105, %v5219
        %v5860 = vmul.f32 %v2107, %v5220
        %v5861 = vmul.f32 %v2458, %v5221
        %v5862 = vmul.f32 %v2460, %v5222
        %v5863 = vmul.f32 %v2811, %v5223
        %v5864 = vmul.f32 %v2813, %v5224
        %v5865 = vmul.f32 %v1405, %v5225
        %v5866 = vmul.f32 %v1407, %v5226
        %v5867 = vmul.f32 %v1758, %v5227
        %v5868 = vmul.f32 %v1760, %v5228
        %v5869 = vmul.f32 %v2111, %v5229
        %v5870 = vmul.f32 %v2113, %v5230
        %v5871 = vmul.f32 %v2464, %v5231
        %v5872 = vmul.f32 %v2466, %v5232
        %v5873 = vmul.f32 %v2817, %v5233
        %v5874 = vmul.f32 %v2819, %v5234
        %v5875 = vmul.f32 %v1409, %v5235
        %v5876 = vmul.f32 %v1411, %v5236
        %v5877 = vmul.f32 %v1762, %v5237
        %v5878 = vmul.f32 %v1764, %v5238
        %v5879 = vmul.f32 %v2115, %v5239
        %v5880 = vmul.f32 %v2117, %v5240
        %v5881 = vmul.f32 %v2468, %v5241
        %v5882 = vmul.f32 %v2470, %v5242
        %v5883 = vmul.f32 %v2821, %v5243
        %v5884 = vmul.f32 %v2823, %v5244
        %v5885 = vmul.f32 %v1415, %v5245
        %v5886 = vmul.f32 %v1417, %v5246
        %v5887 = vmul.f32 %v1768, %v5247
        %v5888 = vmul.f32 %v1770, %v5248
        %v5889 = vmul.f32 %v2121, %v5249
        %v5890 = vmul.f32 %v2123, %v5250
        %v5891 = vmul.f32 %v2474, %v5251
        %v5892 = vmul.f32 %v2476, %v5252
        %v5893 = vmul.f32 %v2827, %v5253
        %v5894 = vmul.f32 %v2829, %v5254
        %v5895 = vmul.f32 %v1419, %v5255
        %v5896 = vmul.f32 %v1421, %v5256
        %v5897 = vmul.f32 %v1772, %v5257
        %v5898 = vmul.f32 %v1774, %v5258
        %v5899 = vmul.f32 %v2125, %v5259
        %v5900 = vmul.f32 %v2127, %v5260
        %v5901 = vmul.f32 %v2478, %v5261
        %v5902 = vmul.f32 %v2480, %v5262
        %v5903 = vmul.f32 %v2831, %v5263
        %v5904 = vmul.f32 %v2833, %v5264
        %v5905 = vmul.f32 %v1425, %v5265
        %v5906 = vmul.f32 %v1427, %v5266
        %v5907 = vmul.f32 %v1778, %v5267
        %v5908 = vmul.f32 %v1780, %v5268
        %v5909 = vmul.f32 %v2131, %v5269
        %v5910 = vmul.f32 %v2133, %v5270
        %v5911 = vmul.f32 %v2484, %v5271
        %v5912 = vmul.f32 %v2486, %v5272
        %v5913 = vmul.f32 %v2837, %v5273
        %v5914 = vmul.f32 %v2839, %v5274
        %v5915 = vmul.f32 %v1429, %v5275
        %v5916 = vmul.f32 %v1431, %v5276
        %v5917 = vmul.f32 %v1782, %v5277
        %v5918 = vmul.f32 %v1784, %v5278
        %v5919 = vmul.f32 %v2135, %v5279
        %v5920 = vmul.f32 %v2137, %v5280
        %v5921 = vmul.f32 %v2488, %v5281
        %v5922 = vmul.f32 %v2490, %v5282
        %v5923 = vmul.f32 %v2841, %v5283
        %v5924 = vmul.f32 %v2843, %v5284
        %v5925 = vmul.f32 %v1435, %v5285
        %v5926 = vmul.f32 %v1437, %v5286
        %v5927 = vmul.f32 %v1788, %v5287
        %v5928 = vmul.f32 %v1790, %v5288
        %v5929 = vmul.f32 %v2141, %v5289
        %v5930 = vmul.f32 %v2143, %v5290
        %v5931 = vmul.f32 %v2494, %v5291
        %v5932 = vmul.f32 %v2496, %v5292
        %v5933 = vmul.f32 %v2847, %v5293
        %v5934 = vmul.f32 %v2849, %v5294
        %v5935 = vmul.f32 %v1439, %v5295
        %v5936 = vmul.f32 %v1441, %v5296
        %v5937 = vmul.f32 %v1792, %v5297
        %v5938 = vmul.f32 %v1794, %v5298
        %v5939 = vmul.f32 %v2145, %v5299
        %v5940 = vmul.f32 %v2147, %v5300
        %v5941 = vmul.f32 %v2498, %v5301
        %v5942 = vmul.f32 %v2500, %v5302
        %v5943 = vmul.f32 %v2851, %v5303
        %v5944 = vmul.f32 %v2853, %v5304
        %v5945 = vmul.f32 %v1445, %v5305
        %v5946 = vmul.f32 %v1447, %v5306
        %v5947 = vmul.f32 %v1798, %v5307
        %v5948 = vmul.f32 %v1800, %v5308
        %v5949 = vmul.f32 %v2151, %v5309
        %v5950 = vmul.f32 %v2153, %v5310
        %v5951 = vmul.f32 %v2504, %v5311
        %v5952 = vmul.f32 %v2506, %v5312
        %v5953 = vmul.f32 %v2857, %v5313
        %v5954 = vmul.f32 %v2859, %v5314
        %v5955 = vmul.f32 %v1449, %v5315
        %v5956 = vmul.f32 %v1451, %v5316
        %v5957 = vmul.f32 %v1802, %v5317
        %v5958 = vmul.f32 %v1804, %v5318
        %v5959 = vmul.f32 %v2155, %v5319
        %v5960 = vmul.f32 %v2157, %v5320
        %v5961 = vmul.f32 %v2508, %v5321
        %v5962 = vmul.f32 %v2510, %v5322
        %v5963 = vmul.f32 %v2861, %v5323
        %v5964 = vmul.f32 %v2863, %v5324
        %v5965 = vmul.f32 %v1455, %v5325
        %v5966 = vmul.f32 %v1457, %v5326
        %v5967 = vmul.f32 %v1808, %v5327
        %v5968 = vmul.f32 %v1810, %v5328
        %v5969 = vmul.f32 %v2161, %v5329
        %v5970 = vmul.f32 %v2163, %v5330
        %v5971 = vmul.f32 %v2514, %v5331
        %v5972 = vmul.f32 %v2516, %v5332
        %v5973 = vmul.f32 %v2867, %v5333
        %v5974 = vmul.f32 %v2869, %v5334
        %v5975 = vmul.f32 %v1459, %v5335
        %v5976 = vmul.f32 %v1461, %v5336
        %v5977 = vmul.f32 %v1812, %v5337
        %v5978 = vmul.f32 %v1814, %v5338
        %v5979 = vmul.f32 %v2165, %v5339
        %v5980 = vmul.f32 %v2167, %v5340
        %v5981 = vmul.f32 %v2518, %v5341
        %v5982 = vmul.f32 %v2520, %v5342
        %v5983 = vmul.f32 %v2871, %v5343
        %v5984 = vmul.f32 %v2873, %v5344
        %v5985 = vmul.f32 %v1465, %v5345
        %v5986 = vmul.f32 %v1467, %v5346
        %v5987 = vmul.f32 %v1818, %v5347
        %v5988 = vmul.f32 %v1820, %v5348
        %v5989 = vmul.f32 %v2171, %v5349
        %v5990 = vmul.f32 %v2173, %v5350
        %v5991 = vmul.f32 %v2524, %v5351
        %v5992 = vmul.f32 %v2526, %v5352
        %v5993 = vmul.f32 %v2877, %v5353
        %v5994 = vmul.f32 %v2879, %v5354
        %v5995 = vmul.f32 %v1469, %v5355
        %v5996 = vmul.f32 %v1471, %v5356
        %v5997 = vmul.f32 %v1822, %v5357
        %v5998 = vmul.f32 %v1824, %v5358
        %v5999 = vmul.f32 %v2175, %v5359
        %v6000 = vmul.f32 %v2177, %v5360
        %v6001 = vmul.f32 %v2528, %v5361
        %v6002 = vmul.f32 %v2530, %v5362
        %v6003 = vmul.f32 %v2881, %v5363
        %v6004 = vmul.f32 %v2883, %v5364
        %v6005 = vmul.f32 %v1475, %v5365
        %v6006 = vmul.f32 %v1477, %v5366
        %v6007 = vmul.f32 %v1828, %v5367
        %v6008 = vmul.f32 %v1830, %v5368
        %v6009 = vmul.f32 %v2181, %v5369
        %v6010 = vmul.f32 %v2183, %v5370
        %v6011 = vmul.f32 %v2534, %v5371
        %v6012 = vmul.f32 %v2536, %v5372
        %v6013 = vmul.f32 %v2887, %v5373
        %v6014 = vmul.f32 %v2889, %v5374
        %v6015 = vmul.f32 %v1479, %v5375
        %v6016 = vmul.f32 %v1481, %v5376
        %v6017 = vmul.f32 %v1832, %v5377
        %v6018 = vmul.f32 %v1834, %v5378
        %v6019 = vmul.f32 %v2185, %v5379
        %v6020 = vmul.f32 %v2187, %v5380
        %v6021 = vmul.f32 %v2538, %v5381
        %v6022 = vmul.f32 %v2540, %v5382
        %v6023 = vmul.f32 %v2891, %v5383
        %v6024 = vmul.f32 %v2893, %v5384
        %v6025 = vmul.f32 %v1485, %v5385
        %v6026 = vmul.f32 %v1487, %v5386
        %v6027 = vmul.f32 %v1838, %v5387
        %v6028 = vmul.f32 %v1840, %v5388
        %v6029 = vmul.f32 %v2191, %v5389
        %v6030 = vmul.f32 %v2193, %v5390
        %v6031 = vmul.f32 %v2544, %v5391
        %v6032 = vmul.f32 %v2546, %v5392
        %v6033 = vmul.f32 %v2897, %v5393
        %v6034 = vmul.f32 %v2899, %v5394
        %v6035 = vmul.f32 %v1489, %v5395
        %v6036 = vmul.f32 %v1491, %v5396
        %v6037 = vmul.f32 %v1842, %v5397
        %v6038 = vmul.f32 %v1844, %v5398
        %v6039 = vmul.f32 %v2195, %v5399
        %v6040 = vmul.f32 %v2197, %v5400
        %v6041 = vmul.f32 %v2548, %v5401
        %v6042 = vmul.f32 %v2550, %v5402
        %v6043 = vmul.f32 %v2901, %v5403
        %v6044 = vmul.f32 %v2903, %v5404
        %v6045 = vmul.f32 %v1495, %v5405
        %v6046 = vmul.f32 %v1497, %v5406
        %v6047 = vmul.f32 %v1848, %v5407
        %v6048 = vmul.f32 %v1850, %v5408
        %v6049 = vmul.f32 %v2201, %v5409
        %v6050 = vmul.f32 %v2203, %v5410
        %v6051 = vmul.f32 %v2554, %v5411
        %v6052 = vmul.f32 %v2556, %v5412
        %v6053 = vmul.f32 %v2907, %v5413
        %v6054 = vmul.f32 %v2909, %v5414
        %v6055 = vmul.f32 %v1499, %v5415
        %v6056 = vmul.f32 %v1501, %v5416
        %v6057 = vmul.f32 %v1852, %v5417
        %v6058 = vmul.f32 %v1854, %v5418
        %v6059 = vmul.f32 %v2205, %v5419
        %v6060 = vmul.f32 %v2207, %v5420
        %v6061 = vmul.f32 %v2558, %v5421
        %v6062 = vmul.f32 %v2560, %v5422
        %v6063 = vmul.f32 %v2911, %v5423
        %v6064 = vmul.f32 %v2913, %v5424
        %v6065 = vmul.f32 %v1505, %v5425
        %v6066 = vmul.f32 %v1507, %v5426
        %v6067 = vmul.f32 %v1858, %v5427
        %v6068 = vmul.f32 %v1860, %v5428
        %v6069 = vmul.f32 %v2211, %v5429
        %v6070 = vmul.f32 %v2213, %v5430
        %v6071 = vmul.f32 %v2564, %v5431
        %v6072 = vmul.f32 %v2566, %v5432
        %v6073 = vmul.f32 %v2917, %v5433
        %v6074 = vmul.f32 %v2919, %v5434
        %v6075 = vmul.f32 %v1509, %v5435
        %v6076 = vmul.f32 %v1511, %v5436
        %v6077 = vmul.f32 %v1862, %v5437
        %v6078 = vmul.f32 %v1864, %v5438
        %v6079 = vmul.f32 %v2215, %v5439
        %v6080 = vmul.f32 %v2217, %v5440
        %v6081 = vmul.f32 %v2568, %v5441
        %v6082 = vmul.f32 %v2570, %v5442
        %v6083 = vmul.f32 %v2921, %v5443
        %v6084 = vmul.f32 %v2923, %v5444
        %v6085 = vmul.f32 %v1515, %v5445
        %v6086 = vmul.f32 %v1517, %v5446
        %v6087 = vmul.f32 %v1868, %v5447
        %v6088 = vmul.f32 %v1870, %v5448
        %v6089 = vmul.f32 %v2221, %v5449
        %v6090 = vmul.f32 %v2223, %v5450
        %v6091 = vmul.f32 %v2574, %v5451
        %v6092 = vmul.f32 %v2576, %v5452
        %v6093 = vmul.f32 %v2927, %v5453
        %v6094 = vmul.f32 %v2929, %v5454
        %v6095 = vmul.f32 %v1519, %v5455
        %v6096 = vmul.f32 %v1521, %v5456
        %v6097 = vmul.f32 %v1872, %v5457
        %v6098 = vmul.f32 %v1874, %v5458
        %v6099 = vmul.f32 %v2225, %v5459
        %v6100 = vmul.f32 %v2227, %v5460
        %v6101 = vmul.f32 %v2578, %v5461
        %v6102 = vmul.f32 %v2580, %v5462
        %v6103 = vmul.f32 %v2931, %v5463
        %v6104 = vmul.f32 %v2933, %v5464
        %v6105 = vmul.f32 %v1525, %v5465
        %v6106 = vmul.f32 %v1527, %v5466
        %v6107 = vmul.f32 %v1878, %v5467
        %v6108 = vmul.f32 %v1880, %v5468
        %v6109 = vmul.f32 %v2231, %v5469
        %v6110 = vmul.f32 %v2233, %v5470
        %v6111 = vmul.f32 %v2584, %v5471
        %v6112 = vmul.f32 %v2586, %v5472
        %v6113 = vmul.f32 %v2937, %v5473
        %v6114 = vmul.f32 %v2939, %v5474
        %v6115 = vmul.f32 %v1529, %v5475
        %v6116 = vmul.f32 %v1531, %v5476
        %v6117 = vmul.f32 %v1882, %v5477
        %v6118 = vmul.f32 %v1884, %v5478
        %v6119 = vmul.f32 %v2235, %v5479
        %v6120 = vmul.f32 %v2237, %v5480
        %v6121 = vmul.f32 %v2588, %v5481
        %v6122 = vmul.f32 %v2590, %v5482
        %v6123 = vmul.f32 %v2941, %v5483
        %v6124 = vmul.f32 %v2943, %v5484
        %v6125 = vmul.f32 %v1535, %v5485
        %v6126 = vmul.f32 %v1537, %v5486
        %v6127 = vmul.f32 %v1888, %v5487
        %v6128 = vmul.f32 %v1890, %v5488
        %v6129 = vmul.f32 %v2241, %v5489
        %v6130 = vmul.f32 %v2243, %v5490
        %v6131 = vmul.f32 %v2594, %v5491
        %v6132 = vmul.f32 %v2596, %v5492
        %v6133 = vmul.f32 %v2947, %v5493
        %v6134 = vmul.f32 %v2949, %v5494
        %v6135 = vmul.f32 %v1539, %v5495
        %v6136 = vmul.f32 %v1541, %v5496
        %v6137 = vmul.f32 %v1892, %v5497
        %v6138 = vmul.f32 %v1894, %v5498
        %v6139 = vmul.f32 %v2245, %v5499
        %v6140 = vmul.f32 %v2247, %v5500
        %v6141 = vmul.f32 %v2598, %v5501
        %v6142 = vmul.f32 %v2600, %v5502
        %v6143 = vmul.f32 %v2951, %v5503
        %v6144 = vmul.f32 %v2953, %v5504
        %v6145 = vmul.f32 %v1545, %v5505
        %v6146 = vmul.f32 %v1547, %v5506
        %v6147 = vmul.f32 %v1898, %v5507
        %v6148 = vmul.f32 %v1900, %v5508
        %v6149 = vmul.f32 %v2251, %v5509
        %v6150 = vmul.f32 %v2253, %v5510
        %v6151 = vmul.f32 %v2604, %v5511
        %v6152 = vmul.f32 %v2606, %v5512
        %v6153 = vmul.f32 %v2957, %v5513
        %v6154 = vmul.f32 %v2959, %v5514
        %v6155 = vmul.f32 %v1549, %v5515
        %v6156 = vmul.f32 %v1551, %v5516
        %v6157 = vmul.f32 %v1902, %v5517
        %v6158 = vmul.f32 %v1904, %v5518
        %v6159 = vmul.f32 %v2255, %v5519
        %v6160 = vmul.f32 %v2257, %v5520
        %v6161 = vmul.f32 %v2608, %v5521
        %v6162 = vmul.f32 %v2610, %v5522
        %v6163 = vmul.f32 %v2961, %v5523
        %v6164 = vmul.f32 %v2963, %v5524
        %v6165 = vld [vmem:[#allocation2] sm:$0xff]
        %v6166 = vld [vmem:[#allocation2 + $0x8] sm:$0xff]
        %v6167 = vld [vmem:[#allocation2 + $0x10] sm:$0xf]
        %v6168 = vadd.f32 %v5525, %v5535
        %v6169 = vadd.f32 %v6168, %v5545
        %v6170 = vadd.f32 %v6169, %v5555
        %v6171 = vadd.f32 %v6170, %v5565
        %v6172 = vadd.f32 %v6171, %v5575
        %v6173 = vadd.f32 %v6172, %v5585
        %v6174 = vadd.f32 %v6173, %v5595
        %v6175 = vadd.f32 %v6174, %v5605
        %v6176 = vadd.f32 %v6175, %v5615
        %v6177 = vadd.f32 %v6176, %v5625
        %v6178 = vadd.f32 %v6177, %v5635
        %v6179 = vadd.f32 %v6178, %v5645
        %v6180 = vadd.f32 %v6179, %v5655
        %v6181 = vadd.f32 %v6180, %v5665
        %v6182 = vadd.f32 %v6181, %v5675
        %v6183 = vadd.f32 %v6182, %v5685
        %v6184 = vadd.f32 %v6183, %v5695
        %v6185 = vadd.f32 %v6184, %v5705
        %v6186 = vadd.f32 %v6185, %v5715
        %v6187 = vadd.f32 %v6186, %v5725
        %v6188 = vadd.f32 %v6187, %v5735
        %v6189 = vadd.f32 %v6188, %v5745
        %v6190 = vadd.f32 %v6189, %v5755
        %v6191 = vadd.f32 %v6190, %v5765
        %v6192 = vadd.f32 %v6191, %v5775
        %v6193 = vadd.f32 %v6192, %v5785
        %v6194 = vadd.f32 %v6193, %v5795
        %v6195 = vadd.f32 %v6194, %v5805
        %v6196 = vadd.f32 %v6195, %v5815
        %v6197 = vadd.f32 %v6196, %v5825
        %v6198 = vadd.f32 %v6197, %v5835
        %v6199 = vrot.slane %v6198, 4
        %v6200 = vadd.f32 %v6198, %v6199
        %v6201 = vrot.slane %v6200, 2
        %v6202 = vadd.f32 %v6200, %v6201
        %v6203 = vrot.slane %v6202, 1
        %v6204 = vadd.f32 %v6202, %v6203
        %v6205 = vadd.f32 %v5526, %v5536
        %v6206 = vadd.f32 %v6205, %v5546
        %v6207 = vadd.f32 %v6206, %v5556
        %v6208 = vadd.f32 %v6207, %v5566
        %v6209 = vadd.f32 %v6208, %v5576
        %v6210 = vadd.f32 %v6209, %v5586
        %v6211 = vadd.f32 %v6210, %v5596
        %v6212 = vadd.f32 %v6211, %v5606
        %v6213 = vadd.f32 %v6212, %v5616
        %v6214 = vadd.f32 %v6213, %v5626
        %v6215 = vadd.f32 %v6214, %v5636
        %v6216 = vadd.f32 %v6215, %v5646
        %v6217 = vadd.f32 %v6216, %v5656
        %v6218 = vadd.f32 %v6217, %v5666
        %v6219 = vadd.f32 %v6218, %v5676
        %v6220 = vadd.f32 %v6219, %v5686
        %v6221 = vadd.f32 %v6220, %v5696
        %v6222 = vadd.f32 %v6221, %v5706
        %v6223 = vadd.f32 %v6222, %v5716
        %v6224 = vadd.f32 %v6223, %v5726
        %v6225 = vadd.f32 %v6224, %v5736
        %v6226 = vadd.f32 %v6225, %v5746
        %v6227 = vadd.f32 %v6226, %v5756
        %v6228 = vadd.f32 %v6227, %v5766
        %v6229 = vadd.f32 %v6228, %v5776
        %v6230 = vadd.f32 %v6229, %v5786
        %v6231 = vadd.f32 %v6230, %v5796
        %v6232 = vadd.f32 %v6231, %v5806
        %v6233 = vadd.f32 %v6232, %v5816
        %v6234 = vadd.f32 %v6233, %v5826
        %v6235 = vadd.f32 %v6234, %v5836
        %v6236 = vrot.slane %v6235, 4
        %v6237 = vadd.f32 %v6235, %v6236
        %v6238 = vrot.slane %v6237, 2
        %v6239 = vadd.f32 %v6237, %v6238
        %v6240 = vrot.slane %v6239, 1
        %v6241 = vadd.f32 %v6239, %v6240
        %v6242 = vadd.f32 %v5527, %v5537
        %v6243 = vadd.f32 %v6242, %v5547
        %v6244 = vadd.f32 %v6243, %v5557
        %v6245 = vadd.f32 %v6244, %v5567
        %v6246 = vadd.f32 %v6245, %v5577
        %v6247 = vadd.f32 %v6246, %v5587
        %v6248 = vadd.f32 %v6247, %v5597
        %v6249 = vadd.f32 %v6248, %v5607
        %v6250 = vadd.f32 %v6249, %v5617
        %v6251 = vadd.f32 %v6250, %v5627
        %v6252 = vadd.f32 %v6251, %v5637
        %v6253 = vadd.f32 %v6252, %v5647
        %v6254 = vadd.f32 %v6253, %v5657
        %v6255 = vadd.f32 %v6254, %v5667
        %v6256 = vadd.f32 %v6255, %v5677
        %v6257 = vadd.f32 %v6256, %v5687
        %v6258 = vadd.f32 %v6257, %v5697
        %v6259 = vadd.f32 %v6258, %v5707
        %v6260 = vadd.f32 %v6259, %v5717
        %v6261 = vadd.f32 %v6260, %v5727
        %v6262 = vadd.f32 %v6261, %v5737
        %v6263 = vadd.f32 %v6262, %v5747
        %v6264 = vadd.f32 %v6263, %v5757
        %v6265 = vadd.f32 %v6264, %v5767
        %v6266 = vadd.f32 %v6265, %v5777
        %v6267 = vadd.f32 %v6266, %v5787
        %v6268 = vadd.f32 %v6267, %v5797
        %v6269 = vadd.f32 %v6268, %v5807
        %v6270 = vadd.f32 %v6269, %v5817
        %v6271 = vadd.f32 %v6270, %v5827
        %v6272 = vadd.f32 %v6271, %v5837
        %v6273 = vrot.slane %v6272, 4
        %v6274 = vadd.f32 %v6272, %v6273
        %v6275 = vrot.slane %v6274, 2
        %v6276 = vadd.f32 %v6274, %v6275
        %v6277 = vrot.slane %v6276, 1
        %v6278 = vadd.f32 %v6276, %v6277
        %v6279 = vadd.f32 %v5528, %v5538
        %v6280 = vadd.f32 %v6279, %v5548
        %v6281 = vadd.f32 %v6280, %v5558
        %v6282 = vadd.f32 %v6281, %v5568
        %v6283 = vadd.f32 %v6282, %v5578
        %v6284 = vadd.f32 %v6283, %v5588
        %v6285 = vadd.f32 %v6284, %v5598
        %v6286 = vadd.f32 %v6285, %v5608
        %v6287 = vadd.f32 %v6286, %v5618
        %v6288 = vadd.f32 %v6287, %v5628
        %v6289 = vadd.f32 %v6288, %v5638
        %v6290 = vadd.f32 %v6289, %v5648
        %v6291 = vadd.f32 %v6290, %v5658
        %v6292 = vadd.f32 %v6291, %v5668
        %v6293 = vadd.f32 %v6292, %v5678
        %v6294 = vadd.f32 %v6293, %v5688
        %v6295 = vadd.f32 %v6294, %v5698
        %v6296 = vadd.f32 %v6295, %v5708
        %v6297 = vadd.f32 %v6296, %v5718
        %v6298 = vadd.f32 %v6297, %v5728
        %v6299 = vadd.f32 %v6298, %v5738
        %v6300 = vadd.f32 %v6299, %v5748
        %v6301 = vadd.f32 %v6300, %v5758
        %v6302 = vadd.f32 %v6301, %v5768
        %v6303 = vadd.f32 %v6302, %v5778
        %v6304 = vadd.f32 %v6303, %v5788
        %v6305 = vadd.f32 %v6304, %v5798
        %v6306 = vadd.f32 %v6305, %v5808
        %v6307 = vadd.f32 %v6306, %v5818
        %v6308 = vadd.f32 %v6307, %v5828
        %v6309 = vadd.f32 %v6308, %v5838
        %v6310 = vrot.slane %v6309, 4
        %v6311 = vadd.f32 %v6309, %v6310
        %v6312 = vrot.slane %v6311, 2
        %v6313 = vadd.f32 %v6311, %v6312
        %v6314 = vrot.slane %v6313, 1
        %v6315 = vadd.f32 %v6313, %v6314
        %v6316 = vadd.f32 %v5529, %v5539
        %v6317 = vadd.f32 %v6316, %v5549
        %v6318 = vadd.f32 %v6317, %v5559
        %v6319 = vadd.f32 %v6318, %v5569
        %v6320 = vadd.f32 %v6319, %v5579
        %v6321 = vadd.f32 %v6320, %v5589
        %v6322 = vadd.f32 %v6321, %v5599
        %v6323 = vadd.f32 %v6322, %v5609
        %v6324 = vadd.f32 %v6323, %v5619
        %v6325 = vadd.f32 %v6324, %v5629
        %v6326 = vadd.f32 %v6325, %v5639
        %v6327 = vadd.f32 %v6326, %v5649
        %v6328 = vadd.f32 %v6327, %v5659
        %v6329 = vadd.f32 %v6328, %v5669
        %v6330 = vadd.f32 %v6329, %v5679
        %v6331 = vadd.f32 %v6330, %v5689
        %v6332 = vadd.f32 %v6331, %v5699
        %v6333 = vadd.f32 %v6332, %v5709
        %v6334 = vadd.f32 %v6333, %v5719
        %v6335 = vadd.f32 %v6334, %v5729
        %v6336 = vadd.f32 %v6335, %v5739
        %v6337 = vadd.f32 %v6336, %v5749
        %v6338 = vadd.f32 %v6337, %v5759
        %v6339 = vadd.f32 %v6338, %v5769
        %v6340 = vadd.f32 %v6339, %v5779
        %v6341 = vadd.f32 %v6340, %v5789
        %v6342 = vadd.f32 %v6341, %v5799
        %v6343 = vadd.f32 %v6342, %v5809
        %v6344 = vadd.f32 %v6343, %v5819
        %v6345 = vadd.f32 %v6344, %v5829
        %v6346 = vadd.f32 %v6345, %v5839
        %v6347 = vrot.slane %v6346, 4
        %v6348 = vadd.f32 %v6346, %v6347
        %v6349 = vrot.slane %v6348, 2
        %v6350 = vadd.f32 %v6348, %v6349
        %v6351 = vrot.slane %v6350, 1
        %v6352 = vadd.f32 %v6350, %v6351
        %v6353 = vadd.f32 %v5530, %v5540
        %v6354 = vadd.f32 %v6353, %v5550
        %v6355 = vadd.f32 %v6354, %v5560
        %v6356 = vadd.f32 %v6355, %v5570
        %v6357 = vadd.f32 %v6356, %v5580
        %v6358 = vadd.f32 %v6357, %v5590
        %v6359 = vadd.f32 %v6358, %v5600
        %v6360 = vadd.f32 %v6359, %v5610
        %v6361 = vadd.f32 %v6360, %v5620
        %v6362 = vadd.f32 %v6361, %v5630
        %v6363 = vadd.f32 %v6362, %v5640
        %v6364 = vadd.f32 %v6363, %v5650
        %v6365 = vadd.f32 %v6364, %v5660
        %v6366 = vadd.f32 %v6365, %v5670
        %v6367 = vadd.f32 %v6366, %v5680
        %v6368 = vadd.f32 %v6367, %v5690
        %v6369 = vadd.f32 %v6368, %v5700
        %v6370 = vadd.f32 %v6369, %v5710
        %v6371 = vadd.f32 %v6370, %v5720
        %v6372 = vadd.f32 %v6371, %v5730
        %v6373 = vadd.f32 %v6372, %v5740
        %v6374 = vadd.f32 %v6373, %v5750
        %v6375 = vadd.f32 %v6374, %v5760
        %v6376 = vadd.f32 %v6375, %v5770
        %v6377 = vadd.f32 %v6376, %v5780
        %v6378 = vadd.f32 %v6377, %v5790
        %v6379 = vadd.f32 %v6378, %v5800
        %v6380 = vadd.f32 %v6379, %v5810
        %v6381 = vadd.f32 %v6380, %v5820
        %v6382 = vadd.f32 %v6381, %v5830
        %v6383 = vadd.f32 %v6382, %v5840
        %v6384 = vrot.slane %v6383, 4
        %v6385 = vadd.f32 %v6383, %v6384
        %v6386 = vrot.slane %v6385, 2
        %v6387 = vadd.f32 %v6385, %v6386
        %v6388 = vrot.slane %v6387, 1
        %v6389 = vadd.f32 %v6387, %v6388
        %v6390 = vadd.f32 %v5531, %v5541
        %v6391 = vadd.f32 %v6390, %v5551
        %v6392 = vadd.f32 %v6391, %v5561
        %v6393 = vadd.f32 %v6392, %v5571
        %v6394 = vadd.f32 %v6393, %v5581
        %v6395 = vadd.f32 %v6394, %v5591
        %v6396 = vadd.f32 %v6395, %v5601
        %v6397 = vadd.f32 %v6396, %v5611
        %v6398 = vadd.f32 %v6397, %v5621
        %v6399 = vadd.f32 %v6398, %v5631
        %v6400 = vadd.f32 %v6399, %v5641
        %v6401 = vadd.f32 %v6400, %v5651
        %v6402 = vadd.f32 %v6401, %v5661
        %v6403 = vadd.f32 %v6402, %v5671
        %v6404 = vadd.f32 %v6403, %v5681
        %v6405 = vadd.f32 %v6404, %v5691
        %v6406 = vadd.f32 %v6405, %v5701
        %v6407 = vadd.f32 %v6406, %v5711
        %v6408 = vadd.f32 %v6407, %v5721
        %v6409 = vadd.f32 %v6408, %v5731
        %v6410 = vadd.f32 %v6409, %v5741
        %v6411 = vadd.f32 %v6410, %v5751
        %v6412 = vadd.f32 %v6411, %v5761
        %v6413 = vadd.f32 %v6412, %v5771
        %v6414 = vadd.f32 %v6413, %v5781
        %v6415 = vadd.f32 %v6414, %v5791
        %v6416 = vadd.f32 %v6415, %v5801
        %v6417 = vadd.f32 %v6416, %v5811
        %v6418 = vadd.f32 %v6417, %v5821
        %v6419 = vadd.f32 %v6418, %v5831
        %v6420 = vadd.f32 %v6419, %v5841
        %v6421 = vrot.slane %v6420, 4
        %v6422 = vadd.f32 %v6420, %v6421
        %v6423 = vrot.slane %v6422, 2
        %v6424 = vadd.f32 %v6422, %v6423
        %v6425 = vrot.slane %v6424, 1
        %v6426 = vadd.f32 %v6424, %v6425
        %v6427 = vadd.f32 %v5532, %v5542
        %v6428 = vadd.f32 %v6427, %v5552
        %v6429 = vadd.f32 %v6428, %v5562
        %v6430 = vadd.f32 %v6429, %v5572
        %v6431 = vadd.f32 %v6430, %v5582
        %v6432 = vadd.f32 %v6431, %v5592
        %v6433 = vadd.f32 %v6432, %v5602
        %v6434 = vadd.f32 %v6433, %v5612
        %v6435 = vadd.f32 %v6434, %v5622
        %v6436 = vadd.f32 %v6435, %v5632
        %v6437 = vadd.f32 %v6436, %v5642
        %v6438 = vadd.f32 %v6437, %v5652
        %v6439 = vadd.f32 %v6438, %v5662
        %v6440 = vadd.f32 %v6439, %v5672
        %v6441 = vadd.f32 %v6440, %v5682
        %v6442 = vadd.f32 %v6441, %v5692
        %v6443 = vadd.f32 %v6442, %v5702
        %v6444 = vadd.f32 %v6443, %v5712
        %v6445 = vadd.f32 %v6444, %v5722
        %v6446 = vadd.f32 %v6445, %v5732
        %v6447 = vadd.f32 %v6446, %v5742
        %v6448 = vadd.f32 %v6447, %v5752
        %v6449 = vadd.f32 %v6448, %v5762
        %v6450 = vadd.f32 %v6449, %v5772
        %v6451 = vadd.f32 %v6450, %v5782
        %v6452 = vadd.f32 %v6451, %v5792
        %v6453 = vadd.f32 %v6452, %v5802
        %v6454 = vadd.f32 %v6453, %v5812
        %v6455 = vadd.f32 %v6454, %v5822
        %v6456 = vadd.f32 %v6455, %v5832
        %v6457 = vadd.f32 %v6456, %v5842
        %v6458 = vrot.slane %v6457, 4
        %v6459 = vadd.f32 %v6457, %v6458
        %v6460 = vrot.slane %v6459, 2
        %v6461 = vadd.f32 %v6459, %v6460
        %v6462 = vrot.slane %v6461, 1
        %v6463 = vadd.f32 %v6461, %v6462
        %v6464 = vadd.f32 %v5533, %v5543
        %v6465 = vadd.f32 %v6464, %v5553
        %v6466 = vadd.f32 %v6465, %v5563
        %v6467 = vadd.f32 %v6466, %v5573
        %v6468 = vadd.f32 %v6467, %v5583
        %v6469 = vadd.f32 %v6468, %v5593
        %v6470 = vadd.f32 %v6469, %v5603
        %v6471 = vadd.f32 %v6470, %v5613
        %v6472 = vadd.f32 %v6471, %v5623
        %v6473 = vadd.f32 %v6472, %v5633
        %v6474 = vadd.f32 %v6473, %v5643
        %v6475 = vadd.f32 %v6474, %v5653
        %v6476 = vadd.f32 %v6475, %v5663
        %v6477 = vadd.f32 %v6476, %v5673
        %v6478 = vadd.f32 %v6477, %v5683
        %v6479 = vadd.f32 %v6478, %v5693
        %v6480 = vadd.f32 %v6479, %v5703
        %v6481 = vadd.f32 %v6480, %v5713
        %v6482 = vadd.f32 %v6481, %v5723
        %v6483 = vadd.f32 %v6482, %v5733
        %v6484 = vadd.f32 %v6483, %v5743
        %v6485 = vadd.f32 %v6484, %v5753
        %v6486 = vadd.f32 %v6485, %v5763
        %v6487 = vadd.f32 %v6486, %v5773
        %v6488 = vadd.f32 %v6487, %v5783
        %v6489 = vadd.f32 %v6488, %v5793
        %v6490 = vadd.f32 %v6489, %v5803
        %v6491 = vadd.f32 %v6490, %v5813
        %v6492 = vadd.f32 %v6491, %v5823
        %v6493 = vadd.f32 %v6492, %v5833
        %v6494 = vadd.f32 %v6493, %v5843
        %v6495 = vrot.slane %v6494, 4
        %v6496 = vadd.f32 %v6494, %v6495
        %v6497 = vrot.slane %v6496, 2
        %v6498 = vadd.f32 %v6496, %v6497
        %v6499 = vrot.slane %v6498, 1
        %v6500 = vadd.f32 %v6498, %v6499
        %v6501 = vadd.f32 %v5534, %v5544
        %v6502 = vadd.f32 %v6501, %v5554
        %v6503 = vadd.f32 %v6502, %v5564
        %v6504 = vadd.f32 %v6503, %v5574
        %v6505 = vadd.f32 %v6504, %v5584
        %v6506 = vadd.f32 %v6505, %v5594
        %v6507 = vadd.f32 %v6506, %v5604
        %v6508 = vadd.f32 %v6507, %v5614
        %v6509 = vadd.f32 %v6508, %v5624
        %v6510 = vadd.f32 %v6509, %v5634
        %v6511 = vadd.f32 %v6510, %v5644
        %v6512 = vadd.f32 %v6511, %v5654
        %v6513 = vadd.f32 %v6512, %v5664
        %v6514 = vadd.f32 %v6513, %v5674
        %v6515 = vadd.f32 %v6514, %v5684
        %v6516 = vadd.f32 %v6515, %v5694
        %v6517 = vadd.f32 %v6516, %v5704
        %v6518 = vadd.f32 %v6517, %v5714
        %v6519 = vadd.f32 %v6518, %v5724
        %v6520 = vadd.f32 %v6519, %v5734
        %v6521 = vadd.f32 %v6520, %v5744
        %v6522 = vadd.f32 %v6521, %v5754
        %v6523 = vadd.f32 %v6522, %v5764
        %v6524 = vadd.f32 %v6523, %v5774
        %v6525 = vadd.f32 %v6524, %v5784
        %v6526 = vadd.f32 %v6525, %v5794
        %v6527 = vadd.f32 %v6526, %v5804
        %v6528 = vadd.f32 %v6527, %v5814
        %v6529 = vadd.f32 %v6528, %v5824
        %v6530 = vadd.f32 %v6529, %v5834
        %v6531 = vadd.f32 %v6530, %v5844
        %v6532 = vrot.slane %v6531, 4
        %v6533 = vadd.f32 %v6531, %v6532
        %v6534 = vrot.slane %v6533, 2
        %v6535 = vadd.f32 %v6533, %v6534
        %v6536 = vrot.slane %v6535, 1
        %v6537 = vadd.f32 %v6535, %v6536
        %v6538 = vadd.f32 %v5845, %v5855
        %v6539 = vadd.f32 %v6538, %v5865
        %v6540 = vadd.f32 %v6539, %v5875
        %v6541 = vadd.f32 %v6540, %v5885
        %v6542 = vadd.f32 %v6541, %v5895
        %v6543 = vadd.f32 %v6542, %v5905
        %v6544 = vadd.f32 %v6543, %v5915
        %v6545 = vadd.f32 %v6544, %v5925
        %v6546 = vadd.f32 %v6545, %v5935
        %v6547 = vadd.f32 %v6546, %v5945
        %v6548 = vadd.f32 %v6547, %v5955
        %v6549 = vadd.f32 %v6548, %v5965
        %v6550 = vadd.f32 %v6549, %v5975
        %v6551 = vadd.f32 %v6550, %v5985
        %v6552 = vadd.f32 %v6551, %v5995
        %v6553 = vadd.f32 %v6552, %v6005
        %v6554 = vadd.f32 %v6553, %v6015
        %v6555 = vadd.f32 %v6554, %v6025
        %v6556 = vadd.f32 %v6555, %v6035
        %v6557 = vadd.f32 %v6556, %v6045
        %v6558 = vadd.f32 %v6557, %v6055
        %v6559 = vadd.f32 %v6558, %v6065
        %v6560 = vadd.f32 %v6559, %v6075
        %v6561 = vadd.f32 %v6560, %v6085
        %v6562 = vadd.f32 %v6561, %v6095
        %v6563 = vadd.f32 %v6562, %v6105
        %v6564 = vadd.f32 %v6563, %v6115
        %v6565 = vadd.f32 %v6564, %v6125
        %v6566 = vadd.f32 %v6565, %v6135
        %v6567 = vadd.f32 %v6566, %v6145
        %v6568 = vadd.f32 %v6567, %v6155
        %v6569 = vrot.slane %v6568, 4
        %v6570 = vadd.f32 %v6568, %v6569
        %v6571 = vrot.slane %v6570, 2
        %v6572 = vadd.f32 %v6570, %v6571
        %v6573 = vrot.slane %v6572, 1
        %v6574 = vadd.f32 %v6572, %v6573
        %v6575 = vadd.f32 %v5846, %v5856
        %v6576 = vadd.f32 %v6575, %v5866
        %v6577 = vadd.f32 %v6576, %v5876
        %v6578 = vadd.f32 %v6577, %v5886
        %v6579 = vadd.f32 %v6578, %v5896
        %v6580 = vadd.f32 %v6579, %v5906
        %v6581 = vadd.f32 %v6580, %v5916
        %v6582 = vadd.f32 %v6581, %v5926
        %v6583 = vadd.f32 %v6582, %v5936
        %v6584 = vadd.f32 %v6583, %v5946
        %v6585 = vadd.f32 %v6584, %v5956
        %v6586 = vadd.f32 %v6585, %v5966
        %v6587 = vadd.f32 %v6586, %v5976
        %v6588 = vadd.f32 %v6587, %v5986
        %v6589 = vadd.f32 %v6588, %v5996
        %v6590 = vadd.f32 %v6589, %v6006
        %v6591 = vadd.f32 %v6590, %v6016
        %v6592 = vadd.f32 %v6591, %v6026
        %v6593 = vadd.f32 %v6592, %v6036
        %v6594 = vadd.f32 %v6593, %v6046
        %v6595 = vadd.f32 %v6594, %v6056
        %v6596 = vadd.f32 %v6595, %v6066
        %v6597 = vadd.f32 %v6596, %v6076
        %v6598 = vadd.f32 %v6597, %v6086
        %v6599 = vadd.f32 %v6598, %v6096
        %v6600 = vadd.f32 %v6599, %v6106
        %v6601 = vadd.f32 %v6600, %v6116
        %v6602 = vadd.f32 %v6601, %v6126
        %v6603 = vadd.f32 %v6602, %v6136
        %v6604 = vadd.f32 %v6603, %v6146
        %v6605 = vadd.f32 %v6604, %v6156
        %v6606 = vrot.slane %v6605, 4
        %v6607 = vadd.f32 %v6605, %v6606
        %v6608 = vrot.slane %v6607, 2
        %v6609 = vadd.f32 %v6607, %v6608
        %v6610 = vrot.slane %v6609, 1
        %v6611 = vadd.f32 %v6609, %v6610
        %v6612 = vadd.f32 %v5847, %v5857
        %v6613 = vadd.f32 %v6612, %v5867
        %v6614 = vadd.f32 %v6613, %v5877
        %v6615 = vadd.f32 %v6614, %v5887
        %v6616 = vadd.f32 %v6615, %v5897
        %v6617 = vadd.f32 %v6616, %v5907
        %v6618 = vadd.f32 %v6617, %v5917
        %v6619 = vadd.f32 %v6618, %v5927
        %v6620 = vadd.f32 %v6619, %v5937
        %v6621 = vadd.f32 %v6620, %v5947
        %v6622 = vadd.f32 %v6621, %v5957
        %v6623 = vadd.f32 %v6622, %v5967
        %v6624 = vadd.f32 %v6623, %v5977
        %v6625 = vadd.f32 %v6624, %v5987
        %v6626 = vadd.f32 %v6625, %v5997
        %v6627 = vadd.f32 %v6626, %v6007
        %v6628 = vadd.f32 %v6627, %v6017
        %v6629 = vadd.f32 %v6628, %v6027
        %v6630 = vadd.f32 %v6629, %v6037
        %v6631 = vadd.f32 %v6630, %v6047
        %v6632 = vadd.f32 %v6631, %v6057
        %v6633 = vadd.f32 %v6632, %v6067
        %v6634 = vadd.f32 %v6633, %v6077
        %v6635 = vadd.f32 %v6634, %v6087
        %v6636 = vadd.f32 %v6635, %v6097
        %v6637 = vadd.f32 %v6636, %v6107
        %v6638 = vadd.f32 %v6637, %v6117
        %v6639 = vadd.f32 %v6638, %v6127
        %v6640 = vadd.f32 %v6639, %v6137
        %v6641 = vadd.f32 %v6640, %v6147
        %v6642 = vadd.f32 %v6641, %v6157
        %v6643 = vrot.slane %v6642, 4
        %v6644 = vadd.f32 %v6642, %v6643
        %v6645 = vrot.slane %v6644, 2
        %v6646 = vadd.f32 %v6644, %v6645
        %v6647 = vrot.slane %v6646, 1
        %v6648 = vadd.f32 %v6646, %v6647
        %v6649 = vadd.f32 %v5848, %v5858
        %v6650 = vadd.f32 %v6649, %v5868
        %v6651 = vadd.f32 %v6650, %v5878
        %v6652 = vadd.f32 %v6651, %v5888
        %v6653 = vadd.f32 %v6652, %v5898
        %v6654 = vadd.f32 %v6653, %v5908
        %v6655 = vadd.f32 %v6654, %v5918
        %v6656 = vadd.f32 %v6655, %v5928
        %v6657 = vadd.f32 %v6656, %v5938
        %v6658 = vadd.f32 %v6657, %v5948
        %v6659 = vadd.f32 %v6658, %v5958
        %v6660 = vadd.f32 %v6659, %v5968
        %v6661 = vadd.f32 %v6660, %v5978
        %v6662 = vadd.f32 %v6661, %v5988
        %v6663 = vadd.f32 %v6662, %v5998
        %v6664 = vadd.f32 %v6663, %v6008
        %v6665 = vadd.f32 %v6664, %v6018
        %v6666 = vadd.f32 %v6665, %v6028
        %v6667 = vadd.f32 %v6666, %v6038
        %v6668 = vadd.f32 %v6667, %v6048
        %v6669 = vadd.f32 %v6668, %v6058
        %v6670 = vadd.f32 %v6669, %v6068
        %v6671 = vadd.f32 %v6670, %v6078
        %v6672 = vadd.f32 %v6671, %v6088
        %v6673 = vadd.f32 %v6672, %v6098
        %v6674 = vadd.f32 %v6673, %v6108
        %v6675 = vadd.f32 %v6674, %v6118
        %v6676 = vadd.f32 %v6675, %v6128
        %v6677 = vadd.f32 %v6676, %v6138
        %v6678 = vadd.f32 %v6677, %v6148
        %v6679 = vadd.f32 %v6678, %v6158
        %v6680 = vrot.slane %v6679, 4
        %v6681 = vadd.f32 %v6679, %v6680
        %v6682 = vrot.slane %v6681, 2
        %v6683 = vadd.f32 %v6681, %v6682
        %v6684 = vrot.slane %v6683, 1
        %v6685 = vadd.f32 %v6683, %v6684
        %v6686 = vadd.f32 %v5849, %v5859
        %v6687 = vadd.f32 %v6686, %v5869
        %v6688 = vadd.f32 %v6687, %v5879
        %v6689 = vadd.f32 %v6688, %v5889
        %v6690 = vadd.f32 %v6689, %v5899
        %v6691 = vadd.f32 %v6690, %v5909
        %v6692 = vadd.f32 %v6691, %v5919
        %v6693 = vadd.f32 %v6692, %v5929
        %v6694 = vadd.f32 %v6693, %v5939
        %v6695 = vadd.f32 %v6694, %v5949
        %v6696 = vadd.f32 %v6695, %v5959
        %v6697 = vadd.f32 %v6696, %v5969
        %v6698 = vadd.f32 %v6697, %v5979
        %v6699 = vadd.f32 %v6698, %v5989
        %v6700 = vadd.f32 %v6699, %v5999
        %v6701 = vadd.f32 %v6700, %v6009
        %v6702 = vadd.f32 %v6701, %v6019
        %v6703 = vadd.f32 %v6702, %v6029
        %v6704 = vadd.f32 %v6703, %v6039
        %v6705 = vadd.f32 %v6704, %v6049
        %v6706 = vadd.f32 %v6705, %v6059
        %v6707 = vadd.f32 %v6706, %v6069
        %v6708 = vadd.f32 %v6707, %v6079
        %v6709 = vadd.f32 %v6708, %v6089
        %v6710 = vadd.f32 %v6709, %v6099
        %v6711 = vadd.f32 %v6710, %v6109
        %v6712 = vadd.f32 %v6711, %v6119
        %v6713 = vadd.f32 %v6712, %v6129
        %v6714 = vadd.f32 %v6713, %v6139
        %v6715 = vadd.f32 %v6714, %v6149
        %v6716 = vadd.f32 %v6715, %v6159
        %v6717 = vrot.slane %v6716, 4
        %v6718 = vadd.f32 %v6716, %v6717
        %v6719 = vrot.slane %v6718, 2
        %v6720 = vadd.f32 %v6718, %v6719
        %v6721 = vrot.slane %v6720, 1
        %v6722 = vadd.f32 %v6720, %v6721
        %v6723 = vadd.f32 %v5850, %v5860
        %v6724 = vadd.f32 %v6723, %v5870
        %v6725 = vadd.f32 %v6724, %v5880
        %v6726 = vadd.f32 %v6725, %v5890
        %v6727 = vadd.f32 %v6726, %v5900
        %v6728 = vadd.f32 %v6727, %v5910
        %v6729 = vadd.f32 %v6728, %v5920
        %v6730 = vadd.f32 %v6729, %v5930
        %v6731 = vadd.f32 %v6730, %v5940
        %v6732 = vadd.f32 %v6731, %v5950
        %v6733 = vadd.f32 %v6732, %v5960
        %v6734 = vadd.f32 %v6733, %v5970
        %v6735 = vadd.f32 %v6734, %v5980
        %v6736 = vadd.f32 %v6735, %v5990
        %v6737 = vadd.f32 %v6736, %v6000
        %v6738 = vadd.f32 %v6737, %v6010
        %v6739 = vadd.f32 %v6738, %v6020
        %v6740 = vadd.f32 %v6739, %v6030
        %v6741 = vadd.f32 %v6740, %v6040
        %v6742 = vadd.f32 %v6741, %v6050
        %v6743 = vadd.f32 %v6742, %v6060
        %v6744 = vadd.f32 %v6743, %v6070
        %v6745 = vadd.f32 %v6744, %v6080
        %v6746 = vadd.f32 %v6745, %v6090
        %v6747 = vadd.f32 %v6746, %v6100
        %v6748 = vadd.f32 %v6747, %v6110
        %v6749 = vadd.f32 %v6748, %v6120
        %v6750 = vadd.f32 %v6749, %v6130
        %v6751 = vadd.f32 %v6750, %v6140
        %v6752 = vadd.f32 %v6751, %v6150
        %v6753 = vadd.f32 %v6752, %v6160
        %v6754 = vrot.slane %v6753, 4
        %v6755 = vadd.f32 %v6753, %v6754
        %v6756 = vrot.slane %v6755, 2
        %v6757 = vadd.f32 %v6755, %v6756
        %v6758 = vrot.slane %v6757, 1
        %v6759 = vadd.f32 %v6757, %v6758
        %v6760 = vadd.f32 %v5851, %v5861
        %v6761 = vadd.f32 %v6760, %v5871
        %v6762 = vadd.f32 %v6761, %v5881
        %v6763 = vadd.f32 %v6762, %v5891
        %v6764 = vadd.f32 %v6763, %v5901
        %v6765 = vadd.f32 %v6764, %v5911
        %v6766 = vadd.f32 %v6765, %v5921
        %v6767 = vadd.f32 %v6766, %v5931
        %v6768 = vadd.f32 %v6767, %v5941
        %v6769 = vadd.f32 %v6768, %v5951
        %v6770 = vadd.f32 %v6769, %v5961
        %v6771 = vadd.f32 %v6770, %v5971
        %v6772 = vadd.f32 %v6771, %v5981
        %v6773 = vadd.f32 %v6772, %v5991
        %v6774 = vadd.f32 %v6773, %v6001
        %v6775 = vadd.f32 %v6774, %v6011
        %v6776 = vadd.f32 %v6775, %v6021
        %v6777 = vadd.f32 %v6776, %v6031
        %v6778 = vadd.f32 %v6777, %v6041
        %v6779 = vadd.f32 %v6778, %v6051
        %v6780 = vadd.f32 %v6779, %v6061
        %v6781 = vadd.f32 %v6780, %v6071
        %v6782 = vadd.f32 %v6781, %v6081
        %v6783 = vadd.f32 %v6782, %v6091
        %v6784 = vadd.f32 %v6783, %v6101
        %v6785 = vadd.f32 %v6784, %v6111
        %v6786 = vadd.f32 %v6785, %v6121
        %v6787 = vadd.f32 %v6786, %v6131
        %v6788 = vadd.f32 %v6787, %v6141
        %v6789 = vadd.f32 %v6788, %v6151
        %v6790 = vadd.f32 %v6789, %v6161
        %v6791 = vrot.slane %v6790, 4
        %v6792 = vadd.f32 %v6790, %v6791
        %v6793 = vrot.slane %v6792, 2
        %v6794 = vadd.f32 %v6792, %v6793
        %v6795 = vrot.slane %v6794, 1
        %v6796 = vadd.f32 %v6794, %v6795
        %v6797 = vadd.f32 %v5852, %v5862
        %v6798 = vadd.f32 %v6797, %v5872
        %v6799 = vadd.f32 %v6798, %v5882
        %v6800 = vadd.f32 %v6799, %v5892
        %v6801 = vadd.f32 %v6800, %v5902
        %v6802 = vadd.f32 %v6801, %v5912
        %v6803 = vadd.f32 %v6802, %v5922
        %v6804 = vadd.f32 %v6803, %v5932
        %v6805 = vadd.f32 %v6804, %v5942
        %v6806 = vadd.f32 %v6805, %v5952
        %v6807 = vadd.f32 %v6806, %v5962
        %v6808 = vadd.f32 %v6807, %v5972
        %v6809 = vadd.f32 %v6808, %v5982
        %v6810 = vadd.f32 %v6809, %v5992
        %v6811 = vadd.f32 %v6810, %v6002
        %v6812 = vadd.f32 %v6811, %v6012
        %v6813 = vadd.f32 %v6812, %v6022
        %v6814 = vadd.f32 %v6813, %v6032
        %v6815 = vadd.f32 %v6814, %v6042
        %v6816 = vadd.f32 %v6815, %v6052
        %v6817 = vadd.f32 %v6816, %v6062
        %v6818 = vadd.f32 %v6817, %v6072
        %v6819 = vadd.f32 %v6818, %v6082
        %v6820 = vadd.f32 %v6819, %v6092
        %v6821 = vadd.f32 %v6820, %v6102
        %v6822 = vadd.f32 %v6821, %v6112
        %v6823 = vadd.f32 %v6822, %v6122
        %v6824 = vadd.f32 %v6823, %v6132
        %v6825 = vadd.f32 %v6824, %v6142
        %v6826 = vadd.f32 %v6825, %v6152
        %v6827 = vadd.f32 %v6826, %v6162
        %v6828 = vrot.slane %v6827, 4
        %v6829 = vadd.f32 %v6827, %v6828
        %v6830 = vrot.slane %v6829, 2
        %v6831 = vadd.f32 %v6829, %v6830
        %v6832 = vrot.slane %v6831, 1
        %v6833 = vadd.f32 %v6831, %v6832
        %v6834 = vadd.f32 %v5853, %v5863
        %v6835 = vadd.f32 %v6834, %v5873
        %v6836 = vadd.f32 %v6835, %v5883
        %v6837 = vadd.f32 %v6836, %v5893
        %v6838 = vadd.f32 %v6837, %v5903
        %v6839 = vadd.f32 %v6838, %v5913
        %v6840 = vadd.f32 %v6839, %v5923
        %v6841 = vadd.f32 %v6840, %v5933
        %v6842 = vadd.f32 %v6841, %v5943
        %v6843 = vadd.f32 %v6842, %v5953
        %v6844 = vadd.f32 %v6843, %v5963
        %v6845 = vadd.f32 %v6844, %v5973
        %v6846 = vadd.f32 %v6845, %v5983
        %v6847 = vadd.f32 %v6846, %v5993
        %v6848 = vadd.f32 %v6847, %v6003
        %v6849 = vadd.f32 %v6848, %v6013
        %v6850 = vadd.f32 %v6849, %v6023
        %v6851 = vadd.f32 %v6850, %v6033
        %v6852 = vadd.f32 %v6851, %v6043
        %v6853 = vadd.f32 %v6852, %v6053
        %v6854 = vadd.f32 %v6853, %v6063
        %v6855 = vadd.f32 %v6854, %v6073
        %v6856 = vadd.f32 %v6855, %v6083
        %v6857 = vadd.f32 %v6856, %v6093
        %v6858 = vadd.f32 %v6857, %v6103
        %v6859 = vadd.f32 %v6858, %v6113
        %v6860 = vadd.f32 %v6859, %v6123
        %v6861 = vadd.f32 %v6860, %v6133
        %v6862 = vadd.f32 %v6861, %v6143
        %v6863 = vadd.f32 %v6862, %v6153
        %v6864 = vadd.f32 %v6863, %v6163
        %v6865 = vrot.slane %v6864, 4
        %v6866 = vadd.f32 %v6864, %v6865
        %v6867 = vrot.slane %v6866, 2
        %v6868 = vadd.f32 %v6866, %v6867
        %v6869 = vrot.slane %v6868, 1
        %v6870 = vadd.f32 %v6868, %v6869
        %v6871 = vadd.f32 %v5854, %v5864
        %v6872 = vadd.f32 %v6871, %v5874
        %v6873 = vadd.f32 %v6872, %v5884
        %v6874 = vadd.f32 %v6873, %v5894
        %v6875 = vadd.f32 %v6874, %v5904
        %v6876 = vadd.f32 %v6875, %v5914
        %v6877 = vadd.f32 %v6876, %v5924
        %v6878 = vadd.f32 %v6877, %v5934
        %v6879 = vadd.f32 %v6878, %v5944
        %v6880 = vadd.f32 %v6879, %v5954
        %v6881 = vadd.f32 %v6880, %v5964
        %v6882 = vadd.f32 %v6881, %v5974
        %v6883 = vadd.f32 %v6882, %v5984
        %v6884 = vadd.f32 %v6883, %v5994
        %v6885 = vadd.f32 %v6884, %v6004
        %v6886 = vadd.f32 %v6885, %v6014
        %v6887 = vadd.f32 %v6886, %v6024
        %v6888 = vadd.f32 %v6887, %v6034
        %v6889 = vadd.f32 %v6888, %v6044
        %v6890 = vadd.f32 %v6889, %v6054
        %v6891 = vadd.f32 %v6890, %v6064
        %v6892 = vadd.f32 %v6891, %v6074
        %v6893 = vadd.f32 %v6892, %v6084
        %v6894 = vadd.f32 %v6893, %v6094
        %v6895 = vadd.f32 %v6894, %v6104
        %v6896 = vadd.f32 %v6895, %v6114
        %v6897 = vadd.f32 %v6896, %v6124
        %v6898 = vadd.f32 %v6897, %v6134
        %v6899 = vadd.f32 %v6898, %v6144
        %v6900 = vadd.f32 %v6899, %v6154
        %v6901 = vadd.f32 %v6900, %v6164
        %v6902 = vrot.slane %v6901, 4
        %v6903 = vadd.f32 %v6901, %v6902
        %v6904 = vrot.slane %v6903, 2
        %v6905 = vadd.f32 %v6903, %v6904
        %v6906 = vrot.slane %v6905, 1
        %v6907 = vadd.f32 %v6905, %v6906
        %v6928 = vcombine.low %v6204, %v6241
        %v6929 = vcombine.low %v6278, %v6315
        %v6931 = vunpack.c.l.s4 1983009808
        %v6932 = vunpack.c.0.s8 %v6931
        %v6933 = vlaneseq
        %v6934 = vshrl.u32 %v6933, 7
        %v6935 = vsub.s32 %v6932, %v6934
        %v6936 = vrot.slane %v6928, %v6935
        %v6938 = vunpack.c.l.s4 1983009808
        %v6939 = vunpack.c.0.s8 %v6938
        %v6940 = vlaneseq
        %v6941 = vshrl.u32 %v6940, 7
        %v6942 = vsub.s32 %v6939, %v6941
        %v6943 = vrot.slane %v6929, %v6942
        %v6944 = vcombine.low %v6936, %v6943
        %v6945 = vcombine.low %v6352, %v6389
        %v6946 = vcombine.low %v6426, %v6463
        %v6948 = vunpack.c.l.s4 1983009808
        %v6949 = vunpack.c.0.s8 %v6948
        %v6950 = vlaneseq
        %v6951 = vshrl.u32 %v6950, 7
        %v6952 = vsub.s32 %v6949, %v6951
        %v6953 = vrot.slane %v6945, %v6952
        %v6955 = vunpack.c.l.s4 1983009808
        %v6956 = vunpack.c.0.s8 %v6955
        %v6957 = vlaneseq
        %v6958 = vshrl.u32 %v6957, 7
        %v6959 = vsub.s32 %v6956, %v6958
        %v6960 = vrot.slane %v6946, %v6959
        %v6961 = vcombine.low %v6953, %v6960
        %v6962 = vcombine.low %v6500, %v6537
        %v6964 = vunpack.c.l.s4 1983009808
        %v6965 = vunpack.c.0.s8 %v6964
        %v6966 = vlaneseq
        %v6967 = vshrl.u32 %v6966, 7
        %v6968 = vsub.s32 %v6965, %v6967
        %v6969 = vrot.slane %v6962, %v6968
        %v6970 = vcombine.low %v6574, %v6611
        %v6971 = vcombine.low %v6648, %v6685
        %v6973 = vunpack.c.l.s4 1983009808
        %v6974 = vunpack.c.0.s8 %v6973
        %v6975 = vlaneseq
        %v6976 = vshrl.u32 %v6975, 7
        %v6977 = vsub.s32 %v6974, %v6976
        %v6978 = vrot.slane %v6970, %v6977
        %v6980 = vunpack.c.l.s4 1983009808
        %v6981 = vunpack.c.0.s8 %v6980
        %v6982 = vlaneseq
        %v6983 = vshrl.u32 %v6982, 7
        %v6984 = vsub.s32 %v6981, %v6983
        %v6985 = vrot.slane %v6971, %v6984
        %v6986 = vcombine.low %v6978, %v6985
        %v6987 = vcombine.low %v6722, %v6759
        %v6988 = vcombine.low %v6796, %v6833
        %v6990 = vunpack.c.l.s4 1983009808
        %v6991 = vunpack.c.0.s8 %v6990
        %v6992 = vlaneseq
        %v6993 = vshrl.u32 %v6992, 7
        %v6994 = vsub.s32 %v6991, %v6993
        %v6995 = vrot.slane %v6987, %v6994
        %v6997 = vunpack.c.l.s4 1983009808
        %v6998 = vunpack.c.0.s8 %v6997
        %v6999 = vlaneseq
        %v7000 = vshrl.u32 %v6999, 7
        %v7001 = vsub.s32 %v6998, %v7000
        %v7002 = vrot.slane %v6988, %v7001
        %v7003 = vcombine.low %v6995, %v7002
        %v7004 = vcombine.low %v6870, %v6907
        %v7006 = vunpack.c.l.s4 1983009808
        %v7007 = vunpack.c.0.s8 %v7006
        %v7008 = vlaneseq
        %v7009 = vshrl.u32 %v7008, 7
        %v7010 = vsub.s32 %v7007, %v7009
        %v7011 = vrot.slane %v7004, %v7010
        %vm7012 = vcmask 1044484
        %v7013 = vsel %vm7012, %v6944, %v6944
        %vm7014 = vcmask 1046534
        %v7015 = vsel %vm7014, %v6944, %v7013
        %v7016 = vrot.slane %v6986, 7
        %vm7017 = vcmask 1041409
        %v7018 = vsel %vm7017, %v7016, %v7015
        %vm7019 = vcmask 1043459
        %v7020 = vsel %vm7019, %v7016, %v7018
        %vm7021 = vcmask 1045509
        %v7022 = vsel %vm7021, %v7016, %v7020
        %vm7023 = vcmask 1047559
        %v7024 = vsel %vm7023, %v7016, %v7022
        %v7025 = vsel %vm7012, %v6961, %v6961
        %v7026 = vsel %vm7014, %v6961, %v7025
        %v7027 = vrot.slane %v7003, 7
        %v7028 = vsel %vm7017, %v7027, %v7026
        %v7029 = vsel %vm7019, %v7027, %v7028
        %v7030 = vsel %vm7021, %v7027, %v7029
        %v7031 = vsel %vm7023, %v7027, %v7030
        %v7032 = vsel %vm7012, %v6969, %v6969
        %v7033 = vsel %vm7014, %v6969, %v7032
        %v7034 = vrot.slane %v7011, 7
        %v7035 = vsel %vm7017, %v7034, %v7033
        %v7036 = vsel %vm7019, %v7034, %v7035
        %v7037 = vsel %vm7021, %v7034, %v7036
        %v7038 = vsel %vm7023, %v7034, %v7037
        %v7042 = vadd.f32 %v6165, %v7024
        %v7043 = vadd.f32 %v6166, %v7031
        %v7044 = vadd.f32 %v6167, %v7038
        %7045 = vst [vmem:[#allocation2] sm:$0xff] %v7042
        %7046 = vst [vmem:[#allocation2 + $0x8] sm:$0xff] %v7043
        %7047 = vst [vmem:[#allocation2 + $0x10] sm:$0xf] %v7044
        // Predicated region
        $region60: #{efficientnet_b7_forward.4} parent=50 // pred_check
          %p7048 = pneg %p403
        $region61: #{efficientnet_b7_forward.4} parent=50 // pred_check_branch
          %7050 = sbr.rel (%p7048) target = $region63
        $region62: #{efficientnet_b7_forward.4} parent=50 // pred_region
          %v7051 = vld [vmem:[#allocation2] sm:$0xff]
          %v7052 = vld [vmem:[#allocation2 + $0x8] sm:$0xff]
          %v7053 = vld [vmem:[#allocation2 + $0x10] sm:$0xf]
          %v7054 = vmul.f32 %v7051, 0.00390625
          %v7055 = vmul.f32 %v7052, 0.00390625
          %v7056 = vmul.f32 %v7053, 0.00390625
          %v7060 = vcombine.high %v7054, %v7054
          %v7062 = vunpack.c.l.s4 1983009808
          %v7063 = vunpack.c.0.s8 %v7062
          %v7064 = vlaneseq
          %v7065 = vshrl.u32 %v7064, 7
          %v7066 = vsub.s32 %v7063, %v7065
          %v7067 = vrot.slane %v7054, %v7066
          %v7069 = vunpack.c.l.s4 1983009808
          %v7070 = vunpack.c.0.s8 %v7069
          %v7071 = vlaneseq
          %v7072 = vshrl.u32 %v7071, 7
          %v7073 = vsub.s32 %v7070, %v7072
          %v7074 = vrot.slane %v7060, %v7073
          %v7075 = vcombine.high %v7067, %v7067
          %v7076 = vcombine.high %v7074, %v7074
          %v7077 = vcombine.high %v7055, %v7055
          %v7079 = vunpack.c.l.s4 1983009808
          %v7080 = vunpack.c.0.s8 %v7079
          %v7081 = vlaneseq
          %v7082 = vshrl.u32 %v7081, 7
          %v7083 = vsub.s32 %v7080, %v7082
          %v7084 = vrot.slane %v7055, %v7083
          %v7086 = vunpack.c.l.s4 1983009808
          %v7087 = vunpack.c.0.s8 %v7086
          %v7088 = vlaneseq
          %v7089 = vshrl.u32 %v7088, 7
          %v7090 = vsub.s32 %v7087, %v7089
          %v7091 = vrot.slane %v7077, %v7090
          %v7092 = vcombine.high %v7084, %v7084
          %v7093 = vcombine.high %v7091, %v7091
          %v7095 = vunpack.c.l.s4 1983009808
          %v7096 = vunpack.c.0.s8 %v7095
          %v7097 = vlaneseq
          %v7098 = vshrl.u32 %v7097, 7
          %v7099 = vsub.s32 %v7096, %v7098
          %v7100 = vrot.slane %v7056, %v7099
          %v7101 = vcombine.high %v7100, %v7100
          %v7112 = vpack.c.bf16 %v7067, %v7067
          %v7113 = vpack.c.bf16 %v7075, %v7075
          %v7114 = vpack.c.bf16 %v7074, %v7074
          %v7115 = vpack.c.bf16 %v7076, %v7076
          %v7116 = vpack.c.bf16 %v7084, %v7084
          %v7117 = vpack.c.bf16 %v7092, %v7092
          %v7118 = vpack.c.bf16 %v7091, %v7091
          %v7119 = vpack.c.bf16 %v7093, %v7093
          %v7120 = vpack.c.bf16 %v7100, %v7100
          %v7121 = vpack.c.bf16 %v7101, %v7101
          %v7132 = vcombine.low %v7112, %v7113
          %v7133 = vcombine.low %v7114, %v7115
          %v7134 = vcombine.low %v7116, %v7117
          %v7135 = vcombine.low %v7118, %v7119
          %v7137 = vunpack.c.l.s4 1966171168
          %v7138 = vunpack.c.0.s8 %v7137
          %v7139 = vlaneseq
          %v7140 = vshrl.u32 %v7139, 7
          %v7141 = vsub.s32 %v7138, %v7140
          %v7142 = vrot.slane %v7132, %v7141
          %v7144 = vunpack.c.l.s4 1966171168
          %v7145 = vunpack.c.0.s8 %v7144
          %v7146 = vlaneseq
          %v7147 = vshrl.u32 %v7146, 7
          %v7148 = vsub.s32 %v7145, %v7147
          %v7149 = vrot.slane %v7133, %v7148
          %v7151 = vunpack.c.l.s4 1966171168
          %v7152 = vunpack.c.0.s8 %v7151
          %v7153 = vlaneseq
          %v7154 = vshrl.u32 %v7153, 7
          %v7155 = vsub.s32 %v7152, %v7154
          %v7156 = vrot.slane %v7134, %v7155
          %v7158 = vunpack.c.l.s4 1966171168
          %v7159 = vunpack.c.0.s8 %v7158
          %v7160 = vlaneseq
          %v7161 = vshrl.u32 %v7160, 7
          %v7162 = vsub.s32 %v7159, %v7161
          %v7163 = vrot.slane %v7135, %v7162
          %v7164 = vcombine.low %v7142, %v7149
          %v7165 = vcombine.low %v7156, %v7163
          %v7167 = vunpack.c.l.s4 1966171168
          %v7168 = vunpack.c.0.s8 %v7167
          %v7169 = vlaneseq
          %v7170 = vshrl.u32 %v7169, 7
          %v7171 = vsub.s32 %v7168, %v7170
          %v7172 = vrot.slane %v7164, %v7171
          %v7174 = vunpack.c.l.s4 1966171168
          %v7175 = vunpack.c.0.s8 %v7174
          %v7176 = vlaneseq
          %v7177 = vshrl.u32 %v7176, 7
          %v7178 = vsub.s32 %v7175, %v7177
          %v7179 = vrot.slane %v7165, %v7178
          %v7180 = vcombine.low %v7172, %v7179
          %v7181 = vcombine.low %v7120, %v7121
          %v7183 = vunpack.c.l.s4 1966171168
          %v7184 = vunpack.c.0.s8 %v7183
          %v7185 = vlaneseq
          %v7186 = vshrl.u32 %v7185, 7
          %v7187 = vsub.s32 %v7184, %v7186
          %v7188 = vrot.slane %v7181, %v7187
          %v7190 = vunpack.c.l.s4 1966171168
          %v7191 = vunpack.c.0.s8 %v7190
          %v7192 = vlaneseq
          %v7193 = vshrl.u32 %v7192, 7
          %v7194 = vsub.s32 %v7191, %v7193
          %v7195 = vrot.slane %v7188, %v7194
          %7198 = vst [vmem:[%s400] sm:$0xff] %v7180
          %7199 = vst [vmem:[%s400 + $0x8] sm:$0x3] %v7195
        $region63: #{efficientnet_b7_forward.4} parent=50 // pred_fallthru
          _
        %s7200 = smul.u32 10, %s18
        %p7201 = scmp.lt.s32.totalorder %s7200, 19
        %s7202 = scalar_select %p7201, %s7200, 19
        %s7203 = scalar_lea.vmem %s3, %s7202
        // Predicated region
        $region64: #{efficientnet_b7_forward.4} parent=50 // pred_check
          %p7204 = pneg %p122
        $region65: #{efficientnet_b7_forward.4} parent=50 // pred_check_branch
          %7206 = sbr.rel (%p7204) target = $region67
        $region66: #{efficientnet_b7_forward.4} parent=50 // pred_region
          %s7207 = smul.u32 10, %s18
        $region67: #{efficientnet_b7_forward.4} parent=50 // pred_fallthru
          _
      $region51: #{efficientnet_b7_forward.4} parent=5 // pred_fallthru
        _
      %p7208 = scmp.le.s32.totalorder 2, %s9
      // Predicated region
      $region68: #{efficientnet_b7_forward.4} parent=5 // pred_check
        %p7209 = pneg %p7208
      $region69: #{efficientnet_b7_forward.4} parent=5 // pred_check_branch
        %7211 = sbr.rel (%p7209) target = $region71
      $region70: #{efficientnet_b7_forward.4} parent=5 // pred_region
        %s7212 = ssub.s32 %s9, 2
        // Predicated region
        $region72: #{efficientnet_b7_forward.4} parent=70 // pred_check
          %p7213 = pneg %p128
        $region73: #{efficientnet_b7_forward.4} parent=70 // pred_check_branch
          %7215 = sbr.rel (%p7213) target = $region75
        $region74: #{efficientnet_b7_forward.4} parent=70 // pred_region
          %s7216 = smul.u32 10, %s20
          %p7217 = scmp.lt.s32.totalorder %s7216, 19
          %s7218 = scalar_select %p7217, %s7216, 19
          %s7219 = scalar_lea.vmem %s3, %s7218
        $region75: #{efficientnet_b7_forward.4} parent=70 // pred_fallthru
          _
      $region71: #{efficientnet_b7_forward.4} parent=5 // pred_fallthru
        _
    $region6: #{efficientnet_b7_forward.4} parent=1 // loop_footer
      %s13 = sadd.s32 1, %s9
    $region7: #{efficientnet_b7_forward.4} parent=1 // loop_footer_branch
      %8 = sbr.rel target = $region3
    $region8: #{efficientnet_b7_forward.4} parent=1 // loop_exit
      _

</llo_original>
